<compile_context>
chip_gen: v7x
topology: tpu7x:2x2x1
jax: 0.10.0
libtpu: 0.0.40
codegen_flags: <defaults>
</compile_context>

<pallas_src>
import jax
import jax.numpy as jnp
from jax.experimental import pallas as pl
from jax.experimental.pallas import tpu as pltpu

N_FILTERS = 100
SCALES = (1, 2, 3, 6, 10)
N_SCALES = len(SCALES)
HIDDEN = 4096            # hard-coded 4096 in the PyTorch module
FEAT_DIM = 512
TILE_H = 1024            # hidden-dim tile streamed per grid step (v7x-safe, fine on v5e/v6e)


# ---------------------------------------------------------------------------
# Fused kernel: 5x ScaleBlock -> (cached in VMEM) -> fc1/fc2 streamed over HIDDEN
# ---------------------------------------------------------------------------
def fused_kernel(*refs):
    # refs layout:
    #   [x_s (B*W,k), pool_s (B,B*W), wconv_s (k,F), bconv_s (1,F)] * N_SCALES,
    #   w1_3d (N_SCALES,F,TILE_H), b1 (1,TILE_H), w2 (TILE_H,FEAT), b2 (1,FEAT),
    #   w3 (FEAT,bit), b3 (1,bit),
    #   hash_out (B,bit), feat_out (B,FEAT),
    #   ms_sc (N_SCALES,B,F), acc_sc (B,FEAT)
    scale_refs = refs[:4 * N_SCALES]
    (w1_ref, b1_ref, w2_ref, b2_ref, w3_ref, b3_ref,
     hash_ref, feat_ref, ms_sc, acc_sc) = refs[4 * N_SCALES:]

    h = pl.program_id(0)

    @pl.when(h == 0)
    def _():
        # ScaleBlock: conv (stride == kernel) as one matmul, ReLU, then mean over the
        # post-conv width via a pooling matmul.  Results cached in VMEM scratch.
        for i in range(N_SCALES):
            x_r, p_r, wc_r, bc_r = scale_refs[4 * i:4 * i + 4]
            z = jnp.dot(x_r[...], wc_r[...], preferred_element_type=jnp.float32)
            z = jnp.maximum(z + bc_r[...], 0.0)                              # (B*W, F)
            ms_sc[i] = jnp.dot(p_r[...], z, preferred_element_type=jnp.float32)  # (B, F)
        acc_sc[...] = jnp.zeros_like(acc_sc)

    # fc1 tile: h1 = ReLU(ms @ W1[:, tile] + b1[tile]); contraction split per scale chunk
    # (exact: ReLU is elementwise on a fully-contracted tile).
    pre = jnp.dot(ms_sc[0], w1_ref[0], preferred_element_type=jnp.float32)
    for s in range(1, N_SCALES):
        pre = pre + jnp.dot(ms_sc[s], w1_ref[s], preferred_element_type=jnp.float32)
    h1 = jnp.maximum(pre + b1_ref[...], 0.0)                                  # (B, TILE_H)

    # fc2 partial sum, accumulated across hidden tiles in VMEM.
    acc_sc[...] += jnp.dot(h1, w2_ref[...], preferred_element_type=jnp.float32)

    @pl.when(h == pl.num_programs(0) - 1)
    def _():
        feat = jnp.maximum(acc_sc[...] + b2_ref[...], 0.0)
        feat_ref[...] = feat
        hash_ref[...] = jnp.tanh(
            jnp.dot(feat, w3_ref[...], preferred_element_type=jnp.float32) + b3_ref[...])


def multi_scale_txt_net(x, params, bit, feat_dim=FEAT_DIM, tile_h=TILE_H):
    B, T = x.shape
    assert HIDDEN % tile_h == 0
    n_h = HIDDEN // tile_h

    inputs = []
    in_specs = []
    for s in SCALES:
        k = 5 * s
        W = T // k                              # PyTorch floor / valid-conv semantics
        xw = x[:, : W * k].reshape(B * W, k)    # non-overlapping windows (stride == kernel)
        # (B, B*W) pooling matrix: row b averages that batch row's W windows.
        pool = jnp.kron(jnp.eye(B, dtype=jnp.float32),
                        jnp.full((1, W), 1.0 / W, dtype=jnp.float32))
        w, b = params[f"scale_{s}"]
        inputs += [xw, pool, w, b]
        in_specs += [
            pl.BlockSpec((B * W, k), lambda h: (0, 0)),
            pl.BlockSpec((B, B * W), lambda h: (0, 0)),
            pl.BlockSpec((k, N_FILTERS), lambda h: (0, 0)),
            pl.BlockSpec((1, N_FILTERS), lambda h: (0, 0)),
        ]

    w1, b1 = params["fc1"]                      # (500, HIDDEN), (1, HIDDEN)
    w2, b2 = params["fc2"]                      # (HIDDEN, 512), (1, 512)
    w3, b3 = params["hash"]                     # (512, bit),   (1, bit)
    w1_3d = w1.reshape(N_SCALES, N_FILTERS, HIDDEN)   # chunk per scale (rows s*100:(s+1)*100)
    inputs += [w1_3d, b1, w2, b2, w3, b3]
    in_specs += [
        pl.BlockSpec((N_SCALES, N_FILTERS, tile_h), lambda h: (0, 0, h)),
        pl.BlockSpec((1, tile_h), lambda h: (0, h)),
        pl.BlockSpec((tile_h, feat_dim), lambda h: (h, 0)),
        pl.BlockSpec((1, feat_dim), lambda h: (0, 0)),
        pl.BlockSpec((feat_dim, bit), lambda h: (0, 0)),
        pl.BlockSpec((1, bit), lambda h: (0, 0)),
    ]

    out_shape = (jax.ShapeDtypeStruct((B, bit), jnp.float32),
                 jax.ShapeDtypeStruct((B, feat_dim), jnp.float32))
    out_specs = (pl.BlockSpec((B, bit), lambda h: (0, 0)),
                 pl.BlockSpec((B, feat_dim), lambda h: (0, 0)))

    grid_spec = pltpu.PrefetchScalarGridSpec(
        num_scalar_prefetch=0,
        grid=(n_h,),
        in_specs=in_specs,
        out_specs=out_specs,
        scratch_shapes=[pltpu.VMEM((N_SCALES, B, N_FILTERS), jnp.float32),  # ms cache
                        pltpu.VMEM((B, feat_dim), jnp.float32)])            # fc2 accumulator

    hash_out, feature = pl.pallas_call(
        fused_kernel,
        out_shape=out_shape,
        grid_spec=grid_spec,
        compiler_params=pltpu.CompilerParams(
            dimension_semantics=("arbitrary",),      # reduction over hidden tiles
            vmem_limit_bytes=32 * 1024 * 1024),      # v7x-friendly (64 MiB physical)
    )(*inputs)
    # TODO(synk): for B == 1 PyTorch's .squeeze() would drop the batch dim; we keep it.
    return hash_out, feature


# ---------------------------------------------------------------------------
# Deterministic parameter init (nn.init.normal_(std=0.01) on all weights & biases;
# conv/linear weights stored transposed as (in, out)).
# ---------------------------------------------------------------------------
def init_params(key, bit, feat_dim=FEAT_DIM):
    std = 0.01
    n_in = N_SCALES * N_FILTERS
    keys = iter(jax.random.split(key, 2 * N_SCALES + 6))
    params = {}
    for s in SCALES:
        k = 5 * s
        w = std * jax.random.normal(next(keys), (k, N_FILTERS), jnp.float32)
        b = std * jax.random.normal(next(keys), (1, N_FILTERS), jnp.float32)
        params[f"scale_{s}"] = (w, b)
    params["fc1"] = (std * jax.random.normal(next(keys), (n_in, HIDDEN), jnp.float32),
                     std * jax.random.normal(next(keys), (1, HIDDEN), jnp.float32))
    params["fc2"] = (std * jax.random.normal(next(keys), (HIDDEN, feat_dim), jnp.float32),
                     std * jax.random.normal(next(keys), (1, feat_dim), jnp.float32))
    params["hash"] = (std * jax.random.normal(next(keys), (feat_dim, bit), jnp.float32),
                      std * jax.random.normal(next(keys), (1, bit), jnp.float32))
    return params


# Pure-JAX reference of the same forward pass (for correctness check).
def reference_forward(x, params, bit, feat_dim=FEAT_DIM):
    B, T = x.shape
    pooled = []
    for s in SCALES:
        k = 5 * s
        W = T // k
        w, b = params[f"scale_{s}"]
        z = jnp.maximum(x[:, : W * k].reshape(B, W, k) @ w + b, 0.0)   # (B, W, F)
        pooled.append(jnp.mean(z, axis=1))                              # avg_pool over width
    ms = jnp.concatenate(pooled, axis=1)                                # (B, 500)
    w1, b1 = params["fc1"]
    w2, b2 = params["fc2"]
    w3, b3 = params["hash"]
    h1 = jnp.maximum(ms @ w1 + b1, 0.0)
    feat = jnp.maximum(h1 @ w2 + b2, 0.0)
    return jnp.tanh(feat @ w3 + b3), feat


if __name__ == "__main__":
    B, T = 2, 150          # T covers all kernel widths {5, 10, 15, 30, 50}
    bit = 32
    key = jax.random.PRNGKey(0)
    kx, kp = jax.random.split(key)
    x = jax.random.normal(kx, (B, T), jnp.float32)
    params = init_params(kp, bit)

    hash_out, feature = multi_scale_txt_net(x, params, bit)
    jax.block_until_ready((hash_out, feature))

    assert hash_out.shape == (B, bit)
    assert feature.shape == (B, FEAT_DIM)
    assert bool(jnp.all(jnp.isfinite(hash_out))) and bool(jnp.all(jnp.isfinite(feature)))

    ref_hash, ref_feat = reference_forward(x, params, bit)
    assert bool(jnp.allclose(hash_out, ref_hash, rtol=1e-3, atol=1e-5))
    assert bool(jnp.allclose(feature, ref_feat, rtol=1e-3, atol=1e-5))

    print("KERNEL_OK")
</pallas_src>

<mosaic_0001>
module attributes {stable_mosaic.version = 11 : i64} {
  func.func @fused_kernel(%arg0: i32, %arg1: memref<60x5xf32, #tpu.memory_space<vmem>>, %arg2: memref<2x60xf32, #tpu.memory_space<vmem>>, %arg3: memref<5x100xf32, #tpu.memory_space<vmem>>, %arg4: memref<1x100xf32, #tpu.memory_space<vmem>>, %arg5: memref<30x10xf32, #tpu.memory_space<vmem>>, %arg6: memref<2x30xf32, #tpu.memory_space<vmem>>, %arg7: memref<10x100xf32, #tpu.memory_space<vmem>>, %arg8: memref<1x100xf32, #tpu.memory_space<vmem>>, %arg9: memref<20x15xf32, #tpu.memory_space<vmem>>, %arg10: memref<2x20xf32, #tpu.memory_space<vmem>>, %arg11: memref<15x100xf32, #tpu.memory_space<vmem>>, %arg12: memref<1x100xf32, #tpu.memory_space<vmem>>, %arg13: memref<10x30xf32, #tpu.memory_space<vmem>>, %arg14: memref<2x10xf32, #tpu.memory_space<vmem>>, %arg15: memref<30x100xf32, #tpu.memory_space<vmem>>, %arg16: memref<1x100xf32, #tpu.memory_space<vmem>>, %arg17: memref<6x50xf32, #tpu.memory_space<vmem>>, %arg18: memref<2x6xf32, #tpu.memory_space<vmem>>, %arg19: memref<50x100xf32, #tpu.memory_space<vmem>>, %arg20: memref<1x100xf32, #tpu.memory_space<vmem>>, %arg21: memref<5x100x1024xf32, #tpu.memory_space<vmem>>, %arg22: memref<1x1024xf32, #tpu.memory_space<vmem>>, %arg23: memref<1024x512xf32, #tpu.memory_space<vmem>>, %arg24: memref<1x512xf32, #tpu.memory_space<vmem>>, %arg25: memref<512x32xf32, #tpu.memory_space<vmem>>, %arg26: memref<1x32xf32, #tpu.memory_space<vmem>>, %arg27: memref<2x32xf32, #tpu.memory_space<vmem>>, %arg28: memref<2x512xf32, #tpu.memory_space<vmem>>, %arg29: memref<5x2x100xf32, #tpu.memory_space<vmem>>, %arg30: memref<2x512xf32, #tpu.memory_space<vmem>>) attributes {dimension_semantics = [#tpu.dimension_semantics<arbitrary>], iteration_bounds = array<i64: 4>, scalar_prefetch = 0 : i64, scratch_operands = 2 : i64, tpu.core_type = #tpu.core_type<tc>, window_params = [{pipeline_mode = #tpu.pipeline_mode<synchronous>, transform_indices = @transform_0, window_bounds = array<i64: 60, 5>}, {pipeline_mode = #tpu.pipeline_mode<synchronous>, transform_indices = @transform_1, window_bounds = array<i64: 2, 60>}, {pipeline_mode = #tpu.pipeline_mode<synchronous>, transform_indices = @transform_2, window_bounds = array<i64: 5, 100>}, {pipeline_mode = #tpu.pipeline_mode<synchronous>, transform_indices = @transform_3, window_bounds = array<i64: 1, 100>}, {pipeline_mode = #tpu.pipeline_mode<synchronous>, transform_indices = @transform_4, window_bounds = array<i64: 30, 10>}, {pipeline_mode = #tpu.pipeline_mode<synchronous>, transform_indices = @transform_5, window_bounds = array<i64: 2, 30>}, {pipeline_mode = #tpu.pipeline_mode<synchronous>, transform_indices = @transform_6, window_bounds = array<i64: 10, 100>}, {pipeline_mode = #tpu.pipeline_mode<synchronous>, transform_indices = @transform_7, window_bounds = array<i64: 1, 100>}, {pipeline_mode = #tpu.pipeline_mode<synchronous>, transform_indices = @transform_8, window_bounds = array<i64: 20, 15>}, {pipeline_mode = #tpu.pipeline_mode<synchronous>, transform_indices = @transform_9, window_bounds = array<i64: 2, 20>}, {pipeline_mode = #tpu.pipeline_mode<synchronous>, transform_indices = @transform_10, window_bounds = array<i64: 15, 100>}, {pipeline_mode = #tpu.pipeline_mode<synchronous>, transform_indices = @transform_11, window_bounds = array<i64: 1, 100>}, {pipeline_mode = #tpu.pipeline_mode<synchronous>, transform_indices = @transform_12, window_bounds = array<i64: 10, 30>}, {pipeline_mode = #tpu.pipeline_mode<synchronous>, transform_indices = @transform_13, window_bounds = array<i64: 2, 10>}, {pipeline_mode = #tpu.pipeline_mode<synchronous>, transform_indices = @transform_14, window_bounds = array<i64: 30, 100>}, {pipeline_mode = #tpu.pipeline_mode<synchronous>, transform_indices = @transform_15, window_bounds = array<i64: 1, 100>}, {pipeline_mode = #tpu.pipeline_mode<synchronous>, transform_indices = @transform_16, window_bounds = array<i64: 6, 50>}, {pipeline_mode = #tpu.pipeline_mode<synchronous>, transform_indices = @transform_17, window_bounds = array<i64: 2, 6>}, {pipeline_mode = #tpu.pipeline_mode<synchronous>, transform_indices = @transform_18, window_bounds = array<i64: 50, 100>}, {pipeline_mode = #tpu.pipeline_mode<synchronous>, transform_indices = @transform_19, window_bounds = array<i64: 1, 100>}, {transform_indices = @transform_20, window_bounds = array<i64: 5, 100, 1024>}, {transform_indices = @transform_21, window_bounds = array<i64: 1, 1024>}, {transform_indices = @transform_22, window_bounds = array<i64: 1024, 512>}, {pipeline_mode = #tpu.pipeline_mode<synchronous>, transform_indices = @transform_23, window_bounds = array<i64: 1, 512>}, {pipeline_mode = #tpu.pipeline_mode<synchronous>, transform_indices = @transform_24, window_bounds = array<i64: 512, 32>}, {pipeline_mode = #tpu.pipeline_mode<synchronous>, transform_indices = @transform_25, window_bounds = array<i64: 1, 32>}, {pipeline_mode = #tpu.pipeline_mode<synchronous>, transform_indices = @transform_26, window_bounds = array<i64: 2, 32>}, {pipeline_mode = #tpu.pipeline_mode<synchronous>, transform_indices = @transform_27, window_bounds = array<i64: 2, 512>}]} {
    %c0_i32 = arith.constant 0 : i32
    %0 = arith.cmpi eq, %arg0, %c0_i32 : i32
    %1 = arith.extui %0 : i1 to i32
    %c0_i32_0 = arith.constant 0 : i32
    %2 = arith.cmpi ne, %1, %c0_i32_0 : i32
    scf.if %2 {
      %c0_41 = arith.constant 0 : index
      %c0_42 = arith.constant 0 : index
      %45 = vector.load %arg1[%c0_41, %c0_42] : memref<60x5xf32, #tpu.memory_space<vmem>>, vector<60x5xf32>
      %c0_43 = arith.constant 0 : index
      %c0_44 = arith.constant 0 : index
      %46 = vector.load %arg3[%c0_43, %c0_44] : memref<5x100xf32, #tpu.memory_space<vmem>>, vector<5x100xf32>
      %cst_45 = arith.constant dense<0.000000e+00> : vector<60x100xf32>
      %47 = tpu.matmul %45, %46, %cst_45 {dimension_numbers = #tpu.dot_dimension_numbers<[1], [0], [0], [1], [0, 0, 1, 1], [], []>} : vector<60x5xf32>, vector<5x100xf32>, vector<60x100xf32> -> vector<60x100xf32>
      %c0_46 = arith.constant 0 : index
      %c0_47 = arith.constant 0 : index
      %48 = vector.load %arg4[%c0_46, %c0_47] : memref<1x100xf32, #tpu.memory_space<vmem>>, vector<1x100xf32>
      %49 = vector.broadcast %48 : vector<1x100xf32> to vector<60x100xf32>
      %50 = arith.addf %47, %49 : vector<60x100xf32>
      %cst_48 = arith.constant 0.000000e+00 : f32
      %51 = vector.broadcast %cst_48 : f32 to vector<60x100xf32>
      %52 = arith.maximumf %50, %51 : vector<60x100xf32>
      %c0_49 = arith.constant 0 : index
      %c0_50 = arith.constant 0 : index
      %53 = vector.load %arg2[%c0_49, %c0_50] : memref<2x60xf32, #tpu.memory_space<vmem>>, vector<2x60xf32>
      %cst_51 = arith.constant dense<0.000000e+00> : vector<2x100xf32>
      %54 = tpu.matmul %53, %52, %cst_51 {dimension_numbers = #tpu.dot_dimension_numbers<[1], [0], [0], [1], [0, 0, 1, 1], [], []>} : vector<2x60xf32>, vector<60x100xf32>, vector<2x100xf32> -> vector<2x100xf32>
      %c0_52 = arith.constant 0 : index
      %c0_53 = arith.constant 0 : index
      %c0_54 = arith.constant 0 : index
      %55 = vector.load %arg29[%c0_52, %c0_53, %c0_54] : memref<5x2x100xf32, #tpu.memory_space<vmem>>, vector<1x2x100xf32>
      %56 = vector.shape_cast %55 : vector<1x2x100xf32> to vector<2x100xf32>
      %57 = vector.shape_cast %54 : vector<2x100xf32> to vector<1x2x100xf32>
      tpu.vector_store %arg29[%c0_52, %c0_53, %c0_54], %57 {strides = array<i32>} : memref<5x2x100xf32, #tpu.memory_space<vmem>>, vector<1x2x100xf32>,
      %c0_55 = arith.constant 0 : index
      %c0_56 = arith.constant 0 : index
      %58 = vector.load %arg5[%c0_55, %c0_56] : memref<30x10xf32, #tpu.memory_space<vmem>>, vector<30x10xf32>
      %c0_57 = arith.constant 0 : index
      %c0_58 = arith.constant 0 : index
      %59 = vector.load %arg7[%c0_57, %c0_58] : memref<10x100xf32, #tpu.memory_space<vmem>>, vector<10x100xf32>
      %cst_59 = arith.constant dense<0.000000e+00> : vector<30x100xf32>
      %60 = tpu.matmul %58, %59, %cst_59 {dimension_numbers = #tpu.dot_dimension_numbers<[1], [0], [0], [1], [0, 0, 1, 1], [], []>} : vector<30x10xf32>, vector<10x100xf32>, vector<30x100xf32> -> vector<30x100xf32>
      %c0_60 = arith.constant 0 : index
      %c0_61 = arith.constant 0 : index
      %61 = vector.load %arg8[%c0_60, %c0_61] : memref<1x100xf32, #tpu.memory_space<vmem>>, vector<1x100xf32>
      %62 = vector.broadcast %61 : vector<1x100xf32> to vector<30x100xf32>
      %63 = arith.addf %60, %62 : vector<30x100xf32>
      %cst_62 = arith.constant 0.000000e+00 : f32
      %64 = vector.broadcast %cst_62 : f32 to vector<30x100xf32>
      %65 = arith.maximumf %63, %64 : vector<30x100xf32>
      %c0_63 = arith.constant 0 : index
      %c0_64 = arith.constant 0 : index
      %66 = vector.load %arg6[%c0_63, %c0_64] : memref<2x30xf32, #tpu.memory_space<vmem>>, vector<2x30xf32>
      %cst_65 = arith.constant dense<0.000000e+00> : vector<2x100xf32>
      %67 = tpu.matmul %66, %65, %cst_65 {dimension_numbers = #tpu.dot_dimension_numbers<[1], [0], [0], [1], [0, 0, 1, 1], [], []>} : vector<2x30xf32>, vector<30x100xf32>, vector<2x100xf32> -> vector<2x100xf32>
      %c1_66 = arith.constant 1 : index
      %c0_67 = arith.constant 0 : index
      %c0_68 = arith.constant 0 : index
      %68 = vector.load %arg29[%c1_66, %c0_67, %c0_68] : memref<5x2x100xf32, #tpu.memory_space<vmem>>, vector<1x2x100xf32>
      %69 = vector.shape_cast %68 : vector<1x2x100xf32> to vector<2x100xf32>
      %70 = vector.shape_cast %67 : vector<2x100xf32> to vector<1x2x100xf32>
      tpu.vector_store %arg29[%c1_66, %c0_67, %c0_68], %70 {strides = array<i32>} : memref<5x2x100xf32, #tpu.memory_space<vmem>>, vector<1x2x100xf32>,
      %c0_69 = arith.constant 0 : index
      %c0_70 = arith.constant 0 : index
      %71 = vector.load %arg9[%c0_69, %c0_70] : memref<20x15xf32, #tpu.memory_space<vmem>>, vector<20x15xf32>
      %c0_71 = arith.constant 0 : index
      %c0_72 = arith.constant 0 : index
      %72 = vector.load %arg11[%c0_71, %c0_72] : memref<15x100xf32, #tpu.memory_space<vmem>>, vector<15x100xf32>
      %cst_73 = arith.constant dense<0.000000e+00> : vector<20x100xf32>
      %73 = tpu.matmul %71, %72, %cst_73 {dimension_numbers = #tpu.dot_dimension_numbers<[1], [0], [0], [1], [0, 0, 1, 1], [], []>} : vector<20x15xf32>, vector<15x100xf32>, vector<20x100xf32> -> vector<20x100xf32>
      %c0_74 = arith.constant 0 : index
      %c0_75 = arith.constant 0 : index
      %74 = vector.load %arg12[%c0_74, %c0_75] : memref<1x100xf32, #tpu.memory_space<vmem>>, vector<1x100xf32>
      %75 = vector.broadcast %74 : vector<1x100xf32> to vector<20x100xf32>
      %76 = arith.addf %73, %75 : vector<20x100xf32>
      %cst_76 = arith.constant 0.000000e+00 : f32
      %77 = vector.broadcast %cst_76 : f32 to vector<20x100xf32>
      %78 = arith.maximumf %76, %77 : vector<20x100xf32>
      %c0_77 = arith.constant 0 : index
      %c0_78 = arith.constant 0 : index
      %79 = vector.load %arg10[%c0_77, %c0_78] : memref<2x20xf32, #tpu.memory_space<vmem>>, vector<2x20xf32>
      %cst_79 = arith.constant dense<0.000000e+00> : vector<2x100xf32>
      %80 = tpu.matmul %79, %78, %cst_79 {dimension_numbers = #tpu.dot_dimension_numbers<[1], [0], [0], [1], [0, 0, 1, 1], [], []>} : vector<2x20xf32>, vector<20x100xf32>, vector<2x100xf32> -> vector<2x100xf32>
      %c2_80 = arith.constant 2 : index
      %c0_81 = arith.constant 0 : index
      %c0_82 = arith.constant 0 : index
      %81 = vector.load %arg29[%c2_80, %c0_81, %c0_82] : memref<5x2x100xf32, #tpu.memory_space<vmem>>, vector<1x2x100xf32>
      %82 = vector.shape_cast %81 : vector<1x2x100xf32> to vector<2x100xf32>
      %83 = vector.shape_cast %80 : vector<2x100xf32> to vector<1x2x100xf32>
      tpu.vector_store %arg29[%c2_80, %c0_81, %c0_82], %83 {strides = array<i32>} : memref<5x2x100xf32, #tpu.memory_space<vmem>>, vector<1x2x100xf32>,
      %c0_83 = arith.constant 0 : index
      %c0_84 = arith.constant 0 : index
      %84 = vector.load %arg13[%c0_83, %c0_84] : memref<10x30xf32, #tpu.memory_space<vmem>>, vector<10x30xf32>
      %c0_85 = arith.constant 0 : index
      %c0_86 = arith.constant 0 : index
      %85 = vector.load %arg15[%c0_85, %c0_86] : memref<30x100xf32, #tpu.memory_space<vmem>>, vector<30x100xf32>
      %cst_87 = arith.constant dense<0.000000e+00> : vector<10x100xf32>
      %86 = tpu.matmul %84, %85, %cst_87 {dimension_numbers = #tpu.dot_dimension_numbers<[1], [0], [0], [1], [0, 0, 1, 1], [], []>} : vector<10x30xf32>, vector<30x100xf32>, vector<10x100xf32> -> vector<10x100xf32>
      %c0_88 = arith.constant 0 : index
      %c0_89 = arith.constant 0 : index
      %87 = vector.load %arg16[%c0_88, %c0_89] : memref<1x100xf32, #tpu.memory_space<vmem>>, vector<1x100xf32>
      %88 = vector.broadcast %87 : vector<1x100xf32> to vector<10x100xf32>
      %89 = arith.addf %86, %88 : vector<10x100xf32>
      %cst_90 = arith.constant 0.000000e+00 : f32
      %90 = vector.broadcast %cst_90 : f32 to vector<10x100xf32>
      %91 = arith.maximumf %89, %90 : vector<10x100xf32>
      %c0_91 = arith.constant 0 : index
      %c0_92 = arith.constant 0 : index
      %92 = vector.load %arg14[%c0_91, %c0_92] : memref<2x10xf32, #tpu.memory_space<vmem>>, vector<2x10xf32>
      %cst_93 = arith.constant dense<0.000000e+00> : vector<2x100xf32>
      %93 = tpu.matmul %92, %91, %cst_93 {dimension_numbers = #tpu.dot_dimension_numbers<[1], [0], [0], [1], [0, 0, 1, 1], [], []>} : vector<2x10xf32>, vector<10x100xf32>, vector<2x100xf32> -> vector<2x100xf32>
      %c3_94 = arith.constant 3 : index
      %c0_95 = arith.constant 0 : index
      %c0_96 = arith.constant 0 : index
      %94 = vector.load %arg29[%c3_94, %c0_95, %c0_96] : memref<5x2x100xf32, #tpu.memory_space<vmem>>, vector<1x2x100xf32>
      %95 = vector.shape_cast %94 : vector<1x2x100xf32> to vector<2x100xf32>
      %96 = vector.shape_cast %93 : vector<2x100xf32> to vector<1x2x100xf32>
      tpu.vector_store %arg29[%c3_94, %c0_95, %c0_96], %96 {strides = array<i32>} : memref<5x2x100xf32, #tpu.memory_space<vmem>>, vector<1x2x100xf32>,
      %c0_97 = arith.constant 0 : index
      %c0_98 = arith.constant 0 : index
      %97 = vector.load %arg17[%c0_97, %c0_98] : memref<6x50xf32, #tpu.memory_space<vmem>>, vector<6x50xf32>
      %c0_99 = arith.constant 0 : index
      %c0_100 = arith.constant 0 : index
      %98 = vector.load %arg19[%c0_99, %c0_100] : memref<50x100xf32, #tpu.memory_space<vmem>>, vector<50x100xf32>
      %cst_101 = arith.constant dense<0.000000e+00> : vector<6x100xf32>
      %99 = tpu.matmul %97, %98, %cst_101 {dimension_numbers = #tpu.dot_dimension_numbers<[1], [0], [0], [1], [0, 0, 1, 1], [], []>} : vector<6x50xf32>, vector<50x100xf32>, vector<6x100xf32> -> vector<6x100xf32>
      %c0_102 = arith.constant 0 : index
      %c0_103 = arith.constant 0 : index
      %100 = vector.load %arg20[%c0_102, %c0_103] : memref<1x100xf32, #tpu.memory_space<vmem>>, vector<1x100xf32>
      %101 = vector.broadcast %100 : vector<1x100xf32> to vector<6x100xf32>
      %102 = arith.addf %99, %101 : vector<6x100xf32>
      %cst_104 = arith.constant 0.000000e+00 : f32
      %103 = vector.broadcast %cst_104 : f32 to vector<6x100xf32>
      %104 = arith.maximumf %102, %103 : vector<6x100xf32>
      %c0_105 = arith.constant 0 : index
      %c0_106 = arith.constant 0 : index
      %105 = vector.load %arg18[%c0_105, %c0_106] : memref<2x6xf32, #tpu.memory_space<vmem>>, vector<2x6xf32>
      %cst_107 = arith.constant dense<0.000000e+00> : vector<2x100xf32>
      %106 = tpu.matmul %105, %104, %cst_107 {dimension_numbers = #tpu.dot_dimension_numbers<[1], [0], [0], [1], [0, 0, 1, 1], [], []>} : vector<2x6xf32>, vector<6x100xf32>, vector<2x100xf32> -> vector<2x100xf32>
      %c4_108 = arith.constant 4 : index
      %c0_109 = arith.constant 0 : index
      %c0_110 = arith.constant 0 : index
      %107 = vector.load %arg29[%c4_108, %c0_109, %c0_110] : memref<5x2x100xf32, #tpu.memory_space<vmem>>, vector<1x2x100xf32>
      %108 = vector.shape_cast %107 : vector<1x2x100xf32> to vector<2x100xf32>
      %109 = vector.shape_cast %106 : vector<2x100xf32> to vector<1x2x100xf32>
      tpu.vector_store %arg29[%c4_108, %c0_109, %c0_110], %109 {strides = array<i32>} : memref<5x2x100xf32, #tpu.memory_space<vmem>>, vector<1x2x100xf32>,
      %cst_111 = arith.constant 0.000000e+00 : f32
      %110 = vector.broadcast %cst_111 : f32 to vector<2x512xf32>
      %c0_112 = arith.constant 0 : index
      %c0_113 = arith.constant 0 : index
      %111 = vector.load %arg30[%c0_112, %c0_113] : memref<2x512xf32, #tpu.memory_space<vmem>>, vector<2x512xf32>
      tpu.vector_store %arg30[%c0_112, %c0_113], %110 {strides = array<i32>} : memref<2x512xf32, #tpu.memory_space<vmem>>, vector<2x512xf32>,
    } else {
    }
    %c0 = arith.constant 0 : index
    %c0_1 = arith.constant 0 : index
    %c0_2 = arith.constant 0 : index
    %3 = vector.load %arg29[%c0, %c0_1, %c0_2] : memref<5x2x100xf32, #tpu.memory_space<vmem>>, vector<1x2x100xf32>
    %4 = vector.shape_cast %3 : vector<1x2x100xf32> to vector<2x100xf32>
    %c0_3 = arith.constant 0 : index
    %c0_4 = arith.constant 0 : index
    %c0_5 = arith.constant 0 : index
    %5 = vector.load %arg21[%c0_3, %c0_4, %c0_5] : memref<5x100x1024xf32, #tpu.memory_space<vmem>>, vector<1x100x1024xf32>
    %6 = vector.shape_cast %5 : vector<1x100x1024xf32> to vector<100x1024xf32>
    %cst = arith.constant dense<0.000000e+00> : vector<2x1024xf32>
    %7 = tpu.matmul %4, %6, %cst {dimension_numbers = #tpu.dot_dimension_numbers<[1], [0], [0], [1], [0, 0, 1, 1], [], []>} : vector<2x100xf32>, vector<100x1024xf32>, vector<2x1024xf32> -> vector<2x1024xf32>
    %c1 = arith.constant 1 : index
    %c0_6 = arith.constant 0 : index
    %c0_7 = arith.constant 0 : index
    %8 = vector.load %arg29[%c1, %c0_6, %c0_7] : memref<5x2x100xf32, #tpu.memory_space<vmem>>, vector<1x2x100xf32>
    %9 = vector.shape_cast %8 : vector<1x2x100xf32> to vector<2x100xf32>
    %c1_8 = arith.constant 1 : index
    %c0_9 = arith.constant 0 : index
    %c0_10 = arith.constant 0 : index
    %10 = vector.load %arg21[%c1_8, %c0_9, %c0_10] : memref<5x100x1024xf32, #tpu.memory_space<vmem>>, vector<1x100x1024xf32>
    %11 = vector.shape_cast %10 : vector<1x100x1024xf32> to vector<100x1024xf32>
    %cst_11 = arith.constant dense<0.000000e+00> : vector<2x1024xf32>
    %12 = tpu.matmul %9, %11, %cst_11 {dimension_numbers = #tpu.dot_dimension_numbers<[1], [0], [0], [1], [0, 0, 1, 1], [], []>} : vector<2x100xf32>, vector<100x1024xf32>, vector<2x1024xf32> -> vector<2x1024xf32>
    %13 = arith.addf %7, %12 : vector<2x1024xf32>
    %c2 = arith.constant 2 : index
    %c0_12 = arith.constant 0 : index
    %c0_13 = arith.constant 0 : index
    %14 = vector.load %arg29[%c2, %c0_12, %c0_13] : memref<5x2x100xf32, #tpu.memory_space<vmem>>, vector<1x2x100xf32>
    %15 = vector.shape_cast %14 : vector<1x2x100xf32> to vector<2x100xf32>
    %c2_14 = arith.constant 2 : index
    %c0_15 = arith.constant 0 : index
    %c0_16 = arith.constant 0 : index
    %16 = vector.load %arg21[%c2_14, %c0_15, %c0_16] : memref<5x100x1024xf32, #tpu.memory_space<vmem>>, vector<1x100x1024xf32>
    %17 = vector.shape_cast %16 : vector<1x100x1024xf32> to vector<100x1024xf32>
    %cst_17 = arith.constant dense<0.000000e+00> : vector<2x1024xf32>
    %18 = tpu.matmul %15, %17, %cst_17 {dimension_numbers = #tpu.dot_dimension_numbers<[1], [0], [0], [1], [0, 0, 1, 1], [], []>} : vector<2x100xf32>, vector<100x1024xf32>, vector<2x1024xf32> -> vector<2x1024xf32>
    %19 = arith.addf %13, %18 : vector<2x1024xf32>
    %c3 = arith.constant 3 : index
    %c0_18 = arith.constant 0 : index
    %c0_19 = arith.constant 0 : index
    %20 = vector.load %arg29[%c3, %c0_18, %c0_19] : memref<5x2x100xf32, #tpu.memory_space<vmem>>, vector<1x2x100xf32>
    %21 = vector.shape_cast %20 : vector<1x2x100xf32> to vector<2x100xf32>
    %c3_20 = arith.constant 3 : index
    %c0_21 = arith.constant 0 : index
    %c0_22 = arith.constant 0 : index
    %22 = vector.load %arg21[%c3_20, %c0_21, %c0_22] : memref<5x100x1024xf32, #tpu.memory_space<vmem>>, vector<1x100x1024xf32>
    %23 = vector.shape_cast %22 : vector<1x100x1024xf32> to vector<100x1024xf32>
    %cst_23 = arith.constant dense<0.000000e+00> : vector<2x1024xf32>
    %24 = tpu.matmul %21, %23, %cst_23 {dimension_numbers = #tpu.dot_dimension_numbers<[1], [0], [0], [1], [0, 0, 1, 1], [], []>} : vector<2x100xf32>, vector<100x1024xf32>, vector<2x1024xf32> -> vector<2x1024xf32>
    %25 = arith.addf %19, %24 : vector<2x1024xf32>
    %c4 = arith.constant 4 : index
    %c0_24 = arith.constant 0 : index
    %c0_25 = arith.constant 0 : index
    %26 = vector.load %arg29[%c4, %c0_24, %c0_25] : memref<5x2x100xf32, #tpu.memory_space<vmem>>, vector<1x2x100xf32>
    %27 = vector.shape_cast %26 : vector<1x2x100xf32> to vector<2x100xf32>
    %c4_26 = arith.constant 4 : index
    %c0_27 = arith.constant 0 : index
    %c0_28 = arith.constant 0 : index
    %28 = vector.load %arg21[%c4_26, %c0_27, %c0_28] : memref<5x100x1024xf32, #tpu.memory_space<vmem>>, vector<1x100x1024xf32>
    %29 = vector.shape_cast %28 : vector<1x100x1024xf32> to vector<100x1024xf32>
    %cst_29 = arith.constant dense<0.000000e+00> : vector<2x1024xf32>
    %30 = tpu.matmul %27, %29, %cst_29 {dimension_numbers = #tpu.dot_dimension_numbers<[1], [0], [0], [1], [0, 0, 1, 1], [], []>} : vector<2x100xf32>, vector<100x1024xf32>, vector<2x1024xf32> -> vector<2x1024xf32>
    %31 = arith.addf %25, %30 : vector<2x1024xf32>
    %c0_30 = arith.constant 0 : index
    %c0_31 = arith.constant 0 : index
    %32 = vector.load %arg22[%c0_30, %c0_31] : memref<1x1024xf32, #tpu.memory_space<vmem>>, vector<1x1024xf32>
    %33 = vector.broadcast %32 : vector<1x1024xf32> to vector<2x1024xf32>
    %34 = arith.addf %31, %33 : vector<2x1024xf32>
    %cst_32 = arith.constant 0.000000e+00 : f32
    %35 = vector.broadcast %cst_32 : f32 to vector<2x1024xf32>
    %36 = arith.maximumf %34, %35 : vector<2x1024xf32>
    %c0_33 = arith.constant 0 : index
    %c0_34 = arith.constant 0 : index
    %37 = vector.load %arg30[%c0_33, %c0_34] : memref<2x512xf32, #tpu.memory_space<vmem>>, vector<2x512xf32>
    %c0_35 = arith.constant 0 : index
    %c0_36 = arith.constant 0 : index
    %38 = vector.load %arg23[%c0_35, %c0_36] : memref<1024x512xf32, #tpu.memory_space<vmem>>, vector<1024x512xf32>
    %cst_37 = arith.constant dense<0.000000e+00> : vector<2x512xf32>
    %39 = tpu.matmul %36, %38, %cst_37 {dimension_numbers = #tpu.dot_dimension_numbers<[1], [0], [0], [1], [0, 0, 1, 1], [], []>} : vector<2x1024xf32>, vector<1024x512xf32>, vector<2x512xf32> -> vector<2x512xf32>
    %40 = arith.addf %37, %39 : vector<2x512xf32>
    %c0_38 = arith.constant 0 : index
    %c0_39 = arith.constant 0 : index
    %41 = vector.load %arg30[%c0_38, %c0_39] : memref<2x512xf32, #tpu.memory_space<vmem>>, vector<2x512xf32>
    tpu.vector_store %arg30[%c0_38, %c0_39], %40 {strides = array<i32>} : memref<2x512xf32, #tpu.memory_space<vmem>>, vector<2x512xf32>,
    %c3_i32 = arith.constant 3 : i32
    %42 = arith.cmpi eq, %arg0, %c3_i32 : i32
    %43 = arith.extui %42 : i1 to i32
    %c0_i32_40 = arith.constant 0 : i32
    %44 = arith.cmpi ne, %43, %c0_i32_40 : i32
    scf.if %44 {
      %c0_41 = arith.constant 0 : index
      %c0_42 = arith.constant 0 : index
      %45 = vector.load %arg30[%c0_41, %c0_42] : memref<2x512xf32, #tpu.memory_space<vmem>>, vector<2x512xf32>
      %c0_43 = arith.constant 0 : index
      %c0_44 = arith.constant 0 : index
      %46 = vector.load %arg24[%c0_43, %c0_44] : memref<1x512xf32, #tpu.memory_space<vmem>>, vector<1x512xf32>
      %47 = vector.broadcast %46 : vector<1x512xf32> to vector<2x512xf32>
      %48 = arith.addf %45, %47 : vector<2x512xf32>
      %cst_45 = arith.constant 0.000000e+00 : f32
      %49 = vector.broadcast %cst_45 : f32 to vector<2x512xf32>
      %50 = arith.maximumf %48, %49 : vector<2x512xf32>
      %c0_46 = arith.constant 0 : index
      %c0_47 = arith.constant 0 : index
      %51 = vector.load %arg28[%c0_46, %c0_47] : memref<2x512xf32, #tpu.memory_space<vmem>>, vector<2x512xf32>
      tpu.vector_store %arg28[%c0_46, %c0_47], %50 {strides = array<i32>} : memref<2x512xf32, #tpu.memory_space<vmem>>, vector<2x512xf32>,
      %c0_48 = arith.constant 0 : index
      %c0_49 = arith.constant 0 : index
      %52 = vector.load %arg25[%c0_48, %c0_49] : memref<512x32xf32, #tpu.memory_space<vmem>>, vector<512x32xf32>
      %cst_50 = arith.constant dense<0.000000e+00> : vector<2x32xf32>
      %53 = tpu.matmul %50, %52, %cst_50 {dimension_numbers = #tpu.dot_dimension_numbers<[1], [0], [0], [1], [0, 0, 1, 1], [], []>} : vector<2x512xf32>, vector<512x32xf32>, vector<2x32xf32> -> vector<2x32xf32>
      %c0_51 = arith.constant 0 : index
      %c0_52 = arith.constant 0 : index
      %54 = vector.load %arg26[%c0_51, %c0_52] : memref<1x32xf32, #tpu.memory_space<vmem>>, vector<1x32xf32>
      %55 = vector.broadcast %54 : vector<1x32xf32> to vector<2x32xf32>
      %56 = arith.addf %53, %55 : vector<2x32xf32>
      %57 = math.tanh %56 : vector<2x32xf32>
      %c0_53 = arith.constant 0 : index
      %c0_54 = arith.constant 0 : index
      %58 = vector.load %arg27[%c0_53, %c0_54] : memref<2x32xf32, #tpu.memory_space<vmem>>, vector<2x32xf32>
      tpu.vector_store %arg27[%c0_53, %c0_54], %57 {strides = array<i32>} : memref<2x32xf32, #tpu.memory_space<vmem>>, vector<2x32xf32>,
    } else {
    }
    return
  }
  func.func @transform_0(%arg0: i32) -> (i32, i32) {
    %c0_i32 = arith.constant 0 : i32
    %c0_i32_0 = arith.constant 0 : i32
    %c0_i32_1 = arith.constant 0 : i32
    return %c0_i32, %c0_i32_0 : i32, i32
  }
  func.func @transform_1(%arg0: i32) -> (i32, i32) {
    %c0_i32 = arith.constant 0 : i32
    %c0_i32_0 = arith.constant 0 : i32
    %c0_i32_1 = arith.constant 0 : i32
    return %c0_i32, %c0_i32_0 : i32, i32
  }
  func.func @transform_2(%arg0: i32) -> (i32, i32) {
    %c0_i32 = arith.constant 0 : i32
    %c0_i32_0 = arith.constant 0 : i32
    %c0_i32_1 = arith.constant 0 : i32
    return %c0_i32, %c0_i32_0 : i32, i32
  }
  func.func @transform_3(%arg0: i32) -> (i32, i32) {
    %c0_i32 = arith.constant 0 : i32
    %c0_i32_0 = arith.constant 0 : i32
    %c0_i32_1 = arith.constant 0 : i32
    return %c0_i32, %c0_i32_0 : i32, i32
  }
  func.func @transform_4(%arg0: i32) -> (i32, i32) {
    %c0_i32 = arith.constant 0 : i32
    %c0_i32_0 = arith.constant 0 : i32
    %c0_i32_1 = arith.constant 0 : i32
    return %c0_i32, %c0_i32_0 : i32, i32
  }
  func.func @transform_5(%arg0: i32) -> (i32, i32) {
    %c0_i32 = arith.constant 0 : i32
    %c0_i32_0 = arith.constant 0 : i32
    %c0_i32_1 = arith.constant 0 : i32
    return %c0_i32, %c0_i32_0 : i32, i32
  }
  func.func @transform_6(%arg0: i32) -> (i32, i32) {
    %c0_i32 = arith.constant 0 : i32
    %c0_i32_0 = arith.constant 0 : i32
    %c0_i32_1 = arith.constant 0 : i32
    return %c0_i32, %c0_i32_0 : i32, i32
  }
  func.func @transform_7(%arg0: i32) -> (i32, i32) {
    %c0_i32 = arith.constant 0 : i32
    %c0_i32_0 = arith.constant 0 : i32
    %c0_i32_1 = arith.constant 0 : i32
    return %c0_i32, %c0_i32_0 : i32, i32
  }
  func.func @transform_8(%arg0: i32) -> (i32, i32) {
    %c0_i32 = arith.constant 0 : i32
    %c0_i32_0 = arith.constant 0 : i32
    %c0_i32_1 = arith.constant 0 : i32
    return %c0_i32, %c0_i32_0 : i32, i32
  }
  func.func @transform_9(%arg0: i32) -> (i32, i32) {
    %c0_i32 = arith.constant 0 : i32
    %c0_i32_0 = arith.constant 0 : i32
    %c0_i32_1 = arith.constant 0 : i32
    return %c0_i32, %c0_i32_0 : i32, i32
  }
  func.func @transform_10(%arg0: i32) -> (i32, i32) {
    %c0_i32 = arith.constant 0 : i32
    %c0_i32_0 = arith.constant 0 : i32
    %c0_i32_1 = arith.constant 0 : i32
    return %c0_i32, %c0_i32_0 : i32, i32
  }
  func.func @transform_11(%arg0: i32) -> (i32, i32) {
    %c0_i32 = arith.constant 0 : i32
    %c0_i32_0 = arith.constant 0 : i32
    %c0_i32_1 = arith.constant 0 : i32
    return %c0_i32, %c0_i32_0 : i32, i32
  }
  func.func @transform_12(%arg0: i32) -> (i32, i32) {
    %c0_i32 = arith.constant 0 : i32
    %c0_i32_0 = arith.constant 0 : i32
    %c0_i32_1 = arith.constant 0 : i32
    return %c0_i32, %c0_i32_0 : i32, i32
  }
  func.func @transform_13(%arg0: i32) -> (i32, i32) {
    %c0_i32 = arith.constant 0 : i32
    %c0_i32_0 = arith.constant 0 : i32
    %c0_i32_1 = arith.constant 0 : i32
    return %c0_i32, %c0_i32_0 : i32, i32
  }
  func.func @transform_14(%arg0: i32) -> (i32, i32) {
    %c0_i32 = arith.constant 0 : i32
    %c0_i32_0 = arith.constant 0 : i32
    %c0_i32_1 = arith.constant 0 : i32
    return %c0_i32, %c0_i32_0 : i32, i32
  }
  func.func @transform_15(%arg0: i32) -> (i32, i32) {
    %c0_i32 = arith.constant 0 : i32
    %c0_i32_0 = arith.constant 0 : i32
    %c0_i32_1 = arith.constant 0 : i32
    return %c0_i32, %c0_i32_0 : i32, i32
  }
  func.func @transform_16(%arg0: i32) -> (i32, i32) {
    %c0_i32 = arith.constant 0 : i32
    %c0_i32_0 = arith.constant 0 : i32
    %c0_i32_1 = arith.constant 0 : i32
    return %c0_i32, %c0_i32_0 : i32, i32
  }
  func.func @transform_17(%arg0: i32) -> (i32, i32) {
    %c0_i32 = arith.constant 0 : i32
    %c0_i32_0 = arith.constant 0 : i32
    %c0_i32_1 = arith.constant 0 : i32
    return %c0_i32, %c0_i32_0 : i32, i32
  }
  func.func @transform_18(%arg0: i32) -> (i32, i32) {
    %c0_i32 = arith.constant 0 : i32
    %c0_i32_0 = arith.constant 0 : i32
    %c0_i32_1 = arith.constant 0 : i32
    return %c0_i32, %c0_i32_0 : i32, i32
  }
  func.func @transform_19(%arg0: i32) -> (i32, i32) {
    %c0_i32 = arith.constant 0 : i32
    %c0_i32_0 = arith.constant 0 : i32
    %c0_i32_1 = arith.constant 0 : i32
    return %c0_i32, %c0_i32_0 : i32, i32
  }
  func.func @transform_20(%arg0: i32) -> (i32, i32, i32) {
    %c0_i32 = arith.constant 0 : i32
    %c0_i32_0 = arith.constant 0 : i32
    %c0_i32_1 = arith.constant 0 : i32
    return %c0_i32, %c0_i32_0, %arg0 : i32, i32, i32
  }
  func.func @transform_21(%arg0: i32) -> (i32, i32) {
    %c0_i32 = arith.constant 0 : i32
    %c0_i32_0 = arith.constant 0 : i32
    return %c0_i32, %arg0 : i32, i32
  }
  func.func @transform_22(%arg0: i32) -> (i32, i32) {
    %c0_i32 = arith.constant 0 : i32
    %c0_i32_0 = arith.constant 0 : i32
    return %arg0, %c0_i32 : i32, i32
  }
  func.func @transform_23(%arg0: i32) -> (i32, i32) {
    %c0_i32 = arith.constant 0 : i32
    %c0_i32_0 = arith.constant 0 : i32
    %c0_i32_1 = arith.constant 0 : i32
    return %c0_i32, %c0_i32_0 : i32, i32
  }
  func.func @transform_24(%arg0: i32) -> (i32, i32) {
    %c0_i32 = arith.constant 0 : i32
    %c0_i32_0 = arith.constant 0 : i32
    %c0_i32_1 = arith.constant 0 : i32
    return %c0_i32, %c0_i32_0 : i32, i32
  }
  func.func @transform_25(%arg0: i32) -> (i32, i32) {
    %c0_i32 = arith.constant 0 : i32
    %c0_i32_0 = arith.constant 0 : i32
    %c0_i32_1 = arith.constant 0 : i32
    return %c0_i32, %c0_i32_0 : i32, i32
  }
  func.func @transform_26(%arg0: i32) -> (i32, i32) {
    %c0_i32 = arith.constant 0 : i32
    %c0_i32_0 = arith.constant 0 : i32
    %c0_i32_1 = arith.constant 0 : i32
    return %c0_i32, %c0_i32_0 : i32, i32
  }
  func.func @transform_27(%arg0: i32) -> (i32, i32) {
    %c0_i32 = arith.constant 0 : i32
    %c0_i32_0 = arith.constant 0 : i32
    %c0_i32_1 = arith.constant 0 : i32
    return %c0_i32, %c0_i32_0 : i32, i32
  }
}

</mosaic_0001>

<llo_original>
// kernel: tpu_custom_call.1
$region0: #{tpu_custom_call.1}
  #allocation0 [shape = 'u32[]', space=smem, size = 0x4, offset = 0x4, fixed_abs, tag = 'smem constant byte address 0x4 - core index']
  #allocation1 [shape = 'u32[144,128]{1,0:T(1,128)}', space=vmem, size = 0x12000, scoped, tag = 'internal scratch']
  #allocation2 [shape = 'f32[5,2,100]{2,1,0:T(2,128)}', space=vmem, size = 0x1400, scoped, tag = 'scratch operand']
  #allocation3 [shape = 'f32[2,512]{1,0:T(2,128)}', space=vmem, size = 0x1000, scoped, tag = 'scratch operand']
  %s0 = inlined_call_operand.vmem [shape: f32[60,5], index: 0, kind: input, shape index: {}]
  %s1 = inlined_call_operand.hbm [shape: f32[2,60], index: 1, kind: input, shape index: {}]
  %s2 = inlined_call_operand.hbm [shape: f32[5,100], index: 2, kind: input, shape index: {}]
  %s3 = inlined_call_operand.hbm [shape: f32[1,100], index: 3, kind: input, shape index: {}]
  %s4 = inlined_call_operand.vmem [shape: f32[30,10], index: 4, kind: input, shape index: {}]
  %s5 = inlined_call_operand.hbm [shape: f32[2,30], index: 5, kind: input, shape index: {}]
  %s6 = inlined_call_operand.hbm [shape: f32[10,100], index: 6, kind: input, shape index: {}]
  %s7 = inlined_call_operand.hbm [shape: f32[1,100], index: 7, kind: input, shape index: {}]
  %s8 = inlined_call_operand.vmem [shape: f32[20,15], index: 8, kind: input, shape index: {}]
  %s9 = inlined_call_operand.hbm [shape: f32[2,20], index: 9, kind: input, shape index: {}]
  %s10 = inlined_call_operand.hbm [shape: f32[15,100], index: 10, kind: input, shape index: {}]
  %s11 = inlined_call_operand.hbm [shape: f32[1,100], index: 11, kind: input, shape index: {}]
  %s12 = inlined_call_operand.hbm [shape: f32[10,30], index: 12, kind: input, shape index: {}]
  %s13 = inlined_call_operand.hbm [shape: f32[2,10], index: 13, kind: input, shape index: {}]
  %s14 = inlined_call_operand.hbm [shape: f32[30,100], index: 14, kind: input, shape index: {}]
  %s15 = inlined_call_operand.hbm [shape: f32[1,100], index: 15, kind: input, shape index: {}]
  %s16 = inlined_call_operand.hbm [shape: f32[6,50], index: 16, kind: input, shape index: {}]
  %s17 = inlined_call_operand.hbm [shape: f32[2,6], index: 17, kind: input, shape index: {}]
  %s18 = inlined_call_operand.hbm [shape: f32[50,100], index: 18, kind: input, shape index: {}]
  %s19 = inlined_call_operand.hbm [shape: f32[1,100], index: 19, kind: input, shape index: {}]
  %s20 = inlined_call_operand.hbm [shape: f32[5,100,4096], index: 20, kind: input, shape index: {}]
  %s21 = inlined_call_operand.hbm [shape: f32[1,4096], index: 21, kind: input, shape index: {}]
  %s22 = inlined_call_operand.hbm [shape: f32[4096,512], index: 22, kind: input, shape index: {}]
  %s23 = inlined_call_operand.hbm [shape: f32[1,512], index: 23, kind: input, shape index: {}]
  %s24 = inlined_call_operand.vmem [shape: f32[512,32], index: 24, kind: input, shape index: {}]
  %s25 = inlined_call_operand.hbm [shape: f32[1,32], index: 25, kind: input, shape index: {}]
  %s26 = inlined_call_operand.hbm [shape: f32[2,32], index: 26, kind: output, shape index: {0}]
  %s27 = inlined_call_operand.hbm [shape: f32[2,512], index: 27, kind: output, shape index: {1}]
  %28 = xla_tuple %s26, %s27
  %s29 = sld [smem:[#allocation0]]
  $region241: #{tpu_custom_call.1} parent=0
    _
  %s31 = ssub.s32 1, %s29
  %s32 = scalar_select 0, %s31, %s29
  $region1: #{tpu_custom_call.1} parent=0
    #allocation4 [shape = 'u8[1024]{0}', space=vmem, size = 0x400, scoped, tag = 'input window, operand 1, single buffered']
    #allocation5 [shape = 's32[2]{0}', space=sflag, size = 0x8, scoped, tag = 'scoped memory for tpu_custom_call.1']
    #allocation6 [shape = 's32[2]{0}', space=sflag, size = 0x8, scoped, tag = 'scoped memory for tpu_custom_call.1']
    #allocation7 [shape = 'u8[4096]{0}', space=vmem, size = 0x1000, scoped, tag = 'input window, operand 2, single buffered']
    #allocation8 [shape = 's32[1]{0}', space=sflag, size = 0x4, scoped, tag = 'scoped memory for tpu_custom_call.1']
    #allocation9 [shape = 'u8[512]{0}', space=vmem, size = 0x400, scoped, tag = 'input window, operand 3, single buffered']
    #allocation10 [shape = 'u8[1024]{0}', space=vmem, size = 0x400, scoped, tag = 'input window, operand 5, single buffered']
    #allocation11 [shape = 's32[1]{0}', space=sflag, size = 0x4, scoped, tag = 'scoped memory for tpu_custom_call.1']
    #allocation12 [shape = 'u8[8192]{0}', space=vmem, size = 0x2000, scoped, tag = 'input window, operand 6, single buffered']
    #allocation13 [shape = 'u8[512]{0}', space=vmem, size = 0x400, scoped, tag = 'input window, operand 7, single buffered']
    #allocation14 [shape = 's32[1]{0}', space=sflag, size = 0x4, scoped, tag = 'scoped memory for tpu_custom_call.1']
    #allocation15 [shape = 'u8[1024]{0}', space=vmem, size = 0x400, scoped, tag = 'input window, operand 9, single buffered']
    #allocation16 [shape = 'u8[8192]{0}', space=vmem, size = 0x2000, scoped, tag = 'input window, operand 10, single buffered']
    #allocation17 [shape = 's32[1]{0}', space=sflag, size = 0x4, scoped, tag = 'scoped memory for tpu_custom_call.1']
    #allocation18 [shape = 'u8[512]{0}', space=vmem, size = 0x400, scoped, tag = 'input window, operand 11, single buffered']
    #allocation19 [shape = 'u8[8192]{0}', space=vmem, size = 0x2000, scoped, tag = 'input window, operand 12, single buffered']
    #allocation20 [shape = 's32[1]{0}', space=sflag, size = 0x4, scoped, tag = 'scoped memory for tpu_custom_call.1']
    #allocation21 [shape = 'u8[1024]{0}', space=vmem, size = 0x400, scoped, tag = 'input window, operand 13, single buffered']
    #allocation22 [shape = 'u8[16384]{0}', space=vmem, size = 0x4000, scoped, tag = 'input window, operand 14, single buffered']
    #allocation23 [shape = 's32[1]{0}', space=sflag, size = 0x4, scoped, tag = 'scoped memory for tpu_custom_call.1']
    #allocation24 [shape = 'u8[512]{0}', space=vmem, size = 0x400, scoped, tag = 'input window, operand 15, single buffered']
    #allocation25 [shape = 'u8[4096]{0}', space=vmem, size = 0x1000, scoped, tag = 'input window, operand 16, single buffered']
    #allocation26 [shape = 's32[1]{0}', space=sflag, size = 0x4, scoped, tag = 'scoped memory for tpu_custom_call.1']
    #allocation27 [shape = 'u8[1024]{0}', space=vmem, size = 0x400, scoped, tag = 'input window, operand 17, single buffered']
    #allocation28 [shape = 'u8[28672]{0}', space=vmem, size = 0x7000, scoped, tag = 'input window, operand 18, single buffered']
    #allocation29 [shape = 's32[1]{0}', space=sflag, size = 0x4, scoped, tag = 'scoped memory for tpu_custom_call.1']
    #allocation30 [shape = 'u8[512]{0}', space=vmem, size = 0x400, scoped, tag = 'input window, operand 19, single buffered']
    #allocation31 [shape = 'u8[4259840]{0}', space=vmem, size = 0x410000, scoped, tag = 'input window, operand 20']
    #allocation32 [shape = 's32[2]{0}', space=sflag, size = 0x8, scoped, tag = 'scoped memory for tpu_custom_call.1']
    #allocation33 [shape = 'u8[8192]{0}', space=vmem, size = 0x2000, scoped, tag = 'input window, operand 21']
    #allocation34 [shape = 'u8[4194304]{0}', space=vmem, size = 0x400000, scoped, tag = 'input window, operand 22']
    #allocation35 [shape = 's32[2]{0}', space=sflag, size = 0x8, scoped, tag = 'scoped memory for tpu_custom_call.1']
    #allocation36 [shape = 'u8[2048]{0}', space=vmem, size = 0x800, scoped, tag = 'input window, operand 23, single buffered']
    #allocation37 [shape = 'u8[512]{0}', space=vmem, size = 0x400, scoped, tag = 'input window, operand 25, single buffered']
    #allocation38 [shape = 's32[1]{0}', space=sflag, size = 0x4, scoped, tag = 'scoped memory for tpu_custom_call.1']
    #allocation39 [shape = 'u8[1024]{0}', space=vmem, size = 0x400, scoped, tag = 'output window, operand 0, single buffered']
    #allocation40 [shape = 'u8[4096]{0}', space=vmem, size = 0x1000, scoped, tag = 'output window, operand 1, single buffered']
    #allocation41 [shape = 's32[1]{0}', space=sflag, size = 0x4, scoped, tag = 'scoped memory for tpu_custom_call.1']
    %33 = vsyncpa [#allocation5], 0
    %34 = vsyncpa [#allocation8], 0
    %35 = vsyncpa [#allocation11], 0
    %36 = vsyncpa [#allocation14], 0
    %37 = vsyncpa [#allocation17], 0
    %38 = vsyncpa [#allocation20], 0
    %39 = vsyncpa [#allocation23], 0
    %40 = vsyncpa [#allocation26], 0
    %41 = vsyncpa [#allocation29], 0
    %42 = vsyncpa [#allocation32], 0
    %s43 = scalar_lea.sflag [#allocation32], 1
    %44 = vsyncpa %s43, 0
    %45 = vsyncpa [#allocation35], 0
    %s46 = scalar_lea.sflag [#allocation35], 1
    %47 = vsyncpa %s46, 0
    %48 = vsyncpa [#allocation38], 0
    %49 = vsyncpa [#allocation6], 0
    %50 = vsyncpa [#allocation41], 0
    loop: start=0, step=1, limit=6
    $region2: #{tpu_custom_call.1} parent=1 // loop_pre_header
      _
    $region3: #{tpu_custom_call.1} parent=1 // loop_header
      %s52 = sphi 0, %s56
      %p53 = scmp.ge.s32.totalorder %s52, 6
      %s60 = sphi 0, %s60
      %s62 = sphi 0, %s60
      %s63 = sphi 0, %s62
      %s77 = sphi 0, %s63
      %s81 = sphi 0, %s81
      %s83 = sphi 0, %s81
      %s84 = sphi 0, %s83
      %s98 = sphi 0, %s84
      %s102 = sphi 0, %s102
      %s104 = sphi 0, %s102
      %s105 = sphi 0, %s104
      %s119 = sphi 0, %s105
      %s123 = sphi 0, %s123
      %s125 = sphi 0, %s123
      %s126 = sphi 0, %s125
      %s140 = sphi 0, %s126
      %s144 = sphi 0, %s144
      %s146 = sphi 0, %s144
      %s147 = sphi 0, %s146
      %s161 = sphi 0, %s147
      %s165 = sphi 0, %s165
      %s167 = sphi 0, %s165
      %s168 = sphi 0, %s167
      %s182 = sphi 0, %s168
      %s186 = sphi 0, %s186
      %s188 = sphi 0, %s186
      %s189 = sphi 0, %s188
      %s203 = sphi 0, %s189
      %s207 = sphi 0, %s207
      %s209 = sphi 0, %s207
      %s210 = sphi 0, %s209
      %s224 = sphi 0, %s210
      %s228 = sphi 0, %s228
      %s230 = sphi 0, %s228
      %s231 = sphi 0, %s230
      %s245 = sphi 0, %s231
      %s249 = sphi 0, %s249
      %s251 = sphi 0, %s249
      %s252 = sphi 0, %s251
      %s266 = sphi 0, %s252
      %s270 = sphi 0, %s270
      %s272 = sphi 0, %s270
      %s273 = sphi 0, %s272
      %s287 = sphi 0, %s273
      %s291 = sphi 0, %s291
      %s293 = sphi 0, %s291
      %s294 = sphi 0, %s293
      %s308 = sphi 0, %s294
      %s312 = sphi 0, %s312
      %s314 = sphi 0, %s312
      %s315 = sphi 0, %s314
      %s329 = sphi 0, %s315
      %s333 = sphi 0, %s333
      %s335 = sphi 0, %s333
      %s336 = sphi 0, %s335
      %s350 = sphi 0, %s336
      %s354 = sphi 0, %s354
      %s356 = sphi 0, %s354
      %s357 = sphi 0, %s356
      %s371 = sphi 0, %s357
      %s375 = sphi 0, %s375
      %s377 = sphi 0, %s375
      %s378 = sphi 0, %s377
      %s392 = sphi 0, %s378
      %s396 = sphi 0, %s396
      %s398 = sphi 0, %s396
      %s399 = sphi 0, %s398
      %s413 = sphi 0, %s399
      %s417 = sphi 0, %s417
      %s419 = sphi 0, %s417
      %s420 = sphi 0, %s419
      %s434 = sphi 0, %s420
      %s438 = sphi 0, %s438
      %s440 = sphi 0, %s438
      %s441 = sphi 0, %s440
      %s455 = sphi 0, %s441
      %s459 = sphi 0, %s459
      %s461 = sphi 0, %s459
      %s462 = sphi 0, %s461
      %s476 = sphi 0, %s462
      %s482 = sphi 0, %s484
      %s485 = sphi 0, %s482
      %s486 = sphi 0, %s485
      %s502 = sphi 0, %s486
      %s508 = sphi 0, %s510
      %s511 = sphi 0, %s508
      %s512 = sphi 0, %s511
      %s528 = sphi 0, %s512
      %s534 = sphi 0, %s536
      %s537 = sphi 0, %s534
      %s538 = sphi 0, %s537
      %s554 = sphi 0, %s538
      %s558 = sphi 0, %s558
      %s560 = sphi 0, %s558
      %s561 = sphi 0, %s560
      %s575 = sphi 0, %s561
      %s579 = sphi 0, %s579
      %s581 = sphi 0, %s579
      %s582 = sphi 0, %s581
      %s596 = sphi 0, %s582
      %s600 = sphi 0, %s600
      %s602 = sphi 0, %s600
      %s603 = sphi 0, %s602
      %s617 = sphi 0, %s603
      %s621 = sphi 0, %s621
      %s623 = sphi 0, %s621
      %s624 = sphi 0, %s623
      %s638 = sphi 0, %s624
      %s642 = sphi 0, %s642
      %s644 = sphi 0, %s642
      %s645 = sphi 0, %s644
      %s659 = sphi 0, %s645
    $region4: #{tpu_custom_call.1} parent=1 // loop_header_branch
      %55 = sbr.rel (%p53) target = $region8
    $region5: #{tpu_custom_call.1} parent=1 // loop_body
      %s57 = ssub.s32 %s52, 1
      %s58 = ssub.s32 %s52, 2
      %s59 = sadd.s32 %s52, 1
      %s61 = sadd.s32 %s60, 1
      %p64 = scmp.eq.s32.totalorder %s52, 3
      %p65 = scmp.ne.s32.totalorder %s60, %s62
      %p66 = scmp.eq.s32.totalorder %s52, 0
      %p67 = por %p65, %p66
      %p68 = scmp.ne.s32.totalorder %s60, %s62
      %p69 = scmp.eq.s32.totalorder %s57, 3
      %p70 = por %p68, %p69
      %p71 = scmp.ne.s32.totalorder %s62, %s63
      %p72 = scmp.eq.s32.totalorder %s57, 0
      %p73 = por %p71, %p72
      %p74 = scmp.ne.s32.totalorder %s62, %s63
      %p75 = scmp.eq.s32.totalorder %s58, 3
      %p76 = por %p74, %p75
      %p78 = scmp.ne.s32.totalorder %s63, %s77
      %p79 = scmp.eq.s32.totalorder %s58, 0
      %p80 = por %p78, %p79
      %s82 = sadd.s32 %s81, 1
      %p85 = scmp.eq.s32.totalorder %s52, 3
      %p86 = scmp.ne.s32.totalorder %s81, %s83
      %p87 = scmp.eq.s32.totalorder %s52, 0
      %p88 = por %p86, %p87
      %p89 = scmp.ne.s32.totalorder %s81, %s83
      %p90 = scmp.eq.s32.totalorder %s57, 3
      %p91 = por %p89, %p90
      %p92 = scmp.ne.s32.totalorder %s83, %s84
      %p93 = scmp.eq.s32.totalorder %s57, 0
      %p94 = por %p92, %p93
      %p95 = scmp.ne.s32.totalorder %s83, %s84
      %p96 = scmp.eq.s32.totalorder %s58, 3
      %p97 = por %p95, %p96
      %p99 = scmp.ne.s32.totalorder %s84, %s98
      %p100 = scmp.eq.s32.totalorder %s58, 0
      %p101 = por %p99, %p100
      %s103 = sadd.s32 %s102, 1
      %p106 = scmp.eq.s32.totalorder %s52, 3
      %p107 = scmp.ne.s32.totalorder %s102, %s104
      %p108 = scmp.eq.s32.totalorder %s52, 0
      %p109 = por %p107, %p108
      %p110 = scmp.ne.s32.totalorder %s102, %s104
      %p111 = scmp.eq.s32.totalorder %s57, 3
      %p112 = por %p110, %p111
      %p113 = scmp.ne.s32.totalorder %s104, %s105
      %p114 = scmp.eq.s32.totalorder %s57, 0
      %p115 = por %p113, %p114
      %p116 = scmp.ne.s32.totalorder %s104, %s105
      %p117 = scmp.eq.s32.totalorder %s58, 3
      %p118 = por %p116, %p117
      %p120 = scmp.ne.s32.totalorder %s105, %s119
      %p121 = scmp.eq.s32.totalorder %s58, 0
      %p122 = por %p120, %p121
      %s124 = sadd.s32 %s123, 1
      %p127 = scmp.eq.s32.totalorder %s52, 3
      %p128 = scmp.ne.s32.totalorder %s123, %s125
      %p129 = scmp.eq.s32.totalorder %s52, 0
      %p130 = por %p128, %p129
      %p131 = scmp.ne.s32.totalorder %s123, %s125
      %p132 = scmp.eq.s32.totalorder %s57, 3
      %p133 = por %p131, %p132
      %p134 = scmp.ne.s32.totalorder %s125, %s126
      %p135 = scmp.eq.s32.totalorder %s57, 0
      %p136 = por %p134, %p135
      %p137 = scmp.ne.s32.totalorder %s125, %s126
      %p138 = scmp.eq.s32.totalorder %s58, 3
      %p139 = por %p137, %p138
      %p141 = scmp.ne.s32.totalorder %s126, %s140
      %p142 = scmp.eq.s32.totalorder %s58, 0
      %p143 = por %p141, %p142
      %s145 = sadd.s32 %s144, 1
      %p148 = scmp.eq.s32.totalorder %s52, 3
      %p149 = scmp.ne.s32.totalorder %s144, %s146
      %p150 = scmp.eq.s32.totalorder %s52, 0
      %p151 = por %p149, %p150
      %p152 = scmp.ne.s32.totalorder %s144, %s146
      %p153 = scmp.eq.s32.totalorder %s57, 3
      %p154 = por %p152, %p153
      %p155 = scmp.ne.s32.totalorder %s146, %s147
      %p156 = scmp.eq.s32.totalorder %s57, 0
      %p157 = por %p155, %p156
      %p158 = scmp.ne.s32.totalorder %s146, %s147
      %p159 = scmp.eq.s32.totalorder %s58, 3
      %p160 = por %p158, %p159
      %p162 = scmp.ne.s32.totalorder %s147, %s161
      %p163 = scmp.eq.s32.totalorder %s58, 0
      %p164 = por %p162, %p163
      %s166 = sadd.s32 %s165, 1
      %p169 = scmp.eq.s32.totalorder %s52, 3
      %p170 = scmp.ne.s32.totalorder %s165, %s167
      %p171 = scmp.eq.s32.totalorder %s52, 0
      %p172 = por %p170, %p171
      %p173 = scmp.ne.s32.totalorder %s165, %s167
      %p174 = scmp.eq.s32.totalorder %s57, 3
      %p175 = por %p173, %p174
      %p176 = scmp.ne.s32.totalorder %s167, %s168
      %p177 = scmp.eq.s32.totalorder %s57, 0
      %p178 = por %p176, %p177
      %p179 = scmp.ne.s32.totalorder %s167, %s168
      %p180 = scmp.eq.s32.totalorder %s58, 3
      %p181 = por %p179, %p180
      %p183 = scmp.ne.s32.totalorder %s168, %s182
      %p184 = scmp.eq.s32.totalorder %s58, 0
      %p185 = por %p183, %p184
      %s187 = sadd.s32 %s186, 1
      %p190 = scmp.eq.s32.totalorder %s52, 3
      %p191 = scmp.ne.s32.totalorder %s186, %s188
      %p192 = scmp.eq.s32.totalorder %s52, 0
      %p193 = por %p191, %p192
      %p194 = scmp.ne.s32.totalorder %s186, %s188
      %p195 = scmp.eq.s32.totalorder %s57, 3
      %p196 = por %p194, %p195
      %p197 = scmp.ne.s32.totalorder %s188, %s189
      %p198 = scmp.eq.s32.totalorder %s57, 0
      %p199 = por %p197, %p198
      %p200 = scmp.ne.s32.totalorder %s188, %s189
      %p201 = scmp.eq.s32.totalorder %s58, 3
      %p202 = por %p200, %p201
      %p204 = scmp.ne.s32.totalorder %s189, %s203
      %p205 = scmp.eq.s32.totalorder %s58, 0
      %p206 = por %p204, %p205
      %s208 = sadd.s32 %s207, 1
      %p211 = scmp.eq.s32.totalorder %s52, 3
      %p212 = scmp.ne.s32.totalorder %s207, %s209
      %p213 = scmp.eq.s32.totalorder %s52, 0
      %p214 = por %p212, %p213
      %p215 = scmp.ne.s32.totalorder %s207, %s209
      %p216 = scmp.eq.s32.totalorder %s57, 3
      %p217 = por %p215, %p216
      %p218 = scmp.ne.s32.totalorder %s209, %s210
      %p219 = scmp.eq.s32.totalorder %s57, 0
      %p220 = por %p218, %p219
      %p221 = scmp.ne.s32.totalorder %s209, %s210
      %p222 = scmp.eq.s32.totalorder %s58, 3
      %p223 = por %p221, %p222
      %p225 = scmp.ne.s32.totalorder %s210, %s224
      %p226 = scmp.eq.s32.totalorder %s58, 0
      %p227 = por %p225, %p226
      %s229 = sadd.s32 %s228, 1
      %p232 = scmp.eq.s32.totalorder %s52, 3
      %p233 = scmp.ne.s32.totalorder %s228, %s230
      %p234 = scmp.eq.s32.totalorder %s52, 0
      %p235 = por %p233, %p234
      %p236 = scmp.ne.s32.totalorder %s228, %s230
      %p237 = scmp.eq.s32.totalorder %s57, 3
      %p238 = por %p236, %p237
      %p239 = scmp.ne.s32.totalorder %s230, %s231
      %p240 = scmp.eq.s32.totalorder %s57, 0
      %p241 = por %p239, %p240
      %p242 = scmp.ne.s32.totalorder %s230, %s231
      %p243 = scmp.eq.s32.totalorder %s58, 3
      %p244 = por %p242, %p243
      %p246 = scmp.ne.s32.totalorder %s231, %s245
      %p247 = scmp.eq.s32.totalorder %s58, 0
      %p248 = por %p246, %p247
      %s250 = sadd.s32 %s249, 1
      %p253 = scmp.eq.s32.totalorder %s52, 3
      %p254 = scmp.ne.s32.totalorder %s249, %s251
      %p255 = scmp.eq.s32.totalorder %s52, 0
      %p256 = por %p254, %p255
      %p257 = scmp.ne.s32.totalorder %s249, %s251
      %p258 = scmp.eq.s32.totalorder %s57, 3
      %p259 = por %p257, %p258
      %p260 = scmp.ne.s32.totalorder %s251, %s252
      %p261 = scmp.eq.s32.totalorder %s57, 0
      %p262 = por %p260, %p261
      %p263 = scmp.ne.s32.totalorder %s251, %s252
      %p264 = scmp.eq.s32.totalorder %s58, 3
      %p265 = por %p263, %p264
      %p267 = scmp.ne.s32.totalorder %s252, %s266
      %p268 = scmp.eq.s32.totalorder %s58, 0
      %p269 = por %p267, %p268
      %s271 = sadd.s32 %s270, 1
      %p274 = scmp.eq.s32.totalorder %s52, 3
      %p275 = scmp.ne.s32.totalorder %s270, %s272
      %p276 = scmp.eq.s32.totalorder %s52, 0
      %p277 = por %p275, %p276
      %p278 = scmp.ne.s32.totalorder %s270, %s272
      %p279 = scmp.eq.s32.totalorder %s57, 3
      %p280 = por %p278, %p279
      %p281 = scmp.ne.s32.totalorder %s272, %s273
      %p282 = scmp.eq.s32.totalorder %s57, 0
      %p283 = por %p281, %p282
      %p284 = scmp.ne.s32.totalorder %s272, %s273
      %p285 = scmp.eq.s32.totalorder %s58, 3
      %p286 = por %p284, %p285
      %p288 = scmp.ne.s32.totalorder %s273, %s287
      %p289 = scmp.eq.s32.totalorder %s58, 0
      %p290 = por %p288, %p289
      %s292 = sadd.s32 %s291, 1
      %p295 = scmp.eq.s32.totalorder %s52, 3
      %p296 = scmp.ne.s32.totalorder %s291, %s293
      %p297 = scmp.eq.s32.totalorder %s52, 0
      %p298 = por %p296, %p297
      %p299 = scmp.ne.s32.totalorder %s291, %s293
      %p300 = scmp.eq.s32.totalorder %s57, 3
      %p301 = por %p299, %p300
      %p302 = scmp.ne.s32.totalorder %s293, %s294
      %p303 = scmp.eq.s32.totalorder %s57, 0
      %p304 = por %p302, %p303
      %p305 = scmp.ne.s32.totalorder %s293, %s294
      %p306 = scmp.eq.s32.totalorder %s58, 3
      %p307 = por %p305, %p306
      %p309 = scmp.ne.s32.totalorder %s294, %s308
      %p310 = scmp.eq.s32.totalorder %s58, 0
      %p311 = por %p309, %p310
      %s313 = sadd.s32 %s312, 1
      %p316 = scmp.eq.s32.totalorder %s52, 3
      %p317 = scmp.ne.s32.totalorder %s312, %s314
      %p318 = scmp.eq.s32.totalorder %s52, 0
      %p319 = por %p317, %p318
      %p320 = scmp.ne.s32.totalorder %s312, %s314
      %p321 = scmp.eq.s32.totalorder %s57, 3
      %p322 = por %p320, %p321
      %p323 = scmp.ne.s32.totalorder %s314, %s315
      %p324 = scmp.eq.s32.totalorder %s57, 0
      %p325 = por %p323, %p324
      %p326 = scmp.ne.s32.totalorder %s314, %s315
      %p327 = scmp.eq.s32.totalorder %s58, 3
      %p328 = por %p326, %p327
      %p330 = scmp.ne.s32.totalorder %s315, %s329
      %p331 = scmp.eq.s32.totalorder %s58, 0
      %p332 = por %p330, %p331
      %s334 = sadd.s32 %s333, 1
      %p337 = scmp.eq.s32.totalorder %s52, 3
      %p338 = scmp.ne.s32.totalorder %s333, %s335
      %p339 = scmp.eq.s32.totalorder %s52, 0
      %p340 = por %p338, %p339
      %p341 = scmp.ne.s32.totalorder %s333, %s335
      %p342 = scmp.eq.s32.totalorder %s57, 3
      %p343 = por %p341, %p342
      %p344 = scmp.ne.s32.totalorder %s335, %s336
      %p345 = scmp.eq.s32.totalorder %s57, 0
      %p346 = por %p344, %p345
      %p347 = scmp.ne.s32.totalorder %s335, %s336
      %p348 = scmp.eq.s32.totalorder %s58, 3
      %p349 = por %p347, %p348
      %p351 = scmp.ne.s32.totalorder %s336, %s350
      %p352 = scmp.eq.s32.totalorder %s58, 0
      %p353 = por %p351, %p352
      %s355 = sadd.s32 %s354, 1
      %p358 = scmp.eq.s32.totalorder %s52, 3
      %p359 = scmp.ne.s32.totalorder %s354, %s356
      %p360 = scmp.eq.s32.totalorder %s52, 0
      %p361 = por %p359, %p360
      %p362 = scmp.ne.s32.totalorder %s354, %s356
      %p363 = scmp.eq.s32.totalorder %s57, 3
      %p364 = por %p362, %p363
      %p365 = scmp.ne.s32.totalorder %s356, %s357
      %p366 = scmp.eq.s32.totalorder %s57, 0
      %p367 = por %p365, %p366
      %p368 = scmp.ne.s32.totalorder %s356, %s357
      %p369 = scmp.eq.s32.totalorder %s58, 3
      %p370 = por %p368, %p369
      %p372 = scmp.ne.s32.totalorder %s357, %s371
      %p373 = scmp.eq.s32.totalorder %s58, 0
      %p374 = por %p372, %p373
      %s376 = sadd.s32 %s375, 1
      %p379 = scmp.eq.s32.totalorder %s52, 3
      %p380 = scmp.ne.s32.totalorder %s375, %s377
      %p381 = scmp.eq.s32.totalorder %s52, 0
      %p382 = por %p380, %p381
      %p383 = scmp.ne.s32.totalorder %s375, %s377
      %p384 = scmp.eq.s32.totalorder %s57, 3
      %p385 = por %p383, %p384
      %p386 = scmp.ne.s32.totalorder %s377, %s378
      %p387 = scmp.eq.s32.totalorder %s57, 0
      %p388 = por %p386, %p387
      %p389 = scmp.ne.s32.totalorder %s377, %s378
      %p390 = scmp.eq.s32.totalorder %s58, 3
      %p391 = por %p389, %p390
      %p393 = scmp.ne.s32.totalorder %s378, %s392
      %p394 = scmp.eq.s32.totalorder %s58, 0
      %p395 = por %p393, %p394
      %s397 = sadd.s32 %s396, 1
      %p400 = scmp.eq.s32.totalorder %s52, 3
      %p401 = scmp.ne.s32.totalorder %s396, %s398
      %p402 = scmp.eq.s32.totalorder %s52, 0
      %p403 = por %p401, %p402
      %p404 = scmp.ne.s32.totalorder %s396, %s398
      %p405 = scmp.eq.s32.totalorder %s57, 3
      %p406 = por %p404, %p405
      %p407 = scmp.ne.s32.totalorder %s398, %s399
      %p408 = scmp.eq.s32.totalorder %s57, 0
      %p409 = por %p407, %p408
      %p410 = scmp.ne.s32.totalorder %s398, %s399
      %p411 = scmp.eq.s32.totalorder %s58, 3
      %p412 = por %p410, %p411
      %p414 = scmp.ne.s32.totalorder %s399, %s413
      %p415 = scmp.eq.s32.totalorder %s58, 0
      %p416 = por %p414, %p415
      %s418 = sadd.s32 %s417, 1
      %p421 = scmp.eq.s32.totalorder %s52, 3
      %p422 = scmp.ne.s32.totalorder %s417, %s419
      %p423 = scmp.eq.s32.totalorder %s52, 0
      %p424 = por %p422, %p423
      %p425 = scmp.ne.s32.totalorder %s417, %s419
      %p426 = scmp.eq.s32.totalorder %s57, 3
      %p427 = por %p425, %p426
      %p428 = scmp.ne.s32.totalorder %s419, %s420
      %p429 = scmp.eq.s32.totalorder %s57, 0
      %p430 = por %p428, %p429
      %p431 = scmp.ne.s32.totalorder %s419, %s420
      %p432 = scmp.eq.s32.totalorder %s58, 3
      %p433 = por %p431, %p432
      %p435 = scmp.ne.s32.totalorder %s420, %s434
      %p436 = scmp.eq.s32.totalorder %s58, 0
      %p437 = por %p435, %p436
      %s439 = sadd.s32 %s438, 1
      %p442 = scmp.eq.s32.totalorder %s52, 3
      %p443 = scmp.ne.s32.totalorder %s438, %s440
      %p444 = scmp.eq.s32.totalorder %s52, 0
      %p445 = por %p443, %p444
      %p446 = scmp.ne.s32.totalorder %s438, %s440
      %p447 = scmp.eq.s32.totalorder %s57, 3
      %p448 = por %p446, %p447
      %p449 = scmp.ne.s32.totalorder %s440, %s441
      %p450 = scmp.eq.s32.totalorder %s57, 0
      %p451 = por %p449, %p450
      %p452 = scmp.ne.s32.totalorder %s440, %s441
      %p453 = scmp.eq.s32.totalorder %s58, 3
      %p454 = por %p452, %p453
      %p456 = scmp.ne.s32.totalorder %s441, %s455
      %p457 = scmp.eq.s32.totalorder %s58, 0
      %p458 = por %p456, %p457
      %s460 = sadd.s32 %s459, 1
      %p463 = scmp.eq.s32.totalorder %s52, 3
      %p464 = scmp.ne.s32.totalorder %s459, %s461
      %p465 = scmp.eq.s32.totalorder %s52, 0
      %p466 = por %p464, %p465
      %p467 = scmp.ne.s32.totalorder %s459, %s461
      %p468 = scmp.eq.s32.totalorder %s57, 3
      %p469 = por %p467, %p468
      %p470 = scmp.ne.s32.totalorder %s461, %s462
      %p471 = scmp.eq.s32.totalorder %s57, 0
      %p472 = por %p470, %p471
      %p473 = scmp.ne.s32.totalorder %s461, %s462
      %p474 = scmp.eq.s32.totalorder %s58, 3
      %p475 = por %p473, %p474
      %p477 = scmp.ne.s32.totalorder %s462, %s476
      %p478 = scmp.eq.s32.totalorder %s58, 0
      %p479 = por %p477, %p478
      %s480 = ssub.s32 %s52, %s59
      %p481 = scmp.eq.s32.totalorder %s480, 0
      %s483 = sadd.s32 %s482, 1
      %s484 = scalar_select %p481, %s482, %s483
      %p487 = pneg %p481
      %p488 = scmp.eq.s32.totalorder %s52, 3
      %p489 = por %p487, %p488
      %p490 = scmp.ne.s32.totalorder %s482, %s485
      %p491 = scmp.eq.s32.totalorder %s52, 0
      %p492 = por %p490, %p491
      %p493 = scmp.ne.s32.totalorder %s482, %s485
      %p494 = scmp.eq.s32.totalorder %s57, 3
      %p495 = por %p493, %p494
      %p496 = scmp.ne.s32.totalorder %s485, %s486
      %p497 = scmp.eq.s32.totalorder %s57, 0
      %p498 = por %p496, %p497
      %p499 = scmp.ne.s32.totalorder %s485, %s486
      %p500 = scmp.eq.s32.totalorder %s58, 3
      %p501 = por %p499, %p500
      %p503 = scmp.ne.s32.totalorder %s486, %s502
      %p504 = scmp.eq.s32.totalorder %s58, 0
      %p505 = por %p503, %p504
      %s506 = ssub.s32 %s52, %s59
      %p507 = scmp.eq.s32.totalorder %s506, 0
      %s509 = sadd.s32 %s508, 1
      %s510 = scalar_select %p507, %s508, %s509
      %p513 = pneg %p507
      %p514 = scmp.eq.s32.totalorder %s52, 3
      %p515 = por %p513, %p514
      %p516 = scmp.ne.s32.totalorder %s508, %s511
      %p517 = scmp.eq.s32.totalorder %s52, 0
      %p518 = por %p516, %p517
      %p519 = scmp.ne.s32.totalorder %s508, %s511
      %p520 = scmp.eq.s32.totalorder %s57, 3
      %p521 = por %p519, %p520
      %p522 = scmp.ne.s32.totalorder %s511, %s512
      %p523 = scmp.eq.s32.totalorder %s57, 0
      %p524 = por %p522, %p523
      %p525 = scmp.ne.s32.totalorder %s511, %s512
      %p526 = scmp.eq.s32.totalorder %s58, 3
      %p527 = por %p525, %p526
      %p529 = scmp.ne.s32.totalorder %s512, %s528
      %p530 = scmp.eq.s32.totalorder %s58, 0
      %p531 = por %p529, %p530
      %s532 = ssub.s32 %s52, %s59
      %p533 = scmp.eq.s32.totalorder %s532, 0
      %s535 = sadd.s32 %s534, 1
      %s536 = scalar_select %p533, %s534, %s535
      %p539 = pneg %p533
      %p540 = scmp.eq.s32.totalorder %s52, 3
      %p541 = por %p539, %p540
      %p542 = scmp.ne.s32.totalorder %s534, %s537
      %p543 = scmp.eq.s32.totalorder %s52, 0
      %p544 = por %p542, %p543
      %p545 = scmp.ne.s32.totalorder %s534, %s537
      %p546 = scmp.eq.s32.totalorder %s57, 3
      %p547 = por %p545, %p546
      %p548 = scmp.ne.s32.totalorder %s537, %s538
      %p549 = scmp.eq.s32.totalorder %s57, 0
      %p550 = por %p548, %p549
      %p551 = scmp.ne.s32.totalorder %s537, %s538
      %p552 = scmp.eq.s32.totalorder %s58, 3
      %p553 = por %p551, %p552
      %p555 = scmp.ne.s32.totalorder %s538, %s554
      %p556 = scmp.eq.s32.totalorder %s58, 0
      %p557 = por %p555, %p556
      %s559 = sadd.s32 %s558, 1
      %p562 = scmp.eq.s32.totalorder %s52, 3
      %p563 = scmp.ne.s32.totalorder %s558, %s560
      %p564 = scmp.eq.s32.totalorder %s52, 0
      %p565 = por %p563, %p564
      %p566 = scmp.ne.s32.totalorder %s558, %s560
      %p567 = scmp.eq.s32.totalorder %s57, 3
      %p568 = por %p566, %p567
      %p569 = scmp.ne.s32.totalorder %s560, %s561
      %p570 = scmp.eq.s32.totalorder %s57, 0
      %p571 = por %p569, %p570
      %p572 = scmp.ne.s32.totalorder %s560, %s561
      %p573 = scmp.eq.s32.totalorder %s58, 3
      %p574 = por %p572, %p573
      %p576 = scmp.ne.s32.totalorder %s561, %s575
      %p577 = scmp.eq.s32.totalorder %s58, 0
      %p578 = por %p576, %p577
      %s580 = sadd.s32 %s579, 1
      %p583 = scmp.eq.s32.totalorder %s52, 3
      %p584 = scmp.ne.s32.totalorder %s579, %s581
      %p585 = scmp.eq.s32.totalorder %s52, 0
      %p586 = por %p584, %p585
      %p587 = scmp.ne.s32.totalorder %s579, %s581
      %p588 = scmp.eq.s32.totalorder %s57, 3
      %p589 = por %p587, %p588
      %p590 = scmp.ne.s32.totalorder %s581, %s582
      %p591 = scmp.eq.s32.totalorder %s57, 0
      %p592 = por %p590, %p591
      %p593 = scmp.ne.s32.totalorder %s581, %s582
      %p594 = scmp.eq.s32.totalorder %s58, 3
      %p595 = por %p593, %p594
      %p597 = scmp.ne.s32.totalorder %s582, %s596
      %p598 = scmp.eq.s32.totalorder %s58, 0
      %p599 = por %p597, %p598
      %s601 = sadd.s32 %s600, 1
      %p604 = scmp.eq.s32.totalorder %s52, 3
      %p605 = scmp.ne.s32.totalorder %s600, %s602
      %p606 = scmp.eq.s32.totalorder %s52, 0
      %p607 = por %p605, %p606
      %p608 = scmp.ne.s32.totalorder %s600, %s602
      %p609 = scmp.eq.s32.totalorder %s57, 3
      %p610 = por %p608, %p609
      %p611 = scmp.ne.s32.totalorder %s602, %s603
      %p612 = scmp.eq.s32.totalorder %s57, 0
      %p613 = por %p611, %p612
      %p614 = scmp.ne.s32.totalorder %s602, %s603
      %p615 = scmp.eq.s32.totalorder %s58, 3
      %p616 = por %p614, %p615
      %p618 = scmp.ne.s32.totalorder %s603, %s617
      %p619 = scmp.eq.s32.totalorder %s58, 0
      %p620 = por %p618, %p619
      %s622 = sadd.s32 %s621, 1
      %p625 = scmp.eq.s32.totalorder %s52, 3
      %p626 = scmp.ne.s32.totalorder %s621, %s623
      %p627 = scmp.eq.s32.totalorder %s52, 0
      %p628 = por %p626, %p627
      %p629 = scmp.ne.s32.totalorder %s621, %s623
      %p630 = scmp.eq.s32.totalorder %s57, 3
      %p631 = por %p629, %p630
      %p632 = scmp.ne.s32.totalorder %s623, %s624
      %p633 = scmp.eq.s32.totalorder %s57, 0
      %p634 = por %p632, %p633
      %p635 = scmp.ne.s32.totalorder %s623, %s624
      %p636 = scmp.eq.s32.totalorder %s58, 3
      %p637 = por %p635, %p636
      %p639 = scmp.ne.s32.totalorder %s624, %s638
      %p640 = scmp.eq.s32.totalorder %s58, 0
      %p641 = por %p639, %p640
      %s643 = sadd.s32 %s642, 1
      %p646 = scmp.eq.s32.totalorder %s52, 3
      %p647 = scmp.ne.s32.totalorder %s642, %s644
      %p648 = scmp.eq.s32.totalorder %s52, 0
      %p649 = por %p647, %p648
      %p650 = scmp.ne.s32.totalorder %s642, %s644
      %p651 = scmp.eq.s32.totalorder %s57, 3
      %p652 = por %p650, %p651
      %p653 = scmp.ne.s32.totalorder %s644, %s645
      %p654 = scmp.eq.s32.totalorder %s57, 0
      %p655 = por %p653, %p654
      %p656 = scmp.ne.s32.totalorder %s644, %s645
      %p657 = scmp.eq.s32.totalorder %s58, 3
      %p658 = por %p656, %p657
      %p660 = scmp.ne.s32.totalorder %s645, %s659
      %p661 = scmp.eq.s32.totalorder %s58, 0
      %p662 = por %p660, %p661
      %p663 = scmp.le.s32.totalorder 1, %s52
      %p664 = scmp.lt.s32.totalorder %s52, 5
      %p665 = pnand %p663, %p664
      %p666 = pneg %p665
      // Predicated region
      $region9: #{tpu_custom_call.1} parent=5 // pred_check
        _
      $region10: #{tpu_custom_call.1} parent=5 // pred_check_branch
        %668 = sbr.rel (%p665) target = $region12
      $region11: #{tpu_custom_call.1} parent=5 // pred_region
        %s669 = ssub.s32 %s52, 1
        // Predicated region
        $region13: #{tpu_custom_call.1} parent=11 // pred_check
          %p670 = pneg %p73
        $region14: #{tpu_custom_call.1} parent=11 // pred_check_branch
          %672 = sbr.rel (%p670) target = $region16
        $region15: #{tpu_custom_call.1} parent=11 // pred_region
          _
        $region16: #{tpu_custom_call.1} parent=11 // pred_fallthru
          _
        // Predicated region
        $region17: #{tpu_custom_call.1} parent=11 // pred_check
          %p673 = pneg %p94
        $region18: #{tpu_custom_call.1} parent=11 // pred_check_branch
          %675 = sbr.rel (%p673) target = $region20
        $region19: #{tpu_custom_call.1} parent=11 // pred_region
          %s677 = ssub.s32 32, 32
          %678 = vsyncadd [#allocation5], %s677
          %s680 = sshll.u32 [#allocation4], 4
          %s681 = int_to_ptr.vmem [resolvable:$true] %s680
          %683 = dma.hbm_to_vmem [thread:$0]  %s1, 32, %s681, [#allocation5]
        $region20: #{tpu_custom_call.1} parent=11 // pred_fallthru
          _
        // Predicated region
        $region21: #{tpu_custom_call.1} parent=11 // pred_check
          %p684 = pneg %p115
        $region22: #{tpu_custom_call.1} parent=11 // pred_check_branch
          %686 = sbr.rel (%p684) target = $region24
        $region23: #{tpu_custom_call.1} parent=11 // pred_region
          %s688 = ssub.s32 128, 128
          %689 = vsyncadd [#allocation8], %s688
          %s691 = sshll.u32 [#allocation7], 4
          %s692 = int_to_ptr.vmem [resolvable:$true] %s691
          %694 = dma.hbm_to_vmem [thread:$0]  %s2, 128, %s692, [#allocation8]
        $region24: #{tpu_custom_call.1} parent=11 // pred_fallthru
          _
        // Predicated region
        $region25: #{tpu_custom_call.1} parent=11 // pred_check
          %p695 = pneg %p136
        $region26: #{tpu_custom_call.1} parent=11 // pred_check_branch
          %697 = sbr.rel (%p695) target = $region28
        $region27: #{tpu_custom_call.1} parent=11 // pred_region
          %s699 = ssub.s32 16, 16
          %700 = vsyncadd [#allocation8], %s699
          %s702 = sshll.u32 [#allocation9], 4
          %s703 = int_to_ptr.vmem [resolvable:$true] %s702
          %705 = dma.hbm_to_vmem [thread:$0]  %s3, 16, %s703, [#allocation8]
        $region28: #{tpu_custom_call.1} parent=11 // pred_fallthru
          _
        // Predicated region
        $region29: #{tpu_custom_call.1} parent=11 // pred_check
          %p706 = pneg %p157
        $region30: #{tpu_custom_call.1} parent=11 // pred_check_branch
          %708 = sbr.rel (%p706) target = $region32
        $region31: #{tpu_custom_call.1} parent=11 // pred_region
          _
        $region32: #{tpu_custom_call.1} parent=11 // pred_fallthru
          _
        // Predicated region
        $region33: #{tpu_custom_call.1} parent=11 // pred_check
          %p709 = pneg %p178
        $region34: #{tpu_custom_call.1} parent=11 // pred_check_branch
          %711 = sbr.rel (%p709) target = $region36
        $region35: #{tpu_custom_call.1} parent=11 // pred_region
          %s713 = ssub.s32 32, 32
          %714 = vsyncadd [#allocation11], %s713
          %s716 = sshll.u32 [#allocation10], 4
          %s717 = int_to_ptr.vmem [resolvable:$true] %s716
          %719 = dma.hbm_to_vmem [thread:$0]  %s5, 32, %s717, [#allocation11]
        $region36: #{tpu_custom_call.1} parent=11 // pred_fallthru
          _
        // Predicated region
        $region37: #{tpu_custom_call.1} parent=11 // pred_check
          %p720 = pneg %p199
        $region38: #{tpu_custom_call.1} parent=11 // pred_check_branch
          %722 = sbr.rel (%p720) target = $region40
        $region39: #{tpu_custom_call.1} parent=11 // pred_region
          %s724 = ssub.s32 256, 256
          %725 = vsyncadd [#allocation11], %s724
          %s726 = sshll.u32 [#allocation12], 4
          %s727 = int_to_ptr.vmem [resolvable:$true] %s726
          %732 = dma.hbm_to_vmem [thread:$0]  %s6, 256, %s727, [#allocation11], 128, 128, 8
        $region40: #{tpu_custom_call.1} parent=11 // pred_fallthru
          _
        // Predicated region
        $region41: #{tpu_custom_call.1} parent=11 // pred_check
          %p733 = pneg %p220
        $region42: #{tpu_custom_call.1} parent=11 // pred_check_branch
          %735 = sbr.rel (%p733) target = $region44
        $region43: #{tpu_custom_call.1} parent=11 // pred_region
          %s737 = ssub.s32 16, 16
          %738 = vsyncadd [#allocation14], %s737
          %s740 = sshll.u32 [#allocation13], 4
          %s741 = int_to_ptr.vmem [resolvable:$true] %s740
          %743 = dma.hbm_to_vmem [thread:$0]  %s7, 16, %s741, [#allocation14]
        $region44: #{tpu_custom_call.1} parent=11 // pred_fallthru
          _
        // Predicated region
        $region45: #{tpu_custom_call.1} parent=11 // pred_check
          %p744 = pneg %p241
        $region46: #{tpu_custom_call.1} parent=11 // pred_check_branch
          %746 = sbr.rel (%p744) target = $region48
        $region47: #{tpu_custom_call.1} parent=11 // pred_region
          _
        $region48: #{tpu_custom_call.1} parent=11 // pred_fallthru
          _
        // Predicated region
        $region49: #{tpu_custom_call.1} parent=11 // pred_check
          %p747 = pneg %p262
        $region50: #{tpu_custom_call.1} parent=11 // pred_check_branch
          %749 = sbr.rel (%p747) target = $region52
        $region51: #{tpu_custom_call.1} parent=11 // pred_region
          %s751 = ssub.s32 32, 32
          %752 = vsyncadd [#allocation14], %s751
          %s754 = sshll.u32 [#allocation15], 4
          %s755 = int_to_ptr.vmem [resolvable:$true] %s754
          %757 = dma.hbm_to_vmem [thread:$0]  %s9, 32, %s755, [#allocation14]
        $region52: #{tpu_custom_call.1} parent=11 // pred_fallthru
          _
        // Predicated region
        $region53: #{tpu_custom_call.1} parent=11 // pred_check
          %p758 = pneg %p283
        $region54: #{tpu_custom_call.1} parent=11 // pred_check_branch
          %760 = sbr.rel (%p758) target = $region56
        $region55: #{tpu_custom_call.1} parent=11 // pred_region
          %s762 = ssub.s32 256, 256
          %763 = vsyncadd [#allocation17], %s762
          %s764 = sshll.u32 [#allocation16], 4
          %s765 = int_to_ptr.vmem [resolvable:$true] %s764
          %770 = dma.hbm_to_vmem [thread:$0]  %s10, 256, %s765, [#allocation17], 128, 128, 8
        $region56: #{tpu_custom_call.1} parent=11 // pred_fallthru
          _
        // Predicated region
        $region57: #{tpu_custom_call.1} parent=11 // pred_check
          %p771 = pneg %p304
        $region58: #{tpu_custom_call.1} parent=11 // pred_check_branch
          %773 = sbr.rel (%p771) target = $region60
        $region59: #{tpu_custom_call.1} parent=11 // pred_region
          %s775 = ssub.s32 16, 16
          %776 = vsyncadd [#allocation17], %s775
          %s778 = sshll.u32 [#allocation18], 4
          %s779 = int_to_ptr.vmem [resolvable:$true] %s778
          %781 = dma.hbm_to_vmem [thread:$0]  %s11, 16, %s779, [#allocation17]
        $region60: #{tpu_custom_call.1} parent=11 // pred_fallthru
          _
        // Predicated region
        $region61: #{tpu_custom_call.1} parent=11 // pred_check
          %p782 = pneg %p325
        $region62: #{tpu_custom_call.1} parent=11 // pred_check_branch
          %784 = sbr.rel (%p782) target = $region64
        $region63: #{tpu_custom_call.1} parent=11 // pred_region
          %s786 = ssub.s32 256, 256
          %787 = vsyncadd [#allocation20], %s786
          %s788 = sshll.u32 [#allocation19], 4
          %s789 = int_to_ptr.vmem [resolvable:$true] %s788
          %794 = dma.hbm_to_vmem [thread:$0]  %s12, 256, %s789, [#allocation20], 128, 128, 8
        $region64: #{tpu_custom_call.1} parent=11 // pred_fallthru
          _
        // Predicated region
        $region65: #{tpu_custom_call.1} parent=11 // pred_check
          %p795 = pneg %p346
        $region66: #{tpu_custom_call.1} parent=11 // pred_check_branch
          %797 = sbr.rel (%p795) target = $region68
        $region67: #{tpu_custom_call.1} parent=11 // pred_region
          %s799 = ssub.s32 32, 32
          %800 = vsyncadd [#allocation20], %s799
          %s802 = sshll.u32 [#allocation21], 4
          %s803 = int_to_ptr.vmem [resolvable:$true] %s802
          %805 = dma.hbm_to_vmem [thread:$0]  %s13, 32, %s803, [#allocation20]
        $region68: #{tpu_custom_call.1} parent=11 // pred_fallthru
          _
        // Predicated region
        $region69: #{tpu_custom_call.1} parent=11 // pred_check
          %p806 = pneg %p367
        $region70: #{tpu_custom_call.1} parent=11 // pred_check_branch
          %808 = sbr.rel (%p806) target = $region72
        $region71: #{tpu_custom_call.1} parent=11 // pred_region
          %s810 = ssub.s32 512, 512
          %811 = vsyncadd [#allocation23], %s810
          %s812 = sshll.u32 [#allocation22], 4
          %s813 = int_to_ptr.vmem [resolvable:$true] %s812
          %818 = dma.hbm_to_vmem [thread:$0]  %s14, 512, %s813, [#allocation23], 128, 128, 8
        $region72: #{tpu_custom_call.1} parent=11 // pred_fallthru
          _
        // Predicated region
        $region73: #{tpu_custom_call.1} parent=11 // pred_check
          %p819 = pneg %p388
        $region74: #{tpu_custom_call.1} parent=11 // pred_check_branch
          %821 = sbr.rel (%p819) target = $region76
        $region75: #{tpu_custom_call.1} parent=11 // pred_region
          %s823 = ssub.s32 16, 16
          %824 = vsyncadd [#allocation23], %s823
          %s826 = sshll.u32 [#allocation24], 4
          %s827 = int_to_ptr.vmem [resolvable:$true] %s826
          %829 = dma.hbm_to_vmem [thread:$0]  %s15, 16, %s827, [#allocation23]
        $region76: #{tpu_custom_call.1} parent=11 // pred_fallthru
          _
        // Predicated region
        $region77: #{tpu_custom_call.1} parent=11 // pred_check
          %p830 = pneg %p409
        $region78: #{tpu_custom_call.1} parent=11 // pred_check_branch
          %832 = sbr.rel (%p830) target = $region80
        $region79: #{tpu_custom_call.1} parent=11 // pred_region
          %s834 = ssub.s32 128, 128
          %835 = vsyncadd [#allocation26], %s834
          %s837 = sshll.u32 [#allocation25], 4
          %s838 = int_to_ptr.vmem [resolvable:$true] %s837
          %840 = dma.hbm_to_vmem [thread:$0]  %s16, 128, %s838, [#allocation26]
        $region80: #{tpu_custom_call.1} parent=11 // pred_fallthru
          _
        // Predicated region
        $region81: #{tpu_custom_call.1} parent=11 // pred_check
          %p841 = pneg %p430
        $region82: #{tpu_custom_call.1} parent=11 // pred_check_branch
          %843 = sbr.rel (%p841) target = $region84
        $region83: #{tpu_custom_call.1} parent=11 // pred_region
          %s845 = ssub.s32 32, 32
          %846 = vsyncadd [#allocation26], %s845
          %s848 = sshll.u32 [#allocation27], 4
          %s849 = int_to_ptr.vmem [resolvable:$true] %s848
          %851 = dma.hbm_to_vmem [thread:$0]  %s17, 32, %s849, [#allocation26]
        $region84: #{tpu_custom_call.1} parent=11 // pred_fallthru
          _
        // Predicated region
        $region85: #{tpu_custom_call.1} parent=11 // pred_check
          %p852 = pneg %p451
        $region86: #{tpu_custom_call.1} parent=11 // pred_check_branch
          %854 = sbr.rel (%p852) target = $region88
        $region87: #{tpu_custom_call.1} parent=11 // pred_region
          %s856 = ssub.s32 896, 896
          %857 = vsyncadd [#allocation29], %s856
          %s858 = sshll.u32 [#allocation28], 4
          %s859 = int_to_ptr.vmem [resolvable:$true] %s858
          %864 = dma.hbm_to_vmem [thread:$0]  %s18, 896, %s859, [#allocation29], 128, 128, 8
        $region88: #{tpu_custom_call.1} parent=11 // pred_fallthru
          _
        // Predicated region
        $region89: #{tpu_custom_call.1} parent=11 // pred_check
          %p865 = pneg %p472
        $region90: #{tpu_custom_call.1} parent=11 // pred_check_branch
          %867 = sbr.rel (%p865) target = $region92
        $region91: #{tpu_custom_call.1} parent=11 // pred_region
          %s869 = ssub.s32 16, 16
          %870 = vsyncadd [#allocation29], %s869
          %s872 = sshll.u32 [#allocation30], 4
          %s873 = int_to_ptr.vmem [resolvable:$true] %s872
          %875 = dma.hbm_to_vmem [thread:$0]  %s19, 16, %s873, [#allocation29]
        $region92: #{tpu_custom_call.1} parent=11 // pred_fallthru
          _
        // Predicated region
        $region93: #{tpu_custom_call.1} parent=11 // pred_check
          %p876 = pneg %p571
        $region94: #{tpu_custom_call.1} parent=11 // pred_check_branch
          %878 = sbr.rel (%p876) target = $region96
        $region95: #{tpu_custom_call.1} parent=11 // pred_region
          %s880 = ssub.s32 64, 64
          %881 = vsyncadd [#allocation35], %s880
          %s883 = sshll.u32 [#allocation36], 4
          %s884 = int_to_ptr.vmem [resolvable:$true] %s883
          %886 = dma.hbm_to_vmem [thread:$0]  %s23, 64, %s884, [#allocation35]
        $region96: #{tpu_custom_call.1} parent=11 // pred_fallthru
          _
        // Predicated region
        $region97: #{tpu_custom_call.1} parent=11 // pred_check
          %p887 = pneg %p592
        $region98: #{tpu_custom_call.1} parent=11 // pred_check_branch
          %889 = sbr.rel (%p887) target = $region100
        $region99: #{tpu_custom_call.1} parent=11 // pred_region
          _
        $region100: #{tpu_custom_call.1} parent=11 // pred_fallthru
          _
        // Predicated region
        $region101: #{tpu_custom_call.1} parent=11 // pred_check
          %p890 = pneg %p613
        $region102: #{tpu_custom_call.1} parent=11 // pred_check_branch
          %892 = sbr.rel (%p890) target = $region104
        $region103: #{tpu_custom_call.1} parent=11 // pred_region
          %s894 = ssub.s32 16, 16
          %895 = vsyncadd [#allocation38], %s894
          %s897 = sshll.u32 [#allocation37], 4
          %s898 = int_to_ptr.vmem [resolvable:$true] %s897
          %900 = dma.hbm_to_vmem [thread:$0]  %s25, 16, %s898, [#allocation38]
        $region104: #{tpu_custom_call.1} parent=11 // pred_fallthru
          _
      $region12: #{tpu_custom_call.1} parent=5 // pred_fallthru
        _
      %p901 = scmp.lt.s32.totalorder %s52, 4
      // Predicated region
      $region105: #{tpu_custom_call.1} parent=5 // pred_check
        %p902 = pneg %p901
      $region106: #{tpu_custom_call.1} parent=5 // pred_check_branch
        %904 = sbr.rel (%p902) target = $region108
      $region107: #{tpu_custom_call.1} parent=5 // pred_region
        // Predicated region
        $region109: #{tpu_custom_call.1} parent=107 // pred_check
          %p905 = pneg %p492
        $region110: #{tpu_custom_call.1} parent=107 // pred_check_branch
          %907 = sbr.rel (%p905) target = $region112
        $region111: #{tpu_custom_call.1} parent=107 // pred_region
          %s908 = sand.u32 %s52, 1
          %s909 = scalar_lea.sflag [#allocation32], %s908
          %s910 = sand.u32 %s482, 1
          %s911 = smul.addr %s910, 4160
          %s912 = scalar_lea.vmem [#allocation31], %s911
          %s913 = smul.u32 8, %s52
          %s915 = ssub.s32 66560, 66560
          %916 = vsyncadd %s909, %s915
          %s917 = smul.addr %s913, 128
          %s918 = scalar_lea.hbm %s20, %s917
          %s919 = sshll.u32 %s912, 4
          %s920 = int_to_ptr.vmem [resolvable:$true] %s919
          %925 = dma.hbm_to_vmem [thread:$0]  %s918, 66560, %s920, %s909, 4096, 1024, 64
        $region112: #{tpu_custom_call.1} parent=107 // pred_fallthru
          _
        // Predicated region
        $region113: #{tpu_custom_call.1} parent=107 // pred_check
          %p926 = pneg %p518
        $region114: #{tpu_custom_call.1} parent=107 // pred_check_branch
          %928 = sbr.rel (%p926) target = $region116
        $region115: #{tpu_custom_call.1} parent=107 // pred_region
          %s929 = sand.u32 %s52, 1
          %s930 = scalar_lea.sflag [#allocation32], %s929
          %s931 = sand.u32 %s508, 1
          %s932 = smul.addr %s931, 8
          %s933 = scalar_lea.vmem [#allocation33], %s932
          %s934 = smul.u32 8, %s52
          %s936 = ssub.s32 128, 128
          %937 = vsyncadd %s930, %s936
          %s938 = smul.addr %s934, 16
          %s939 = scalar_lea.hbm %s21, %s938
          %s941 = sshll.u32 %s933, 4
          %s942 = int_to_ptr.vmem [resolvable:$true] %s941
          %944 = dma.hbm_to_vmem [thread:$0]  %s939, 128, %s942, %s930
        $region116: #{tpu_custom_call.1} parent=107 // pred_fallthru
          _
        // Predicated region
        $region117: #{tpu_custom_call.1} parent=107 // pred_check
          %p945 = pneg %p544
        $region118: #{tpu_custom_call.1} parent=107 // pred_check_branch
          %947 = sbr.rel (%p945) target = $region120
        $region119: #{tpu_custom_call.1} parent=107 // pred_region
          %s948 = sand.u32 %s52, 1
          %s949 = scalar_lea.sflag [#allocation35], %s948
          %s950 = sand.u32 %s534, 1
          %s951 = smul.addr %s950, 4096
          %s952 = scalar_lea.vmem [#allocation34], %s951
          %s953 = smul.u32 128, %s52
          %s955 = ssub.s32 65536, 65536
          %956 = vsyncadd %s949, %s955
          %s957 = smul.addr %s953, 4
          %s958 = smul.addr %s957, 128
          %s959 = scalar_lea.hbm %s22, %s958
          %s960 = sshll.u32 %s952, 4
          %s961 = int_to_ptr.vmem [resolvable:$true] %s960
          %966 = dma.hbm_to_vmem [thread:$0]  %s959, 65536, %s961, %s949, 512, 512, 32
        $region120: #{tpu_custom_call.1} parent=107 // pred_fallthru
          _
      $region108: #{tpu_custom_call.1} parent=5 // pred_fallthru
        _
      %p967 = scmp.le.s32.totalorder 1, %s52
      %p968 = scmp.lt.s32.totalorder %s52, 5
      %p969 = pnand %p967, %p968
      %p970 = pneg %p969
      // Predicated region
      $region121: #{tpu_custom_call.1} parent=5 // pred_check
        _
      $region122: #{tpu_custom_call.1} parent=5 // pred_check_branch
        %972 = sbr.rel (%p969) target = $region124
      $region123: #{tpu_custom_call.1} parent=5 // pred_region
        %s973 = ssub.s32 %s52, 1
        // Predicated region
        $region125: #{tpu_custom_call.1} parent=123 // pred_check
          %p974 = pneg %p94
        $region126: #{tpu_custom_call.1} parent=123 // pred_check_branch
          %976 = sbr.rel (%p974) target = $region128
        $region127: #{tpu_custom_call.1} parent=123 // pred_region
          %977 = dma.done [#allocation5], 32
        $region128: #{tpu_custom_call.1} parent=123 // pred_fallthru
          _
        // Predicated region
        $region129: #{tpu_custom_call.1} parent=123 // pred_check
          %p978 = pneg %p115
        $region130: #{tpu_custom_call.1} parent=123 // pred_check_branch
          %980 = sbr.rel (%p978) target = $region132
        $region131: #{tpu_custom_call.1} parent=123 // pred_region
          %981 = dma.done [#allocation8], 128
        $region132: #{tpu_custom_call.1} parent=123 // pred_fallthru
          _
        // Predicated region
        $region133: #{tpu_custom_call.1} parent=123 // pred_check
          %p982 = pneg %p136
        $region134: #{tpu_custom_call.1} parent=123 // pred_check_branch
          %984 = sbr.rel (%p982) target = $region136
        $region135: #{tpu_custom_call.1} parent=123 // pred_region
          %985 = dma.done [#allocation8], 16
        $region136: #{tpu_custom_call.1} parent=123 // pred_fallthru
          _
        // Predicated region
        $region137: #{tpu_custom_call.1} parent=123 // pred_check
          %p986 = pneg %p178
        $region138: #{tpu_custom_call.1} parent=123 // pred_check_branch
          %988 = sbr.rel (%p986) target = $region140
        $region139: #{tpu_custom_call.1} parent=123 // pred_region
          %989 = dma.done [#allocation11], 32
        $region140: #{tpu_custom_call.1} parent=123 // pred_fallthru
          _
        // Predicated region
        $region141: #{tpu_custom_call.1} parent=123 // pred_check
          %p990 = pneg %p199
        $region142: #{tpu_custom_call.1} parent=123 // pred_check_branch
          %992 = sbr.rel (%p990) target = $region144
        $region143: #{tpu_custom_call.1} parent=123 // pred_region
          %993 = dma.done [#allocation11], 256
        $region144: #{tpu_custom_call.1} parent=123 // pred_fallthru
          _
        // Predicated region
        $region145: #{tpu_custom_call.1} parent=123 // pred_check
          %p994 = pneg %p220
        $region146: #{tpu_custom_call.1} parent=123 // pred_check_branch
          %996 = sbr.rel (%p994) target = $region148
        $region147: #{tpu_custom_call.1} parent=123 // pred_region
          %997 = dma.done [#allocation14], 16
        $region148: #{tpu_custom_call.1} parent=123 // pred_fallthru
          _
        // Predicated region
        $region149: #{tpu_custom_call.1} parent=123 // pred_check
          %p998 = pneg %p262
        $region150: #{tpu_custom_call.1} parent=123 // pred_check_branch
          %1000 = sbr.rel (%p998) target = $region152
        $region151: #{tpu_custom_call.1} parent=123 // pred_region
          %1001 = dma.done [#allocation14], 32
        $region152: #{tpu_custom_call.1} parent=123 // pred_fallthru
          _
        // Predicated region
        $region153: #{tpu_custom_call.1} parent=123 // pred_check
          %p1002 = pneg %p283
        $region154: #{tpu_custom_call.1} parent=123 // pred_check_branch
          %1004 = sbr.rel (%p1002) target = $region156
        $region155: #{tpu_custom_call.1} parent=123 // pred_region
          %1005 = dma.done [#allocation17], 256
        $region156: #{tpu_custom_call.1} parent=123 // pred_fallthru
          _
        // Predicated region
        $region157: #{tpu_custom_call.1} parent=123 // pred_check
          %p1006 = pneg %p304
        $region158: #{tpu_custom_call.1} parent=123 // pred_check_branch
          %1008 = sbr.rel (%p1006) target = $region160
        $region159: #{tpu_custom_call.1} parent=123 // pred_region
          %1009 = dma.done [#allocation17], 16
        $region160: #{tpu_custom_call.1} parent=123 // pred_fallthru
          _
        // Predicated region
        $region161: #{tpu_custom_call.1} parent=123 // pred_check
          %p1010 = pneg %p325
        $region162: #{tpu_custom_call.1} parent=123 // pred_check_branch
          %1012 = sbr.rel (%p1010) target = $region164
        $region163: #{tpu_custom_call.1} parent=123 // pred_region
          %1013 = dma.done [#allocation20], 256
        $region164: #{tpu_custom_call.1} parent=123 // pred_fallthru
          _
        // Predicated region
        $region165: #{tpu_custom_call.1} parent=123 // pred_check
          %p1014 = pneg %p346
        $region166: #{tpu_custom_call.1} parent=123 // pred_check_branch
          %1016 = sbr.rel (%p1014) target = $region168
        $region167: #{tpu_custom_call.1} parent=123 // pred_region
          %1017 = dma.done [#allocation20], 32
        $region168: #{tpu_custom_call.1} parent=123 // pred_fallthru
          _
        // Predicated region
        $region169: #{tpu_custom_call.1} parent=123 // pred_check
          %p1018 = pneg %p367
        $region170: #{tpu_custom_call.1} parent=123 // pred_check_branch
          %1020 = sbr.rel (%p1018) target = $region172
        $region171: #{tpu_custom_call.1} parent=123 // pred_region
          %1021 = dma.done [#allocation23], 512
        $region172: #{tpu_custom_call.1} parent=123 // pred_fallthru
          _
        // Predicated region
        $region173: #{tpu_custom_call.1} parent=123 // pred_check
          %p1022 = pneg %p388
        $region174: #{tpu_custom_call.1} parent=123 // pred_check_branch
          %1024 = sbr.rel (%p1022) target = $region176
        $region175: #{tpu_custom_call.1} parent=123 // pred_region
          %1025 = dma.done [#allocation23], 16
        $region176: #{tpu_custom_call.1} parent=123 // pred_fallthru
          _
        // Predicated region
        $region177: #{tpu_custom_call.1} parent=123 // pred_check
          %p1026 = pneg %p409
        $region178: #{tpu_custom_call.1} parent=123 // pred_check_branch
          %1028 = sbr.rel (%p1026) target = $region180
        $region179: #{tpu_custom_call.1} parent=123 // pred_region
          %1029 = dma.done [#allocation26], 128
        $region180: #{tpu_custom_call.1} parent=123 // pred_fallthru
          _
        // Predicated region
        $region181: #{tpu_custom_call.1} parent=123 // pred_check
          %p1030 = pneg %p430
        $region182: #{tpu_custom_call.1} parent=123 // pred_check_branch
          %1032 = sbr.rel (%p1030) target = $region184
        $region183: #{tpu_custom_call.1} parent=123 // pred_region
          %1033 = dma.done [#allocation26], 32
        $region184: #{tpu_custom_call.1} parent=123 // pred_fallthru
          _
        // Predicated region
        $region185: #{tpu_custom_call.1} parent=123 // pred_check
          %p1034 = pneg %p451
        $region186: #{tpu_custom_call.1} parent=123 // pred_check_branch
          %1036 = sbr.rel (%p1034) target = $region188
        $region187: #{tpu_custom_call.1} parent=123 // pred_region
          %1037 = dma.done [#allocation29], 896
        $region188: #{tpu_custom_call.1} parent=123 // pred_fallthru
          _
        // Predicated region
        $region189: #{tpu_custom_call.1} parent=123 // pred_check
          %p1038 = pneg %p472
        $region190: #{tpu_custom_call.1} parent=123 // pred_check_branch
          %1040 = sbr.rel (%p1038) target = $region192
        $region191: #{tpu_custom_call.1} parent=123 // pred_region
          %1041 = dma.done [#allocation29], 16
        $region192: #{tpu_custom_call.1} parent=123 // pred_fallthru
          _
        %s1042 = sand.u32 %s57, 1
        %s1043 = scalar_lea.sflag [#allocation32], %s1042
        %s1044 = sand.u32 %s485, 1
        %s1045 = smul.addr %s1044, 4160
        %s1046 = scalar_lea.vmem [#allocation31], %s1045
        // Predicated region
        $region193: #{tpu_custom_call.1} parent=123 // pred_check
          %p1047 = pneg %p498
        $region194: #{tpu_custom_call.1} parent=123 // pred_check_branch
          %1049 = sbr.rel (%p1047) target = $region196
        $region195: #{tpu_custom_call.1} parent=123 // pred_region
          %1050 = dma.done %s1043, 66560
        $region196: #{tpu_custom_call.1} parent=123 // pred_fallthru
          _
        %s1051 = sand.u32 %s57, 1
        %s1052 = scalar_lea.sflag [#allocation32], %s1051
        %s1053 = sand.u32 %s511, 1
        %s1054 = smul.addr %s1053, 8
        %s1055 = scalar_lea.vmem [#allocation33], %s1054
        // Predicated region
        $region197: #{tpu_custom_call.1} parent=123 // pred_check
          %p1056 = pneg %p524
        $region198: #{tpu_custom_call.1} parent=123 // pred_check_branch
          %1058 = sbr.rel (%p1056) target = $region200
        $region199: #{tpu_custom_call.1} parent=123 // pred_region
          %1059 = dma.done %s1052, 128
        $region200: #{tpu_custom_call.1} parent=123 // pred_fallthru
          _
        %s1060 = sand.u32 %s57, 1
        %s1061 = scalar_lea.sflag [#allocation35], %s1060
        %s1062 = sand.u32 %s537, 1
        %s1063 = smul.addr %s1062, 4096
        %s1064 = scalar_lea.vmem [#allocation34], %s1063
        // Predicated region
        $region201: #{tpu_custom_call.1} parent=123 // pred_check
          %p1065 = pneg %p550
        $region202: #{tpu_custom_call.1} parent=123 // pred_check_branch
          %1067 = sbr.rel (%p1065) target = $region204
        $region203: #{tpu_custom_call.1} parent=123 // pred_region
          %1068 = dma.done %s1061, 65536
        $region204: #{tpu_custom_call.1} parent=123 // pred_fallthru
          _
        // Predicated region
        $region205: #{tpu_custom_call.1} parent=123 // pred_check
          %p1069 = pneg %p571
        $region206: #{tpu_custom_call.1} parent=123 // pred_check_branch
          %1071 = sbr.rel (%p1069) target = $region208
        $region207: #{tpu_custom_call.1} parent=123 // pred_region
          %1072 = dma.done [#allocation35], 64
        $region208: #{tpu_custom_call.1} parent=123 // pred_fallthru
          _
        // Predicated region
        $region209: #{tpu_custom_call.1} parent=123 // pred_check
          %p1073 = pneg %p613
        $region210: #{tpu_custom_call.1} parent=123 // pred_check_branch
          %1075 = sbr.rel (%p1073) target = $region212
        $region211: #{tpu_custom_call.1} parent=123 // pred_region
          %1076 = dma.done [#allocation38], 16
        $region212: #{tpu_custom_call.1} parent=123 // pred_fallthru
          _
        %p1077 = pneg %p73
        %p1078 = pneg %p70
        %p1079 = pneg %p94
        %p1080 = pneg %p91
        %p1081 = pneg %p115
        %p1082 = pneg %p112
        %p1083 = pneg %p136
        %p1084 = pneg %p133
        %p1085 = pneg %p157
        %p1086 = pneg %p154
        %p1087 = pneg %p178
        %p1088 = pneg %p175
        %p1089 = pneg %p199
        %p1090 = pneg %p196
        %p1091 = pneg %p220
        %p1092 = pneg %p217
        %p1093 = pneg %p241
        %p1094 = pneg %p238
        %p1095 = pneg %p262
        %p1096 = pneg %p259
        %p1097 = pneg %p283
        %p1098 = pneg %p280
        %p1099 = pneg %p304
        %p1100 = pneg %p301
        %p1101 = pneg %p325
        %p1102 = pneg %p322
        %p1103 = pneg %p346
        %p1104 = pneg %p343
        %p1105 = pneg %p367
        %p1106 = pneg %p364
        %p1107 = pneg %p388
        %p1108 = pneg %p385
        %p1109 = pneg %p409
        %p1110 = pneg %p406
        %p1111 = pneg %p430
        %p1112 = pneg %p427
        %p1113 = pneg %p451
        %p1114 = pneg %p448
        %p1115 = pneg %p472
        %p1116 = pneg %p469
        %s1117 = sand.u32 %s57, 1
        %s1118 = scalar_lea.sflag [#allocation32], %s1117
        %s1119 = sand.u32 %s485, 1
        %s1120 = smul.addr %s1119, 4160
        %s1121 = scalar_lea.vmem [#allocation31], %s1120
        %p1122 = pneg %p498
        %p1123 = pneg %p495
        %s1124 = sand.u32 %s57, 1
        %s1125 = scalar_lea.sflag [#allocation32], %s1124
        %s1126 = sand.u32 %s511, 1
        %s1127 = smul.addr %s1126, 8
        %s1128 = scalar_lea.vmem [#allocation33], %s1127
        %p1129 = pneg %p524
        %p1130 = pneg %p521
        %s1131 = sand.u32 %s57, 1
        %s1132 = scalar_lea.sflag [#allocation35], %s1131
        %s1133 = sand.u32 %s537, 1
        %s1134 = smul.addr %s1133, 4096
        %s1135 = scalar_lea.vmem [#allocation34], %s1134
        %p1136 = pneg %p550
        %p1137 = pneg %p547
        %p1138 = pneg %p571
        %p1139 = pneg %p568
        %p1140 = pneg %p592
        %p1141 = pneg %p589
        %p1142 = pneg %p613
        %p1143 = pneg %p610
        %p1144 = pneg %p634
        %p1145 = pneg %p631
        %p1146 = pneg %p655
        %p1147 = pneg %p652
        %s1148 = smul.u32 8, %s57
        %s1149 = smul.u32 8, %s57
        %s1150 = smul.u32 128, %s57
        %p1151 = scmp.eq.s32.totalorder %s57, 0
        // Predicated region
        $region213: #{tpu_custom_call.1} parent=123 // pred_check
          %p1152 = pneg %p1151
        $region214: #{tpu_custom_call.1} parent=123 // pred_check_branch
          %1154 = sbr.rel (%p1152) target = $region216
        $region215: #{tpu_custom_call.1} parent=123 // pred_region
          %v1155 = vld [vmem:[%s0] sm:$0xff]
          %v1156 = vld [vmem:[%s0 + $0x8] sm:$0xff]
          %v1157 = vld [vmem:[%s0 + $0x10] sm:$0xff]
          %v1158 = vld [vmem:[%s0 + $0x18] sm:$0xff]
          %v1159 = vld [vmem:[%s0 + $0x20] sm:$0xff]
          %v1160 = vld [vmem:[%s0 + $0x28] sm:$0xff]
          %v1161 = vld [vmem:[%s0 + $0x30] sm:$0xff]
          %v1162 = vld [vmem:[%s0 + $0x38] sm:$0xf]
          %v1163 = vld [vmem:[#allocation7] sm:$0x1f]
          %v1164 = vld [vmem:[#allocation9] sm:$0x1]
          %v1166 = vlaneseq
          %v1167 = vshrl.u32 %v1166, 7
          %v1168 = vsub.s32 0, %v1167
          %v1169 = vrot.slane %v1164, %v1168
          %vm1171 = vcmask 39936
          %v1173 = vsel %vm1171, %v1155, 0
          %v1176 = vsel %vm1171, %v1156, 0
          %v1179 = vsel %vm1171, %v1157, 0
          %v1182 = vsel %vm1171, %v1158, 0
          %v1185 = vsel %vm1171, %v1159, 0
          %v1188 = vsel %vm1171, %v1160, 0
          %v1191 = vsel %vm1171, %v1161, 0
          %v1194 = vsel %vm1171, %v1162, 0
          %vm1196 = vcmask 1044480
          %v1198 = vsel %vm1196, %v1163, 0
          %1200 = vmatprep.subr.mxu0 0.0
          %1201 = vmatpush1.msra.mxu0 %v1198
          %1202 = vmatprep.subr.mxu0 0.0
          %1203 = vmatpush1.msra.mxu0 0.0
          %1204 = vmatprep.subr.mxu0 0.0
          %1205 = vmatpush1.msra.mxu0 0.0
          %1206 = vmatprep.subr.mxu0 0.0
          %1207 = vmatpush1.msra.mxu0 0.0
          %1208 = vmatprep.subr.mxu0 0.0
          %1209 = vmatpush1.msra.mxu0 0.0
          %1210 = vmatprep.subr.mxu0 0.0
          %1211 = vmatpush1.msra.mxu0 0.0
          %1212 = vmatprep.subr.mxu0 0.0
          %1213 = vmatpush1.msra.mxu0 0.0
          %1214 = vmatprep.subr.mxu0 0.0
          %1215 = vmatpush1.msra.mxu0 0.0
          %1216 = vmatprep.subr.mxu0 0.0
          %1217 = vmatpush1.msra.mxu0 0.0
          %1218 = vmatprep.subr.mxu0 0.0
          %1219 = vmatpush1.msra.mxu0 0.0
          %1220 = vmatprep.subr.mxu0 0.0
          %1221 = vmatpush1.msra.mxu0 0.0
          %1222 = vmatprep.subr.mxu0 0.0
          %1223 = vmatpush1.msra.mxu0 0.0
          %1224 = vmatprep.subr.mxu0 0.0
          %1225 = vmatpush1.msra.mxu0 0.0
          %1226 = vmatprep.subr.mxu0 0.0
          %1227 = vmatpush1.msra.mxu0 0.0
          %1228 = vmatprep.subr.mxu0 0.0
          %1229 = vmatpush1.msra.mxu0 0.0
          %1230 = vmatprep.subr.mxu0 0.0
          %1231 = vmatpush1.msra.mxu0 0.0
          %1232 = vmatprep.subr.mxu0 0.0
          %1233 = vmatpush1.msra.mxu0 0.0
          %1234 = vmatprep.subr.mxu0 0.0
          %1235 = vmatpush1.msra.mxu0 0.0
          %1236 = vmatprep.subr.mxu0 0.0
          %1237 = vmatpush1.msra.mxu0 0.0
          %1238 = vmatprep.subr.mxu0 0.0
          %1239 = vmatpush1.msra.mxu0 0.0
          %1240 = vmatprep.subr.mxu0 0.0
          %1241 = vmatpush1.msra.mxu0 0.0
          %1242 = vmatprep.subr.mxu0 0.0
          %1243 = vmatpush1.msra.mxu0 0.0
          %1244 = vmatprep.subr.mxu0 0.0
          %1245 = vmatpush1.msra.mxu0 0.0
          %1246 = vmatprep.subr.mxu0 0.0
          %1247 = vmatpush1.msra.mxu0 0.0
          %1248 = vmatprep.subr.mxu0 0.0
          %1249 = vmatpush1.msra.mxu0 0.0
          %1250 = vmatprep.subr.mxu0 0.0
          %1251 = vmatpush1.msra.mxu0 0.0
          %1252 = vmatprep.subr.mxu0 0.0
          %1253 = vmatpush1.msra.mxu0 0.0
          %1254 = vmatprep.subr.mxu0 0.0
          %1255 = vmatpush1.msra.mxu0 0.0
          %1256 = vmatprep.subr.mxu0 0.0
          %1257 = vmatpush1.msra.mxu0 0.0
          %1258 = vmatprep.subr.mxu0 0.0
          %1259 = vmatpush1.msra.mxu0 0.0
          %1260 = vmatprep.subr.mxu0 0.0
          %1261 = vmatpush1.msra.mxu0 0.0
          %1262 = vmatprep.subr.mxu0 0.0
          %1263 = vmatpush1.msra.mxu0 0.0
          %1264 = vmatprep.mubr.f32.mxu0 0.0
          %1265 = vmatmul.mubr.f32.gmra.mrb[0].mxu0 %v1173
          %v1266 = vpop.f32.mrb[0].mxu0
          %v1267 = vadd.f32 %v1169, %v1266
          %v1268 = vpop.f32.mrb[0].mxu0
          %1269 = vmatprep.mubr.f32.mxu0 0.0
          %1270 = vmatmul.mubr.f32.gmra.mrb[0].mxu0 %v1176
          %v1271 = vpop.f32.mrb[0].mxu0
          %v1272 = vadd.f32 %v1169, %v1271
          %v1273 = vpop.f32.mrb[0].mxu0
          %1274 = vmatprep.mubr.f32.mxu0 0.0
          %1275 = vmatmul.mubr.f32.gmra.mrb[0].mxu0 %v1179
          %v1276 = vpop.f32.mrb[0].mxu0
          %v1277 = vadd.f32 %v1169, %v1276
          %v1278 = vpop.f32.mrb[0].mxu0
          %1279 = vmatprep.mubr.f32.mxu0 0.0
          %1280 = vmatmul.mubr.f32.gmra.mrb[0].mxu0 %v1182
          %v1281 = vpop.f32.mrb[0].mxu0
          %v1282 = vadd.f32 %v1169, %v1281
          %v1283 = vpop.f32.mrb[0].mxu0
          %1284 = vmatprep.mubr.f32.mxu0 0.0
          %1285 = vmatmul.mubr.f32.gmra.mrb[0].mxu0 %v1185
          %v1286 = vpop.f32.mrb[0].mxu0
          %v1287 = vadd.f32 %v1169, %v1286
          %v1288 = vpop.f32.mrb[0].mxu0
          %1289 = vmatprep.mubr.f32.mxu0 0.0
          %1290 = vmatmul.mubr.f32.gmra.mrb[0].mxu0 %v1188
          %v1291 = vpop.f32.mrb[0].mxu0
          %v1292 = vadd.f32 %v1169, %v1291
          %v1293 = vpop.f32.mrb[0].mxu0
          %1294 = vmatprep.mubr.f32.mxu0 0.0
          %1295 = vmatmul.mubr.f32.gmra.mrb[0].mxu0 %v1191
          %v1296 = vpop.f32.mrb[0].mxu0
          %v1297 = vadd.f32 %v1169, %v1296
          %v1298 = vpop.f32.mrb[0].mxu0
          %1299 = vmatprep.mubr.f32.mxu0 0.0
          %1300 = vmatmul.mubr.f32.gmra.mrb[0].mxu0 %v1194
          %v1301 = vpop.f32.mrb[0].mxu0
          %v1302 = vadd.f32 %v1169, %v1301
          %v1303 = vpop.f32.mrb[0].mxu0
          %1304 = vdwg.mxu0
          %v1305 = vmax.f32 %v1267, 0.0
          %v1306 = vmax.f32 %v1272, 0.0
          %v1307 = vmax.f32 %v1277, 0.0
          %v1308 = vmax.f32 %v1282, 0.0
          %v1309 = vmax.f32 %v1287, 0.0
          %v1310 = vmax.f32 %v1292, 0.0
          %v1311 = vmax.f32 %v1297, 0.0
          %v1312 = vmax.f32 %v1302, 0.0
          %v1313 = vld [vmem:[#allocation4] sm:$0x3]
          %vm1314 = vcmask 490496
          %v1316 = vsel %vm1314, %v1313, 0
          %vm1318 = vcmask 1043456
          %v1320 = vsel %vm1318, %v1312, 0
          %1322 = vmatprep.subr.mxu0 0.0
          %1323 = vmatpush1.msra.mxu0 %v1305
          %1324 = vmatprep.subr.mxu0 0.0
          %1325 = vmatpush1.msra.mxu0 %v1306
          %1326 = vmatprep.subr.mxu0 0.0
          %1327 = vmatpush1.msra.mxu0 %v1307
          %1328 = vmatprep.subr.mxu0 0.0
          %1329 = vmatpush1.msra.mxu0 %v1308
          %1330 = vmatprep.subr.mxu0 0.0
          %1331 = vmatpush1.msra.mxu0 %v1309
          %1332 = vmatprep.subr.mxu0 0.0
          %1333 = vmatpush1.msra.mxu0 %v1310
          %1334 = vmatprep.subr.mxu0 0.0
          %1335 = vmatpush1.msra.mxu0 %v1311
          %1336 = vmatprep.subr.mxu0 0.0
          %1337 = vmatpush1.msra.mxu0 %v1320
          %1338 = vmatprep.subr.mxu0 0.0
          %1339 = vmatpush1.msra.mxu0 0.0
          %1340 = vmatprep.subr.mxu0 0.0
          %1341 = vmatpush1.msra.mxu0 0.0
          %1342 = vmatprep.subr.mxu0 0.0
          %1343 = vmatpush1.msra.mxu0 0.0
          %1344 = vmatprep.subr.mxu0 0.0
          %1345 = vmatpush1.msra.mxu0 0.0
          %1346 = vmatprep.subr.mxu0 0.0
          %1347 = vmatpush1.msra.mxu0 0.0
          %1348 = vmatprep.subr.mxu0 0.0
          %1349 = vmatpush1.msra.mxu0 0.0
          %1350 = vmatprep.subr.mxu0 0.0
          %1351 = vmatpush1.msra.mxu0 0.0
          %1352 = vmatprep.subr.mxu0 0.0
          %1353 = vmatpush1.msra.mxu0 0.0
          %1354 = vmatprep.subr.mxu0 0.0
          %1355 = vmatpush1.msra.mxu0 0.0
          %1356 = vmatprep.subr.mxu0 0.0
          %1357 = vmatpush1.msra.mxu0 0.0
          %1358 = vmatprep.subr.mxu0 0.0
          %1359 = vmatpush1.msra.mxu0 0.0
          %1360 = vmatprep.subr.mxu0 0.0
          %1361 = vmatpush1.msra.mxu0 0.0
          %1362 = vmatprep.subr.mxu0 0.0
          %1363 = vmatpush1.msra.mxu0 0.0
          %1364 = vmatprep.subr.mxu0 0.0
          %1365 = vmatpush1.msra.mxu0 0.0
          %1366 = vmatprep.subr.mxu0 0.0
          %1367 = vmatpush1.msra.mxu0 0.0
          %1368 = vmatprep.subr.mxu0 0.0
          %1369 = vmatpush1.msra.mxu0 0.0
          %1370 = vmatprep.subr.mxu0 0.0
          %1371 = vmatpush1.msra.mxu0 0.0
          %1372 = vmatprep.subr.mxu0 0.0
          %1373 = vmatpush1.msra.mxu0 0.0
          %1374 = vmatprep.subr.mxu0 0.0
          %1375 = vmatpush1.msra.mxu0 0.0
          %1376 = vmatprep.subr.mxu0 0.0
          %1377 = vmatpush1.msra.mxu0 0.0
          %1378 = vmatprep.subr.mxu0 0.0
          %1379 = vmatpush1.msra.mxu0 0.0
          %1380 = vmatprep.subr.mxu0 0.0
          %1381 = vmatpush1.msra.mxu0 0.0
          %1382 = vmatprep.subr.mxu0 0.0
          %1383 = vmatpush1.msra.mxu0 0.0
          %1384 = vmatprep.subr.mxu0 0.0
          %1385 = vmatpush1.msra.mxu0 0.0
          %1386 = vmatprep.mubr.f32.mxu0 0.0
          %1387 = vmatmul.mubr.f32.gmra.mrb[0].mxu0 %v1316
          %v1388 = vpop.f32.mrb[0].mxu0
          %v1389 = vadd.f32 0.0, %v1388
          %v1390 = vpop.f32.mrb[0].mxu0
          %1391 = vdwg.mxu0
          %vm1392 = vcmask 812032
          %1393 = vst.msk [vmem:[#allocation2] sm:$0x3] %vm1392, %v1389
          %v1394 = vld [vmem:[%s4] sm:$0xff]
          %v1395 = vld [vmem:[%s4 + $0x8] sm:$0xff]
          %v1396 = vld [vmem:[%s4 + $0x10] sm:$0xff]
          %v1397 = vld [vmem:[%s4 + $0x18] sm:$0x3f]
          %v1398 = vld [vmem:[#allocation12] sm:$0xff]
          %v1399 = vld [vmem:[#allocation12 + $0x8] sm:$0x3]
          %v1400 = vld [vmem:[#allocation13] sm:$0x1]
          %v1402 = vlaneseq
          %v1403 = vshrl.u32 %v1402, 7
          %v1404 = vsub.s32 0, %v1403
          %v1405 = vrot.slane %v1400, %v1404
          %vm1407 = vcmask 80896
          %v1409 = vsel %vm1407, %v1394, 0
          %v1412 = vsel %vm1407, %v1395, 0
          %v1415 = vsel %vm1407, %v1396, 0
          %v1418 = vsel %vm1407, %v1397, 0
          %vm1420 = vcmask 1041408
          %v1422 = vsel %vm1420, %v1399, 0
          %1424 = vmatprep.subr.mxu0 0.0
          %1425 = vmatpush1.msra.mxu0 %v1398
          %1426 = vmatprep.subr.mxu0 0.0
          %1427 = vmatpush1.msra.mxu0 %v1422
          %1428 = vmatprep.subr.mxu0 0.0
          %1429 = vmatpush1.msra.mxu0 0.0
          %1430 = vmatprep.subr.mxu0 0.0
          %1431 = vmatpush1.msra.mxu0 0.0
          %1432 = vmatprep.subr.mxu0 0.0
          %1433 = vmatpush1.msra.mxu0 0.0
          %1434 = vmatprep.subr.mxu0 0.0
          %1435 = vmatpush1.msra.mxu0 0.0
          %1436 = vmatprep.subr.mxu0 0.0
          %1437 = vmatpush1.msra.mxu0 0.0
          %1438 = vmatprep.subr.mxu0 0.0
          %1439 = vmatpush1.msra.mxu0 0.0
          %1440 = vmatprep.subr.mxu0 0.0
          %1441 = vmatpush1.msra.mxu0 0.0
          %1442 = vmatprep.subr.mxu0 0.0
          %1443 = vmatpush1.msra.mxu0 0.0
          %1444 = vmatprep.subr.mxu0 0.0
          %1445 = vmatpush1.msra.mxu0 0.0
          %1446 = vmatprep.subr.mxu0 0.0
          %1447 = vmatpush1.msra.mxu0 0.0
          %1448 = vmatprep.subr.mxu0 0.0
          %1449 = vmatpush1.msra.mxu0 0.0
          %1450 = vmatprep.subr.mxu0 0.0
          %1451 = vmatpush1.msra.mxu0 0.0
          %1452 = vmatprep.subr.mxu0 0.0
          %1453 = vmatpush1.msra.mxu0 0.0
          %1454 = vmatprep.subr.mxu0 0.0
          %1455 = vmatpush1.msra.mxu0 0.0
          %1456 = vmatprep.subr.mxu0 0.0
          %1457 = vmatpush1.msra.mxu0 0.0
          %1458 = vmatprep.subr.mxu0 0.0
          %1459 = vmatpush1.msra.mxu0 0.0
          %1460 = vmatprep.subr.mxu0 0.0
          %1461 = vmatpush1.msra.mxu0 0.0
          %1462 = vmatprep.subr.mxu0 0.0
          %1463 = vmatpush1.msra.mxu0 0.0
          %1464 = vmatprep.subr.mxu0 0.0
          %1465 = vmatpush1.msra.mxu0 0.0
          %1466 = vmatprep.subr.mxu0 0.0
          %1467 = vmatpush1.msra.mxu0 0.0
          %1468 = vmatprep.subr.mxu0 0.0
          %1469 = vmatpush1.msra.mxu0 0.0
          %1470 = vmatprep.subr.mxu0 0.0
          %1471 = vmatpush1.msra.mxu0 0.0
          %1472 = vmatprep.subr.mxu0 0.0
          %1473 = vmatpush1.msra.mxu0 0.0
          %1474 = vmatprep.subr.mxu0 0.0
          %1475 = vmatpush1.msra.mxu0 0.0
          %1476 = vmatprep.subr.mxu0 0.0
          %1477 = vmatpush1.msra.mxu0 0.0
          %1478 = vmatprep.subr.mxu0 0.0
          %1479 = vmatpush1.msra.mxu0 0.0
          %1480 = vmatprep.subr.mxu0 0.0
          %1481 = vmatpush1.msra.mxu0 0.0
          %1482 = vmatprep.subr.mxu0 0.0
          %1483 = vmatpush1.msra.mxu0 0.0
          %1484 = vmatprep.subr.mxu0 0.0
          %1485 = vmatpush1.msra.mxu0 0.0
          %1486 = vmatprep.subr.mxu0 0.0
          %1487 = vmatpush1.msra.mxu0 0.0
          %1488 = vmatprep.mubr.f32.mxu0 0.0
          %1489 = vmatmul.mubr.f32.gmra.mrb[0].mxu0 %v1409
          %v1490 = vpop.f32.mrb[0].mxu0
          %v1491 = vadd.f32 %v1405, %v1490
          %v1492 = vpop.f32.mrb[0].mxu0
          %1493 = vmatprep.mubr.f32.mxu0 0.0
          %1494 = vmatmul.mubr.f32.gmra.mrb[0].mxu0 %v1412
          %v1495 = vpop.f32.mrb[0].mxu0
          %v1496 = vadd.f32 %v1405, %v1495
          %v1497 = vpop.f32.mrb[0].mxu0
          %1498 = vmatprep.mubr.f32.mxu0 0.0
          %1499 = vmatmul.mubr.f32.gmra.mrb[0].mxu0 %v1415
          %v1500 = vpop.f32.mrb[0].mxu0
          %v1501 = vadd.f32 %v1405, %v1500
          %v1502 = vpop.f32.mrb[0].mxu0
          %1503 = vmatprep.mubr.f32.mxu0 0.0
          %1504 = vmatmul.mubr.f32.gmra.mrb[0].mxu0 %v1418
          %v1505 = vpop.f32.mrb[0].mxu0
          %v1506 = vadd.f32 %v1405, %v1505
          %v1507 = vpop.f32.mrb[0].mxu0
          %1508 = vdwg.mxu0
          %v1509 = vmax.f32 %v1491, 0.0
          %v1510 = vmax.f32 %v1496, 0.0
          %v1511 = vmax.f32 %v1501, 0.0
          %v1512 = vmax.f32 %v1506, 0.0
          %v1513 = vld [vmem:[#allocation10] sm:$0x3]
          %vm1514 = vcmask 244736
          %v1516 = vsel %vm1514, %v1513, 0
          %vm1518 = vcmask 1045504
          %v1520 = vsel %vm1518, %v1512, 0
          %1522 = vmatprep.subr.mxu0 0.0
          %1523 = vmatpush1.msra.mxu0 %v1509
          %1524 = vmatprep.subr.mxu0 0.0
          %1525 = vmatpush1.msra.mxu0 %v1510
          %1526 = vmatprep.subr.mxu0 0.0
          %1527 = vmatpush1.msra.mxu0 %v1511
          %1528 = vmatprep.subr.mxu0 0.0
          %1529 = vmatpush1.msra.mxu0 %v1520
          %1530 = vmatprep.subr.mxu0 0.0
          %1531 = vmatpush1.msra.mxu0 0.0
          %1532 = vmatprep.subr.mxu0 0.0
          %1533 = vmatpush1.msra.mxu0 0.0
          %1534 = vmatprep.subr.mxu0 0.0
          %1535 = vmatpush1.msra.mxu0 0.0
          %1536 = vmatprep.subr.mxu0 0.0
          %1537 = vmatpush1.msra.mxu0 0.0
          %1538 = vmatprep.subr.mxu0 0.0
          %1539 = vmatpush1.msra.mxu0 0.0
          %1540 = vmatprep.subr.mxu0 0.0
          %1541 = vmatpush1.msra.mxu0 0.0
          %1542 = vmatprep.subr.mxu0 0.0
          %1543 = vmatpush1.msra.mxu0 0.0
          %1544 = vmatprep.subr.mxu0 0.0
          %1545 = vmatpush1.msra.mxu0 0.0
          %1546 = vmatprep.subr.mxu0 0.0
          %1547 = vmatpush1.msra.mxu0 0.0
          %1548 = vmatprep.subr.mxu0 0.0
          %1549 = vmatpush1.msra.mxu0 0.0
          %1550 = vmatprep.subr.mxu0 0.0
          %1551 = vmatpush1.msra.mxu0 0.0
          %1552 = vmatprep.subr.mxu0 0.0
          %1553 = vmatpush1.msra.mxu0 0.0
          %1554 = vmatprep.subr.mxu0 0.0
          %1555 = vmatpush1.msra.mxu0 0.0
          %1556 = vmatprep.subr.mxu0 0.0
          %1557 = vmatpush1.msra.mxu0 0.0
          %1558 = vmatprep.subr.mxu0 0.0
          %1559 = vmatpush1.msra.mxu0 0.0
          %1560 = vmatprep.subr.mxu0 0.0
          %1561 = vmatpush1.msra.mxu0 0.0
          %1562 = vmatprep.subr.mxu0 0.0
          %1563 = vmatpush1.msra.mxu0 0.0
          %1564 = vmatprep.subr.mxu0 0.0
          %1565 = vmatpush1.msra.mxu0 0.0
          %1566 = vmatprep.subr.mxu0 0.0
          %1567 = vmatpush1.msra.mxu0 0.0
          %1568 = vmatprep.subr.mxu0 0.0
          %1569 = vmatpush1.msra.mxu0 0.0
          %1570 = vmatprep.subr.mxu0 0.0
          %1571 = vmatpush1.msra.mxu0 0.0
          %1572 = vmatprep.subr.mxu0 0.0
          %1573 = vmatpush1.msra.mxu0 0.0
          %1574 = vmatprep.subr.mxu0 0.0
          %1575 = vmatpush1.msra.mxu0 0.0
          %1576 = vmatprep.subr.mxu0 0.0
          %1577 = vmatpush1.msra.mxu0 0.0
          %1578 = vmatprep.subr.mxu0 0.0
          %1579 = vmatpush1.msra.mxu0 0.0
          %1580 = vmatprep.subr.mxu0 0.0
          %1581 = vmatpush1.msra.mxu0 0.0
          %1582 = vmatprep.subr.mxu0 0.0
          %1583 = vmatpush1.msra.mxu0 0.0
          %1584 = vmatprep.subr.mxu0 0.0
          %1585 = vmatpush1.msra.mxu0 0.0
          %1586 = vmatprep.mubr.f32.mxu0 0.0
          %1587 = vmatmul.mubr.f32.gmra.mrb[0].mxu0 %v1516
          %v1588 = vpop.f32.mrb[0].mxu0
          %v1589 = vadd.f32 0.0, %v1588
          %v1590 = vpop.f32.mrb[0].mxu0
          %1591 = vdwg.mxu0
          %s1592 = scalar_lea.vmem [#allocation2], 2
          %1593 = vst.msk [vmem:[%s1592] sm:$0x3] %vm1392, %v1589
          %v1594 = vld [vmem:[%s8] sm:$0xff]
          %v1595 = vld [vmem:[%s8 + $0x8] sm:$0xff]
          %v1596 = vld [vmem:[%s8 + $0x10] sm:$0xf]
          %v1597 = vld [vmem:[#allocation16] sm:$0xff]
          %v1598 = vld [vmem:[#allocation16 + $0x8] sm:$0x7f]
          %v1599 = vld [vmem:[#allocation18] sm:$0x1]
          %v1601 = vlaneseq
          %v1602 = vshrl.u32 %v1601, 7
          %v1603 = vsub.s32 0, %v1602
          %v1604 = vrot.slane %v1599, %v1603
          %vm1606 = vcmask 121856
          %v1608 = vsel %vm1606, %v1594, 0
          %v1611 = vsel %vm1606, %v1595, 0
          %v1614 = vsel %vm1606, %v1596, 0
          %vm1616 = vcmask 1046528
          %v1618 = vsel %vm1616, %v1598, 0
          %1620 = vmatprep.subr.mxu0 0.0
          %1621 = vmatpush1.msra.mxu0 %v1597
          %1622 = vmatprep.subr.mxu0 0.0
          %1623 = vmatpush1.msra.mxu0 %v1618
          %1624 = vmatprep.subr.mxu0 0.0
          %1625 = vmatpush1.msra.mxu0 0.0
          %1626 = vmatprep.subr.mxu0 0.0
          %1627 = vmatpush1.msra.mxu0 0.0
          %1628 = vmatprep.subr.mxu0 0.0
          %1629 = vmatpush1.msra.mxu0 0.0
          %1630 = vmatprep.subr.mxu0 0.0
          %1631 = vmatpush1.msra.mxu0 0.0
          %1632 = vmatprep.subr.mxu0 0.0
          %1633 = vmatpush1.msra.mxu0 0.0
          %1634 = vmatprep.subr.mxu0 0.0
          %1635 = vmatpush1.msra.mxu0 0.0
          %1636 = vmatprep.subr.mxu0 0.0
          %1637 = vmatpush1.msra.mxu0 0.0
          %1638 = vmatprep.subr.mxu0 0.0
          %1639 = vmatpush1.msra.mxu0 0.0
          %1640 = vmatprep.subr.mxu0 0.0
          %1641 = vmatpush1.msra.mxu0 0.0
          %1642 = vmatprep.subr.mxu0 0.0
          %1643 = vmatpush1.msra.mxu0 0.0
          %1644 = vmatprep.subr.mxu0 0.0
          %1645 = vmatpush1.msra.mxu0 0.0
          %1646 = vmatprep.subr.mxu0 0.0
          %1647 = vmatpush1.msra.mxu0 0.0
          %1648 = vmatprep.subr.mxu0 0.0
          %1649 = vmatpush1.msra.mxu0 0.0
          %1650 = vmatprep.subr.mxu0 0.0
          %1651 = vmatpush1.msra.mxu0 0.0
          %1652 = vmatprep.subr.mxu0 0.0
          %1653 = vmatpush1.msra.mxu0 0.0
          %1654 = vmatprep.subr.mxu0 0.0
          %1655 = vmatpush1.msra.mxu0 0.0
          %1656 = vmatprep.subr.mxu0 0.0
          %1657 = vmatpush1.msra.mxu0 0.0
          %1658 = vmatprep.subr.mxu0 0.0
          %1659 = vmatpush1.msra.mxu0 0.0
          %1660 = vmatprep.subr.mxu0 0.0
          %1661 = vmatpush1.msra.mxu0 0.0
          %1662 = vmatprep.subr.mxu0 0.0
          %1663 = vmatpush1.msra.mxu0 0.0
          %1664 = vmatprep.subr.mxu0 0.0
          %1665 = vmatpush1.msra.mxu0 0.0
          %1666 = vmatprep.subr.mxu0 0.0
          %1667 = vmatpush1.msra.mxu0 0.0
          %1668 = vmatprep.subr.mxu0 0.0
          %1669 = vmatpush1.msra.mxu0 0.0
          %1670 = vmatprep.subr.mxu0 0.0
          %1671 = vmatpush1.msra.mxu0 0.0
          %1672 = vmatprep.subr.mxu0 0.0
          %1673 = vmatpush1.msra.mxu0 0.0
          %1674 = vmatprep.subr.mxu0 0.0
          %1675 = vmatpush1.msra.mxu0 0.0
          %1676 = vmatprep.subr.mxu0 0.0
          %1677 = vmatpush1.msra.mxu0 0.0
          %1678 = vmatprep.subr.mxu0 0.0
          %1679 = vmatpush1.msra.mxu0 0.0
          %1680 = vmatprep.subr.mxu0 0.0
          %1681 = vmatpush1.msra.mxu0 0.0
          %1682 = vmatprep.subr.mxu0 0.0
          %1683 = vmatpush1.msra.mxu0 0.0
          %1684 = vmatprep.mubr.f32.mxu0 0.0
          %1685 = vmatmul.mubr.f32.gmra.mrb[0].mxu0 %v1608
          %v1686 = vpop.f32.mrb[0].mxu0
          %v1687 = vadd.f32 %v1604, %v1686
          %v1688 = vpop.f32.mrb[0].mxu0
          %1689 = vmatprep.mubr.f32.mxu0 0.0
          %1690 = vmatmul.mubr.f32.gmra.mrb[0].mxu0 %v1611
          %v1691 = vpop.f32.mrb[0].mxu0
          %v1692 = vadd.f32 %v1604, %v1691
          %v1693 = vpop.f32.mrb[0].mxu0
          %1694 = vmatprep.mubr.f32.mxu0 0.0
          %1695 = vmatmul.mubr.f32.gmra.mrb[0].mxu0 %v1614
          %v1696 = vpop.f32.mrb[0].mxu0
          %v1697 = vadd.f32 %v1604, %v1696
          %v1698 = vpop.f32.mrb[0].mxu0
          %1699 = vdwg.mxu0
          %v1700 = vmax.f32 %v1687, 0.0
          %v1701 = vmax.f32 %v1692, 0.0
          %v1702 = vmax.f32 %v1697, 0.0
          %v1703 = vld [vmem:[#allocation15] sm:$0x3]
          %vm1704 = vcmask 162816
          %v1706 = vsel %vm1704, %v1703, 0
          %v1709 = vsel %vm1318, %v1702, 0
          %1711 = vmatprep.subr.mxu0 0.0
          %1712 = vmatpush1.msra.mxu0 %v1700
          %1713 = vmatprep.subr.mxu0 0.0
          %1714 = vmatpush1.msra.mxu0 %v1701
          %1715 = vmatprep.subr.mxu0 0.0
          %1716 = vmatpush1.msra.mxu0 %v1709
          %1717 = vmatprep.subr.mxu0 0.0
          %1718 = vmatpush1.msra.mxu0 0.0
          %1719 = vmatprep.subr.mxu0 0.0
          %1720 = vmatpush1.msra.mxu0 0.0
          %1721 = vmatprep.subr.mxu0 0.0
          %1722 = vmatpush1.msra.mxu0 0.0
          %1723 = vmatprep.subr.mxu0 0.0
          %1724 = vmatpush1.msra.mxu0 0.0
          %1725 = vmatprep.subr.mxu0 0.0
          %1726 = vmatpush1.msra.mxu0 0.0
          %1727 = vmatprep.subr.mxu0 0.0
          %1728 = vmatpush1.msra.mxu0 0.0
          %1729 = vmatprep.subr.mxu0 0.0
          %1730 = vmatpush1.msra.mxu0 0.0
          %1731 = vmatprep.subr.mxu0 0.0
          %1732 = vmatpush1.msra.mxu0 0.0
          %1733 = vmatprep.subr.mxu0 0.0
          %1734 = vmatpush1.msra.mxu0 0.0
          %1735 = vmatprep.subr.mxu0 0.0
          %1736 = vmatpush1.msra.mxu0 0.0
          %1737 = vmatprep.subr.mxu0 0.0
          %1738 = vmatpush1.msra.mxu0 0.0
          %1739 = vmatprep.subr.mxu0 0.0
          %1740 = vmatpush1.msra.mxu0 0.0
          %1741 = vmatprep.subr.mxu0 0.0
          %1742 = vmatpush1.msra.mxu0 0.0
          %1743 = vmatprep.subr.mxu0 0.0
          %1744 = vmatpush1.msra.mxu0 0.0
          %1745 = vmatprep.subr.mxu0 0.0
          %1746 = vmatpush1.msra.mxu0 0.0
          %1747 = vmatprep.subr.mxu0 0.0
          %1748 = vmatpush1.msra.mxu0 0.0
          %1749 = vmatprep.subr.mxu0 0.0
          %1750 = vmatpush1.msra.mxu0 0.0
          %1751 = vmatprep.subr.mxu0 0.0
          %1752 = vmatpush1.msra.mxu0 0.0
          %1753 = vmatprep.subr.mxu0 0.0
          %1754 = vmatpush1.msra.mxu0 0.0
          %1755 = vmatprep.subr.mxu0 0.0
          %1756 = vmatpush1.msra.mxu0 0.0
          %1757 = vmatprep.subr.mxu0 0.0
          %1758 = vmatpush1.msra.mxu0 0.0
          %1759 = vmatprep.subr.mxu0 0.0
          %1760 = vmatpush1.msra.mxu0 0.0
          %1761 = vmatprep.subr.mxu0 0.0
          %1762 = vmatpush1.msra.mxu0 0.0
          %1763 = vmatprep.subr.mxu0 0.0
          %1764 = vmatpush1.msra.mxu0 0.0
          %1765 = vmatprep.subr.mxu0 0.0
          %1766 = vmatpush1.msra.mxu0 0.0
          %1767 = vmatprep.subr.mxu0 0.0
          %1768 = vmatpush1.msra.mxu0 0.0
          %1769 = vmatprep.subr.mxu0 0.0
          %1770 = vmatpush1.msra.mxu0 0.0
          %1771 = vmatprep.subr.mxu0 0.0
          %1772 = vmatpush1.msra.mxu0 0.0
          %1773 = vmatprep.subr.mxu0 0.0
          %1774 = vmatpush1.msra.mxu0 0.0
          %1775 = vmatprep.mubr.f32.mxu0 0.0
          %1776 = vmatmul.mubr.f32.gmra.mrb[0].mxu0 %v1706
          %v1777 = vpop.f32.mrb[0].mxu0
          %v1778 = vadd.f32 0.0, %v1777
          %v1779 = vpop.f32.mrb[0].mxu0
          %1780 = vdwg.mxu0
          %s1781 = scalar_lea.vmem [#allocation2], 4
          %1782 = vst.msk [vmem:[%s1781] sm:$0x3] %vm1392, %v1778
          %v1783 = vld [vmem:[#allocation19] sm:$0xff]
          %v1784 = vld [vmem:[#allocation19 + $0x8] sm:$0x3]
          %v1785 = vld [vmem:[#allocation22] sm:$0xff]
          %v1786 = vld [vmem:[#allocation22 + $0x8] sm:$0xff]
          %v1787 = vld [vmem:[#allocation22 + $0x10] sm:$0xff]
          %v1788 = vld [vmem:[#allocation22 + $0x18] sm:$0x3f]
          %v1789 = vld [vmem:[#allocation24] sm:$0x1]
          %v1791 = vlaneseq
          %v1792 = vshrl.u32 %v1791, 7
          %v1793 = vsub.s32 0, %v1792
          %v1794 = vrot.slane %v1789, %v1793
          %v1797 = vsel %vm1514, %v1783, 0
          %v1800 = vsel %vm1514, %v1784, 0
          %v1803 = vsel %vm1518, %v1788, 0
          %1805 = vmatprep.subr.mxu0 0.0
          %1806 = vmatpush1.msra.mxu0 %v1785
          %1807 = vmatprep.subr.mxu0 0.0
          %1808 = vmatpush1.msra.mxu0 %v1786
          %1809 = vmatprep.subr.mxu0 0.0
          %1810 = vmatpush1.msra.mxu0 %v1787
          %1811 = vmatprep.subr.mxu0 0.0
          %1812 = vmatpush1.msra.mxu0 %v1803
          %1813 = vmatprep.subr.mxu0 0.0
          %1814 = vmatpush1.msra.mxu0 0.0
          %1815 = vmatprep.subr.mxu0 0.0
          %1816 = vmatpush1.msra.mxu0 0.0
          %1817 = vmatprep.subr.mxu0 0.0
          %1818 = vmatpush1.msra.mxu0 0.0
          %1819 = vmatprep.subr.mxu0 0.0
          %1820 = vmatpush1.msra.mxu0 0.0
          %1821 = vmatprep.subr.mxu0 0.0
          %1822 = vmatpush1.msra.mxu0 0.0
          %1823 = vmatprep.subr.mxu0 0.0
          %1824 = vmatpush1.msra.mxu0 0.0
          %1825 = vmatprep.subr.mxu0 0.0
          %1826 = vmatpush1.msra.mxu0 0.0
          %1827 = vmatprep.subr.mxu0 0.0
          %1828 = vmatpush1.msra.mxu0 0.0
          %1829 = vmatprep.subr.mxu0 0.0
          %1830 = vmatpush1.msra.mxu0 0.0
          %1831 = vmatprep.subr.mxu0 0.0
          %1832 = vmatpush1.msra.mxu0 0.0
          %1833 = vmatprep.subr.mxu0 0.0
          %1834 = vmatpush1.msra.mxu0 0.0
          %1835 = vmatprep.subr.mxu0 0.0
          %1836 = vmatpush1.msra.mxu0 0.0
          %1837 = vmatprep.subr.mxu0 0.0
          %1838 = vmatpush1.msra.mxu0 0.0
          %1839 = vmatprep.subr.mxu0 0.0
          %1840 = vmatpush1.msra.mxu0 0.0
          %1841 = vmatprep.subr.mxu0 0.0
          %1842 = vmatpush1.msra.mxu0 0.0
          %1843 = vmatprep.subr.mxu0 0.0
          %1844 = vmatpush1.msra.mxu0 0.0
          %1845 = vmatprep.subr.mxu0 0.0
          %1846 = vmatpush1.msra.mxu0 0.0
          %1847 = vmatprep.subr.mxu0 0.0
          %1848 = vmatpush1.msra.mxu0 0.0
          %1849 = vmatprep.subr.mxu0 0.0
          %1850 = vmatpush1.msra.mxu0 0.0
          %1851 = vmatprep.subr.mxu0 0.0
          %1852 = vmatpush1.msra.mxu0 0.0
          %1853 = vmatprep.subr.mxu0 0.0
          %1854 = vmatpush1.msra.mxu0 0.0
          %1855 = vmatprep.subr.mxu0 0.0
          %1856 = vmatpush1.msra.mxu0 0.0
          %1857 = vmatprep.subr.mxu0 0.0
          %1858 = vmatpush1.msra.mxu0 0.0
          %1859 = vmatprep.subr.mxu0 0.0
          %1860 = vmatpush1.msra.mxu0 0.0
          %1861 = vmatprep.subr.mxu0 0.0
          %1862 = vmatpush1.msra.mxu0 0.0
          %1863 = vmatprep.subr.mxu0 0.0
          %1864 = vmatpush1.msra.mxu0 0.0
          %1865 = vmatprep.subr.mxu0 0.0
          %1866 = vmatpush1.msra.mxu0 0.0
          %1867 = vmatprep.subr.mxu0 0.0
          %1868 = vmatpush1.msra.mxu0 0.0
          %1869 = vmatprep.mubr.f32.mxu0 0.0
          %1870 = vmatmul.mubr.f32.gmra.mrb[0].mxu0 %v1797
          %v1871 = vpop.f32.mrb[0].mxu0
          %v1872 = vadd.f32 %v1794, %v1871
          %v1873 = vpop.f32.mrb[0].mxu0
          %1874 = vmatprep.mubr.f32.mxu0 0.0
          %1875 = vmatmul.mubr.f32.gmra.mrb[0].mxu0 %v1800
          %v1876 = vpop.f32.mrb[0].mxu0
          %v1877 = vadd.f32 %v1794, %v1876
          %v1878 = vpop.f32.mrb[0].mxu0
          %1879 = vdwg.mxu0
          %v1880 = vmax.f32 %v1872, 0.0
          %v1881 = vmax.f32 %v1877, 0.0
          %v1882 = vld [vmem:[#allocation21] sm:$0x3]
          %v1884 = vsel %vm1407, %v1882, 0
          %v1887 = vsel %vm1420, %v1881, 0
          %1889 = vmatprep.subr.mxu0 0.0
          %1890 = vmatpush1.msra.mxu0 %v1880
          %1891 = vmatprep.subr.mxu0 0.0
          %1892 = vmatpush1.msra.mxu0 %v1887
          %1893 = vmatprep.subr.mxu0 0.0
          %1894 = vmatpush1.msra.mxu0 0.0
          %1895 = vmatprep.subr.mxu0 0.0
          %1896 = vmatpush1.msra.mxu0 0.0
          %1897 = vmatprep.subr.mxu0 0.0
          %1898 = vmatpush1.msra.mxu0 0.0
          %1899 = vmatprep.subr.mxu0 0.0
          %1900 = vmatpush1.msra.mxu0 0.0
          %1901 = vmatprep.subr.mxu0 0.0
          %1902 = vmatpush1.msra.mxu0 0.0
          %1903 = vmatprep.subr.mxu0 0.0
          %1904 = vmatpush1.msra.mxu0 0.0
          %1905 = vmatprep.subr.mxu0 0.0
          %1906 = vmatpush1.msra.mxu0 0.0
          %1907 = vmatprep.subr.mxu0 0.0
          %1908 = vmatpush1.msra.mxu0 0.0
          %1909 = vmatprep.subr.mxu0 0.0
          %1910 = vmatpush1.msra.mxu0 0.0
          %1911 = vmatprep.subr.mxu0 0.0
          %1912 = vmatpush1.msra.mxu0 0.0
          %1913 = vmatprep.subr.mxu0 0.0
          %1914 = vmatpush1.msra.mxu0 0.0
          %1915 = vmatprep.subr.mxu0 0.0
          %1916 = vmatpush1.msra.mxu0 0.0
          %1917 = vmatprep.subr.mxu0 0.0
          %1918 = vmatpush1.msra.mxu0 0.0
          %1919 = vmatprep.subr.mxu0 0.0
          %1920 = vmatpush1.msra.mxu0 0.0
          %1921 = vmatprep.subr.mxu0 0.0
          %1922 = vmatpush1.msra.mxu0 0.0
          %1923 = vmatprep.subr.mxu0 0.0
          %1924 = vmatpush1.msra.mxu0 0.0
          %1925 = vmatprep.subr.mxu0 0.0
          %1926 = vmatpush1.msra.mxu0 0.0
          %1927 = vmatprep.subr.mxu0 0.0
          %1928 = vmatpush1.msra.mxu0 0.0
          %1929 = vmatprep.subr.mxu0 0.0
          %1930 = vmatpush1.msra.mxu0 0.0
          %1931 = vmatprep.subr.mxu0 0.0
          %1932 = vmatpush1.msra.mxu0 0.0
          %1933 = vmatprep.subr.mxu0 0.0
          %1934 = vmatpush1.msra.mxu0 0.0
          %1935 = vmatprep.subr.mxu0 0.0
          %1936 = vmatpush1.msra.mxu0 0.0
          %1937 = vmatprep.subr.mxu0 0.0
          %1938 = vmatpush1.msra.mxu0 0.0
          %1939 = vmatprep.subr.mxu0 0.0
          %1940 = vmatpush1.msra.mxu0 0.0
          %1941 = vmatprep.subr.mxu0 0.0
          %1942 = vmatpush1.msra.mxu0 0.0
          %1943 = vmatprep.subr.mxu0 0.0
          %1944 = vmatpush1.msra.mxu0 0.0
          %1945 = vmatprep.subr.mxu0 0.0
          %1946 = vmatpush1.msra.mxu0 0.0
          %1947 = vmatprep.subr.mxu0 0.0
          %1948 = vmatpush1.msra.mxu0 0.0
          %1949 = vmatprep.subr.mxu0 0.0
          %1950 = vmatpush1.msra.mxu0 0.0
          %1951 = vmatprep.subr.mxu0 0.0
          %1952 = vmatpush1.msra.mxu0 0.0
          %1953 = vmatprep.mubr.f32.mxu0 0.0
          %1954 = vmatmul.mubr.f32.gmra.mrb[0].mxu0 %v1884
          %v1955 = vpop.f32.mrb[0].mxu0
          %v1956 = vadd.f32 0.0, %v1955
          %v1957 = vpop.f32.mrb[0].mxu0
          %1958 = vdwg.mxu0
          %s1959 = scalar_lea.vmem [#allocation2], 6
          %1960 = vst.msk [vmem:[%s1959] sm:$0x3] %vm1392, %v1956
          %v1961 = vld [vmem:[#allocation25] sm:$0x3f]
          %v1962 = vld [vmem:[#allocation28] sm:$0xff]
          %v1963 = vld [vmem:[#allocation28 + $0x8] sm:$0xff]
          %v1964 = vld [vmem:[#allocation28 + $0x10] sm:$0xff]
          %v1965 = vld [vmem:[#allocation28 + $0x18] sm:$0xff]
          %v1966 = vld [vmem:[#allocation28 + $0x20] sm:$0xff]
          %v1967 = vld [vmem:[#allocation28 + $0x28] sm:$0xff]
          %v1968 = vld [vmem:[#allocation28 + $0x30] sm:$0x3]
          %v1969 = vld [vmem:[#allocation30] sm:$0x1]
          %v1971 = vlaneseq
          %v1972 = vshrl.u32 %v1971, 7
          %v1973 = vsub.s32 0, %v1972
          %v1974 = vrot.slane %v1969, %v1973
          %vm1976 = vcmask 408576
          %v1978 = vsel %vm1976, %v1961, 0
          %v1981 = vsel %vm1420, %v1968, 0
          %1983 = vmatprep.subr.mxu0 0.0
          %1984 = vmatpush1.msra.mxu0 %v1962
          %1985 = vmatprep.subr.mxu0 0.0
          %1986 = vmatpush1.msra.mxu0 %v1963
          %1987 = vmatprep.subr.mxu0 0.0
          %1988 = vmatpush1.msra.mxu0 %v1964
          %1989 = vmatprep.subr.mxu0 0.0
          %1990 = vmatpush1.msra.mxu0 %v1965
          %1991 = vmatprep.subr.mxu0 0.0
          %1992 = vmatpush1.msra.mxu0 %v1966
          %1993 = vmatprep.subr.mxu0 0.0
          %1994 = vmatpush1.msra.mxu0 %v1967
          %1995 = vmatprep.subr.mxu0 0.0
          %1996 = vmatpush1.msra.mxu0 %v1981
          %1997 = vmatprep.subr.mxu0 0.0
          %1998 = vmatpush1.msra.mxu0 0.0
          %1999 = vmatprep.subr.mxu0 0.0
          %2000 = vmatpush1.msra.mxu0 0.0
          %2001 = vmatprep.subr.mxu0 0.0
          %2002 = vmatpush1.msra.mxu0 0.0
          %2003 = vmatprep.subr.mxu0 0.0
          %2004 = vmatpush1.msra.mxu0 0.0
          %2005 = vmatprep.subr.mxu0 0.0
          %2006 = vmatpush1.msra.mxu0 0.0
          %2007 = vmatprep.subr.mxu0 0.0
          %2008 = vmatpush1.msra.mxu0 0.0
          %2009 = vmatprep.subr.mxu0 0.0
          %2010 = vmatpush1.msra.mxu0 0.0
          %2011 = vmatprep.subr.mxu0 0.0
          %2012 = vmatpush1.msra.mxu0 0.0
          %2013 = vmatprep.subr.mxu0 0.0
          %2014 = vmatpush1.msra.mxu0 0.0
          %2015 = vmatprep.subr.mxu0 0.0
          %2016 = vmatpush1.msra.mxu0 0.0
          %2017 = vmatprep.subr.mxu0 0.0
          %2018 = vmatpush1.msra.mxu0 0.0
          %2019 = vmatprep.subr.mxu0 0.0
          %2020 = vmatpush1.msra.mxu0 0.0
          %2021 = vmatprep.subr.mxu0 0.0
          %2022 = vmatpush1.msra.mxu0 0.0
          %2023 = vmatprep.subr.mxu0 0.0
          %2024 = vmatpush1.msra.mxu0 0.0
          %2025 = vmatprep.subr.mxu0 0.0
          %2026 = vmatpush1.msra.mxu0 0.0
          %2027 = vmatprep.subr.mxu0 0.0
          %2028 = vmatpush1.msra.mxu0 0.0
          %2029 = vmatprep.subr.mxu0 0.0
          %2030 = vmatpush1.msra.mxu0 0.0
          %2031 = vmatprep.subr.mxu0 0.0
          %2032 = vmatpush1.msra.mxu0 0.0
          %2033 = vmatprep.subr.mxu0 0.0
          %2034 = vmatpush1.msra.mxu0 0.0
          %2035 = vmatprep.subr.mxu0 0.0
          %2036 = vmatpush1.msra.mxu0 0.0
          %2037 = vmatprep.subr.mxu0 0.0
          %2038 = vmatpush1.msra.mxu0 0.0
          %2039 = vmatprep.subr.mxu0 0.0
          %2040 = vmatpush1.msra.mxu0 0.0
          %2041 = vmatprep.subr.mxu0 0.0
          %2042 = vmatpush1.msra.mxu0 0.0
          %2043 = vmatprep.subr.mxu0 0.0
          %2044 = vmatpush1.msra.mxu0 0.0
          %2045 = vmatprep.subr.mxu0 0.0
          %2046 = vmatpush1.msra.mxu0 0.0
          %2047 = vmatprep.mubr.f32.mxu0 0.0
          %2048 = vmatmul.mubr.f32.gmra.mrb[0].mxu0 %v1978
          %v2049 = vpop.f32.mrb[0].mxu0
          %v2050 = vadd.f32 %v1974, %v2049
          %v2051 = vpop.f32.mrb[0].mxu0
          %2052 = vdwg.mxu0
          %v2053 = vmax.f32 %v2050, 0.0
          %v2054 = vld [vmem:[#allocation27] sm:$0x3]
          %vm2055 = vcmask 48128
          %v2057 = vsel %vm2055, %v2054, 0
          %v2060 = vsel %vm1518, %v2053, 0
          %2062 = vmatprep.subr.mxu0 0.0
          %2063 = vmatpush1.msra.mxu0 %v2060
          %2064 = vmatprep.subr.mxu0 0.0
          %2065 = vmatpush1.msra.mxu0 0.0
          %2066 = vmatprep.subr.mxu0 0.0
          %2067 = vmatpush1.msra.mxu0 0.0
          %2068 = vmatprep.subr.mxu0 0.0
          %2069 = vmatpush1.msra.mxu0 0.0
          %2070 = vmatprep.subr.mxu0 0.0
          %2071 = vmatpush1.msra.mxu0 0.0
          %2072 = vmatprep.subr.mxu0 0.0
          %2073 = vmatpush1.msra.mxu0 0.0
          %2074 = vmatprep.subr.mxu0 0.0
          %2075 = vmatpush1.msra.mxu0 0.0
          %2076 = vmatprep.subr.mxu0 0.0
          %2077 = vmatpush1.msra.mxu0 0.0
          %2078 = vmatprep.subr.mxu0 0.0
          %2079 = vmatpush1.msra.mxu0 0.0
          %2080 = vmatprep.subr.mxu0 0.0
          %2081 = vmatpush1.msra.mxu0 0.0
          %2082 = vmatprep.subr.mxu0 0.0
          %2083 = vmatpush1.msra.mxu0 0.0
          %2084 = vmatprep.subr.mxu0 0.0
          %2085 = vmatpush1.msra.mxu0 0.0
          %2086 = vmatprep.subr.mxu0 0.0
          %2087 = vmatpush1.msra.mxu0 0.0
          %2088 = vmatprep.subr.mxu0 0.0
          %2089 = vmatpush1.msra.mxu0 0.0
          %2090 = vmatprep.subr.mxu0 0.0
          %2091 = vmatpush1.msra.mxu0 0.0
          %2092 = vmatprep.subr.mxu0 0.0
          %2093 = vmatpush1.msra.mxu0 0.0
          %2094 = vmatprep.subr.mxu0 0.0
          %2095 = vmatpush1.msra.mxu0 0.0
          %2096 = vmatprep.subr.mxu0 0.0
          %2097 = vmatpush1.msra.mxu0 0.0
          %2098 = vmatprep.subr.mxu0 0.0
          %2099 = vmatpush1.msra.mxu0 0.0
          %2100 = vmatprep.subr.mxu0 0.0
          %2101 = vmatpush1.msra.mxu0 0.0
          %2102 = vmatprep.subr.mxu0 0.0
          %2103 = vmatpush1.msra.mxu0 0.0
          %2104 = vmatprep.subr.mxu0 0.0
          %2105 = vmatpush1.msra.mxu0 0.0
          %2106 = vmatprep.subr.mxu0 0.0
          %2107 = vmatpush1.msra.mxu0 0.0
          %2108 = vmatprep.subr.mxu0 0.0
          %2109 = vmatpush1.msra.mxu0 0.0
          %2110 = vmatprep.subr.mxu0 0.0
          %2111 = vmatpush1.msra.mxu0 0.0
          %2112 = vmatprep.subr.mxu0 0.0
          %2113 = vmatpush1.msra.mxu0 0.0
          %2114 = vmatprep.subr.mxu0 0.0
          %2115 = vmatpush1.msra.mxu0 0.0
          %2116 = vmatprep.subr.mxu0 0.0
          %2117 = vmatpush1.msra.mxu0 0.0
          %2118 = vmatprep.subr.mxu0 0.0
          %2119 = vmatpush1.msra.mxu0 0.0
          %2120 = vmatprep.subr.mxu0 0.0
          %2121 = vmatpush1.msra.mxu0 0.0
          %2122 = vmatprep.subr.mxu0 0.0
          %2123 = vmatpush1.msra.mxu0 0.0
          %2124 = vmatprep.subr.mxu0 0.0
          %2125 = vmatpush1.msra.mxu0 0.0
          %2126 = vmatprep.mubr.f32.mxu0 0.0
          %2127 = vmatmul.mubr.f32.gmra.mrb[0].mxu0 %v2057
          %v2128 = vpop.f32.mrb[0].mxu0
          %v2129 = vadd.f32 0.0, %v2128
          %v2130 = vpop.f32.mrb[0].mxu0
          %2131 = vdwg.mxu0
          %s2132 = scalar_lea.vmem [#allocation2], 8
          %2133 = vst.msk [vmem:[%s2132] sm:$0x3] %vm1392, %v2129
          %2134 = vst [vmem:[#allocation3] sm:$0xff] 0.0
        $region216: #{tpu_custom_call.1} parent=123 // pred_fallthru
          _
        %v2135 = vld [vmem:[#allocation2] sm:$0x3]
        %v2136 = vld [vmem:[%s1046] sm:$0xff]
        %v2137 = vld [vmem:[%s1046 + $0x8] sm:$0xff]
        %v2138 = vld [vmem:[%s1046 + $0x10] sm:$0xff]
        %v2139 = vld [vmem:[%s1046 + $0x18] sm:$0xff]
        %v2140 = vld [vmem:[%s1046 + $0x20] sm:$0xff]
        %v2141 = vld [vmem:[%s1046 + $0x28] sm:$0xff]
        %v2142 = vld [vmem:[%s1046 + $0x30] sm:$0xff]
        %v2143 = vld [vmem:[%s1046 + $0x38] sm:$0xff]
        %v2144 = vld [vmem:[%s1046 + $0x40] sm:$0xff]
        %v2145 = vld [vmem:[%s1046 + $0x48] sm:$0xff]
        %v2146 = vld [vmem:[%s1046 + $0x50] sm:$0xff]
        %v2147 = vld [vmem:[%s1046 + $0x58] sm:$0xff]
        %v2148 = vld [vmem:[%s1046 + $0x60] sm:$0xff]
        %v2149 = vld [vmem:[%s1046 + $0x68] sm:$0xff]
        %v2150 = vld [vmem:[%s1046 + $0x70] sm:$0xff]
        %v2151 = vld [vmem:[%s1046 + $0x78] sm:$0xff]
        %v2152 = vld [vmem:[%s1046 + $0x80] sm:$0xff]
        %v2153 = vld [vmem:[%s1046 + $0x88] sm:$0xff]
        %v2154 = vld [vmem:[%s1046 + $0x90] sm:$0xff]
        %v2155 = vld [vmem:[%s1046 + $0x98] sm:$0xff]
        %v2156 = vld [vmem:[%s1046 + $0xa0] sm:$0xff]
        %v2157 = vld [vmem:[%s1046 + $0xa8] sm:$0xff]
        %v2158 = vld [vmem:[%s1046 + $0xb0] sm:$0xff]
        %v2159 = vld [vmem:[%s1046 + $0xb8] sm:$0xff]
        %v2160 = vld [vmem:[%s1046 + $0xc0] sm:$0xff]
        %v2161 = vld [vmem:[%s1046 + $0xc8] sm:$0xff]
        %v2162 = vld [vmem:[%s1046 + $0xd0] sm:$0xff]
        %v2163 = vld [vmem:[%s1046 + $0xd8] sm:$0xff]
        %v2164 = vld [vmem:[%s1046 + $0xe0] sm:$0xff]
        %v2165 = vld [vmem:[%s1046 + $0xe8] sm:$0xff]
        %v2166 = vld [vmem:[%s1046 + $0xf0] sm:$0xff]
        %v2167 = vld [vmem:[%s1046 + $0xf8] sm:$0xff]
        %v2168 = vld [vmem:[%s1046 + $0x100] sm:$0xff]
        %v2169 = vld [vmem:[%s1046 + $0x108] sm:$0xff]
        %v2170 = vld [vmem:[%s1046 + $0x110] sm:$0xff]
        %v2171 = vld [vmem:[%s1046 + $0x118] sm:$0xff]
        %v2172 = vld [vmem:[%s1046 + $0x120] sm:$0xff]
        %v2173 = vld [vmem:[%s1046 + $0x128] sm:$0xff]
        %v2174 = vld [vmem:[%s1046 + $0x130] sm:$0xff]
        %v2175 = vld [vmem:[%s1046 + $0x138] sm:$0xff]
        %v2176 = vld [vmem:[%s1046 + $0x140] sm:$0xff]
        %v2177 = vld [vmem:[%s1046 + $0x148] sm:$0xff]
        %v2178 = vld [vmem:[%s1046 + $0x150] sm:$0xff]
        %v2179 = vld [vmem:[%s1046 + $0x158] sm:$0xff]
        %v2180 = vld [vmem:[%s1046 + $0x160] sm:$0xff]
        %v2181 = vld [vmem:[%s1046 + $0x168] sm:$0xff]
        %v2182 = vld [vmem:[%s1046 + $0x170] sm:$0xff]
        %v2183 = vld [vmem:[%s1046 + $0x178] sm:$0xff]
        %v2184 = vld [vmem:[%s1046 + $0x180] sm:$0xff]
        %v2185 = vld [vmem:[%s1046 + $0x188] sm:$0xff]
        %v2186 = vld [vmem:[%s1046 + $0x190] sm:$0xff]
        %v2187 = vld [vmem:[%s1046 + $0x198] sm:$0xff]
        %v2188 = vld [vmem:[%s1046 + $0x1a0] sm:$0xff]
        %v2189 = vld [vmem:[%s1046 + $0x1a8] sm:$0xff]
        %v2190 = vld [vmem:[%s1046 + $0x1b0] sm:$0xff]
        %v2191 = vld [vmem:[%s1046 + $0x1b8] sm:$0xff]
        %v2192 = vld [vmem:[%s1046 + $0x1c0] sm:$0xff]
        %v2193 = vld [vmem:[%s1046 + $0x1c8] sm:$0xff]
        %v2194 = vld [vmem:[%s1046 + $0x1d0] sm:$0xff]
        %v2195 = vld [vmem:[%s1046 + $0x1d8] sm:$0xff]
        %v2196 = vld [vmem:[%s1046 + $0x1e0] sm:$0xff]
        %v2197 = vld [vmem:[%s1046 + $0x1e8] sm:$0xff]
        %v2198 = vld [vmem:[%s1046 + $0x1f0] sm:$0xff]
        %v2199 = vld [vmem:[%s1046 + $0x1f8] sm:$0xff]
        %v2200 = vld [vmem:[%s1046 + $0x200] sm:$0xff]
        %v2201 = vld [vmem:[%s1046 + $0x208] sm:$0xff]
        %v2202 = vld [vmem:[%s1046 + $0x210] sm:$0xff]
        %v2203 = vld [vmem:[%s1046 + $0x218] sm:$0xff]
        %v2204 = vld [vmem:[%s1046 + $0x220] sm:$0xff]
        %v2205 = vld [vmem:[%s1046 + $0x228] sm:$0xff]
        %v2206 = vld [vmem:[%s1046 + $0x230] sm:$0xff]
        %v2207 = vld [vmem:[%s1046 + $0x238] sm:$0xff]
        %v2208 = vld [vmem:[%s1046 + $0x240] sm:$0xff]
        %v2209 = vld [vmem:[%s1046 + $0x248] sm:$0xff]
        %v2210 = vld [vmem:[%s1046 + $0x250] sm:$0xff]
        %v2211 = vld [vmem:[%s1046 + $0x258] sm:$0xff]
        %v2212 = vld [vmem:[%s1046 + $0x260] sm:$0xff]
        %v2213 = vld [vmem:[%s1046 + $0x268] sm:$0xff]
        %v2214 = vld [vmem:[%s1046 + $0x270] sm:$0xff]
        %v2215 = vld [vmem:[%s1046 + $0x278] sm:$0xff]
        %v2216 = vld [vmem:[%s1046 + $0x280] sm:$0xff]
        %v2217 = vld [vmem:[%s1046 + $0x288] sm:$0xff]
        %v2218 = vld [vmem:[%s1046 + $0x290] sm:$0xff]
        %v2219 = vld [vmem:[%s1046 + $0x298] sm:$0xff]
        %v2220 = vld [vmem:[%s1046 + $0x2a0] sm:$0xff]
        %v2221 = vld [vmem:[%s1046 + $0x2a8] sm:$0xff]
        %v2222 = vld [vmem:[%s1046 + $0x2b0] sm:$0xff]
        %v2223 = vld [vmem:[%s1046 + $0x2b8] sm:$0xff]
        %v2224 = vld [vmem:[%s1046 + $0x2c0] sm:$0xff]
        %v2225 = vld [vmem:[%s1046 + $0x2c8] sm:$0xff]
        %v2226 = vld [vmem:[%s1046 + $0x2d0] sm:$0xff]
        %v2227 = vld [vmem:[%s1046 + $0x2d8] sm:$0xff]
        %v2228 = vld [vmem:[%s1046 + $0x2e0] sm:$0xff]
        %v2229 = vld [vmem:[%s1046 + $0x2e8] sm:$0xff]
        %v2230 = vld [vmem:[%s1046 + $0x2f0] sm:$0xff]
        %v2231 = vld [vmem:[%s1046 + $0x2f8] sm:$0xff]
        %v2232 = vld [vmem:[%s1046 + $0x300] sm:$0xf]
        %v2233 = vld [vmem:[%s1046 + $0x308] sm:$0xf]
        %v2234 = vld [vmem:[%s1046 + $0x310] sm:$0xf]
        %v2235 = vld [vmem:[%s1046 + $0x318] sm:$0xf]
        %v2236 = vld [vmem:[%s1046 + $0x320] sm:$0xf]
        %v2237 = vld [vmem:[%s1046 + $0x328] sm:$0xf]
        %v2238 = vld [vmem:[%s1046 + $0x330] sm:$0xf]
        %v2239 = vld [vmem:[%s1046 + $0x338] sm:$0xf]
        %s2240 = scalar_lea.vmem [#allocation2], 2
        %v2241 = vld [vmem:[%s2240] sm:$0x3]
        %s2242 = scalar_lea.vmem %s1046, 832 [#allocation31]
        %v2243 = vld [vmem:[%s2242] sm:$0xff]
        %v2244 = vld [vmem:[%s2242 + $0x8] sm:$0xff]
        %v2245 = vld [vmem:[%s2242 + $0x10] sm:$0xff]
        %v2246 = vld [vmem:[%s2242 + $0x18] sm:$0xff]
        %v2247 = vld [vmem:[%s2242 + $0x20] sm:$0xff]
        %v2248 = vld [vmem:[%s2242 + $0x28] sm:$0xff]
        %v2249 = vld [vmem:[%s2242 + $0x30] sm:$0xff]
        %v2250 = vld [vmem:[%s2242 + $0x38] sm:$0xff]
        %v2251 = vld [vmem:[%s2242 + $0x40] sm:$0xff]
        %v2252 = vld [vmem:[%s2242 + $0x48] sm:$0xff]
        %v2253 = vld [vmem:[%s2242 + $0x50] sm:$0xff]
        %v2254 = vld [vmem:[%s2242 + $0x58] sm:$0xff]
        %v2255 = vld [vmem:[%s2242 + $0x60] sm:$0xff]
        %v2256 = vld [vmem:[%s2242 + $0x68] sm:$0xff]
        %v2257 = vld [vmem:[%s2242 + $0x70] sm:$0xff]
        %v2258 = vld [vmem:[%s2242 + $0x78] sm:$0xff]
        %v2259 = vld [vmem:[%s2242 + $0x80] sm:$0xff]
        %v2260 = vld [vmem:[%s2242 + $0x88] sm:$0xff]
        %v2261 = vld [vmem:[%s2242 + $0x90] sm:$0xff]
        %v2262 = vld [vmem:[%s2242 + $0x98] sm:$0xff]
        %v2263 = vld [vmem:[%s2242 + $0xa0] sm:$0xff]
        %v2264 = vld [vmem:[%s2242 + $0xa8] sm:$0xff]
        %v2265 = vld [vmem:[%s2242 + $0xb0] sm:$0xff]
        %v2266 = vld [vmem:[%s2242 + $0xb8] sm:$0xff]
        %v2267 = vld [vmem:[%s2242 + $0xc0] sm:$0xff]
        %v2268 = vld [vmem:[%s2242 + $0xc8] sm:$0xff]
        %v2269 = vld [vmem:[%s2242 + $0xd0] sm:$0xff]
        %v2270 = vld [vmem:[%s2242 + $0xd8] sm:$0xff]
        %v2271 = vld [vmem:[%s2242 + $0xe0] sm:$0xff]
        %v2272 = vld [vmem:[%s2242 + $0xe8] sm:$0xff]
        %v2273 = vld [vmem:[%s2242 + $0xf0] sm:$0xff]
        %v2274 = vld [vmem:[%s2242 + $0xf8] sm:$0xff]
        %v2275 = vld [vmem:[%s2242 + $0x100] sm:$0xff]
        %v2276 = vld [vmem:[%s2242 + $0x108] sm:$0xff]
        %v2277 = vld [vmem:[%s2242 + $0x110] sm:$0xff]
        %v2278 = vld [vmem:[%s2242 + $0x118] sm:$0xff]
        %v2279 = vld [vmem:[%s2242 + $0x120] sm:$0xff]
        %v2280 = vld [vmem:[%s2242 + $0x128] sm:$0xff]
        %v2281 = vld [vmem:[%s2242 + $0x130] sm:$0xff]
        %v2282 = vld [vmem:[%s2242 + $0x138] sm:$0xff]
        %v2283 = vld [vmem:[%s2242 + $0x140] sm:$0xff]
        %v2284 = vld [vmem:[%s2242 + $0x148] sm:$0xff]
        %v2285 = vld [vmem:[%s2242 + $0x150] sm:$0xff]
        %v2286 = vld [vmem:[%s2242 + $0x158] sm:$0xff]
        %v2287 = vld [vmem:[%s2242 + $0x160] sm:$0xff]
        %v2288 = vld [vmem:[%s2242 + $0x168] sm:$0xff]
        %v2289 = vld [vmem:[%s2242 + $0x170] sm:$0xff]
        %v2290 = vld [vmem:[%s2242 + $0x178] sm:$0xff]
        %v2291 = vld [vmem:[%s2242 + $0x180] sm:$0xff]
        %v2292 = vld [vmem:[%s2242 + $0x188] sm:$0xff]
        %v2293 = vld [vmem:[%s2242 + $0x190] sm:$0xff]
        %v2294 = vld [vmem:[%s2242 + $0x198] sm:$0xff]
        %v2295 = vld [vmem:[%s2242 + $0x1a0] sm:$0xff]
        %v2296 = vld [vmem:[%s2242 + $0x1a8] sm:$0xff]
        %v2297 = vld [vmem:[%s2242 + $0x1b0] sm:$0xff]
        %v2298 = vld [vmem:[%s2242 + $0x1b8] sm:$0xff]
        %v2299 = vld [vmem:[%s2242 + $0x1c0] sm:$0xff]
        %v2300 = vld [vmem:[%s2242 + $0x1c8] sm:$0xff]
        %v2301 = vld [vmem:[%s2242 + $0x1d0] sm:$0xff]
        %v2302 = vld [vmem:[%s2242 + $0x1d8] sm:$0xff]
        %v2303 = vld [vmem:[%s2242 + $0x1e0] sm:$0xff]
        %v2304 = vld [vmem:[%s2242 + $0x1e8] sm:$0xff]
        %v2305 = vld [vmem:[%s2242 + $0x1f0] sm:$0xff]
        %v2306 = vld [vmem:[%s2242 + $0x1f8] sm:$0xff]
        %v2307 = vld [vmem:[%s2242 + $0x200] sm:$0xff]
        %v2308 = vld [vmem:[%s2242 + $0x208] sm:$0xff]
        %v2309 = vld [vmem:[%s2242 + $0x210] sm:$0xff]
        %v2310 = vld [vmem:[%s2242 + $0x218] sm:$0xff]
        %v2311 = vld [vmem:[%s2242 + $0x220] sm:$0xff]
        %v2312 = vld [vmem:[%s2242 + $0x228] sm:$0xff]
        %v2313 = vld [vmem:[%s2242 + $0x230] sm:$0xff]
        %v2314 = vld [vmem:[%s2242 + $0x238] sm:$0xff]
        %v2315 = vld [vmem:[%s2242 + $0x240] sm:$0xff]
        %v2316 = vld [vmem:[%s2242 + $0x248] sm:$0xff]
        %v2317 = vld [vmem:[%s2242 + $0x250] sm:$0xff]
        %v2318 = vld [vmem:[%s2242 + $0x258] sm:$0xff]
        %v2319 = vld [vmem:[%s2242 + $0x260] sm:$0xff]
        %v2320 = vld [vmem:[%s2242 + $0x268] sm:$0xff]
        %v2321 = vld [vmem:[%s2242 + $0x270] sm:$0xff]
        %v2322 = vld [vmem:[%s2242 + $0x278] sm:$0xff]
        %v2323 = vld [vmem:[%s2242 + $0x280] sm:$0xff]
        %v2324 = vld [vmem:[%s2242 + $0x288] sm:$0xff]
        %v2325 = vld [vmem:[%s2242 + $0x290] sm:$0xff]
        %v2326 = vld [vmem:[%s2242 + $0x298] sm:$0xff]
        %v2327 = vld [vmem:[%s2242 + $0x2a0] sm:$0xff]
        %v2328 = vld [vmem:[%s2242 + $0x2a8] sm:$0xff]
        %v2329 = vld [vmem:[%s2242 + $0x2b0] sm:$0xff]
        %v2330 = vld [vmem:[%s2242 + $0x2b8] sm:$0xff]
        %v2331 = vld [vmem:[%s2242 + $0x2c0] sm:$0xff]
        %v2332 = vld [vmem:[%s2242 + $0x2c8] sm:$0xff]
        %v2333 = vld [vmem:[%s2242 + $0x2d0] sm:$0xff]
        %v2334 = vld [vmem:[%s2242 + $0x2d8] sm:$0xff]
        %v2335 = vld [vmem:[%s2242 + $0x2e0] sm:$0xff]
        %v2336 = vld [vmem:[%s2242 + $0x2e8] sm:$0xff]
        %v2337 = vld [vmem:[%s2242 + $0x2f0] sm:$0xff]
        %v2338 = vld [vmem:[%s2242 + $0x2f8] sm:$0xff]
        %v2339 = vld [vmem:[%s2242 + $0x300] sm:$0xf]
        %v2340 = vld [vmem:[%s2242 + $0x308] sm:$0xf]
        %v2341 = vld [vmem:[%s2242 + $0x310] sm:$0xf]
        %v2342 = vld [vmem:[%s2242 + $0x318] sm:$0xf]
        %v2343 = vld [vmem:[%s2242 + $0x320] sm:$0xf]
        %v2344 = vld [vmem:[%s2242 + $0x328] sm:$0xf]
        %v2345 = vld [vmem:[%s2242 + $0x330] sm:$0xf]
        %v2346 = vld [vmem:[%s2242 + $0x338] sm:$0xf]
        %vm2347 = vcmask 818176
        %v2349 = vsel %vm2347, %v2241, 0
        %vm2351 = vcmask 1043456
        %v2353 = vsel %vm2351, %v2339, 0
        %v2356 = vsel %vm2351, %v2340, 0
        %v2359 = vsel %vm2351, %v2341, 0
        %v2362 = vsel %vm2351, %v2342, 0
        %v2365 = vsel %vm2351, %v2343, 0
        %v2368 = vsel %vm2351, %v2344, 0
        %v2371 = vsel %vm2351, %v2345, 0
        %v2374 = vsel %vm2351, %v2346, 0
        %2376 = vmatprep.subr.mxu0 %v2244
        %2377 = vmatpush1.msra.mxu0 %v2243
        %2378 = vmatprep.subr.mxu0 %v2252
        %2379 = vmatpush1.msra.mxu0 %v2251
        %2380 = vmatprep.subr.mxu0 %v2260
        %2381 = vmatpush1.msra.mxu0 %v2259
        %2382 = vmatprep.subr.mxu0 %v2268
        %2383 = vmatpush1.msra.mxu0 %v2267
        %2384 = vmatprep.subr.mxu0 %v2276
        %2385 = vmatpush1.msra.mxu0 %v2275
        %2386 = vmatprep.subr.mxu0 %v2284
        %2387 = vmatpush1.msra.mxu0 %v2283
        %2388 = vmatprep.subr.mxu0 %v2292
        %2389 = vmatpush1.msra.mxu0 %v2291
        %2390 = vmatprep.subr.mxu0 %v2300
        %2391 = vmatpush1.msra.mxu0 %v2299
        %2392 = vmatprep.subr.mxu0 %v2308
        %2393 = vmatpush1.msra.mxu0 %v2307
        %2394 = vmatprep.subr.mxu0 %v2316
        %2395 = vmatpush1.msra.mxu0 %v2315
        %2396 = vmatprep.subr.mxu0 %v2324
        %2397 = vmatpush1.msra.mxu0 %v2323
        %2398 = vmatprep.subr.mxu0 %v2332
        %2399 = vmatpush1.msra.mxu0 %v2331
        %2400 = vmatprep.subr.mxu0 %v2356
        %2401 = vmatpush1.msra.mxu0 %v2353
        %2402 = vmatprep.subr.mxu0 0.0
        %2403 = vmatpush1.msra.mxu0 0.0
        %2404 = vmatprep.subr.mxu0 0.0
        %2405 = vmatpush1.msra.mxu0 0.0
        %2406 = vmatprep.subr.mxu0 0.0
        %2407 = vmatpush1.msra.mxu0 0.0
        %2408 = vmatprep.subr.mxu0 0.0
        %2409 = vmatpush1.msra.mxu0 0.0
        %2410 = vmatprep.subr.mxu0 0.0
        %2411 = vmatpush1.msra.mxu0 0.0
        %2412 = vmatprep.subr.mxu0 0.0
        %2413 = vmatpush1.msra.mxu0 0.0
        %2414 = vmatprep.subr.mxu0 0.0
        %2415 = vmatpush1.msra.mxu0 0.0
        %2416 = vmatprep.subr.mxu0 0.0
        %2417 = vmatpush1.msra.mxu0 0.0
        %2418 = vmatprep.subr.mxu0 0.0
        %2419 = vmatpush1.msra.mxu0 0.0
        %2420 = vmatprep.subr.mxu0 0.0
        %2421 = vmatpush1.msra.mxu0 0.0
        %2422 = vmatprep.subr.mxu0 0.0
        %2423 = vmatpush1.msra.mxu0 0.0
        %2424 = vmatprep.subr.mxu0 0.0
        %2425 = vmatpush1.msra.mxu0 0.0
        %2426 = vmatprep.subr.mxu0 0.0
        %2427 = vmatpush1.msra.mxu0 0.0
        %2428 = vmatprep.subr.mxu0 0.0
        %2429 = vmatpush1.msra.mxu0 0.0
        %2430 = vmatprep.subr.mxu0 0.0
        %2431 = vmatpush1.msra.mxu0 0.0
        %2432 = vmatprep.subr.mxu0 0.0
        %2433 = vmatpush1.msra.mxu0 0.0
        %2434 = vmatprep.subr.mxu0 0.0
        %2435 = vmatpush1.msra.mxu0 0.0
        %2436 = vmatprep.subr.mxu0 0.0
        %2437 = vmatpush1.msra.mxu0 0.0
        %2438 = vmatprep.subr.mxu0 0.0
        %2439 = vmatpush1.msra.mxu0 0.0
        %2440 = vmatprep.mubr.f32.mxu0 0.0
        %2441 = vmatmul.mubr.f32.gmra.mrb[0].mxu0 %v2349
        %v2442 = vpop.f32.mrb[0].mxu0
        %v2443 = vadd.f32 0.0, %v2442
        %v2444 = vpop.f32.mrb[0].mxu0
        %v2445 = vadd.f32 0.0, %v2444
        %2446 = vdwg.mxu0
        %2447 = vmatprep.subr.mxu0 %v2246
        %2448 = vmatpush1.msra.mxu0 %v2245
        %2449 = vmatprep.subr.mxu0 %v2254
        %2450 = vmatpush1.msra.mxu0 %v2253
        %2451 = vmatprep.subr.mxu0 %v2262
        %2452 = vmatpush1.msra.mxu0 %v2261
        %2453 = vmatprep.subr.mxu0 %v2270
        %2454 = vmatpush1.msra.mxu0 %v2269
        %2455 = vmatprep.subr.mxu0 %v2278
        %2456 = vmatpush1.msra.mxu0 %v2277
        %2457 = vmatprep.subr.mxu0 %v2286
        %2458 = vmatpush1.msra.mxu0 %v2285
        %2459 = vmatprep.subr.mxu0 %v2294
        %2460 = vmatpush1.msra.mxu0 %v2293
        %2461 = vmatprep.subr.mxu0 %v2302
        %2462 = vmatpush1.msra.mxu0 %v2301
        %2463 = vmatprep.subr.mxu0 %v2310
        %2464 = vmatpush1.msra.mxu0 %v2309
        %2465 = vmatprep.subr.mxu0 %v2318
        %2466 = vmatpush1.msra.mxu0 %v2317
        %2467 = vmatprep.subr.mxu0 %v2326
        %2468 = vmatpush1.msra.mxu0 %v2325
        %2469 = vmatprep.subr.mxu0 %v2334
        %2470 = vmatpush1.msra.mxu0 %v2333
        %2471 = vmatprep.subr.mxu0 %v2362
        %2472 = vmatpush1.msra.mxu0 %v2359
        %2473 = vmatprep.subr.mxu0 0.0
        %2474 = vmatpush1.msra.mxu0 0.0
        %2475 = vmatprep.subr.mxu0 0.0
        %2476 = vmatpush1.msra.mxu0 0.0
        %2477 = vmatprep.subr.mxu0 0.0
        %2478 = vmatpush1.msra.mxu0 0.0
        %2479 = vmatprep.subr.mxu0 0.0
        %2480 = vmatpush1.msra.mxu0 0.0
        %2481 = vmatprep.subr.mxu0 0.0
        %2482 = vmatpush1.msra.mxu0 0.0
        %2483 = vmatprep.subr.mxu0 0.0
        %2484 = vmatpush1.msra.mxu0 0.0
        %2485 = vmatprep.subr.mxu0 0.0
        %2486 = vmatpush1.msra.mxu0 0.0
        %2487 = vmatprep.subr.mxu0 0.0
        %2488 = vmatpush1.msra.mxu0 0.0
        %2489 = vmatprep.subr.mxu0 0.0
        %2490 = vmatpush1.msra.mxu0 0.0
        %2491 = vmatprep.subr.mxu0 0.0
        %2492 = vmatpush1.msra.mxu0 0.0
        %2493 = vmatprep.subr.mxu0 0.0
        %2494 = vmatpush1.msra.mxu0 0.0
        %2495 = vmatprep.subr.mxu0 0.0
        %2496 = vmatpush1.msra.mxu0 0.0
        %2497 = vmatprep.subr.mxu0 0.0
        %2498 = vmatpush1.msra.mxu0 0.0
        %2499 = vmatprep.subr.mxu0 0.0
        %2500 = vmatpush1.msra.mxu0 0.0
        %2501 = vmatprep.subr.mxu0 0.0
        %2502 = vmatpush1.msra.mxu0 0.0
        %2503 = vmatprep.subr.mxu0 0.0
        %2504 = vmatpush1.msra.mxu0 0.0
        %2505 = vmatprep.subr.mxu0 0.0
        %2506 = vmatpush1.msra.mxu0 0.0
        %2507 = vmatprep.subr.mxu0 0.0
        %2508 = vmatpush1.msra.mxu0 0.0
        %2509 = vmatprep.subr.mxu0 0.0
        %2510 = vmatpush1.msra.mxu0 0.0
        %2511 = vmatprep.mubr.f32.mxu0 0.0
        %2512 = vmatmul.mubr.f32.gmra.mrb[0].mxu0 %v2349
        %v2513 = vpop.f32.mrb[0].mxu0
        %v2514 = vadd.f32 0.0, %v2513
        %v2515 = vpop.f32.mrb[0].mxu0
        %v2516 = vadd.f32 0.0, %v2515
        %2517 = vdwg.mxu0
        %2518 = vmatprep.subr.mxu0 %v2248
        %2519 = vmatpush1.msra.mxu0 %v2247
        %2520 = vmatprep.subr.mxu0 %v2256
        %2521 = vmatpush1.msra.mxu0 %v2255
        %2522 = vmatprep.subr.mxu0 %v2264
        %2523 = vmatpush1.msra.mxu0 %v2263
        %2524 = vmatprep.subr.mxu0 %v2272
        %2525 = vmatpush1.msra.mxu0 %v2271
        %2526 = vmatprep.subr.mxu0 %v2280
        %2527 = vmatpush1.msra.mxu0 %v2279
        %2528 = vmatprep.subr.mxu0 %v2288
        %2529 = vmatpush1.msra.mxu0 %v2287
        %2530 = vmatprep.subr.mxu0 %v2296
        %2531 = vmatpush1.msra.mxu0 %v2295
        %2532 = vmatprep.subr.mxu0 %v2304
        %2533 = vmatpush1.msra.mxu0 %v2303
        %2534 = vmatprep.subr.mxu0 %v2312
        %2535 = vmatpush1.msra.mxu0 %v2311
        %2536 = vmatprep.subr.mxu0 %v2320
        %2537 = vmatpush1.msra.mxu0 %v2319
        %2538 = vmatprep.subr.mxu0 %v2328
        %2539 = vmatpush1.msra.mxu0 %v2327
        %2540 = vmatprep.subr.mxu0 %v2336
        %2541 = vmatpush1.msra.mxu0 %v2335
        %2542 = vmatprep.subr.mxu0 %v2368
        %2543 = vmatpush1.msra.mxu0 %v2365
        %2544 = vmatprep.subr.mxu0 0.0
        %2545 = vmatpush1.msra.mxu0 0.0
        %2546 = vmatprep.subr.mxu0 0.0
        %2547 = vmatpush1.msra.mxu0 0.0
        %2548 = vmatprep.subr.mxu0 0.0
        %2549 = vmatpush1.msra.mxu0 0.0
        %2550 = vmatprep.subr.mxu0 0.0
        %2551 = vmatpush1.msra.mxu0 0.0
        %2552 = vmatprep.subr.mxu0 0.0
        %2553 = vmatpush1.msra.mxu0 0.0
        %2554 = vmatprep.subr.mxu0 0.0
        %2555 = vmatpush1.msra.mxu0 0.0
        %2556 = vmatprep.subr.mxu0 0.0
        %2557 = vmatpush1.msra.mxu0 0.0
        %2558 = vmatprep.subr.mxu0 0.0
        %2559 = vmatpush1.msra.mxu0 0.0
        %2560 = vmatprep.subr.mxu0 0.0
        %2561 = vmatpush1.msra.mxu0 0.0
        %2562 = vmatprep.subr.mxu0 0.0
        %2563 = vmatpush1.msra.mxu0 0.0
        %2564 = vmatprep.subr.mxu0 0.0
        %2565 = vmatpush1.msra.mxu0 0.0
        %2566 = vmatprep.subr.mxu0 0.0
        %2567 = vmatpush1.msra.mxu0 0.0
        %2568 = vmatprep.subr.mxu0 0.0
        %2569 = vmatpush1.msra.mxu0 0.0
        %2570 = vmatprep.subr.mxu0 0.0
        %2571 = vmatpush1.msra.mxu0 0.0
        %2572 = vmatprep.subr.mxu0 0.0
        %2573 = vmatpush1.msra.mxu0 0.0
        %2574 = vmatprep.subr.mxu0 0.0
        %2575 = vmatpush1.msra.mxu0 0.0
        %2576 = vmatprep.subr.mxu0 0.0
        %2577 = vmatpush1.msra.mxu0 0.0
        %2578 = vmatprep.subr.mxu0 0.0
        %2579 = vmatpush1.msra.mxu0 0.0
        %2580 = vmatprep.subr.mxu0 0.0
        %2581 = vmatpush1.msra.mxu0 0.0
        %2582 = vmatprep.mubr.f32.mxu0 0.0
        %2583 = vmatmul.mubr.f32.gmra.mrb[0].mxu0 %v2349
        %v2584 = vpop.f32.mrb[0].mxu0
        %v2585 = vadd.f32 0.0, %v2584
        %v2586 = vpop.f32.mrb[0].mxu0
        %v2587 = vadd.f32 0.0, %v2586
        %2588 = vdwg.mxu0
        %2589 = vmatprep.subr.mxu0 %v2250
        %2590 = vmatpush1.msra.mxu0 %v2249
        %2591 = vmatprep.subr.mxu0 %v2258
        %2592 = vmatpush1.msra.mxu0 %v2257
        %2593 = vmatprep.subr.mxu0 %v2266
        %2594 = vmatpush1.msra.mxu0 %v2265
        %2595 = vmatprep.subr.mxu0 %v2274
        %2596 = vmatpush1.msra.mxu0 %v2273
        %2597 = vmatprep.subr.mxu0 %v2282
        %2598 = vmatpush1.msra.mxu0 %v2281
        %2599 = vmatprep.subr.mxu0 %v2290
        %2600 = vmatpush1.msra.mxu0 %v2289
        %2601 = vmatprep.subr.mxu0 %v2298
        %2602 = vmatpush1.msra.mxu0 %v2297
        %2603 = vmatprep.subr.mxu0 %v2306
        %2604 = vmatpush1.msra.mxu0 %v2305
        %2605 = vmatprep.subr.mxu0 %v2314
        %2606 = vmatpush1.msra.mxu0 %v2313
        %2607 = vmatprep.subr.mxu0 %v2322
        %2608 = vmatpush1.msra.mxu0 %v2321
        %2609 = vmatprep.subr.mxu0 %v2330
        %2610 = vmatpush1.msra.mxu0 %v2329
        %2611 = vmatprep.subr.mxu0 %v2338
        %2612 = vmatpush1.msra.mxu0 %v2337
        %2613 = vmatprep.subr.mxu0 %v2374
        %2614 = vmatpush1.msra.mxu0 %v2371
        %2615 = vmatprep.subr.mxu0 0.0
        %2616 = vmatpush1.msra.mxu0 0.0
        %2617 = vmatprep.subr.mxu0 0.0
        %2618 = vmatpush1.msra.mxu0 0.0
        %2619 = vmatprep.subr.mxu0 0.0
        %2620 = vmatpush1.msra.mxu0 0.0
        %2621 = vmatprep.subr.mxu0 0.0
        %2622 = vmatpush1.msra.mxu0 0.0
        %2623 = vmatprep.subr.mxu0 0.0
        %2624 = vmatpush1.msra.mxu0 0.0
        %2625 = vmatprep.subr.mxu0 0.0
        %2626 = vmatpush1.msra.mxu0 0.0
        %2627 = vmatprep.subr.mxu0 0.0
        %2628 = vmatpush1.msra.mxu0 0.0
        %2629 = vmatprep.subr.mxu0 0.0
        %2630 = vmatpush1.msra.mxu0 0.0
        %2631 = vmatprep.subr.mxu0 0.0
        %2632 = vmatpush1.msra.mxu0 0.0
        %2633 = vmatprep.subr.mxu0 0.0
        %2634 = vmatpush1.msra.mxu0 0.0
        %2635 = vmatprep.subr.mxu0 0.0
        %2636 = vmatpush1.msra.mxu0 0.0
        %2637 = vmatprep.subr.mxu0 0.0
        %2638 = vmatpush1.msra.mxu0 0.0
        %2639 = vmatprep.subr.mxu0 0.0
        %2640 = vmatpush1.msra.mxu0 0.0
        %2641 = vmatprep.subr.mxu0 0.0
        %2642 = vmatpush1.msra.mxu0 0.0
        %2643 = vmatprep.subr.mxu0 0.0
        %2644 = vmatpush1.msra.mxu0 0.0
        %2645 = vmatprep.subr.mxu0 0.0
        %2646 = vmatpush1.msra.mxu0 0.0
        %2647 = vmatprep.subr.mxu0 0.0
        %2648 = vmatpush1.msra.mxu0 0.0
        %2649 = vmatprep.subr.mxu0 0.0
        %2650 = vmatpush1.msra.mxu0 0.0
        %2651 = vmatprep.subr.mxu0 0.0
        %2652 = vmatpush1.msra.mxu0 0.0
        %2653 = vmatprep.mubr.f32.mxu0 0.0
        %2654 = vmatmul.mubr.f32.gmra.mrb[0].mxu0 %v2349
        %v2655 = vpop.f32.mrb[0].mxu0
        %v2656 = vadd.f32 0.0, %v2655
        %v2657 = vpop.f32.mrb[0].mxu0
        %v2658 = vadd.f32 0.0, %v2657
        %2659 = vdwg.mxu0
        %v2661 = vsel %vm2347, %v2135, 0
        %v2664 = vsel %vm2351, %v2232, 0
        %v2667 = vsel %vm2351, %v2233, 0
        %v2670 = vsel %vm2351, %v2234, 0
        %v2673 = vsel %vm2351, %v2235, 0
        %v2676 = vsel %vm2351, %v2236, 0
        %v2679 = vsel %vm2351, %v2237, 0
        %v2682 = vsel %vm2351, %v2238, 0
        %v2685 = vsel %vm2351, %v2239, 0
        %2687 = vmatprep.subr.mxu0 %v2137
        %2688 = vmatpush1.msra.mxu0 %v2136
        %2689 = vmatprep.subr.mxu0 %v2145
        %2690 = vmatpush1.msra.mxu0 %v2144
        %2691 = vmatprep.subr.mxu0 %v2153
        %2692 = vmatpush1.msra.mxu0 %v2152
        %2693 = vmatprep.subr.mxu0 %v2161
        %2694 = vmatpush1.msra.mxu0 %v2160
        %2695 = vmatprep.subr.mxu0 %v2169
        %2696 = vmatpush1.msra.mxu0 %v2168
        %2697 = vmatprep.subr.mxu0 %v2177
        %2698 = vmatpush1.msra.mxu0 %v2176
        %2699 = vmatprep.subr.mxu0 %v2185
        %2700 = vmatpush1.msra.mxu0 %v2184
        %2701 = vmatprep.subr.mxu0 %v2193
        %2702 = vmatpush1.msra.mxu0 %v2192
        %2703 = vmatprep.subr.mxu0 %v2201
        %2704 = vmatpush1.msra.mxu0 %v2200
        %2705 = vmatprep.subr.mxu0 %v2209
        %2706 = vmatpush1.msra.mxu0 %v2208
        %2707 = vmatprep.subr.mxu0 %v2217
        %2708 = vmatpush1.msra.mxu0 %v2216
        %2709 = vmatprep.subr.mxu0 %v2225
        %2710 = vmatpush1.msra.mxu0 %v2224
        %2711 = vmatprep.subr.mxu0 %v2667
        %2712 = vmatpush1.msra.mxu0 %v2664
        %2713 = vmatprep.subr.mxu0 0.0
        %2714 = vmatpush1.msra.mxu0 0.0
        %2715 = vmatprep.subr.mxu0 0.0
        %2716 = vmatpush1.msra.mxu0 0.0
        %2717 = vmatprep.subr.mxu0 0.0
        %2718 = vmatpush1.msra.mxu0 0.0
        %2719 = vmatprep.subr.mxu0 0.0
        %2720 = vmatpush1.msra.mxu0 0.0
        %2721 = vmatprep.subr.mxu0 0.0
        %2722 = vmatpush1.msra.mxu0 0.0
        %2723 = vmatprep.subr.mxu0 0.0
        %2724 = vmatpush1.msra.mxu0 0.0
        %2725 = vmatprep.subr.mxu0 0.0
        %2726 = vmatpush1.msra.mxu0 0.0
        %2727 = vmatprep.subr.mxu0 0.0
        %2728 = vmatpush1.msra.mxu0 0.0
        %2729 = vmatprep.subr.mxu0 0.0
        %2730 = vmatpush1.msra.mxu0 0.0
        %2731 = vmatprep.subr.mxu0 0.0
        %2732 = vmatpush1.msra.mxu0 0.0
        %2733 = vmatprep.subr.mxu0 0.0
        %2734 = vmatpush1.msra.mxu0 0.0
        %2735 = vmatprep.subr.mxu0 0.0
        %2736 = vmatpush1.msra.mxu0 0.0
        %2737 = vmatprep.subr.mxu0 0.0
        %2738 = vmatpush1.msra.mxu0 0.0
        %2739 = vmatprep.subr.mxu0 0.0
        %2740 = vmatpush1.msra.mxu0 0.0
        %2741 = vmatprep.subr.mxu0 0.0
        %2742 = vmatpush1.msra.mxu0 0.0
        %2743 = vmatprep.subr.mxu0 0.0
        %2744 = vmatpush1.msra.mxu0 0.0
        %2745 = vmatprep.subr.mxu0 0.0
        %2746 = vmatpush1.msra.mxu0 0.0
        %2747 = vmatprep.subr.mxu0 0.0
        %2748 = vmatpush1.msra.mxu0 0.0
        %2749 = vmatprep.subr.mxu0 0.0
        %2750 = vmatpush1.msra.mxu0 0.0
        %2751 = vmatprep.mubr.f32.mxu0 0.0
        %2752 = vmatmul.mubr.f32.gmra.mrb[0].mxu0 %v2661
        %v2753 = vpop.f32.mrb[0].mxu0
        %v2754 = vadd.f32 %v2443, %v2753
        %v2755 = vpop.f32.mrb[0].mxu0
        %v2756 = vadd.f32 %v2445, %v2755
        %2757 = vdwg.mxu0
        %2758 = vmatprep.subr.mxu0 %v2139
        %2759 = vmatpush1.msra.mxu0 %v2138
        %2760 = vmatprep.subr.mxu0 %v2147
        %2761 = vmatpush1.msra.mxu0 %v2146
        %2762 = vmatprep.subr.mxu0 %v2155
        %2763 = vmatpush1.msra.mxu0 %v2154
        %2764 = vmatprep.subr.mxu0 %v2163
        %2765 = vmatpush1.msra.mxu0 %v2162
        %2766 = vmatprep.subr.mxu0 %v2171
        %2767 = vmatpush1.msra.mxu0 %v2170
        %2768 = vmatprep.subr.mxu0 %v2179
        %2769 = vmatpush1.msra.mxu0 %v2178
        %2770 = vmatprep.subr.mxu0 %v2187
        %2771 = vmatpush1.msra.mxu0 %v2186
        %2772 = vmatprep.subr.mxu0 %v2195
        %2773 = vmatpush1.msra.mxu0 %v2194
        %2774 = vmatprep.subr.mxu0 %v2203
        %2775 = vmatpush1.msra.mxu0 %v2202
        %2776 = vmatprep.subr.mxu0 %v2211
        %2777 = vmatpush1.msra.mxu0 %v2210
        %2778 = vmatprep.subr.mxu0 %v2219
        %2779 = vmatpush1.msra.mxu0 %v2218
        %2780 = vmatprep.subr.mxu0 %v2227
        %2781 = vmatpush1.msra.mxu0 %v2226
        %2782 = vmatprep.subr.mxu0 %v2673
        %2783 = vmatpush1.msra.mxu0 %v2670
        %2784 = vmatprep.subr.mxu0 0.0
        %2785 = vmatpush1.msra.mxu0 0.0
        %2786 = vmatprep.subr.mxu0 0.0
        %2787 = vmatpush1.msra.mxu0 0.0
        %2788 = vmatprep.subr.mxu0 0.0
        %2789 = vmatpush1.msra.mxu0 0.0
        %2790 = vmatprep.subr.mxu0 0.0
        %2791 = vmatpush1.msra.mxu0 0.0
        %2792 = vmatprep.subr.mxu0 0.0
        %2793 = vmatpush1.msra.mxu0 0.0
        %2794 = vmatprep.subr.mxu0 0.0
        %2795 = vmatpush1.msra.mxu0 0.0
        %2796 = vmatprep.subr.mxu0 0.0
        %2797 = vmatpush1.msra.mxu0 0.0
        %2798 = vmatprep.subr.mxu0 0.0
        %2799 = vmatpush1.msra.mxu0 0.0
        %2800 = vmatprep.subr.mxu0 0.0
        %2801 = vmatpush1.msra.mxu0 0.0
        %2802 = vmatprep.subr.mxu0 0.0
        %2803 = vmatpush1.msra.mxu0 0.0
        %2804 = vmatprep.subr.mxu0 0.0
        %2805 = vmatpush1.msra.mxu0 0.0
        %2806 = vmatprep.subr.mxu0 0.0
        %2807 = vmatpush1.msra.mxu0 0.0
        %2808 = vmatprep.subr.mxu0 0.0
        %2809 = vmatpush1.msra.mxu0 0.0
        %2810 = vmatprep.subr.mxu0 0.0
        %2811 = vmatpush1.msra.mxu0 0.0
        %2812 = vmatprep.subr.mxu0 0.0
        %2813 = vmatpush1.msra.mxu0 0.0
        %2814 = vmatprep.subr.mxu0 0.0
        %2815 = vmatpush1.msra.mxu0 0.0
        %2816 = vmatprep.subr.mxu0 0.0
        %2817 = vmatpush1.msra.mxu0 0.0
        %2818 = vmatprep.subr.mxu0 0.0
        %2819 = vmatpush1.msra.mxu0 0.0
        %2820 = vmatprep.subr.mxu0 0.0
        %2821 = vmatpush1.msra.mxu0 0.0
        %2822 = vmatprep.mubr.f32.mxu0 0.0
        %2823 = vmatmul.mubr.f32.gmra.mrb[0].mxu0 %v2661
        %v2824 = vpop.f32.mrb[0].mxu0
        %v2825 = vadd.f32 %v2514, %v2824
        %v2826 = vpop.f32.mrb[0].mxu0
        %v2827 = vadd.f32 %v2516, %v2826
        %2828 = vdwg.mxu0
        %2829 = vmatprep.subr.mxu0 %v2141
        %2830 = vmatpush1.msra.mxu0 %v2140
        %2831 = vmatprep.subr.mxu0 %v2149
        %2832 = vmatpush1.msra.mxu0 %v2148
        %2833 = vmatprep.subr.mxu0 %v2157
        %2834 = vmatpush1.msra.mxu0 %v2156
        %2835 = vmatprep.subr.mxu0 %v2165
        %2836 = vmatpush1.msra.mxu0 %v2164
        %2837 = vmatprep.subr.mxu0 %v2173
        %2838 = vmatpush1.msra.mxu0 %v2172
        %2839 = vmatprep.subr.mxu0 %v2181
        %2840 = vmatpush1.msra.mxu0 %v2180
        %2841 = vmatprep.subr.mxu0 %v2189
        %2842 = vmatpush1.msra.mxu0 %v2188
        %2843 = vmatprep.subr.mxu0 %v2197
        %2844 = vmatpush1.msra.mxu0 %v2196
        %2845 = vmatprep.subr.mxu0 %v2205
        %2846 = vmatpush1.msra.mxu0 %v2204
        %2847 = vmatprep.subr.mxu0 %v2213
        %2848 = vmatpush1.msra.mxu0 %v2212
        %2849 = vmatprep.subr.mxu0 %v2221
        %2850 = vmatpush1.msra.mxu0 %v2220
        %2851 = vmatprep.subr.mxu0 %v2229
        %2852 = vmatpush1.msra.mxu0 %v2228
        %2853 = vmatprep.subr.mxu0 %v2679
        %2854 = vmatpush1.msra.mxu0 %v2676
        %2855 = vmatprep.subr.mxu0 0.0
        %2856 = vmatpush1.msra.mxu0 0.0
        %2857 = vmatprep.subr.mxu0 0.0
        %2858 = vmatpush1.msra.mxu0 0.0
        %2859 = vmatprep.subr.mxu0 0.0
        %2860 = vmatpush1.msra.mxu0 0.0
        %2861 = vmatprep.subr.mxu0 0.0
        %2862 = vmatpush1.msra.mxu0 0.0
        %2863 = vmatprep.subr.mxu0 0.0
        %2864 = vmatpush1.msra.mxu0 0.0
        %2865 = vmatprep.subr.mxu0 0.0
        %2866 = vmatpush1.msra.mxu0 0.0
        %2867 = vmatprep.subr.mxu0 0.0
        %2868 = vmatpush1.msra.mxu0 0.0
        %2869 = vmatprep.subr.mxu0 0.0
        %2870 = vmatpush1.msra.mxu0 0.0
        %2871 = vmatprep.subr.mxu0 0.0
        %2872 = vmatpush1.msra.mxu0 0.0
        %2873 = vmatprep.subr.mxu0 0.0
        %2874 = vmatpush1.msra.mxu0 0.0
        %2875 = vmatprep.subr.mxu0 0.0
        %2876 = vmatpush1.msra.mxu0 0.0
        %2877 = vmatprep.subr.mxu0 0.0
        %2878 = vmatpush1.msra.mxu0 0.0
        %2879 = vmatprep.subr.mxu0 0.0
        %2880 = vmatpush1.msra.mxu0 0.0
        %2881 = vmatprep.subr.mxu0 0.0
        %2882 = vmatpush1.msra.mxu0 0.0
        %2883 = vmatprep.subr.mxu0 0.0
        %2884 = vmatpush1.msra.mxu0 0.0
        %2885 = vmatprep.subr.mxu0 0.0
        %2886 = vmatpush1.msra.mxu0 0.0
        %2887 = vmatprep.subr.mxu0 0.0
        %2888 = vmatpush1.msra.mxu0 0.0
        %2889 = vmatprep.subr.mxu0 0.0
        %2890 = vmatpush1.msra.mxu0 0.0
        %2891 = vmatprep.subr.mxu0 0.0
        %2892 = vmatpush1.msra.mxu0 0.0
        %2893 = vmatprep.mubr.f32.mxu0 0.0
        %2894 = vmatmul.mubr.f32.gmra.mrb[0].mxu0 %v2661
        %v2895 = vpop.f32.mrb[0].mxu0
        %v2896 = vadd.f32 %v2585, %v2895
        %v2897 = vpop.f32.mrb[0].mxu0
        %v2898 = vadd.f32 %v2587, %v2897
        %2899 = vdwg.mxu0
        %2900 = vmatprep.subr.mxu0 %v2143
        %2901 = vmatpush1.msra.mxu0 %v2142
        %2902 = vmatprep.subr.mxu0 %v2151
        %2903 = vmatpush1.msra.mxu0 %v2150
        %2904 = vmatprep.subr.mxu0 %v2159
        %2905 = vmatpush1.msra.mxu0 %v2158
        %2906 = vmatprep.subr.mxu0 %v2167
        %2907 = vmatpush1.msra.mxu0 %v2166
        %2908 = vmatprep.subr.mxu0 %v2175
        %2909 = vmatpush1.msra.mxu0 %v2174
        %2910 = vmatprep.subr.mxu0 %v2183
        %2911 = vmatpush1.msra.mxu0 %v2182
        %2912 = vmatprep.subr.mxu0 %v2191
        %2913 = vmatpush1.msra.mxu0 %v2190
        %2914 = vmatprep.subr.mxu0 %v2199
        %2915 = vmatpush1.msra.mxu0 %v2198
        %2916 = vmatprep.subr.mxu0 %v2207
        %2917 = vmatpush1.msra.mxu0 %v2206
        %2918 = vmatprep.subr.mxu0 %v2215
        %2919 = vmatpush1.msra.mxu0 %v2214
        %2920 = vmatprep.subr.mxu0 %v2223
        %2921 = vmatpush1.msra.mxu0 %v2222
        %2922 = vmatprep.subr.mxu0 %v2231
        %2923 = vmatpush1.msra.mxu0 %v2230
        %2924 = vmatprep.subr.mxu0 %v2685
        %2925 = vmatpush1.msra.mxu0 %v2682
        %2926 = vmatprep.subr.mxu0 0.0
        %2927 = vmatpush1.msra.mxu0 0.0
        %2928 = vmatprep.subr.mxu0 0.0
        %2929 = vmatpush1.msra.mxu0 0.0
        %2930 = vmatprep.subr.mxu0 0.0
        %2931 = vmatpush1.msra.mxu0 0.0
        %2932 = vmatprep.subr.mxu0 0.0
        %2933 = vmatpush1.msra.mxu0 0.0
        %2934 = vmatprep.subr.mxu0 0.0
        %2935 = vmatpush1.msra.mxu0 0.0
        %2936 = vmatprep.subr.mxu0 0.0
        %2937 = vmatpush1.msra.mxu0 0.0
        %2938 = vmatprep.subr.mxu0 0.0
        %2939 = vmatpush1.msra.mxu0 0.0
        %2940 = vmatprep.subr.mxu0 0.0
        %2941 = vmatpush1.msra.mxu0 0.0
        %2942 = vmatprep.subr.mxu0 0.0
        %2943 = vmatpush1.msra.mxu0 0.0
        %2944 = vmatprep.subr.mxu0 0.0
        %2945 = vmatpush1.msra.mxu0 0.0
        %2946 = vmatprep.subr.mxu0 0.0
        %2947 = vmatpush1.msra.mxu0 0.0
        %2948 = vmatprep.subr.mxu0 0.0
        %2949 = vmatpush1.msra.mxu0 0.0
        %2950 = vmatprep.subr.mxu0 0.0
        %2951 = vmatpush1.msra.mxu0 0.0
        %2952 = vmatprep.subr.mxu0 0.0
        %2953 = vmatpush1.msra.mxu0 0.0
        %2954 = vmatprep.subr.mxu0 0.0
        %2955 = vmatpush1.msra.mxu0 0.0
        %2956 = vmatprep.subr.mxu0 0.0
        %2957 = vmatpush1.msra.mxu0 0.0
        %2958 = vmatprep.subr.mxu0 0.0
        %2959 = vmatpush1.msra.mxu0 0.0
        %2960 = vmatprep.subr.mxu0 0.0
        %2961 = vmatpush1.msra.mxu0 0.0
        %2962 = vmatprep.subr.mxu0 0.0
        %2963 = vmatpush1.msra.mxu0 0.0
        %2964 = vmatprep.mubr.f32.mxu0 0.0
        %2965 = vmatmul.mubr.f32.gmra.mrb[0].mxu0 %v2661
        %v2966 = vpop.f32.mrb[0].mxu0
        %v2967 = vadd.f32 %v2656, %v2966
        %v2968 = vpop.f32.mrb[0].mxu0
        %v2969 = vadd.f32 %v2658, %v2968
        %2970 = vdwg.mxu0
        %s2971 = scalar_lea.vmem [#allocation2], 4
        %v2972 = vld [vmem:[%s2971] sm:$0x3]
        %s2973 = scalar_lea.vmem %s1046, 1664 [#allocation31]
        %v2974 = vld [vmem:[%s2973] sm:$0xff]
        %v2975 = vld [vmem:[%s2973 + $0x8] sm:$0xff]
        %v2976 = vld [vmem:[%s2973 + $0x10] sm:$0xff]
        %v2977 = vld [vmem:[%s2973 + $0x18] sm:$0xff]
        %v2978 = vld [vmem:[%s2973 + $0x20] sm:$0xff]
        %v2979 = vld [vmem:[%s2973 + $0x28] sm:$0xff]
        %v2980 = vld [vmem:[%s2973 + $0x30] sm:$0xff]
        %v2981 = vld [vmem:[%s2973 + $0x38] sm:$0xff]
        %v2982 = vld [vmem:[%s2973 + $0x40] sm:$0xff]
        %v2983 = vld [vmem:[%s2973 + $0x48] sm:$0xff]
        %v2984 = vld [vmem:[%s2973 + $0x50] sm:$0xff]
        %v2985 = vld [vmem:[%s2973 + $0x58] sm:$0xff]
        %v2986 = vld [vmem:[%s2973 + $0x60] sm:$0xff]
        %v2987 = vld [vmem:[%s2973 + $0x68] sm:$0xff]
        %v2988 = vld [vmem:[%s2973 + $0x70] sm:$0xff]
        %v2989 = vld [vmem:[%s2973 + $0x78] sm:$0xff]
        %v2990 = vld [vmem:[%s2973 + $0x80] sm:$0xff]
        %v2991 = vld [vmem:[%s2973 + $0x88] sm:$0xff]
        %v2992 = vld [vmem:[%s2973 + $0x90] sm:$0xff]
        %v2993 = vld [vmem:[%s2973 + $0x98] sm:$0xff]
        %v2994 = vld [vmem:[%s2973 + $0xa0] sm:$0xff]
        %v2995 = vld [vmem:[%s2973 + $0xa8] sm:$0xff]
        %v2996 = vld [vmem:[%s2973 + $0xb0] sm:$0xff]
        %v2997 = vld [vmem:[%s2973 + $0xb8] sm:$0xff]
        %v2998 = vld [vmem:[%s2973 + $0xc0] sm:$0xff]
        %v2999 = vld [vmem:[%s2973 + $0xc8] sm:$0xff]
        %v3000 = vld [vmem:[%s2973 + $0xd0] sm:$0xff]
        %v3001 = vld [vmem:[%s2973 + $0xd8] sm:$0xff]
        %v3002 = vld [vmem:[%s2973 + $0xe0] sm:$0xff]
        %v3003 = vld [vmem:[%s2973 + $0xe8] sm:$0xff]
        %v3004 = vld [vmem:[%s2973 + $0xf0] sm:$0xff]
        %v3005 = vld [vmem:[%s2973 + $0xf8] sm:$0xff]
        %v3006 = vld [vmem:[%s2973 + $0x100] sm:$0xff]
        %v3007 = vld [vmem:[%s2973 + $0x108] sm:$0xff]
        %v3008 = vld [vmem:[%s2973 + $0x110] sm:$0xff]
        %v3009 = vld [vmem:[%s2973 + $0x118] sm:$0xff]
        %v3010 = vld [vmem:[%s2973 + $0x120] sm:$0xff]
        %v3011 = vld [vmem:[%s2973 + $0x128] sm:$0xff]
        %v3012 = vld [vmem:[%s2973 + $0x130] sm:$0xff]
        %v3013 = vld [vmem:[%s2973 + $0x138] sm:$0xff]
        %v3014 = vld [vmem:[%s2973 + $0x140] sm:$0xff]
        %v3015 = vld [vmem:[%s2973 + $0x148] sm:$0xff]
        %v3016 = vld [vmem:[%s2973 + $0x150] sm:$0xff]
        %v3017 = vld [vmem:[%s2973 + $0x158] sm:$0xff]
        %v3018 = vld [vmem:[%s2973 + $0x160] sm:$0xff]
        %v3019 = vld [vmem:[%s2973 + $0x168] sm:$0xff]
        %v3020 = vld [vmem:[%s2973 + $0x170] sm:$0xff]
        %v3021 = vld [vmem:[%s2973 + $0x178] sm:$0xff]
        %v3022 = vld [vmem:[%s2973 + $0x180] sm:$0xff]
        %v3023 = vld [vmem:[%s2973 + $0x188] sm:$0xff]
        %v3024 = vld [vmem:[%s2973 + $0x190] sm:$0xff]
        %v3025 = vld [vmem:[%s2973 + $0x198] sm:$0xff]
        %v3026 = vld [vmem:[%s2973 + $0x1a0] sm:$0xff]
        %v3027 = vld [vmem:[%s2973 + $0x1a8] sm:$0xff]
        %v3028 = vld [vmem:[%s2973 + $0x1b0] sm:$0xff]
        %v3029 = vld [vmem:[%s2973 + $0x1b8] sm:$0xff]
        %v3030 = vld [vmem:[%s2973 + $0x1c0] sm:$0xff]
        %v3031 = vld [vmem:[%s2973 + $0x1c8] sm:$0xff]
        %v3032 = vld [vmem:[%s2973 + $0x1d0] sm:$0xff]
        %v3033 = vld [vmem:[%s2973 + $0x1d8] sm:$0xff]
        %v3034 = vld [vmem:[%s2973 + $0x1e0] sm:$0xff]
        %v3035 = vld [vmem:[%s2973 + $0x1e8] sm:$0xff]
        %v3036 = vld [vmem:[%s2973 + $0x1f0] sm:$0xff]
        %v3037 = vld [vmem:[%s2973 + $0x1f8] sm:$0xff]
        %v3038 = vld [vmem:[%s2973 + $0x200] sm:$0xff]
        %v3039 = vld [vmem:[%s2973 + $0x208] sm:$0xff]
        %v3040 = vld [vmem:[%s2973 + $0x210] sm:$0xff]
        %v3041 = vld [vmem:[%s2973 + $0x218] sm:$0xff]
        %v3042 = vld [vmem:[%s2973 + $0x220] sm:$0xff]
        %v3043 = vld [vmem:[%s2973 + $0x228] sm:$0xff]
        %v3044 = vld [vmem:[%s2973 + $0x230] sm:$0xff]
        %v3045 = vld [vmem:[%s2973 + $0x238] sm:$0xff]
        %v3046 = vld [vmem:[%s2973 + $0x240] sm:$0xff]
        %v3047 = vld [vmem:[%s2973 + $0x248] sm:$0xff]
        %v3048 = vld [vmem:[%s2973 + $0x250] sm:$0xff]
        %v3049 = vld [vmem:[%s2973 + $0x258] sm:$0xff]
        %v3050 = vld [vmem:[%s2973 + $0x260] sm:$0xff]
        %v3051 = vld [vmem:[%s2973 + $0x268] sm:$0xff]
        %v3052 = vld [vmem:[%s2973 + $0x270] sm:$0xff]
        %v3053 = vld [vmem:[%s2973 + $0x278] sm:$0xff]
        %v3054 = vld [vmem:[%s2973 + $0x280] sm:$0xff]
        %v3055 = vld [vmem:[%s2973 + $0x288] sm:$0xff]
        %v3056 = vld [vmem:[%s2973 + $0x290] sm:$0xff]
        %v3057 = vld [vmem:[%s2973 + $0x298] sm:$0xff]
        %v3058 = vld [vmem:[%s2973 + $0x2a0] sm:$0xff]
        %v3059 = vld [vmem:[%s2973 + $0x2a8] sm:$0xff]
        %v3060 = vld [vmem:[%s2973 + $0x2b0] sm:$0xff]
        %v3061 = vld [vmem:[%s2973 + $0x2b8] sm:$0xff]
        %v3062 = vld [vmem:[%s2973 + $0x2c0] sm:$0xff]
        %v3063 = vld [vmem:[%s2973 + $0x2c8] sm:$0xff]
        %v3064 = vld [vmem:[%s2973 + $0x2d0] sm:$0xff]
        %v3065 = vld [vmem:[%s2973 + $0x2d8] sm:$0xff]
        %v3066 = vld [vmem:[%s2973 + $0x2e0] sm:$0xff]
        %v3067 = vld [vmem:[%s2973 + $0x2e8] sm:$0xff]
        %v3068 = vld [vmem:[%s2973 + $0x2f0] sm:$0xff]
        %v3069 = vld [vmem:[%s2973 + $0x2f8] sm:$0xff]
        %v3070 = vld [vmem:[%s2973 + $0x300] sm:$0xf]
        %v3071 = vld [vmem:[%s2973 + $0x308] sm:$0xf]
        %v3072 = vld [vmem:[%s2973 + $0x310] sm:$0xf]
        %v3073 = vld [vmem:[%s2973 + $0x318] sm:$0xf]
        %v3074 = vld [vmem:[%s2973 + $0x320] sm:$0xf]
        %v3075 = vld [vmem:[%s2973 + $0x328] sm:$0xf]
        %v3076 = vld [vmem:[%s2973 + $0x330] sm:$0xf]
        %v3077 = vld [vmem:[%s2973 + $0x338] sm:$0xf]
        %v3079 = vsel %vm2347, %v2972, 0
        %v3082 = vsel %vm2351, %v3070, 0
        %v3085 = vsel %vm2351, %v3071, 0
        %v3088 = vsel %vm2351, %v3072, 0
        %v3091 = vsel %vm2351, %v3073, 0
        %v3094 = vsel %vm2351, %v3074, 0
        %v3097 = vsel %vm2351, %v3075, 0
        %v3100 = vsel %vm2351, %v3076, 0
        %v3103 = vsel %vm2351, %v3077, 0
        %3105 = vmatprep.subr.mxu0 %v2975
        %3106 = vmatpush1.msra.mxu0 %v2974
        %3107 = vmatprep.subr.mxu0 %v2983
        %3108 = vmatpush1.msra.mxu0 %v2982
        %3109 = vmatprep.subr.mxu0 %v2991
        %3110 = vmatpush1.msra.mxu0 %v2990
        %3111 = vmatprep.subr.mxu0 %v2999
        %3112 = vmatpush1.msra.mxu0 %v2998
        %3113 = vmatprep.subr.mxu0 %v3007
        %3114 = vmatpush1.msra.mxu0 %v3006
        %3115 = vmatprep.subr.mxu0 %v3015
        %3116 = vmatpush1.msra.mxu0 %v3014
        %3117 = vmatprep.subr.mxu0 %v3023
        %3118 = vmatpush1.msra.mxu0 %v3022
        %3119 = vmatprep.subr.mxu0 %v3031
        %3120 = vmatpush1.msra.mxu0 %v3030
        %3121 = vmatprep.subr.mxu0 %v3039
        %3122 = vmatpush1.msra.mxu0 %v3038
        %3123 = vmatprep.subr.mxu0 %v3047
        %3124 = vmatpush1.msra.mxu0 %v3046
        %3125 = vmatprep.subr.mxu0 %v3055
        %3126 = vmatpush1.msra.mxu0 %v3054
        %3127 = vmatprep.subr.mxu0 %v3063
        %3128 = vmatpush1.msra.mxu0 %v3062
        %3129 = vmatprep.subr.mxu0 %v3085
        %3130 = vmatpush1.msra.mxu0 %v3082
        %3131 = vmatprep.subr.mxu0 0.0
        %3132 = vmatpush1.msra.mxu0 0.0
        %3133 = vmatprep.subr.mxu0 0.0
        %3134 = vmatpush1.msra.mxu0 0.0
        %3135 = vmatprep.subr.mxu0 0.0
        %3136 = vmatpush1.msra.mxu0 0.0
        %3137 = vmatprep.subr.mxu0 0.0
        %3138 = vmatpush1.msra.mxu0 0.0
        %3139 = vmatprep.subr.mxu0 0.0
        %3140 = vmatpush1.msra.mxu0 0.0
        %3141 = vmatprep.subr.mxu0 0.0
        %3142 = vmatpush1.msra.mxu0 0.0
        %3143 = vmatprep.subr.mxu0 0.0
        %3144 = vmatpush1.msra.mxu0 0.0
        %3145 = vmatprep.subr.mxu0 0.0
        %3146 = vmatpush1.msra.mxu0 0.0
        %3147 = vmatprep.subr.mxu0 0.0
        %3148 = vmatpush1.msra.mxu0 0.0
        %3149 = vmatprep.subr.mxu0 0.0
        %3150 = vmatpush1.msra.mxu0 0.0
        %3151 = vmatprep.subr.mxu0 0.0
        %3152 = vmatpush1.msra.mxu0 0.0
        %3153 = vmatprep.subr.mxu0 0.0
        %3154 = vmatpush1.msra.mxu0 0.0
        %3155 = vmatprep.subr.mxu0 0.0
        %3156 = vmatpush1.msra.mxu0 0.0
        %3157 = vmatprep.subr.mxu0 0.0
        %3158 = vmatpush1.msra.mxu0 0.0
        %3159 = vmatprep.subr.mxu0 0.0
        %3160 = vmatpush1.msra.mxu0 0.0
        %3161 = vmatprep.subr.mxu0 0.0
        %3162 = vmatpush1.msra.mxu0 0.0
        %3163 = vmatprep.subr.mxu0 0.0
        %3164 = vmatpush1.msra.mxu0 0.0
        %3165 = vmatprep.subr.mxu0 0.0
        %3166 = vmatpush1.msra.mxu0 0.0
        %3167 = vmatprep.subr.mxu0 0.0
        %3168 = vmatpush1.msra.mxu0 0.0
        %3169 = vmatprep.mubr.f32.mxu0 0.0
        %3170 = vmatmul.mubr.f32.gmra.mrb[0].mxu0 %v3079
        %v3171 = vpop.f32.mrb[0].mxu0
        %v3172 = vadd.f32 0.0, %v3171
        %v3173 = vpop.f32.mrb[0].mxu0
        %v3174 = vadd.f32 0.0, %v3173
        %3175 = vdwg.mxu0
        %3176 = vmatprep.subr.mxu0 %v2977
        %3177 = vmatpush1.msra.mxu0 %v2976
        %3178 = vmatprep.subr.mxu0 %v2985
        %3179 = vmatpush1.msra.mxu0 %v2984
        %3180 = vmatprep.subr.mxu0 %v2993
        %3181 = vmatpush1.msra.mxu0 %v2992
        %3182 = vmatprep.subr.mxu0 %v3001
        %3183 = vmatpush1.msra.mxu0 %v3000
        %3184 = vmatprep.subr.mxu0 %v3009
        %3185 = vmatpush1.msra.mxu0 %v3008
        %3186 = vmatprep.subr.mxu0 %v3017
        %3187 = vmatpush1.msra.mxu0 %v3016
        %3188 = vmatprep.subr.mxu0 %v3025
        %3189 = vmatpush1.msra.mxu0 %v3024
        %3190 = vmatprep.subr.mxu0 %v3033
        %3191 = vmatpush1.msra.mxu0 %v3032
        %3192 = vmatprep.subr.mxu0 %v3041
        %3193 = vmatpush1.msra.mxu0 %v3040
        %3194 = vmatprep.subr.mxu0 %v3049
        %3195 = vmatpush1.msra.mxu0 %v3048
        %3196 = vmatprep.subr.mxu0 %v3057
        %3197 = vmatpush1.msra.mxu0 %v3056
        %3198 = vmatprep.subr.mxu0 %v3065
        %3199 = vmatpush1.msra.mxu0 %v3064
        %3200 = vmatprep.subr.mxu0 %v3091
        %3201 = vmatpush1.msra.mxu0 %v3088
        %3202 = vmatprep.subr.mxu0 0.0
        %3203 = vmatpush1.msra.mxu0 0.0
        %3204 = vmatprep.subr.mxu0 0.0
        %3205 = vmatpush1.msra.mxu0 0.0
        %3206 = vmatprep.subr.mxu0 0.0
        %3207 = vmatpush1.msra.mxu0 0.0
        %3208 = vmatprep.subr.mxu0 0.0
        %3209 = vmatpush1.msra.mxu0 0.0
        %3210 = vmatprep.subr.mxu0 0.0
        %3211 = vmatpush1.msra.mxu0 0.0
        %3212 = vmatprep.subr.mxu0 0.0
        %3213 = vmatpush1.msra.mxu0 0.0
        %3214 = vmatprep.subr.mxu0 0.0
        %3215 = vmatpush1.msra.mxu0 0.0
        %3216 = vmatprep.subr.mxu0 0.0
        %3217 = vmatpush1.msra.mxu0 0.0
        %3218 = vmatprep.subr.mxu0 0.0
        %3219 = vmatpush1.msra.mxu0 0.0
        %3220 = vmatprep.subr.mxu0 0.0
        %3221 = vmatpush1.msra.mxu0 0.0
        %3222 = vmatprep.subr.mxu0 0.0
        %3223 = vmatpush1.msra.mxu0 0.0
        %3224 = vmatprep.subr.mxu0 0.0
        %3225 = vmatpush1.msra.mxu0 0.0
        %3226 = vmatprep.subr.mxu0 0.0
        %3227 = vmatpush1.msra.mxu0 0.0
        %3228 = vmatprep.subr.mxu0 0.0
        %3229 = vmatpush1.msra.mxu0 0.0
        %3230 = vmatprep.subr.mxu0 0.0
        %3231 = vmatpush1.msra.mxu0 0.0
        %3232 = vmatprep.subr.mxu0 0.0
        %3233 = vmatpush1.msra.mxu0 0.0
        %3234 = vmatprep.subr.mxu0 0.0
        %3235 = vmatpush1.msra.mxu0 0.0
        %3236 = vmatprep.subr.mxu0 0.0
        %3237 = vmatpush1.msra.mxu0 0.0
        %3238 = vmatprep.subr.mxu0 0.0
        %3239 = vmatpush1.msra.mxu0 0.0
        %3240 = vmatprep.mubr.f32.mxu0 0.0
        %3241 = vmatmul.mubr.f32.gmra.mrb[0].mxu0 %v3079
        %v3242 = vpop.f32.mrb[0].mxu0
        %v3243 = vadd.f32 0.0, %v3242
        %v3244 = vpop.f32.mrb[0].mxu0
        %v3245 = vadd.f32 0.0, %v3244
        %3246 = vdwg.mxu0
        %3247 = vmatprep.subr.mxu0 %v2979
        %3248 = vmatpush1.msra.mxu0 %v2978
        %3249 = vmatprep.subr.mxu0 %v2987
        %3250 = vmatpush1.msra.mxu0 %v2986
        %3251 = vmatprep.subr.mxu0 %v2995
        %3252 = vmatpush1.msra.mxu0 %v2994
        %3253 = vmatprep.subr.mxu0 %v3003
        %3254 = vmatpush1.msra.mxu0 %v3002
        %3255 = vmatprep.subr.mxu0 %v3011
        %3256 = vmatpush1.msra.mxu0 %v3010
        %3257 = vmatprep.subr.mxu0 %v3019
        %3258 = vmatpush1.msra.mxu0 %v3018
        %3259 = vmatprep.subr.mxu0 %v3027
        %3260 = vmatpush1.msra.mxu0 %v3026
        %3261 = vmatprep.subr.mxu0 %v3035
        %3262 = vmatpush1.msra.mxu0 %v3034
        %3263 = vmatprep.subr.mxu0 %v3043
        %3264 = vmatpush1.msra.mxu0 %v3042
        %3265 = vmatprep.subr.mxu0 %v3051
        %3266 = vmatpush1.msra.mxu0 %v3050
        %3267 = vmatprep.subr.mxu0 %v3059
        %3268 = vmatpush1.msra.mxu0 %v3058
        %3269 = vmatprep.subr.mxu0 %v3067
        %3270 = vmatpush1.msra.mxu0 %v3066
        %3271 = vmatprep.subr.mxu0 %v3097
        %3272 = vmatpush1.msra.mxu0 %v3094
        %3273 = vmatprep.subr.mxu0 0.0
        %3274 = vmatpush1.msra.mxu0 0.0
        %3275 = vmatprep.subr.mxu0 0.0
        %3276 = vmatpush1.msra.mxu0 0.0
        %3277 = vmatprep.subr.mxu0 0.0
        %3278 = vmatpush1.msra.mxu0 0.0
        %3279 = vmatprep.subr.mxu0 0.0
        %3280 = vmatpush1.msra.mxu0 0.0
        %3281 = vmatprep.subr.mxu0 0.0
        %3282 = vmatpush1.msra.mxu0 0.0
        %3283 = vmatprep.subr.mxu0 0.0
        %3284 = vmatpush1.msra.mxu0 0.0
        %3285 = vmatprep.subr.mxu0 0.0
        %3286 = vmatpush1.msra.mxu0 0.0
        %3287 = vmatprep.subr.mxu0 0.0
        %3288 = vmatpush1.msra.mxu0 0.0
        %3289 = vmatprep.subr.mxu0 0.0
        %3290 = vmatpush1.msra.mxu0 0.0
        %3291 = vmatprep.subr.mxu0 0.0
        %3292 = vmatpush1.msra.mxu0 0.0
        %3293 = vmatprep.subr.mxu0 0.0
        %3294 = vmatpush1.msra.mxu0 0.0
        %3295 = vmatprep.subr.mxu0 0.0
        %3296 = vmatpush1.msra.mxu0 0.0
        %3297 = vmatprep.subr.mxu0 0.0
        %3298 = vmatpush1.msra.mxu0 0.0
        %3299 = vmatprep.subr.mxu0 0.0
        %3300 = vmatpush1.msra.mxu0 0.0
        %3301 = vmatprep.subr.mxu0 0.0
        %3302 = vmatpush1.msra.mxu0 0.0
        %3303 = vmatprep.subr.mxu0 0.0
        %3304 = vmatpush1.msra.mxu0 0.0
        %3305 = vmatprep.subr.mxu0 0.0
        %3306 = vmatpush1.msra.mxu0 0.0
        %3307 = vmatprep.subr.mxu0 0.0
        %3308 = vmatpush1.msra.mxu0 0.0
        %3309 = vmatprep.subr.mxu0 0.0
        %3310 = vmatpush1.msra.mxu0 0.0
        %3311 = vmatprep.mubr.f32.mxu0 0.0
        %3312 = vmatmul.mubr.f32.gmra.mrb[0].mxu0 %v3079
        %v3313 = vpop.f32.mrb[0].mxu0
        %v3314 = vadd.f32 0.0, %v3313
        %v3315 = vpop.f32.mrb[0].mxu0
        %v3316 = vadd.f32 0.0, %v3315
        %3317 = vdwg.mxu0
        %3318 = vmatprep.subr.mxu0 %v2981
        %3319 = vmatpush1.msra.mxu0 %v2980
        %3320 = vmatprep.subr.mxu0 %v2989
        %3321 = vmatpush1.msra.mxu0 %v2988
        %3322 = vmatprep.subr.mxu0 %v2997
        %3323 = vmatpush1.msra.mxu0 %v2996
        %3324 = vmatprep.subr.mxu0 %v3005
        %3325 = vmatpush1.msra.mxu0 %v3004
        %3326 = vmatprep.subr.mxu0 %v3013
        %3327 = vmatpush1.msra.mxu0 %v3012
        %3328 = vmatprep.subr.mxu0 %v3021
        %3329 = vmatpush1.msra.mxu0 %v3020
        %3330 = vmatprep.subr.mxu0 %v3029
        %3331 = vmatpush1.msra.mxu0 %v3028
        %3332 = vmatprep.subr.mxu0 %v3037
        %3333 = vmatpush1.msra.mxu0 %v3036
        %3334 = vmatprep.subr.mxu0 %v3045
        %3335 = vmatpush1.msra.mxu0 %v3044
        %3336 = vmatprep.subr.mxu0 %v3053
        %3337 = vmatpush1.msra.mxu0 %v3052
        %3338 = vmatprep.subr.mxu0 %v3061
        %3339 = vmatpush1.msra.mxu0 %v3060
        %3340 = vmatprep.subr.mxu0 %v3069
        %3341 = vmatpush1.msra.mxu0 %v3068
        %3342 = vmatprep.subr.mxu0 %v3103
        %3343 = vmatpush1.msra.mxu0 %v3100
        %3344 = vmatprep.subr.mxu0 0.0
        %3345 = vmatpush1.msra.mxu0 0.0
        %3346 = vmatprep.subr.mxu0 0.0
        %3347 = vmatpush1.msra.mxu0 0.0
        %3348 = vmatprep.subr.mxu0 0.0
        %3349 = vmatpush1.msra.mxu0 0.0
        %3350 = vmatprep.subr.mxu0 0.0
        %3351 = vmatpush1.msra.mxu0 0.0
        %3352 = vmatprep.subr.mxu0 0.0
        %3353 = vmatpush1.msra.mxu0 0.0
        %3354 = vmatprep.subr.mxu0 0.0
        %3355 = vmatpush1.msra.mxu0 0.0
        %3356 = vmatprep.subr.mxu0 0.0
        %3357 = vmatpush1.msra.mxu0 0.0
        %3358 = vmatprep.subr.mxu0 0.0
        %3359 = vmatpush1.msra.mxu0 0.0
        %3360 = vmatprep.subr.mxu0 0.0
        %3361 = vmatpush1.msra.mxu0 0.0
        %3362 = vmatprep.subr.mxu0 0.0
        %3363 = vmatpush1.msra.mxu0 0.0
        %3364 = vmatprep.subr.mxu0 0.0
        %3365 = vmatpush1.msra.mxu0 0.0
        %3366 = vmatprep.subr.mxu0 0.0
        %3367 = vmatpush1.msra.mxu0 0.0
        %3368 = vmatprep.subr.mxu0 0.0
        %3369 = vmatpush1.msra.mxu0 0.0
        %3370 = vmatprep.subr.mxu0 0.0
        %3371 = vmatpush1.msra.mxu0 0.0
        %3372 = vmatprep.subr.mxu0 0.0
        %3373 = vmatpush1.msra.mxu0 0.0
        %3374 = vmatprep.subr.mxu0 0.0
        %3375 = vmatpush1.msra.mxu0 0.0
        %3376 = vmatprep.subr.mxu0 0.0
        %3377 = vmatpush1.msra.mxu0 0.0
        %3378 = vmatprep.subr.mxu0 0.0
        %3379 = vmatpush1.msra.mxu0 0.0
        %3380 = vmatprep.subr.mxu0 0.0
        %3381 = vmatpush1.msra.mxu0 0.0
        %3382 = vmatprep.mubr.f32.mxu0 0.0
        %3383 = vmatmul.mubr.f32.gmra.mrb[0].mxu0 %v3079
        %v3384 = vpop.f32.mrb[0].mxu0
        %v3385 = vadd.f32 0.0, %v3384
        %v3386 = vpop.f32.mrb[0].mxu0
        %v3387 = vadd.f32 0.0, %v3386
        %3388 = vdwg.mxu0
        %v3389 = vadd.f32 %v2754, %v3172
        %v3390 = vadd.f32 %v2756, %v3174
        %v3391 = vadd.f32 %v2825, %v3243
        %v3392 = vadd.f32 %v2827, %v3245
        %v3393 = vadd.f32 %v2896, %v3314
        %v3394 = vadd.f32 %v2898, %v3316
        %v3395 = vadd.f32 %v2967, %v3385
        %v3396 = vadd.f32 %v2969, %v3387
        %s3397 = scalar_lea.vmem [#allocation2], 6
        %v3398 = vld [vmem:[%s3397] sm:$0x3]
        %s3399 = scalar_lea.vmem %s1046, 2496 [#allocation31]
        %v3400 = vld [vmem:[%s3399] sm:$0xff]
        %v3401 = vld [vmem:[%s3399 + $0x8] sm:$0xff]
        %v3402 = vld [vmem:[%s3399 + $0x10] sm:$0xff]
        %v3403 = vld [vmem:[%s3399 + $0x18] sm:$0xff]
        %v3404 = vld [vmem:[%s3399 + $0x20] sm:$0xff]
        %v3405 = vld [vmem:[%s3399 + $0x28] sm:$0xff]
        %v3406 = vld [vmem:[%s3399 + $0x30] sm:$0xff]
        %v3407 = vld [vmem:[%s3399 + $0x38] sm:$0xff]
        %v3408 = vld [vmem:[%s3399 + $0x40] sm:$0xff]
        %v3409 = vld [vmem:[%s3399 + $0x48] sm:$0xff]
        %v3410 = vld [vmem:[%s3399 + $0x50] sm:$0xff]
        %v3411 = vld [vmem:[%s3399 + $0x58] sm:$0xff]
        %v3412 = vld [vmem:[%s3399 + $0x60] sm:$0xff]
        %v3413 = vld [vmem:[%s3399 + $0x68] sm:$0xff]
        %v3414 = vld [vmem:[%s3399 + $0x70] sm:$0xff]
        %v3415 = vld [vmem:[%s3399 + $0x78] sm:$0xff]
        %v3416 = vld [vmem:[%s3399 + $0x80] sm:$0xff]
        %v3417 = vld [vmem:[%s3399 + $0x88] sm:$0xff]
        %v3418 = vld [vmem:[%s3399 + $0x90] sm:$0xff]
        %v3419 = vld [vmem:[%s3399 + $0x98] sm:$0xff]
        %v3420 = vld [vmem:[%s3399 + $0xa0] sm:$0xff]
        %v3421 = vld [vmem:[%s3399 + $0xa8] sm:$0xff]
        %v3422 = vld [vmem:[%s3399 + $0xb0] sm:$0xff]
        %v3423 = vld [vmem:[%s3399 + $0xb8] sm:$0xff]
        %v3424 = vld [vmem:[%s3399 + $0xc0] sm:$0xff]
        %v3425 = vld [vmem:[%s3399 + $0xc8] sm:$0xff]
        %v3426 = vld [vmem:[%s3399 + $0xd0] sm:$0xff]
        %v3427 = vld [vmem:[%s3399 + $0xd8] sm:$0xff]
        %v3428 = vld [vmem:[%s3399 + $0xe0] sm:$0xff]
        %v3429 = vld [vmem:[%s3399 + $0xe8] sm:$0xff]
        %v3430 = vld [vmem:[%s3399 + $0xf0] sm:$0xff]
        %v3431 = vld [vmem:[%s3399 + $0xf8] sm:$0xff]
        %v3432 = vld [vmem:[%s3399 + $0x100] sm:$0xff]
        %v3433 = vld [vmem:[%s3399 + $0x108] sm:$0xff]
        %v3434 = vld [vmem:[%s3399 + $0x110] sm:$0xff]
        %v3435 = vld [vmem:[%s3399 + $0x118] sm:$0xff]
        %v3436 = vld [vmem:[%s3399 + $0x120] sm:$0xff]
        %v3437 = vld [vmem:[%s3399 + $0x128] sm:$0xff]
        %v3438 = vld [vmem:[%s3399 + $0x130] sm:$0xff]
        %v3439 = vld [vmem:[%s3399 + $0x138] sm:$0xff]
        %v3440 = vld [vmem:[%s3399 + $0x140] sm:$0xff]
        %v3441 = vld [vmem:[%s3399 + $0x148] sm:$0xff]
        %v3442 = vld [vmem:[%s3399 + $0x150] sm:$0xff]
        %v3443 = vld [vmem:[%s3399 + $0x158] sm:$0xff]
        %v3444 = vld [vmem:[%s3399 + $0x160] sm:$0xff]
        %v3445 = vld [vmem:[%s3399 + $0x168] sm:$0xff]
        %v3446 = vld [vmem:[%s3399 + $0x170] sm:$0xff]
        %v3447 = vld [vmem:[%s3399 + $0x178] sm:$0xff]
        %v3448 = vld [vmem:[%s3399 + $0x180] sm:$0xff]
        %v3449 = vld [vmem:[%s3399 + $0x188] sm:$0xff]
        %v3450 = vld [vmem:[%s3399 + $0x190] sm:$0xff]
        %v3451 = vld [vmem:[%s3399 + $0x198] sm:$0xff]
        %v3452 = vld [vmem:[%s3399 + $0x1a0] sm:$0xff]
        %v3453 = vld [vmem:[%s3399 + $0x1a8] sm:$0xff]
        %v3454 = vld [vmem:[%s3399 + $0x1b0] sm:$0xff]
        %v3455 = vld [vmem:[%s3399 + $0x1b8] sm:$0xff]
        %v3456 = vld [vmem:[%s3399 + $0x1c0] sm:$0xff]
        %v3457 = vld [vmem:[%s3399 + $0x1c8] sm:$0xff]
        %v3458 = vld [vmem:[%s3399 + $0x1d0] sm:$0xff]
        %v3459 = vld [vmem:[%s3399 + $0x1d8] sm:$0xff]
        %v3460 = vld [vmem:[%s3399 + $0x1e0] sm:$0xff]
        %v3461 = vld [vmem:[%s3399 + $0x1e8] sm:$0xff]
        %v3462 = vld [vmem:[%s3399 + $0x1f0] sm:$0xff]
        %v3463 = vld [vmem:[%s3399 + $0x1f8] sm:$0xff]
        %v3464 = vld [vmem:[%s3399 + $0x200] sm:$0xff]
        %v3465 = vld [vmem:[%s3399 + $0x208] sm:$0xff]
        %v3466 = vld [vmem:[%s3399 + $0x210] sm:$0xff]
        %v3467 = vld [vmem:[%s3399 + $0x218] sm:$0xff]
        %v3468 = vld [vmem:[%s3399 + $0x220] sm:$0xff]
        %v3469 = vld [vmem:[%s3399 + $0x228] sm:$0xff]
        %v3470 = vld [vmem:[%s3399 + $0x230] sm:$0xff]
        %v3471 = vld [vmem:[%s3399 + $0x238] sm:$0xff]
        %v3472 = vld [vmem:[%s3399 + $0x240] sm:$0xff]
        %v3473 = vld [vmem:[%s3399 + $0x248] sm:$0xff]
        %v3474 = vld [vmem:[%s3399 + $0x250] sm:$0xff]
        %v3475 = vld [vmem:[%s3399 + $0x258] sm:$0xff]
        %v3476 = vld [vmem:[%s3399 + $0x260] sm:$0xff]
        %v3477 = vld [vmem:[%s3399 + $0x268] sm:$0xff]
        %v3478 = vld [vmem:[%s3399 + $0x270] sm:$0xff]
        %v3479 = vld [vmem:[%s3399 + $0x278] sm:$0xff]
        %v3480 = vld [vmem:[%s3399 + $0x280] sm:$0xff]
        %v3481 = vld [vmem:[%s3399 + $0x288] sm:$0xff]
        %v3482 = vld [vmem:[%s3399 + $0x290] sm:$0xff]
        %v3483 = vld [vmem:[%s3399 + $0x298] sm:$0xff]
        %v3484 = vld [vmem:[%s3399 + $0x2a0] sm:$0xff]
        %v3485 = vld [vmem:[%s3399 + $0x2a8] sm:$0xff]
        %v3486 = vld [vmem:[%s3399 + $0x2b0] sm:$0xff]
        %v3487 = vld [vmem:[%s3399 + $0x2b8] sm:$0xff]
        %v3488 = vld [vmem:[%s3399 + $0x2c0] sm:$0xff]
        %v3489 = vld [vmem:[%s3399 + $0x2c8] sm:$0xff]
        %v3490 = vld [vmem:[%s3399 + $0x2d0] sm:$0xff]
        %v3491 = vld [vmem:[%s3399 + $0x2d8] sm:$0xff]
        %v3492 = vld [vmem:[%s3399 + $0x2e0] sm:$0xff]
        %v3493 = vld [vmem:[%s3399 + $0x2e8] sm:$0xff]
        %v3494 = vld [vmem:[%s3399 + $0x2f0] sm:$0xff]
        %v3495 = vld [vmem:[%s3399 + $0x2f8] sm:$0xff]
        %v3496 = vld [vmem:[%s3399 + $0x300] sm:$0xf]
        %v3497 = vld [vmem:[%s3399 + $0x308] sm:$0xf]
        %v3498 = vld [vmem:[%s3399 + $0x310] sm:$0xf]
        %v3499 = vld [vmem:[%s3399 + $0x318] sm:$0xf]
        %v3500 = vld [vmem:[%s3399 + $0x320] sm:$0xf]
        %v3501 = vld [vmem:[%s3399 + $0x328] sm:$0xf]
        %v3502 = vld [vmem:[%s3399 + $0x330] sm:$0xf]
        %v3503 = vld [vmem:[%s3399 + $0x338] sm:$0xf]
        %v3505 = vsel %vm2347, %v3398, 0
        %v3508 = vsel %vm2351, %v3496, 0
        %v3511 = vsel %vm2351, %v3497, 0
        %v3514 = vsel %vm2351, %v3498, 0
        %v3517 = vsel %vm2351, %v3499, 0
        %v3520 = vsel %vm2351, %v3500, 0
        %v3523 = vsel %vm2351, %v3501, 0
        %v3526 = vsel %vm2351, %v3502, 0
        %v3529 = vsel %vm2351, %v3503, 0
        %3531 = vmatprep.subr.mxu0 %v3401
        %3532 = vmatpush1.msra.mxu0 %v3400
        %3533 = vmatprep.subr.mxu0 %v3409
        %3534 = vmatpush1.msra.mxu0 %v3408
        %3535 = vmatprep.subr.mxu0 %v3417
        %3536 = vmatpush1.msra.mxu0 %v3416
        %3537 = vmatprep.subr.mxu0 %v3425
        %3538 = vmatpush1.msra.mxu0 %v3424
        %3539 = vmatprep.subr.mxu0 %v3433
        %3540 = vmatpush1.msra.mxu0 %v3432
        %3541 = vmatprep.subr.mxu0 %v3441
        %3542 = vmatpush1.msra.mxu0 %v3440
        %3543 = vmatprep.subr.mxu0 %v3449
        %3544 = vmatpush1.msra.mxu0 %v3448
        %3545 = vmatprep.subr.mxu0 %v3457
        %3546 = vmatpush1.msra.mxu0 %v3456
        %3547 = vmatprep.subr.mxu0 %v3465
        %3548 = vmatpush1.msra.mxu0 %v3464
        %3549 = vmatprep.subr.mxu0 %v3473
        %3550 = vmatpush1.msra.mxu0 %v3472
        %3551 = vmatprep.subr.mxu0 %v3481
        %3552 = vmatpush1.msra.mxu0 %v3480
        %3553 = vmatprep.subr.mxu0 %v3489
        %3554 = vmatpush1.msra.mxu0 %v3488
        %3555 = vmatprep.subr.mxu0 %v3511
        %3556 = vmatpush1.msra.mxu0 %v3508
        %3557 = vmatprep.subr.mxu0 0.0
        %3558 = vmatpush1.msra.mxu0 0.0
        %3559 = vmatprep.subr.mxu0 0.0
        %3560 = vmatpush1.msra.mxu0 0.0
        %3561 = vmatprep.subr.mxu0 0.0
        %3562 = vmatpush1.msra.mxu0 0.0
        %3563 = vmatprep.subr.mxu0 0.0
        %3564 = vmatpush1.msra.mxu0 0.0
        %3565 = vmatprep.subr.mxu0 0.0
        %3566 = vmatpush1.msra.mxu0 0.0
        %3567 = vmatprep.subr.mxu0 0.0
        %3568 = vmatpush1.msra.mxu0 0.0
        %3569 = vmatprep.subr.mxu0 0.0
        %3570 = vmatpush1.msra.mxu0 0.0
        %3571 = vmatprep.subr.mxu0 0.0
        %3572 = vmatpush1.msra.mxu0 0.0
        %3573 = vmatprep.subr.mxu0 0.0
        %3574 = vmatpush1.msra.mxu0 0.0
        %3575 = vmatprep.subr.mxu0 0.0
        %3576 = vmatpush1.msra.mxu0 0.0
        %3577 = vmatprep.subr.mxu0 0.0
        %3578 = vmatpush1.msra.mxu0 0.0
        %3579 = vmatprep.subr.mxu0 0.0
        %3580 = vmatpush1.msra.mxu0 0.0
        %3581 = vmatprep.subr.mxu0 0.0
        %3582 = vmatpush1.msra.mxu0 0.0
        %3583 = vmatprep.subr.mxu0 0.0
        %3584 = vmatpush1.msra.mxu0 0.0
        %3585 = vmatprep.subr.mxu0 0.0
        %3586 = vmatpush1.msra.mxu0 0.0
        %3587 = vmatprep.subr.mxu0 0.0
        %3588 = vmatpush1.msra.mxu0 0.0
        %3589 = vmatprep.subr.mxu0 0.0
        %3590 = vmatpush1.msra.mxu0 0.0
        %3591 = vmatprep.subr.mxu0 0.0
        %3592 = vmatpush1.msra.mxu0 0.0
        %3593 = vmatprep.subr.mxu0 0.0
        %3594 = vmatpush1.msra.mxu0 0.0
        %3595 = vmatprep.mubr.f32.mxu0 0.0
        %3596 = vmatmul.mubr.f32.gmra.mrb[0].mxu0 %v3505
        %v3597 = vpop.f32.mrb[0].mxu0
        %v3598 = vadd.f32 0.0, %v3597
        %v3599 = vpop.f32.mrb[0].mxu0
        %v3600 = vadd.f32 0.0, %v3599
        %3601 = vdwg.mxu0
        %3602 = vmatprep.subr.mxu0 %v3403
        %3603 = vmatpush1.msra.mxu0 %v3402
        %3604 = vmatprep.subr.mxu0 %v3411
        %3605 = vmatpush1.msra.mxu0 %v3410
        %3606 = vmatprep.subr.mxu0 %v3419
        %3607 = vmatpush1.msra.mxu0 %v3418
        %3608 = vmatprep.subr.mxu0 %v3427
        %3609 = vmatpush1.msra.mxu0 %v3426
        %3610 = vmatprep.subr.mxu0 %v3435
        %3611 = vmatpush1.msra.mxu0 %v3434
        %3612 = vmatprep.subr.mxu0 %v3443
        %3613 = vmatpush1.msra.mxu0 %v3442
        %3614 = vmatprep.subr.mxu0 %v3451
        %3615 = vmatpush1.msra.mxu0 %v3450
        %3616 = vmatprep.subr.mxu0 %v3459
        %3617 = vmatpush1.msra.mxu0 %v3458
        %3618 = vmatprep.subr.mxu0 %v3467
        %3619 = vmatpush1.msra.mxu0 %v3466
        %3620 = vmatprep.subr.mxu0 %v3475
        %3621 = vmatpush1.msra.mxu0 %v3474
        %3622 = vmatprep.subr.mxu0 %v3483
        %3623 = vmatpush1.msra.mxu0 %v3482
        %3624 = vmatprep.subr.mxu0 %v3491
        %3625 = vmatpush1.msra.mxu0 %v3490
        %3626 = vmatprep.subr.mxu0 %v3517
        %3627 = vmatpush1.msra.mxu0 %v3514
        %3628 = vmatprep.subr.mxu0 0.0
        %3629 = vmatpush1.msra.mxu0 0.0
        %3630 = vmatprep.subr.mxu0 0.0
        %3631 = vmatpush1.msra.mxu0 0.0
        %3632 = vmatprep.subr.mxu0 0.0
        %3633 = vmatpush1.msra.mxu0 0.0
        %3634 = vmatprep.subr.mxu0 0.0
        %3635 = vmatpush1.msra.mxu0 0.0
        %3636 = vmatprep.subr.mxu0 0.0
        %3637 = vmatpush1.msra.mxu0 0.0
        %3638 = vmatprep.subr.mxu0 0.0
        %3639 = vmatpush1.msra.mxu0 0.0
        %3640 = vmatprep.subr.mxu0 0.0
        %3641 = vmatpush1.msra.mxu0 0.0
        %3642 = vmatprep.subr.mxu0 0.0
        %3643 = vmatpush1.msra.mxu0 0.0
        %3644 = vmatprep.subr.mxu0 0.0
        %3645 = vmatpush1.msra.mxu0 0.0
        %3646 = vmatprep.subr.mxu0 0.0
        %3647 = vmatpush1.msra.mxu0 0.0
        %3648 = vmatprep.subr.mxu0 0.0
        %3649 = vmatpush1.msra.mxu0 0.0
        %3650 = vmatprep.subr.mxu0 0.0
        %3651 = vmatpush1.msra.mxu0 0.0
        %3652 = vmatprep.subr.mxu0 0.0
        %3653 = vmatpush1.msra.mxu0 0.0
        %3654 = vmatprep.subr.mxu0 0.0
        %3655 = vmatpush1.msra.mxu0 0.0
        %3656 = vmatprep.subr.mxu0 0.0
        %3657 = vmatpush1.msra.mxu0 0.0
        %3658 = vmatprep.subr.mxu0 0.0
        %3659 = vmatpush1.msra.mxu0 0.0
        %3660 = vmatprep.subr.mxu0 0.0
        %3661 = vmatpush1.msra.mxu0 0.0
        %3662 = vmatprep.subr.mxu0 0.0
        %3663 = vmatpush1.msra.mxu0 0.0
        %3664 = vmatprep.subr.mxu0 0.0
        %3665 = vmatpush1.msra.mxu0 0.0
        %3666 = vmatprep.mubr.f32.mxu0 0.0
        %3667 = vmatmul.mubr.f32.gmra.mrb[0].mxu0 %v3505
        %v3668 = vpop.f32.mrb[0].mxu0
        %v3669 = vadd.f32 0.0, %v3668
        %v3670 = vpop.f32.mrb[0].mxu0
        %v3671 = vadd.f32 0.0, %v3670
        %3672 = vdwg.mxu0
        %3673 = vmatprep.subr.mxu0 %v3405
        %3674 = vmatpush1.msra.mxu0 %v3404
        %3675 = vmatprep.subr.mxu0 %v3413
        %3676 = vmatpush1.msra.mxu0 %v3412
        %3677 = vmatprep.subr.mxu0 %v3421
        %3678 = vmatpush1.msra.mxu0 %v3420
        %3679 = vmatprep.subr.mxu0 %v3429
        %3680 = vmatpush1.msra.mxu0 %v3428
        %3681 = vmatprep.subr.mxu0 %v3437
        %3682 = vmatpush1.msra.mxu0 %v3436
        %3683 = vmatprep.subr.mxu0 %v3445
        %3684 = vmatpush1.msra.mxu0 %v3444
        %3685 = vmatprep.subr.mxu0 %v3453
        %3686 = vmatpush1.msra.mxu0 %v3452
        %3687 = vmatprep.subr.mxu0 %v3461
        %3688 = vmatpush1.msra.mxu0 %v3460
        %3689 = vmatprep.subr.mxu0 %v3469
        %3690 = vmatpush1.msra.mxu0 %v3468
        %3691 = vmatprep.subr.mxu0 %v3477
        %3692 = vmatpush1.msra.mxu0 %v3476
        %3693 = vmatprep.subr.mxu0 %v3485
        %3694 = vmatpush1.msra.mxu0 %v3484
        %3695 = vmatprep.subr.mxu0 %v3493
        %3696 = vmatpush1.msra.mxu0 %v3492
        %3697 = vmatprep.subr.mxu0 %v3523
        %3698 = vmatpush1.msra.mxu0 %v3520
        %3699 = vmatprep.subr.mxu0 0.0
        %3700 = vmatpush1.msra.mxu0 0.0
        %3701 = vmatprep.subr.mxu0 0.0
        %3702 = vmatpush1.msra.mxu0 0.0
        %3703 = vmatprep.subr.mxu0 0.0
        %3704 = vmatpush1.msra.mxu0 0.0
        %3705 = vmatprep.subr.mxu0 0.0
        %3706 = vmatpush1.msra.mxu0 0.0
        %3707 = vmatprep.subr.mxu0 0.0
        %3708 = vmatpush1.msra.mxu0 0.0
        %3709 = vmatprep.subr.mxu0 0.0
        %3710 = vmatpush1.msra.mxu0 0.0
        %3711 = vmatprep.subr.mxu0 0.0
        %3712 = vmatpush1.msra.mxu0 0.0
        %3713 = vmatprep.subr.mxu0 0.0
        %3714 = vmatpush1.msra.mxu0 0.0
        %3715 = vmatprep.subr.mxu0 0.0
        %3716 = vmatpush1.msra.mxu0 0.0
        %3717 = vmatprep.subr.mxu0 0.0
        %3718 = vmatpush1.msra.mxu0 0.0
        %3719 = vmatprep.subr.mxu0 0.0
        %3720 = vmatpush1.msra.mxu0 0.0
        %3721 = vmatprep.subr.mxu0 0.0
        %3722 = vmatpush1.msra.mxu0 0.0
        %3723 = vmatprep.subr.mxu0 0.0
        %3724 = vmatpush1.msra.mxu0 0.0
        %3725 = vmatprep.subr.mxu0 0.0
        %3726 = vmatpush1.msra.mxu0 0.0
        %3727 = vmatprep.subr.mxu0 0.0
        %3728 = vmatpush1.msra.mxu0 0.0
        %3729 = vmatprep.subr.mxu0 0.0
        %3730 = vmatpush1.msra.mxu0 0.0
        %3731 = vmatprep.subr.mxu0 0.0
        %3732 = vmatpush1.msra.mxu0 0.0
        %3733 = vmatprep.subr.mxu0 0.0
        %3734 = vmatpush1.msra.mxu0 0.0
        %3735 = vmatprep.subr.mxu0 0.0
        %3736 = vmatpush1.msra.mxu0 0.0
        %3737 = vmatprep.mubr.f32.mxu0 0.0
        %3738 = vmatmul.mubr.f32.gmra.mrb[0].mxu0 %v3505
        %v3739 = vpop.f32.mrb[0].mxu0
        %v3740 = vadd.f32 0.0, %v3739
        %v3741 = vpop.f32.mrb[0].mxu0
        %v3742 = vadd.f32 0.0, %v3741
        %3743 = vdwg.mxu0
        %3744 = vmatprep.subr.mxu0 %v3407
        %3745 = vmatpush1.msra.mxu0 %v3406
        %3746 = vmatprep.subr.mxu0 %v3415
        %3747 = vmatpush1.msra.mxu0 %v3414
        %3748 = vmatprep.subr.mxu0 %v3423
        %3749 = vmatpush1.msra.mxu0 %v3422
        %3750 = vmatprep.subr.mxu0 %v3431
        %3751 = vmatpush1.msra.mxu0 %v3430
        %3752 = vmatprep.subr.mxu0 %v3439
        %3753 = vmatpush1.msra.mxu0 %v3438
        %3754 = vmatprep.subr.mxu0 %v3447
        %3755 = vmatpush1.msra.mxu0 %v3446
        %3756 = vmatprep.subr.mxu0 %v3455
        %3757 = vmatpush1.msra.mxu0 %v3454
        %3758 = vmatprep.subr.mxu0 %v3463
        %3759 = vmatpush1.msra.mxu0 %v3462
        %3760 = vmatprep.subr.mxu0 %v3471
        %3761 = vmatpush1.msra.mxu0 %v3470
        %3762 = vmatprep.subr.mxu0 %v3479
        %3763 = vmatpush1.msra.mxu0 %v3478
        %3764 = vmatprep.subr.mxu0 %v3487
        %3765 = vmatpush1.msra.mxu0 %v3486
        %3766 = vmatprep.subr.mxu0 %v3495
        %3767 = vmatpush1.msra.mxu0 %v3494
        %3768 = vmatprep.subr.mxu0 %v3529
        %3769 = vmatpush1.msra.mxu0 %v3526
        %3770 = vmatprep.subr.mxu0 0.0
        %3771 = vmatpush1.msra.mxu0 0.0
        %3772 = vmatprep.subr.mxu0 0.0
        %3773 = vmatpush1.msra.mxu0 0.0
        %3774 = vmatprep.subr.mxu0 0.0
        %3775 = vmatpush1.msra.mxu0 0.0
        %3776 = vmatprep.subr.mxu0 0.0
        %3777 = vmatpush1.msra.mxu0 0.0
        %3778 = vmatprep.subr.mxu0 0.0
        %3779 = vmatpush1.msra.mxu0 0.0
        %3780 = vmatprep.subr.mxu0 0.0
        %3781 = vmatpush1.msra.mxu0 0.0
        %3782 = vmatprep.subr.mxu0 0.0
        %3783 = vmatpush1.msra.mxu0 0.0
        %3784 = vmatprep.subr.mxu0 0.0
        %3785 = vmatpush1.msra.mxu0 0.0
        %3786 = vmatprep.subr.mxu0 0.0
        %3787 = vmatpush1.msra.mxu0 0.0
        %3788 = vmatprep.subr.mxu0 0.0
        %3789 = vmatpush1.msra.mxu0 0.0
        %3790 = vmatprep.subr.mxu0 0.0
        %3791 = vmatpush1.msra.mxu0 0.0
        %3792 = vmatprep.subr.mxu0 0.0
        %3793 = vmatpush1.msra.mxu0 0.0
        %3794 = vmatprep.subr.mxu0 0.0
        %3795 = vmatpush1.msra.mxu0 0.0
        %3796 = vmatprep.subr.mxu0 0.0
        %3797 = vmatpush1.msra.mxu0 0.0
        %3798 = vmatprep.subr.mxu0 0.0
        %3799 = vmatpush1.msra.mxu0 0.0
        %3800 = vmatprep.subr.mxu0 0.0
        %3801 = vmatpush1.msra.mxu0 0.0
        %3802 = vmatprep.subr.mxu0 0.0
        %3803 = vmatpush1.msra.mxu0 0.0
        %3804 = vmatprep.subr.mxu0 0.0
        %3805 = vmatpush1.msra.mxu0 0.0
        %3806 = vmatprep.subr.mxu0 0.0
        %3807 = vmatpush1.msra.mxu0 0.0
        %3808 = vmatprep.mubr.f32.mxu0 0.0
        %3809 = vmatmul.mubr.f32.gmra.mrb[0].mxu0 %v3505
        %v3810 = vpop.f32.mrb[0].mxu0
        %v3811 = vadd.f32 0.0, %v3810
        %v3812 = vpop.f32.mrb[0].mxu0
        %v3813 = vadd.f32 0.0, %v3812
        %3814 = vdwg.mxu0
        %v3815 = vadd.f32 %v3389, %v3598
        %v3816 = vadd.f32 %v3390, %v3600
        %v3817 = vadd.f32 %v3391, %v3669
        %v3818 = vadd.f32 %v3392, %v3671
        %v3819 = vadd.f32 %v3393, %v3740
        %v3820 = vadd.f32 %v3394, %v3742
        %v3821 = vadd.f32 %v3395, %v3811
        %v3822 = vadd.f32 %v3396, %v3813
        %s3823 = scalar_lea.vmem [#allocation2], 8
        %v3824 = vld [vmem:[%s3823] sm:$0x3]
        %s3825 = scalar_lea.vmem %s1046, 3328 [#allocation31]
        %v3826 = vld [vmem:[%s3825] sm:$0xff]
        %v3827 = vld [vmem:[%s3825 + $0x8] sm:$0xff]
        %v3828 = vld [vmem:[%s3825 + $0x10] sm:$0xff]
        %v3829 = vld [vmem:[%s3825 + $0x18] sm:$0xff]
        %v3830 = vld [vmem:[%s3825 + $0x20] sm:$0xff]
        %v3831 = vld [vmem:[%s3825 + $0x28] sm:$0xff]
        %v3832 = vld [vmem:[%s3825 + $0x30] sm:$0xff]
        %v3833 = vld [vmem:[%s3825 + $0x38] sm:$0xff]
        %v3834 = vld [vmem:[%s3825 + $0x40] sm:$0xff]
        %v3835 = vld [vmem:[%s3825 + $0x48] sm:$0xff]
        %v3836 = vld [vmem:[%s3825 + $0x50] sm:$0xff]
        %v3837 = vld [vmem:[%s3825 + $0x58] sm:$0xff]
        %v3838 = vld [vmem:[%s3825 + $0x60] sm:$0xff]
        %v3839 = vld [vmem:[%s3825 + $0x68] sm:$0xff]
        %v3840 = vld [vmem:[%s3825 + $0x70] sm:$0xff]
        %v3841 = vld [vmem:[%s3825 + $0x78] sm:$0xff]
        %v3842 = vld [vmem:[%s3825 + $0x80] sm:$0xff]
        %v3843 = vld [vmem:[%s3825 + $0x88] sm:$0xff]
        %v3844 = vld [vmem:[%s3825 + $0x90] sm:$0xff]
        %v3845 = vld [vmem:[%s3825 + $0x98] sm:$0xff]
        %v3846 = vld [vmem:[%s3825 + $0xa0] sm:$0xff]
        %v3847 = vld [vmem:[%s3825 + $0xa8] sm:$0xff]
        %v3848 = vld [vmem:[%s3825 + $0xb0] sm:$0xff]
        %v3849 = vld [vmem:[%s3825 + $0xb8] sm:$0xff]
        %v3850 = vld [vmem:[%s3825 + $0xc0] sm:$0xff]
        %v3851 = vld [vmem:[%s3825 + $0xc8] sm:$0xff]
        %v3852 = vld [vmem:[%s3825 + $0xd0] sm:$0xff]
        %v3853 = vld [vmem:[%s3825 + $0xd8] sm:$0xff]
        %v3854 = vld [vmem:[%s3825 + $0xe0] sm:$0xff]
        %v3855 = vld [vmem:[%s3825 + $0xe8] sm:$0xff]
        %v3856 = vld [vmem:[%s3825 + $0xf0] sm:$0xff]
        %v3857 = vld [vmem:[%s3825 + $0xf8] sm:$0xff]
        %v3858 = vld [vmem:[%s3825 + $0x100] sm:$0xff]
        %v3859 = vld [vmem:[%s3825 + $0x108] sm:$0xff]
        %v3860 = vld [vmem:[%s3825 + $0x110] sm:$0xff]
        %v3861 = vld [vmem:[%s3825 + $0x118] sm:$0xff]
        %v3862 = vld [vmem:[%s3825 + $0x120] sm:$0xff]
        %v3863 = vld [vmem:[%s3825 + $0x128] sm:$0xff]
        %v3864 = vld [vmem:[%s3825 + $0x130] sm:$0xff]
        %v3865 = vld [vmem:[%s3825 + $0x138] sm:$0xff]
        %v3866 = vld [vmem:[%s3825 + $0x140] sm:$0xff]
        %v3867 = vld [vmem:[%s3825 + $0x148] sm:$0xff]
        %v3868 = vld [vmem:[%s3825 + $0x150] sm:$0xff]
        %v3869 = vld [vmem:[%s3825 + $0x158] sm:$0xff]
        %v3870 = vld [vmem:[%s3825 + $0x160] sm:$0xff]
        %v3871 = vld [vmem:[%s3825 + $0x168] sm:$0xff]
        %v3872 = vld [vmem:[%s3825 + $0x170] sm:$0xff]
        %v3873 = vld [vmem:[%s3825 + $0x178] sm:$0xff]
        %v3874 = vld [vmem:[%s3825 + $0x180] sm:$0xff]
        %v3875 = vld [vmem:[%s3825 + $0x188] sm:$0xff]
        %v3876 = vld [vmem:[%s3825 + $0x190] sm:$0xff]
        %v3877 = vld [vmem:[%s3825 + $0x198] sm:$0xff]
        %v3878 = vld [vmem:[%s3825 + $0x1a0] sm:$0xff]
        %v3879 = vld [vmem:[%s3825 + $0x1a8] sm:$0xff]
        %v3880 = vld [vmem:[%s3825 + $0x1b0] sm:$0xff]
        %v3881 = vld [vmem:[%s3825 + $0x1b8] sm:$0xff]
        %v3882 = vld [vmem:[%s3825 + $0x1c0] sm:$0xff]
        %v3883 = vld [vmem:[%s3825 + $0x1c8] sm:$0xff]
        %v3884 = vld [vmem:[%s3825 + $0x1d0] sm:$0xff]
        %v3885 = vld [vmem:[%s3825 + $0x1d8] sm:$0xff]
        %v3886 = vld [vmem:[%s3825 + $0x1e0] sm:$0xff]
        %v3887 = vld [vmem:[%s3825 + $0x1e8] sm:$0xff]
        %v3888 = vld [vmem:[%s3825 + $0x1f0] sm:$0xff]
        %v3889 = vld [vmem:[%s3825 + $0x1f8] sm:$0xff]
        %v3890 = vld [vmem:[%s3825 + $0x200] sm:$0xff]
        %v3891 = vld [vmem:[%s3825 + $0x208] sm:$0xff]
        %v3892 = vld [vmem:[%s3825 + $0x210] sm:$0xff]
        %v3893 = vld [vmem:[%s3825 + $0x218] sm:$0xff]
        %v3894 = vld [vmem:[%s3825 + $0x220] sm:$0xff]
        %v3895 = vld [vmem:[%s3825 + $0x228] sm:$0xff]
        %v3896 = vld [vmem:[%s3825 + $0x230] sm:$0xff]
        %v3897 = vld [vmem:[%s3825 + $0x238] sm:$0xff]
        %v3898 = vld [vmem:[%s3825 + $0x240] sm:$0xff]
        %v3899 = vld [vmem:[%s3825 + $0x248] sm:$0xff]
        %v3900 = vld [vmem:[%s3825 + $0x250] sm:$0xff]
        %v3901 = vld [vmem:[%s3825 + $0x258] sm:$0xff]
        %v3902 = vld [vmem:[%s3825 + $0x260] sm:$0xff]
        %v3903 = vld [vmem:[%s3825 + $0x268] sm:$0xff]
        %v3904 = vld [vmem:[%s3825 + $0x270] sm:$0xff]
        %v3905 = vld [vmem:[%s3825 + $0x278] sm:$0xff]
        %v3906 = vld [vmem:[%s3825 + $0x280] sm:$0xff]
        %v3907 = vld [vmem:[%s3825 + $0x288] sm:$0xff]
        %v3908 = vld [vmem:[%s3825 + $0x290] sm:$0xff]
        %v3909 = vld [vmem:[%s3825 + $0x298] sm:$0xff]
        %v3910 = vld [vmem:[%s3825 + $0x2a0] sm:$0xff]
        %v3911 = vld [vmem:[%s3825 + $0x2a8] sm:$0xff]
        %v3912 = vld [vmem:[%s3825 + $0x2b0] sm:$0xff]
        %v3913 = vld [vmem:[%s3825 + $0x2b8] sm:$0xff]
        %v3914 = vld [vmem:[%s3825 + $0x2c0] sm:$0xff]
        %v3915 = vld [vmem:[%s3825 + $0x2c8] sm:$0xff]
        %v3916 = vld [vmem:[%s3825 + $0x2d0] sm:$0xff]
        %v3917 = vld [vmem:[%s3825 + $0x2d8] sm:$0xff]
        %v3918 = vld [vmem:[%s3825 + $0x2e0] sm:$0xff]
        %v3919 = vld [vmem:[%s3825 + $0x2e8] sm:$0xff]
        %v3920 = vld [vmem:[%s3825 + $0x2f0] sm:$0xff]
        %v3921 = vld [vmem:[%s3825 + $0x2f8] sm:$0xff]
        %v3922 = vld [vmem:[%s3825 + $0x300] sm:$0xf]
        %v3923 = vld [vmem:[%s3825 + $0x308] sm:$0xf]
        %v3924 = vld [vmem:[%s3825 + $0x310] sm:$0xf]
        %v3925 = vld [vmem:[%s3825 + $0x318] sm:$0xf]
        %v3926 = vld [vmem:[%s3825 + $0x320] sm:$0xf]
        %v3927 = vld [vmem:[%s3825 + $0x328] sm:$0xf]
        %v3928 = vld [vmem:[%s3825 + $0x330] sm:$0xf]
        %v3929 = vld [vmem:[%s3825 + $0x338] sm:$0xf]
        %v3931 = vsel %vm2347, %v3824, 0
        %v3934 = vsel %vm2351, %v3922, 0
        %v3937 = vsel %vm2351, %v3923, 0
        %v3940 = vsel %vm2351, %v3924, 0
        %v3943 = vsel %vm2351, %v3925, 0
        %v3946 = vsel %vm2351, %v3926, 0
        %v3949 = vsel %vm2351, %v3927, 0
        %v3952 = vsel %vm2351, %v3928, 0
        %v3955 = vsel %vm2351, %v3929, 0
        %3957 = vmatprep.subr.mxu0 %v3827
        %3958 = vmatpush1.msra.mxu0 %v3826
        %3959 = vmatprep.subr.mxu0 %v3835
        %3960 = vmatpush1.msra.mxu0 %v3834
        %3961 = vmatprep.subr.mxu0 %v3843
        %3962 = vmatpush1.msra.mxu0 %v3842
        %3963 = vmatprep.subr.mxu0 %v3851
        %3964 = vmatpush1.msra.mxu0 %v3850
        %3965 = vmatprep.subr.mxu0 %v3859
        %3966 = vmatpush1.msra.mxu0 %v3858
        %3967 = vmatprep.subr.mxu0 %v3867
        %3968 = vmatpush1.msra.mxu0 %v3866
        %3969 = vmatprep.subr.mxu0 %v3875
        %3970 = vmatpush1.msra.mxu0 %v3874
        %3971 = vmatprep.subr.mxu0 %v3883
        %3972 = vmatpush1.msra.mxu0 %v3882
        %3973 = vmatprep.subr.mxu0 %v3891
        %3974 = vmatpush1.msra.mxu0 %v3890
        %3975 = vmatprep.subr.mxu0 %v3899
        %3976 = vmatpush1.msra.mxu0 %v3898
        %3977 = vmatprep.subr.mxu0 %v3907
        %3978 = vmatpush1.msra.mxu0 %v3906
        %3979 = vmatprep.subr.mxu0 %v3915
        %3980 = vmatpush1.msra.mxu0 %v3914
        %3981 = vmatprep.subr.mxu0 %v3937
        %3982 = vmatpush1.msra.mxu0 %v3934
        %3983 = vmatprep.subr.mxu0 0.0
        %3984 = vmatpush1.msra.mxu0 0.0
        %3985 = vmatprep.subr.mxu0 0.0
        %3986 = vmatpush1.msra.mxu0 0.0
        %3987 = vmatprep.subr.mxu0 0.0
        %3988 = vmatpush1.msra.mxu0 0.0
        %3989 = vmatprep.subr.mxu0 0.0
        %3990 = vmatpush1.msra.mxu0 0.0
        %3991 = vmatprep.subr.mxu0 0.0
        %3992 = vmatpush1.msra.mxu0 0.0
        %3993 = vmatprep.subr.mxu0 0.0
        %3994 = vmatpush1.msra.mxu0 0.0
        %3995 = vmatprep.subr.mxu0 0.0
        %3996 = vmatpush1.msra.mxu0 0.0
        %3997 = vmatprep.subr.mxu0 0.0
        %3998 = vmatpush1.msra.mxu0 0.0
        %3999 = vmatprep.subr.mxu0 0.0
        %4000 = vmatpush1.msra.mxu0 0.0
        %4001 = vmatprep.subr.mxu0 0.0
        %4002 = vmatpush1.msra.mxu0 0.0
        %4003 = vmatprep.subr.mxu0 0.0
        %4004 = vmatpush1.msra.mxu0 0.0
        %4005 = vmatprep.subr.mxu0 0.0
        %4006 = vmatpush1.msra.mxu0 0.0
        %4007 = vmatprep.subr.mxu0 0.0
        %4008 = vmatpush1.msra.mxu0 0.0
        %4009 = vmatprep.subr.mxu0 0.0
        %4010 = vmatpush1.msra.mxu0 0.0
        %4011 = vmatprep.subr.mxu0 0.0
        %4012 = vmatpush1.msra.mxu0 0.0
        %4013 = vmatprep.subr.mxu0 0.0
        %4014 = vmatpush1.msra.mxu0 0.0
        %4015 = vmatprep.subr.mxu0 0.0
        %4016 = vmatpush1.msra.mxu0 0.0
        %4017 = vmatprep.subr.mxu0 0.0
        %4018 = vmatpush1.msra.mxu0 0.0
        %4019 = vmatprep.subr.mxu0 0.0
        %4020 = vmatpush1.msra.mxu0 0.0
        %4021 = vmatprep.mubr.f32.mxu0 0.0
        %4022 = vmatmul.mubr.f32.gmra.mrb[0].mxu0 %v3931
        %v4023 = vpop.f32.mrb[0].mxu0
        %v4024 = vadd.f32 0.0, %v4023
        %v4025 = vpop.f32.mrb[0].mxu0
        %v4026 = vadd.f32 0.0, %v4025
        %4027 = vdwg.mxu0
        %4028 = vmatprep.subr.mxu0 %v3829
        %4029 = vmatpush1.msra.mxu0 %v3828
        %4030 = vmatprep.subr.mxu0 %v3837
        %4031 = vmatpush1.msra.mxu0 %v3836
        %4032 = vmatprep.subr.mxu0 %v3845
        %4033 = vmatpush1.msra.mxu0 %v3844
        %4034 = vmatprep.subr.mxu0 %v3853
        %4035 = vmatpush1.msra.mxu0 %v3852
        %4036 = vmatprep.subr.mxu0 %v3861
        %4037 = vmatpush1.msra.mxu0 %v3860
        %4038 = vmatprep.subr.mxu0 %v3869
        %4039 = vmatpush1.msra.mxu0 %v3868
        %4040 = vmatprep.subr.mxu0 %v3877
        %4041 = vmatpush1.msra.mxu0 %v3876
        %4042 = vmatprep.subr.mxu0 %v3885
        %4043 = vmatpush1.msra.mxu0 %v3884
        %4044 = vmatprep.subr.mxu0 %v3893
        %4045 = vmatpush1.msra.mxu0 %v3892
        %4046 = vmatprep.subr.mxu0 %v3901
        %4047 = vmatpush1.msra.mxu0 %v3900
        %4048 = vmatprep.subr.mxu0 %v3909
        %4049 = vmatpush1.msra.mxu0 %v3908
        %4050 = vmatprep.subr.mxu0 %v3917
        %4051 = vmatpush1.msra.mxu0 %v3916
        %4052 = vmatprep.subr.mxu0 %v3943
        %4053 = vmatpush1.msra.mxu0 %v3940
        %4054 = vmatprep.subr.mxu0 0.0
        %4055 = vmatpush1.msra.mxu0 0.0
        %4056 = vmatprep.subr.mxu0 0.0
        %4057 = vmatpush1.msra.mxu0 0.0
        %4058 = vmatprep.subr.mxu0 0.0
        %4059 = vmatpush1.msra.mxu0 0.0
        %4060 = vmatprep.subr.mxu0 0.0
        %4061 = vmatpush1.msra.mxu0 0.0
        %4062 = vmatprep.subr.mxu0 0.0
        %4063 = vmatpush1.msra.mxu0 0.0
        %4064 = vmatprep.subr.mxu0 0.0
        %4065 = vmatpush1.msra.mxu0 0.0
        %4066 = vmatprep.subr.mxu0 0.0
        %4067 = vmatpush1.msra.mxu0 0.0
        %4068 = vmatprep.subr.mxu0 0.0
        %4069 = vmatpush1.msra.mxu0 0.0
        %4070 = vmatprep.subr.mxu0 0.0
        %4071 = vmatpush1.msra.mxu0 0.0
        %4072 = vmatprep.subr.mxu0 0.0
        %4073 = vmatpush1.msra.mxu0 0.0
        %4074 = vmatprep.subr.mxu0 0.0
        %4075 = vmatpush1.msra.mxu0 0.0
        %4076 = vmatprep.subr.mxu0 0.0
        %4077 = vmatpush1.msra.mxu0 0.0
        %4078 = vmatprep.subr.mxu0 0.0
        %4079 = vmatpush1.msra.mxu0 0.0
        %4080 = vmatprep.subr.mxu0 0.0
        %4081 = vmatpush1.msra.mxu0 0.0
        %4082 = vmatprep.subr.mxu0 0.0
        %4083 = vmatpush1.msra.mxu0 0.0
        %4084 = vmatprep.subr.mxu0 0.0
        %4085 = vmatpush1.msra.mxu0 0.0
        %4086 = vmatprep.subr.mxu0 0.0
        %4087 = vmatpush1.msra.mxu0 0.0
        %4088 = vmatprep.subr.mxu0 0.0
        %4089 = vmatpush1.msra.mxu0 0.0
        %4090 = vmatprep.subr.mxu0 0.0
        %4091 = vmatpush1.msra.mxu0 0.0
        %4092 = vmatprep.mubr.f32.mxu0 0.0
        %4093 = vmatmul.mubr.f32.gmra.mrb[0].mxu0 %v3931
        %v4094 = vpop.f32.mrb[0].mxu0
        %v4095 = vadd.f32 0.0, %v4094
        %v4096 = vpop.f32.mrb[0].mxu0
        %v4097 = vadd.f32 0.0, %v4096
        %4098 = vdwg.mxu0
        %4099 = vmatprep.subr.mxu0 %v3831
        %4100 = vmatpush1.msra.mxu0 %v3830
        %4101 = vmatprep.subr.mxu0 %v3839
        %4102 = vmatpush1.msra.mxu0 %v3838
        %4103 = vmatprep.subr.mxu0 %v3847
        %4104 = vmatpush1.msra.mxu0 %v3846
        %4105 = vmatprep.subr.mxu0 %v3855
        %4106 = vmatpush1.msra.mxu0 %v3854
        %4107 = vmatprep.subr.mxu0 %v3863
        %4108 = vmatpush1.msra.mxu0 %v3862
        %4109 = vmatprep.subr.mxu0 %v3871
        %4110 = vmatpush1.msra.mxu0 %v3870
        %4111 = vmatprep.subr.mxu0 %v3879
        %4112 = vmatpush1.msra.mxu0 %v3878
        %4113 = vmatprep.subr.mxu0 %v3887
        %4114 = vmatpush1.msra.mxu0 %v3886
        %4115 = vmatprep.subr.mxu0 %v3895
        %4116 = vmatpush1.msra.mxu0 %v3894
        %4117 = vmatprep.subr.mxu0 %v3903
        %4118 = vmatpush1.msra.mxu0 %v3902
        %4119 = vmatprep.subr.mxu0 %v3911
        %4120 = vmatpush1.msra.mxu0 %v3910
        %4121 = vmatprep.subr.mxu0 %v3919
        %4122 = vmatpush1.msra.mxu0 %v3918
        %4123 = vmatprep.subr.mxu0 %v3949
        %4124 = vmatpush1.msra.mxu0 %v3946
        %4125 = vmatprep.subr.mxu0 0.0
        %4126 = vmatpush1.msra.mxu0 0.0
        %4127 = vmatprep.subr.mxu0 0.0
        %4128 = vmatpush1.msra.mxu0 0.0
        %4129 = vmatprep.subr.mxu0 0.0
        %4130 = vmatpush1.msra.mxu0 0.0
        %4131 = vmatprep.subr.mxu0 0.0
        %4132 = vmatpush1.msra.mxu0 0.0
        %4133 = vmatprep.subr.mxu0 0.0
        %4134 = vmatpush1.msra.mxu0 0.0
        %4135 = vmatprep.subr.mxu0 0.0
        %4136 = vmatpush1.msra.mxu0 0.0
        %4137 = vmatprep.subr.mxu0 0.0
        %4138 = vmatpush1.msra.mxu0 0.0
        %4139 = vmatprep.subr.mxu0 0.0
        %4140 = vmatpush1.msra.mxu0 0.0
        %4141 = vmatprep.subr.mxu0 0.0
        %4142 = vmatpush1.msra.mxu0 0.0
        %4143 = vmatprep.subr.mxu0 0.0
        %4144 = vmatpush1.msra.mxu0 0.0
        %4145 = vmatprep.subr.mxu0 0.0
        %4146 = vmatpush1.msra.mxu0 0.0
        %4147 = vmatprep.subr.mxu0 0.0
        %4148 = vmatpush1.msra.mxu0 0.0
        %4149 = vmatprep.subr.mxu0 0.0
        %4150 = vmatpush1.msra.mxu0 0.0
        %4151 = vmatprep.subr.mxu0 0.0
        %4152 = vmatpush1.msra.mxu0 0.0
        %4153 = vmatprep.subr.mxu0 0.0
        %4154 = vmatpush1.msra.mxu0 0.0
        %4155 = vmatprep.subr.mxu0 0.0
        %4156 = vmatpush1.msra.mxu0 0.0
        %4157 = vmatprep.subr.mxu0 0.0
        %4158 = vmatpush1.msra.mxu0 0.0
        %4159 = vmatprep.subr.mxu0 0.0
        %4160 = vmatpush1.msra.mxu0 0.0
        %4161 = vmatprep.subr.mxu0 0.0
        %4162 = vmatpush1.msra.mxu0 0.0
        %4163 = vmatprep.mubr.f32.mxu0 0.0
        %4164 = vmatmul.mubr.f32.gmra.mrb[0].mxu0 %v3931
        %v4165 = vpop.f32.mrb[0].mxu0
        %v4166 = vadd.f32 0.0, %v4165
        %v4167 = vpop.f32.mrb[0].mxu0
        %v4168 = vadd.f32 0.0, %v4167
        %4169 = vdwg.mxu0
        %4170 = vmatprep.subr.mxu0 %v3833
        %4171 = vmatpush1.msra.mxu0 %v3832
        %4172 = vmatprep.subr.mxu0 %v3841
        %4173 = vmatpush1.msra.mxu0 %v3840
        %4174 = vmatprep.subr.mxu0 %v3849
        %4175 = vmatpush1.msra.mxu0 %v3848
        %4176 = vmatprep.subr.mxu0 %v3857
        %4177 = vmatpush1.msra.mxu0 %v3856
        %4178 = vmatprep.subr.mxu0 %v3865
        %4179 = vmatpush1.msra.mxu0 %v3864
        %4180 = vmatprep.subr.mxu0 %v3873
        %4181 = vmatpush1.msra.mxu0 %v3872
        %4182 = vmatprep.subr.mxu0 %v3881
        %4183 = vmatpush1.msra.mxu0 %v3880
        %4184 = vmatprep.subr.mxu0 %v3889
        %4185 = vmatpush1.msra.mxu0 %v3888
        %4186 = vmatprep.subr.mxu0 %v3897
        %4187 = vmatpush1.msra.mxu0 %v3896
        %4188 = vmatprep.subr.mxu0 %v3905
        %4189 = vmatpush1.msra.mxu0 %v3904
        %4190 = vmatprep.subr.mxu0 %v3913
        %4191 = vmatpush1.msra.mxu0 %v3912
        %4192 = vmatprep.subr.mxu0 %v3921
        %4193 = vmatpush1.msra.mxu0 %v3920
        %4194 = vmatprep.subr.mxu0 %v3955
        %4195 = vmatpush1.msra.mxu0 %v3952
        %4196 = vmatprep.subr.mxu0 0.0
        %4197 = vmatpush1.msra.mxu0 0.0
        %4198 = vmatprep.subr.mxu0 0.0
        %4199 = vmatpush1.msra.mxu0 0.0
        %4200 = vmatprep.subr.mxu0 0.0
        %4201 = vmatpush1.msra.mxu0 0.0
        %4202 = vmatprep.subr.mxu0 0.0
        %4203 = vmatpush1.msra.mxu0 0.0
        %4204 = vmatprep.subr.mxu0 0.0
        %4205 = vmatpush1.msra.mxu0 0.0
        %4206 = vmatprep.subr.mxu0 0.0
        %4207 = vmatpush1.msra.mxu0 0.0
        %4208 = vmatprep.subr.mxu0 0.0
        %4209 = vmatpush1.msra.mxu0 0.0
        %4210 = vmatprep.subr.mxu0 0.0
        %4211 = vmatpush1.msra.mxu0 0.0
        %4212 = vmatprep.subr.mxu0 0.0
        %4213 = vmatpush1.msra.mxu0 0.0
        %4214 = vmatprep.subr.mxu0 0.0
        %4215 = vmatpush1.msra.mxu0 0.0
        %4216 = vmatprep.subr.mxu0 0.0
        %4217 = vmatpush1.msra.mxu0 0.0
        %4218 = vmatprep.subr.mxu0 0.0
        %4219 = vmatpush1.msra.mxu0 0.0
        %4220 = vmatprep.subr.mxu0 0.0
        %4221 = vmatpush1.msra.mxu0 0.0
        %4222 = vmatprep.subr.mxu0 0.0
        %4223 = vmatpush1.msra.mxu0 0.0
        %4224 = vmatprep.subr.mxu0 0.0
        %4225 = vmatpush1.msra.mxu0 0.0
        %4226 = vmatprep.subr.mxu0 0.0
        %4227 = vmatpush1.msra.mxu0 0.0
        %4228 = vmatprep.subr.mxu0 0.0
        %4229 = vmatpush1.msra.mxu0 0.0
        %4230 = vmatprep.subr.mxu0 0.0
        %4231 = vmatpush1.msra.mxu0 0.0
        %4232 = vmatprep.subr.mxu0 0.0
        %4233 = vmatpush1.msra.mxu0 0.0
        %4234 = vmatprep.mubr.f32.mxu0 0.0
        %4235 = vmatmul.mubr.f32.gmra.mrb[0].mxu0 %v3931
        %v4236 = vpop.f32.mrb[0].mxu0
        %v4237 = vadd.f32 0.0, %v4236
        %v4238 = vpop.f32.mrb[0].mxu0
        %v4239 = vadd.f32 0.0, %v4238
        %4240 = vdwg.mxu0
        %v4241 = vadd.f32 %v3815, %v4024
        %v4242 = vadd.f32 %v3816, %v4026
        %v4243 = vadd.f32 %v3817, %v4095
        %v4244 = vadd.f32 %v3818, %v4097
        %v4245 = vadd.f32 %v3819, %v4166
        %v4246 = vadd.f32 %v3820, %v4168
        %v4247 = vadd.f32 %v3821, %v4237
        %v4248 = vadd.f32 %v3822, %v4239
        %v4249 = vld [vmem:[%s1055] sm:$0xff]
        %v4251 = vlaneseq
        %v4252 = vshrl.u32 %v4251, 7
        %v4253 = vsub.s32 0, %v4252
        %v4254 = vrot.slane %v4249, %v4253
        %v4255 = vlaneseq
        %v4256 = vshrl.u32 %v4255, 7
        %v4257 = vsub.s32 1, %v4256
        %v4258 = vrot.slane %v4249, %v4257
        %v4259 = vlaneseq
        %v4260 = vshrl.u32 %v4259, 7
        %v4261 = vsub.s32 2, %v4260
        %v4262 = vrot.slane %v4249, %v4261
        %v4263 = vlaneseq
        %v4264 = vshrl.u32 %v4263, 7
        %v4265 = vsub.s32 3, %v4264
        %v4266 = vrot.slane %v4249, %v4265
        %v4267 = vlaneseq
        %v4268 = vshrl.u32 %v4267, 7
        %v4269 = vsub.s32 4, %v4268
        %v4270 = vrot.slane %v4249, %v4269
        %v4271 = vlaneseq
        %v4272 = vshrl.u32 %v4271, 7
        %v4273 = vsub.s32 5, %v4272
        %v4274 = vrot.slane %v4249, %v4273
        %v4275 = vlaneseq
        %v4276 = vshrl.u32 %v4275, 7
        %v4277 = vsub.s32 6, %v4276
        %v4278 = vrot.slane %v4249, %v4277
        %v4279 = vlaneseq
        %v4280 = vshrl.u32 %v4279, 7
        %v4281 = vsub.s32 7, %v4280
        %v4282 = vrot.slane %v4249, %v4281
        %v4291 = vadd.f32 %v4241, %v4254
        %v4292 = vadd.f32 %v4242, %v4258
        %v4293 = vadd.f32 %v4243, %v4262
        %v4294 = vadd.f32 %v4244, %v4266
        %v4295 = vadd.f32 %v4245, %v4270
        %v4296 = vadd.f32 %v4246, %v4274
        %v4297 = vadd.f32 %v4247, %v4278
        %v4298 = vadd.f32 %v4248, %v4282
        %v4299 = vmax.f32 %v4291, 0.0
        %v4300 = vmax.f32 %v4292, 0.0
        %v4301 = vmax.f32 %v4293, 0.0
        %v4302 = vmax.f32 %v4294, 0.0
        %v4303 = vmax.f32 %v4295, 0.0
        %v4304 = vmax.f32 %v4296, 0.0
        %v4305 = vmax.f32 %v4297, 0.0
        %v4306 = vmax.f32 %v4298, 0.0
        %v4307 = vld [vmem:[#allocation3] sm:$0xff]
        %v4308 = vld [vmem:[%s1064] sm:$0xff]
        %v4309 = vld [vmem:[%s1064 + $0x8] sm:$0xff]
        %v4310 = vld [vmem:[%s1064 + $0x10] sm:$0xff]
        %v4311 = vld [vmem:[%s1064 + $0x18] sm:$0xff]
        %v4312 = vld [vmem:[%s1064 + $0x20] sm:$0xff]
        %v4313 = vld [vmem:[%s1064 + $0x28] sm:$0xff]
        %v4314 = vld [vmem:[%s1064 + $0x30] sm:$0xff]
        %v4315 = vld [vmem:[%s1064 + $0x38] sm:$0xff]
        %v4316 = vld [vmem:[%s1064 + $0x40] sm:$0xff]
        %v4317 = vld [vmem:[%s1064 + $0x48] sm:$0xff]
        %v4318 = vld [vmem:[%s1064 + $0x50] sm:$0xff]
        %v4319 = vld [vmem:[%s1064 + $0x58] sm:$0xff]
        %v4320 = vld [vmem:[%s1064 + $0x60] sm:$0xff]
        %v4321 = vld [vmem:[%s1064 + $0x68] sm:$0xff]
        %v4322 = vld [vmem:[%s1064 + $0x70] sm:$0xff]
        %v4323 = vld [vmem:[%s1064 + $0x78] sm:$0xff]
        %v4324 = vld [vmem:[%s1064 + $0x80] sm:$0xff]
        %v4325 = vld [vmem:[%s1064 + $0x88] sm:$0xff]
        %v4326 = vld [vmem:[%s1064 + $0x90] sm:$0xff]
        %v4327 = vld [vmem:[%s1064 + $0x98] sm:$0xff]
        %v4328 = vld [vmem:[%s1064 + $0xa0] sm:$0xff]
        %v4329 = vld [vmem:[%s1064 + $0xa8] sm:$0xff]
        %v4330 = vld [vmem:[%s1064 + $0xb0] sm:$0xff]
        %v4331 = vld [vmem:[%s1064 + $0xb8] sm:$0xff]
        %v4332 = vld [vmem:[%s1064 + $0xc0] sm:$0xff]
        %v4333 = vld [vmem:[%s1064 + $0xc8] sm:$0xff]
        %v4334 = vld [vmem:[%s1064 + $0xd0] sm:$0xff]
        %v4335 = vld [vmem:[%s1064 + $0xd8] sm:$0xff]
        %v4336 = vld [vmem:[%s1064 + $0xe0] sm:$0xff]
        %v4337 = vld [vmem:[%s1064 + $0xe8] sm:$0xff]
        %v4338 = vld [vmem:[%s1064 + $0xf0] sm:$0xff]
        %v4339 = vld [vmem:[%s1064 + $0xf8] sm:$0xff]
        %v4340 = vld [vmem:[%s1064 + $0x100] sm:$0xff]
        %v4341 = vld [vmem:[%s1064 + $0x108] sm:$0xff]
        %v4342 = vld [vmem:[%s1064 + $0x110] sm:$0xff]
        %v4343 = vld [vmem:[%s1064 + $0x118] sm:$0xff]
        %v4344 = vld [vmem:[%s1064 + $0x120] sm:$0xff]
        %v4345 = vld [vmem:[%s1064 + $0x128] sm:$0xff]
        %v4346 = vld [vmem:[%s1064 + $0x130] sm:$0xff]
        %v4347 = vld [vmem:[%s1064 + $0x138] sm:$0xff]
        %v4348 = vld [vmem:[%s1064 + $0x140] sm:$0xff]
        %v4349 = vld [vmem:[%s1064 + $0x148] sm:$0xff]
        %v4350 = vld [vmem:[%s1064 + $0x150] sm:$0xff]
        %v4351 = vld [vmem:[%s1064 + $0x158] sm:$0xff]
        %v4352 = vld [vmem:[%s1064 + $0x160] sm:$0xff]
        %v4353 = vld [vmem:[%s1064 + $0x168] sm:$0xff]
        %v4354 = vld [vmem:[%s1064 + $0x170] sm:$0xff]
        %v4355 = vld [vmem:[%s1064 + $0x178] sm:$0xff]
        %v4356 = vld [vmem:[%s1064 + $0x180] sm:$0xff]
        %v4357 = vld [vmem:[%s1064 + $0x188] sm:$0xff]
        %v4358 = vld [vmem:[%s1064 + $0x190] sm:$0xff]
        %v4359 = vld [vmem:[%s1064 + $0x198] sm:$0xff]
        %v4360 = vld [vmem:[%s1064 + $0x1a0] sm:$0xff]
        %v4361 = vld [vmem:[%s1064 + $0x1a8] sm:$0xff]
        %v4362 = vld [vmem:[%s1064 + $0x1b0] sm:$0xff]
        %v4363 = vld [vmem:[%s1064 + $0x1b8] sm:$0xff]
        %v4364 = vld [vmem:[%s1064 + $0x1c0] sm:$0xff]
        %v4365 = vld [vmem:[%s1064 + $0x1c8] sm:$0xff]
        %v4366 = vld [vmem:[%s1064 + $0x1d0] sm:$0xff]
        %v4367 = vld [vmem:[%s1064 + $0x1d8] sm:$0xff]
        %v4368 = vld [vmem:[%s1064 + $0x1e0] sm:$0xff]
        %v4369 = vld [vmem:[%s1064 + $0x1e8] sm:$0xff]
        %v4370 = vld [vmem:[%s1064 + $0x1f0] sm:$0xff]
        %v4371 = vld [vmem:[%s1064 + $0x1f8] sm:$0xff]
        %v4372 = vld [vmem:[%s1064 + $0x200] sm:$0xff]
        %v4373 = vld [vmem:[%s1064 + $0x208] sm:$0xff]
        %v4374 = vld [vmem:[%s1064 + $0x210] sm:$0xff]
        %v4375 = vld [vmem:[%s1064 + $0x218] sm:$0xff]
        %v4376 = vld [vmem:[%s1064 + $0x220] sm:$0xff]
        %v4377 = vld [vmem:[%s1064 + $0x228] sm:$0xff]
        %v4378 = vld [vmem:[%s1064 + $0x230] sm:$0xff]
        %v4379 = vld [vmem:[%s1064 + $0x238] sm:$0xff]
        %v4380 = vld [vmem:[%s1064 + $0x240] sm:$0xff]
        %v4381 = vld [vmem:[%s1064 + $0x248] sm:$0xff]
        %v4382 = vld [vmem:[%s1064 + $0x250] sm:$0xff]
        %v4383 = vld [vmem:[%s1064 + $0x258] sm:$0xff]
        %v4384 = vld [vmem:[%s1064 + $0x260] sm:$0xff]
        %v4385 = vld [vmem:[%s1064 + $0x268] sm:$0xff]
        %v4386 = vld [vmem:[%s1064 + $0x270] sm:$0xff]
        %v4387 = vld [vmem:[%s1064 + $0x278] sm:$0xff]
        %v4388 = vld [vmem:[%s1064 + $0x280] sm:$0xff]
        %v4389 = vld [vmem:[%s1064 + $0x288] sm:$0xff]
        %v4390 = vld [vmem:[%s1064 + $0x290] sm:$0xff]
        %v4391 = vld [vmem:[%s1064 + $0x298] sm:$0xff]
        %v4392 = vld [vmem:[%s1064 + $0x2a0] sm:$0xff]
        %v4393 = vld [vmem:[%s1064 + $0x2a8] sm:$0xff]
        %v4394 = vld [vmem:[%s1064 + $0x2b0] sm:$0xff]
        %v4395 = vld [vmem:[%s1064 + $0x2b8] sm:$0xff]
        %v4396 = vld [vmem:[%s1064 + $0x2c0] sm:$0xff]
        %v4397 = vld [vmem:[%s1064 + $0x2c8] sm:$0xff]
        %v4398 = vld [vmem:[%s1064 + $0x2d0] sm:$0xff]
        %v4399 = vld [vmem:[%s1064 + $0x2d8] sm:$0xff]
        %v4400 = vld [vmem:[%s1064 + $0x2e0] sm:$0xff]
        %v4401 = vld [vmem:[%s1064 + $0x2e8] sm:$0xff]
        %v4402 = vld [vmem:[%s1064 + $0x2f0] sm:$0xff]
        %v4403 = vld [vmem:[%s1064 + $0x2f8] sm:$0xff]
        %v4404 = vld [vmem:[%s1064 + $0x300] sm:$0xff]
        %v4405 = vld [vmem:[%s1064 + $0x308] sm:$0xff]
        %v4406 = vld [vmem:[%s1064 + $0x310] sm:$0xff]
        %v4407 = vld [vmem:[%s1064 + $0x318] sm:$0xff]
        %v4408 = vld [vmem:[%s1064 + $0x320] sm:$0xff]
        %v4409 = vld [vmem:[%s1064 + $0x328] sm:$0xff]
        %v4410 = vld [vmem:[%s1064 + $0x330] sm:$0xff]
        %v4411 = vld [vmem:[%s1064 + $0x338] sm:$0xff]
        %v4412 = vld [vmem:[%s1064 + $0x340] sm:$0xff]
        %v4413 = vld [vmem:[%s1064 + $0x348] sm:$0xff]
        %v4414 = vld [vmem:[%s1064 + $0x350] sm:$0xff]
        %v4415 = vld [vmem:[%s1064 + $0x358] sm:$0xff]
        %v4416 = vld [vmem:[%s1064 + $0x360] sm:$0xff]
        %v4417 = vld [vmem:[%s1064 + $0x368] sm:$0xff]
        %v4418 = vld [vmem:[%s1064 + $0x370] sm:$0xff]
        %v4419 = vld [vmem:[%s1064 + $0x378] sm:$0xff]
        %v4420 = vld [vmem:[%s1064 + $0x380] sm:$0xff]
        %v4421 = vld [vmem:[%s1064 + $0x388] sm:$0xff]
        %v4422 = vld [vmem:[%s1064 + $0x390] sm:$0xff]
        %v4423 = vld [vmem:[%s1064 + $0x398] sm:$0xff]
        %v4424 = vld [vmem:[%s1064 + $0x3a0] sm:$0xff]
        %v4425 = vld [vmem:[%s1064 + $0x3a8] sm:$0xff]
        %v4426 = vld [vmem:[%s1064 + $0x3b0] sm:$0xff]
        %v4427 = vld [vmem:[%s1064 + $0x3b8] sm:$0xff]
        %v4428 = vld [vmem:[%s1064 + $0x3c0] sm:$0xff]
        %v4429 = vld [vmem:[%s1064 + $0x3c8] sm:$0xff]
        %v4430 = vld [vmem:[%s1064 + $0x3d0] sm:$0xff]
        %v4431 = vld [vmem:[%s1064 + $0x3d8] sm:$0xff]
        %v4432 = vld [vmem:[%s1064 + $0x3e0] sm:$0xff]
        %v4433 = vld [vmem:[%s1064 + $0x3e8] sm:$0xff]
        %v4434 = vld [vmem:[%s1064 + $0x3f0] sm:$0xff]
        %v4435 = vld [vmem:[%s1064 + $0x3f8] sm:$0xff]
        %v4436 = vld [vmem:[%s1064 + $0x400] sm:$0xff]
        %v4437 = vld [vmem:[%s1064 + $0x408] sm:$0xff]
        %v4438 = vld [vmem:[%s1064 + $0x410] sm:$0xff]
        %v4439 = vld [vmem:[%s1064 + $0x418] sm:$0xff]
        %v4440 = vld [vmem:[%s1064 + $0x420] sm:$0xff]
        %v4441 = vld [vmem:[%s1064 + $0x428] sm:$0xff]
        %v4442 = vld [vmem:[%s1064 + $0x430] sm:$0xff]
        %v4443 = vld [vmem:[%s1064 + $0x438] sm:$0xff]
        %v4444 = vld [vmem:[%s1064 + $0x440] sm:$0xff]
        %v4445 = vld [vmem:[%s1064 + $0x448] sm:$0xff]
        %v4446 = vld [vmem:[%s1064 + $0x450] sm:$0xff]
        %v4447 = vld [vmem:[%s1064 + $0x458] sm:$0xff]
        %v4448 = vld [vmem:[%s1064 + $0x460] sm:$0xff]
        %v4449 = vld [vmem:[%s1064 + $0x468] sm:$0xff]
        %v4450 = vld [vmem:[%s1064 + $0x470] sm:$0xff]
        %v4451 = vld [vmem:[%s1064 + $0x478] sm:$0xff]
        %v4452 = vld [vmem:[%s1064 + $0x480] sm:$0xff]
        %v4453 = vld [vmem:[%s1064 + $0x488] sm:$0xff]
        %v4454 = vld [vmem:[%s1064 + $0x490] sm:$0xff]
        %v4455 = vld [vmem:[%s1064 + $0x498] sm:$0xff]
        %v4456 = vld [vmem:[%s1064 + $0x4a0] sm:$0xff]
        %v4457 = vld [vmem:[%s1064 + $0x4a8] sm:$0xff]
        %v4458 = vld [vmem:[%s1064 + $0x4b0] sm:$0xff]
        %v4459 = vld [vmem:[%s1064 + $0x4b8] sm:$0xff]
        %v4460 = vld [vmem:[%s1064 + $0x4c0] sm:$0xff]
        %v4461 = vld [vmem:[%s1064 + $0x4c8] sm:$0xff]
        %v4462 = vld [vmem:[%s1064 + $0x4d0] sm:$0xff]
        %v4463 = vld [vmem:[%s1064 + $0x4d8] sm:$0xff]
        %v4464 = vld [vmem:[%s1064 + $0x4e0] sm:$0xff]
        %v4465 = vld [vmem:[%s1064 + $0x4e8] sm:$0xff]
        %v4466 = vld [vmem:[%s1064 + $0x4f0] sm:$0xff]
        %v4467 = vld [vmem:[%s1064 + $0x4f8] sm:$0xff]
        %v4468 = vld [vmem:[%s1064 + $0x500] sm:$0xff]
        %v4469 = vld [vmem:[%s1064 + $0x508] sm:$0xff]
        %v4470 = vld [vmem:[%s1064 + $0x510] sm:$0xff]
        %v4471 = vld [vmem:[%s1064 + $0x518] sm:$0xff]
        %v4472 = vld [vmem:[%s1064 + $0x520] sm:$0xff]
        %v4473 = vld [vmem:[%s1064 + $0x528] sm:$0xff]
        %v4474 = vld [vmem:[%s1064 + $0x530] sm:$0xff]
        %v4475 = vld [vmem:[%s1064 + $0x538] sm:$0xff]
        %v4476 = vld [vmem:[%s1064 + $0x540] sm:$0xff]
        %v4477 = vld [vmem:[%s1064 + $0x548] sm:$0xff]
        %v4478 = vld [vmem:[%s1064 + $0x550] sm:$0xff]
        %v4479 = vld [vmem:[%s1064 + $0x558] sm:$0xff]
        %v4480 = vld [vmem:[%s1064 + $0x560] sm:$0xff]
        %v4481 = vld [vmem:[%s1064 + $0x568] sm:$0xff]
        %v4482 = vld [vmem:[%s1064 + $0x570] sm:$0xff]
        %v4483 = vld [vmem:[%s1064 + $0x578] sm:$0xff]
        %v4484 = vld [vmem:[%s1064 + $0x580] sm:$0xff]
        %v4485 = vld [vmem:[%s1064 + $0x588] sm:$0xff]
        %v4486 = vld [vmem:[%s1064 + $0x590] sm:$0xff]
        %v4487 = vld [vmem:[%s1064 + $0x598] sm:$0xff]
        %v4488 = vld [vmem:[%s1064 + $0x5a0] sm:$0xff]
        %v4489 = vld [vmem:[%s1064 + $0x5a8] sm:$0xff]
        %v4490 = vld [vmem:[%s1064 + $0x5b0] sm:$0xff]
        %v4491 = vld [vmem:[%s1064 + $0x5b8] sm:$0xff]
        %v4492 = vld [vmem:[%s1064 + $0x5c0] sm:$0xff]
        %v4493 = vld [vmem:[%s1064 + $0x5c8] sm:$0xff]
        %v4494 = vld [vmem:[%s1064 + $0x5d0] sm:$0xff]
        %v4495 = vld [vmem:[%s1064 + $0x5d8] sm:$0xff]
        %v4496 = vld [vmem:[%s1064 + $0x5e0] sm:$0xff]
        %v4497 = vld [vmem:[%s1064 + $0x5e8] sm:$0xff]
        %v4498 = vld [vmem:[%s1064 + $0x5f0] sm:$0xff]
        %v4499 = vld [vmem:[%s1064 + $0x5f8] sm:$0xff]
        %v4500 = vld [vmem:[%s1064 + $0x600] sm:$0xff]
        %v4501 = vld [vmem:[%s1064 + $0x608] sm:$0xff]
        %v4502 = vld [vmem:[%s1064 + $0x610] sm:$0xff]
        %v4503 = vld [vmem:[%s1064 + $0x618] sm:$0xff]
        %v4504 = vld [vmem:[%s1064 + $0x620] sm:$0xff]
        %v4505 = vld [vmem:[%s1064 + $0x628] sm:$0xff]
        %v4506 = vld [vmem:[%s1064 + $0x630] sm:$0xff]
        %v4507 = vld [vmem:[%s1064 + $0x638] sm:$0xff]
        %v4508 = vld [vmem:[%s1064 + $0x640] sm:$0xff]
        %v4509 = vld [vmem:[%s1064 + $0x648] sm:$0xff]
        %v4510 = vld [vmem:[%s1064 + $0x650] sm:$0xff]
        %v4511 = vld [vmem:[%s1064 + $0x658] sm:$0xff]
        %v4512 = vld [vmem:[%s1064 + $0x660] sm:$0xff]
        %v4513 = vld [vmem:[%s1064 + $0x668] sm:$0xff]
        %v4514 = vld [vmem:[%s1064 + $0x670] sm:$0xff]
        %v4515 = vld [vmem:[%s1064 + $0x678] sm:$0xff]
        %v4516 = vld [vmem:[%s1064 + $0x680] sm:$0xff]
        %v4517 = vld [vmem:[%s1064 + $0x688] sm:$0xff]
        %v4518 = vld [vmem:[%s1064 + $0x690] sm:$0xff]
        %v4519 = vld [vmem:[%s1064 + $0x698] sm:$0xff]
        %v4520 = vld [vmem:[%s1064 + $0x6a0] sm:$0xff]
        %v4521 = vld [vmem:[%s1064 + $0x6a8] sm:$0xff]
        %v4522 = vld [vmem:[%s1064 + $0x6b0] sm:$0xff]
        %v4523 = vld [vmem:[%s1064 + $0x6b8] sm:$0xff]
        %v4524 = vld [vmem:[%s1064 + $0x6c0] sm:$0xff]
        %v4525 = vld [vmem:[%s1064 + $0x6c8] sm:$0xff]
        %v4526 = vld [vmem:[%s1064 + $0x6d0] sm:$0xff]
        %v4527 = vld [vmem:[%s1064 + $0x6d8] sm:$0xff]
        %v4528 = vld [vmem:[%s1064 + $0x6e0] sm:$0xff]
        %v4529 = vld [vmem:[%s1064 + $0x6e8] sm:$0xff]
        %v4530 = vld [vmem:[%s1064 + $0x6f0] sm:$0xff]
        %v4531 = vld [vmem:[%s1064 + $0x6f8] sm:$0xff]
        %v4532 = vld [vmem:[%s1064 + $0x700] sm:$0xff]
        %v4533 = vld [vmem:[%s1064 + $0x708] sm:$0xff]
        %v4534 = vld [vmem:[%s1064 + $0x710] sm:$0xff]
        %v4535 = vld [vmem:[%s1064 + $0x718] sm:$0xff]
        %v4536 = vld [vmem:[%s1064 + $0x720] sm:$0xff]
        %v4537 = vld [vmem:[%s1064 + $0x728] sm:$0xff]
        %v4538 = vld [vmem:[%s1064 + $0x730] sm:$0xff]
        %v4539 = vld [vmem:[%s1064 + $0x738] sm:$0xff]
        %v4540 = vld [vmem:[%s1064 + $0x740] sm:$0xff]
        %v4541 = vld [vmem:[%s1064 + $0x748] sm:$0xff]
        %v4542 = vld [vmem:[%s1064 + $0x750] sm:$0xff]
        %v4543 = vld [vmem:[%s1064 + $0x758] sm:$0xff]
        %v4544 = vld [vmem:[%s1064 + $0x760] sm:$0xff]
        %v4545 = vld [vmem:[%s1064 + $0x768] sm:$0xff]
        %v4546 = vld [vmem:[%s1064 + $0x770] sm:$0xff]
        %v4547 = vld [vmem:[%s1064 + $0x778] sm:$0xff]
        %v4548 = vld [vmem:[%s1064 + $0x780] sm:$0xff]
        %v4549 = vld [vmem:[%s1064 + $0x788] sm:$0xff]
        %v4550 = vld [vmem:[%s1064 + $0x790] sm:$0xff]
        %v4551 = vld [vmem:[%s1064 + $0x798] sm:$0xff]
        %v4552 = vld [vmem:[%s1064 + $0x7a0] sm:$0xff]
        %v4553 = vld [vmem:[%s1064 + $0x7a8] sm:$0xff]
        %v4554 = vld [vmem:[%s1064 + $0x7b0] sm:$0xff]
        %v4555 = vld [vmem:[%s1064 + $0x7b8] sm:$0xff]
        %v4556 = vld [vmem:[%s1064 + $0x7c0] sm:$0xff]
        %v4557 = vld [vmem:[%s1064 + $0x7c8] sm:$0xff]
        %v4558 = vld [vmem:[%s1064 + $0x7d0] sm:$0xff]
        %v4559 = vld [vmem:[%s1064 + $0x7d8] sm:$0xff]
        %v4560 = vld [vmem:[%s1064 + $0x7e0] sm:$0xff]
        %v4561 = vld [vmem:[%s1064 + $0x7e8] sm:$0xff]
        %v4562 = vld [vmem:[%s1064 + $0x7f0] sm:$0xff]
        %v4563 = vld [vmem:[%s1064 + $0x7f8] sm:$0xff]
        %v4564 = vld [vmem:[%s1064 + $0x800] sm:$0xff]
        %v4565 = vld [vmem:[%s1064 + $0x808] sm:$0xff]
        %v4566 = vld [vmem:[%s1064 + $0x810] sm:$0xff]
        %v4567 = vld [vmem:[%s1064 + $0x818] sm:$0xff]
        %v4568 = vld [vmem:[%s1064 + $0x820] sm:$0xff]
        %v4569 = vld [vmem:[%s1064 + $0x828] sm:$0xff]
        %v4570 = vld [vmem:[%s1064 + $0x830] sm:$0xff]
        %v4571 = vld [vmem:[%s1064 + $0x838] sm:$0xff]
        %v4572 = vld [vmem:[%s1064 + $0x840] sm:$0xff]
        %v4573 = vld [vmem:[%s1064 + $0x848] sm:$0xff]
        %v4574 = vld [vmem:[%s1064 + $0x850] sm:$0xff]
        %v4575 = vld [vmem:[%s1064 + $0x858] sm:$0xff]
        %v4576 = vld [vmem:[%s1064 + $0x860] sm:$0xff]
        %v4577 = vld [vmem:[%s1064 + $0x868] sm:$0xff]
        %v4578 = vld [vmem:[%s1064 + $0x870] sm:$0xff]
        %v4579 = vld [vmem:[%s1064 + $0x878] sm:$0xff]
        %v4580 = vld [vmem:[%s1064 + $0x880] sm:$0xff]
        %v4581 = vld [vmem:[%s1064 + $0x888] sm:$0xff]
        %v4582 = vld [vmem:[%s1064 + $0x890] sm:$0xff]
        %v4583 = vld [vmem:[%s1064 + $0x898] sm:$0xff]
        %v4584 = vld [vmem:[%s1064 + $0x8a0] sm:$0xff]
        %v4585 = vld [vmem:[%s1064 + $0x8a8] sm:$0xff]
        %v4586 = vld [vmem:[%s1064 + $0x8b0] sm:$0xff]
        %v4587 = vld [vmem:[%s1064 + $0x8b8] sm:$0xff]
        %v4588 = vld [vmem:[%s1064 + $0x8c0] sm:$0xff]
        %v4589 = vld [vmem:[%s1064 + $0x8c8] sm:$0xff]
        %v4590 = vld [vmem:[%s1064 + $0x8d0] sm:$0xff]
        %v4591 = vld [vmem:[%s1064 + $0x8d8] sm:$0xff]
        %v4592 = vld [vmem:[%s1064 + $0x8e0] sm:$0xff]
        %v4593 = vld [vmem:[%s1064 + $0x8e8] sm:$0xff]
        %v4594 = vld [vmem:[%s1064 + $0x8f0] sm:$0xff]
        %v4595 = vld [vmem:[%s1064 + $0x8f8] sm:$0xff]
        %v4596 = vld [vmem:[%s1064 + $0x900] sm:$0xff]
        %v4597 = vld [vmem:[%s1064 + $0x908] sm:$0xff]
        %v4598 = vld [vmem:[%s1064 + $0x910] sm:$0xff]
        %v4599 = vld [vmem:[%s1064 + $0x918] sm:$0xff]
        %v4600 = vld [vmem:[%s1064 + $0x920] sm:$0xff]
        %v4601 = vld [vmem:[%s1064 + $0x928] sm:$0xff]
        %v4602 = vld [vmem:[%s1064 + $0x930] sm:$0xff]
        %v4603 = vld [vmem:[%s1064 + $0x938] sm:$0xff]
        %v4604 = vld [vmem:[%s1064 + $0x940] sm:$0xff]
        %v4605 = vld [vmem:[%s1064 + $0x948] sm:$0xff]
        %v4606 = vld [vmem:[%s1064 + $0x950] sm:$0xff]
        %v4607 = vld [vmem:[%s1064 + $0x958] sm:$0xff]
        %v4608 = vld [vmem:[%s1064 + $0x960] sm:$0xff]
        %v4609 = vld [vmem:[%s1064 + $0x968] sm:$0xff]
        %v4610 = vld [vmem:[%s1064 + $0x970] sm:$0xff]
        %v4611 = vld [vmem:[%s1064 + $0x978] sm:$0xff]
        %v4612 = vld [vmem:[%s1064 + $0x980] sm:$0xff]
        %v4613 = vld [vmem:[%s1064 + $0x988] sm:$0xff]
        %v4614 = vld [vmem:[%s1064 + $0x990] sm:$0xff]
        %v4615 = vld [vmem:[%s1064 + $0x998] sm:$0xff]
        %v4616 = vld [vmem:[%s1064 + $0x9a0] sm:$0xff]
        %v4617 = vld [vmem:[%s1064 + $0x9a8] sm:$0xff]
        %v4618 = vld [vmem:[%s1064 + $0x9b0] sm:$0xff]
        %v4619 = vld [vmem:[%s1064 + $0x9b8] sm:$0xff]
        %v4620 = vld [vmem:[%s1064 + $0x9c0] sm:$0xff]
        %v4621 = vld [vmem:[%s1064 + $0x9c8] sm:$0xff]
        %v4622 = vld [vmem:[%s1064 + $0x9d0] sm:$0xff]
        %v4623 = vld [vmem:[%s1064 + $0x9d8] sm:$0xff]
        %v4624 = vld [vmem:[%s1064 + $0x9e0] sm:$0xff]
        %v4625 = vld [vmem:[%s1064 + $0x9e8] sm:$0xff]
        %v4626 = vld [vmem:[%s1064 + $0x9f0] sm:$0xff]
        %v4627 = vld [vmem:[%s1064 + $0x9f8] sm:$0xff]
        %v4628 = vld [vmem:[%s1064 + $0xa00] sm:$0xff]
        %v4629 = vld [vmem:[%s1064 + $0xa08] sm:$0xff]
        %v4630 = vld [vmem:[%s1064 + $0xa10] sm:$0xff]
        %v4631 = vld [vmem:[%s1064 + $0xa18] sm:$0xff]
        %v4632 = vld [vmem:[%s1064 + $0xa20] sm:$0xff]
        %v4633 = vld [vmem:[%s1064 + $0xa28] sm:$0xff]
        %v4634 = vld [vmem:[%s1064 + $0xa30] sm:$0xff]
        %v4635 = vld [vmem:[%s1064 + $0xa38] sm:$0xff]
        %v4636 = vld [vmem:[%s1064 + $0xa40] sm:$0xff]
        %v4637 = vld [vmem:[%s1064 + $0xa48] sm:$0xff]
        %v4638 = vld [vmem:[%s1064 + $0xa50] sm:$0xff]
        %v4639 = vld [vmem:[%s1064 + $0xa58] sm:$0xff]
        %v4640 = vld [vmem:[%s1064 + $0xa60] sm:$0xff]
        %v4641 = vld [vmem:[%s1064 + $0xa68] sm:$0xff]
        %v4642 = vld [vmem:[%s1064 + $0xa70] sm:$0xff]
        %v4643 = vld [vmem:[%s1064 + $0xa78] sm:$0xff]
        %v4644 = vld [vmem:[%s1064 + $0xa80] sm:$0xff]
        %v4645 = vld [vmem:[%s1064 + $0xa88] sm:$0xff]
        %v4646 = vld [vmem:[%s1064 + $0xa90] sm:$0xff]
        %v4647 = vld [vmem:[%s1064 + $0xa98] sm:$0xff]
        %v4648 = vld [vmem:[%s1064 + $0xaa0] sm:$0xff]
        %v4649 = vld [vmem:[%s1064 + $0xaa8] sm:$0xff]
        %v4650 = vld [vmem:[%s1064 + $0xab0] sm:$0xff]
        %v4651 = vld [vmem:[%s1064 + $0xab8] sm:$0xff]
        %v4652 = vld [vmem:[%s1064 + $0xac0] sm:$0xff]
        %v4653 = vld [vmem:[%s1064 + $0xac8] sm:$0xff]
        %v4654 = vld [vmem:[%s1064 + $0xad0] sm:$0xff]
        %v4655 = vld [vmem:[%s1064 + $0xad8] sm:$0xff]
        %v4656 = vld [vmem:[%s1064 + $0xae0] sm:$0xff]
        %v4657 = vld [vmem:[%s1064 + $0xae8] sm:$0xff]
        %v4658 = vld [vmem:[%s1064 + $0xaf0] sm:$0xff]
        %v4659 = vld [vmem:[%s1064 + $0xaf8] sm:$0xff]
        %v4660 = vld [vmem:[%s1064 + $0xb00] sm:$0xff]
        %v4661 = vld [vmem:[%s1064 + $0xb08] sm:$0xff]
        %v4662 = vld [vmem:[%s1064 + $0xb10] sm:$0xff]
        %v4663 = vld [vmem:[%s1064 + $0xb18] sm:$0xff]
        %v4664 = vld [vmem:[%s1064 + $0xb20] sm:$0xff]
        %v4665 = vld [vmem:[%s1064 + $0xb28] sm:$0xff]
        %v4666 = vld [vmem:[%s1064 + $0xb30] sm:$0xff]
        %v4667 = vld [vmem:[%s1064 + $0xb38] sm:$0xff]
        %v4668 = vld [vmem:[%s1064 + $0xb40] sm:$0xff]
        %v4669 = vld [vmem:[%s1064 + $0xb48] sm:$0xff]
        %v4670 = vld [vmem:[%s1064 + $0xb50] sm:$0xff]
        %v4671 = vld [vmem:[%s1064 + $0xb58] sm:$0xff]
        %v4672 = vld [vmem:[%s1064 + $0xb60] sm:$0xff]
        %v4673 = vld [vmem:[%s1064 + $0xb68] sm:$0xff]
        %v4674 = vld [vmem:[%s1064 + $0xb70] sm:$0xff]
        %v4675 = vld [vmem:[%s1064 + $0xb78] sm:$0xff]
        %v4676 = vld [vmem:[%s1064 + $0xb80] sm:$0xff]
        %v4677 = vld [vmem:[%s1064 + $0xb88] sm:$0xff]
        %v4678 = vld [vmem:[%s1064 + $0xb90] sm:$0xff]
        %v4679 = vld [vmem:[%s1064 + $0xb98] sm:$0xff]
        %v4680 = vld [vmem:[%s1064 + $0xba0] sm:$0xff]
        %v4681 = vld [vmem:[%s1064 + $0xba8] sm:$0xff]
        %v4682 = vld [vmem:[%s1064 + $0xbb0] sm:$0xff]
        %v4683 = vld [vmem:[%s1064 + $0xbb8] sm:$0xff]
        %v4684 = vld [vmem:[%s1064 + $0xbc0] sm:$0xff]
        %v4685 = vld [vmem:[%s1064 + $0xbc8] sm:$0xff]
        %v4686 = vld [vmem:[%s1064 + $0xbd0] sm:$0xff]
        %v4687 = vld [vmem:[%s1064 + $0xbd8] sm:$0xff]
        %v4688 = vld [vmem:[%s1064 + $0xbe0] sm:$0xff]
        %v4689 = vld [vmem:[%s1064 + $0xbe8] sm:$0xff]
        %v4690 = vld [vmem:[%s1064 + $0xbf0] sm:$0xff]
        %v4691 = vld [vmem:[%s1064 + $0xbf8] sm:$0xff]
        %v4692 = vld [vmem:[%s1064 + $0xc00] sm:$0xff]
        %v4693 = vld [vmem:[%s1064 + $0xc08] sm:$0xff]
        %v4694 = vld [vmem:[%s1064 + $0xc10] sm:$0xff]
        %v4695 = vld [vmem:[%s1064 + $0xc18] sm:$0xff]
        %v4696 = vld [vmem:[%s1064 + $0xc20] sm:$0xff]
        %v4697 = vld [vmem:[%s1064 + $0xc28] sm:$0xff]
        %v4698 = vld [vmem:[%s1064 + $0xc30] sm:$0xff]
        %v4699 = vld [vmem:[%s1064 + $0xc38] sm:$0xff]
        %v4700 = vld [vmem:[%s1064 + $0xc40] sm:$0xff]
        %v4701 = vld [vmem:[%s1064 + $0xc48] sm:$0xff]
        %v4702 = vld [vmem:[%s1064 + $0xc50] sm:$0xff]
        %v4703 = vld [vmem:[%s1064 + $0xc58] sm:$0xff]
        %v4704 = vld [vmem:[%s1064 + $0xc60] sm:$0xff]
        %v4705 = vld [vmem:[%s1064 + $0xc68] sm:$0xff]
        %v4706 = vld [vmem:[%s1064 + $0xc70] sm:$0xff]
        %v4707 = vld [vmem:[%s1064 + $0xc78] sm:$0xff]
        %v4708 = vld [vmem:[%s1064 + $0xc80] sm:$0xff]
        %v4709 = vld [vmem:[%s1064 + $0xc88] sm:$0xff]
        %v4710 = vld [vmem:[%s1064 + $0xc90] sm:$0xff]
        %v4711 = vld [vmem:[%s1064 + $0xc98] sm:$0xff]
        %v4712 = vld [vmem:[%s1064 + $0xca0] sm:$0xff]
        %v4713 = vld [vmem:[%s1064 + $0xca8] sm:$0xff]
        %v4714 = vld [vmem:[%s1064 + $0xcb0] sm:$0xff]
        %v4715 = vld [vmem:[%s1064 + $0xcb8] sm:$0xff]
        %v4716 = vld [vmem:[%s1064 + $0xcc0] sm:$0xff]
        %v4717 = vld [vmem:[%s1064 + $0xcc8] sm:$0xff]
        %v4718 = vld [vmem:[%s1064 + $0xcd0] sm:$0xff]
        %v4719 = vld [vmem:[%s1064 + $0xcd8] sm:$0xff]
        %v4720 = vld [vmem:[%s1064 + $0xce0] sm:$0xff]
        %v4721 = vld [vmem:[%s1064 + $0xce8] sm:$0xff]
        %v4722 = vld [vmem:[%s1064 + $0xcf0] sm:$0xff]
        %v4723 = vld [vmem:[%s1064 + $0xcf8] sm:$0xff]
        %v4724 = vld [vmem:[%s1064 + $0xd00] sm:$0xff]
        %v4725 = vld [vmem:[%s1064 + $0xd08] sm:$0xff]
        %v4726 = vld [vmem:[%s1064 + $0xd10] sm:$0xff]
        %v4727 = vld [vmem:[%s1064 + $0xd18] sm:$0xff]
        %v4728 = vld [vmem:[%s1064 + $0xd20] sm:$0xff]
        %v4729 = vld [vmem:[%s1064 + $0xd28] sm:$0xff]
        %v4730 = vld [vmem:[%s1064 + $0xd30] sm:$0xff]
        %v4731 = vld [vmem:[%s1064 + $0xd38] sm:$0xff]
        %v4732 = vld [vmem:[%s1064 + $0xd40] sm:$0xff]
        %v4733 = vld [vmem:[%s1064 + $0xd48] sm:$0xff]
        %v4734 = vld [vmem:[%s1064 + $0xd50] sm:$0xff]
        %v4735 = vld [vmem:[%s1064 + $0xd58] sm:$0xff]
        %v4736 = vld [vmem:[%s1064 + $0xd60] sm:$0xff]
        %v4737 = vld [vmem:[%s1064 + $0xd68] sm:$0xff]
        %v4738 = vld [vmem:[%s1064 + $0xd70] sm:$0xff]
        %v4739 = vld [vmem:[%s1064 + $0xd78] sm:$0xff]
        %v4740 = vld [vmem:[%s1064 + $0xd80] sm:$0xff]
        %v4741 = vld [vmem:[%s1064 + $0xd88] sm:$0xff]
        %v4742 = vld [vmem:[%s1064 + $0xd90] sm:$0xff]
        %v4743 = vld [vmem:[%s1064 + $0xd98] sm:$0xff]
        %v4744 = vld [vmem:[%s1064 + $0xda0] sm:$0xff]
        %v4745 = vld [vmem:[%s1064 + $0xda8] sm:$0xff]
        %v4746 = vld [vmem:[%s1064 + $0xdb0] sm:$0xff]
        %v4747 = vld [vmem:[%s1064 + $0xdb8] sm:$0xff]
        %v4748 = vld [vmem:[%s1064 + $0xdc0] sm:$0xff]
        %v4749 = vld [vmem:[%s1064 + $0xdc8] sm:$0xff]
        %v4750 = vld [vmem:[%s1064 + $0xdd0] sm:$0xff]
        %v4751 = vld [vmem:[%s1064 + $0xdd8] sm:$0xff]
        %v4752 = vld [vmem:[%s1064 + $0xde0] sm:$0xff]
        %v4753 = vld [vmem:[%s1064 + $0xde8] sm:$0xff]
        %v4754 = vld [vmem:[%s1064 + $0xdf0] sm:$0xff]
        %v4755 = vld [vmem:[%s1064 + $0xdf8] sm:$0xff]
        %v4756 = vld [vmem:[%s1064 + $0xe00] sm:$0xff]
        %v4757 = vld [vmem:[%s1064 + $0xe08] sm:$0xff]
        %v4758 = vld [vmem:[%s1064 + $0xe10] sm:$0xff]
        %v4759 = vld [vmem:[%s1064 + $0xe18] sm:$0xff]
        %v4760 = vld [vmem:[%s1064 + $0xe20] sm:$0xff]
        %v4761 = vld [vmem:[%s1064 + $0xe28] sm:$0xff]
        %v4762 = vld [vmem:[%s1064 + $0xe30] sm:$0xff]
        %v4763 = vld [vmem:[%s1064 + $0xe38] sm:$0xff]
        %v4764 = vld [vmem:[%s1064 + $0xe40] sm:$0xff]
        %v4765 = vld [vmem:[%s1064 + $0xe48] sm:$0xff]
        %v4766 = vld [vmem:[%s1064 + $0xe50] sm:$0xff]
        %v4767 = vld [vmem:[%s1064 + $0xe58] sm:$0xff]
        %v4768 = vld [vmem:[%s1064 + $0xe60] sm:$0xff]
        %v4769 = vld [vmem:[%s1064 + $0xe68] sm:$0xff]
        %v4770 = vld [vmem:[%s1064 + $0xe70] sm:$0xff]
        %v4771 = vld [vmem:[%s1064 + $0xe78] sm:$0xff]
        %v4772 = vld [vmem:[%s1064 + $0xe80] sm:$0xff]
        %v4773 = vld [vmem:[%s1064 + $0xe88] sm:$0xff]
        %v4774 = vld [vmem:[%s1064 + $0xe90] sm:$0xff]
        %v4775 = vld [vmem:[%s1064 + $0xe98] sm:$0xff]
        %v4776 = vld [vmem:[%s1064 + $0xea0] sm:$0xff]
        %v4777 = vld [vmem:[%s1064 + $0xea8] sm:$0xff]
        %v4778 = vld [vmem:[%s1064 + $0xeb0] sm:$0xff]
        %v4779 = vld [vmem:[%s1064 + $0xeb8] sm:$0xff]
        %v4780 = vld [vmem:[%s1064 + $0xec0] sm:$0xff]
        %v4781 = vld [vmem:[%s1064 + $0xec8] sm:$0xff]
        %v4782 = vld [vmem:[%s1064 + $0xed0] sm:$0xff]
        %v4783 = vld [vmem:[%s1064 + $0xed8] sm:$0xff]
        %v4784 = vld [vmem:[%s1064 + $0xee0] sm:$0xff]
        %v4785 = vld [vmem:[%s1064 + $0xee8] sm:$0xff]
        %v4786 = vld [vmem:[%s1064 + $0xef0] sm:$0xff]
        %v4787 = vld [vmem:[%s1064 + $0xef8] sm:$0xff]
        %v4788 = vld [vmem:[%s1064 + $0xf00] sm:$0xff]
        %v4789 = vld [vmem:[%s1064 + $0xf08] sm:$0xff]
        %v4790 = vld [vmem:[%s1064 + $0xf10] sm:$0xff]
        %v4791 = vld [vmem:[%s1064 + $0xf18] sm:$0xff]
        %v4792 = vld [vmem:[%s1064 + $0xf20] sm:$0xff]
        %v4793 = vld [vmem:[%s1064 + $0xf28] sm:$0xff]
        %v4794 = vld [vmem:[%s1064 + $0xf30] sm:$0xff]
        %v4795 = vld [vmem:[%s1064 + $0xf38] sm:$0xff]
        %v4796 = vld [vmem:[%s1064 + $0xf40] sm:$0xff]
        %v4797 = vld [vmem:[%s1064 + $0xf48] sm:$0xff]
        %v4798 = vld [vmem:[%s1064 + $0xf50] sm:$0xff]
        %v4799 = vld [vmem:[%s1064 + $0xf58] sm:$0xff]
        %v4800 = vld [vmem:[%s1064 + $0xf60] sm:$0xff]
        %v4801 = vld [vmem:[%s1064 + $0xf68] sm:$0xff]
        %v4802 = vld [vmem:[%s1064 + $0xf70] sm:$0xff]
        %v4803 = vld [vmem:[%s1064 + $0xf78] sm:$0xff]
        %v4804 = vld [vmem:[%s1064 + $0xf80] sm:$0xff]
        %v4805 = vld [vmem:[%s1064 + $0xf88] sm:$0xff]
        %v4806 = vld [vmem:[%s1064 + $0xf90] sm:$0xff]
        %v4807 = vld [vmem:[%s1064 + $0xf98] sm:$0xff]
        %v4808 = vld [vmem:[%s1064 + $0xfa0] sm:$0xff]
        %v4809 = vld [vmem:[%s1064 + $0xfa8] sm:$0xff]
        %v4810 = vld [vmem:[%s1064 + $0xfb0] sm:$0xff]
        %v4811 = vld [vmem:[%s1064 + $0xfb8] sm:$0xff]
        %v4812 = vld [vmem:[%s1064 + $0xfc0] sm:$0xff]
        %v4813 = vld [vmem:[%s1064 + $0xfc8] sm:$0xff]
        %v4814 = vld [vmem:[%s1064 + $0xfd0] sm:$0xff]
        %v4815 = vld [vmem:[%s1064 + $0xfd8] sm:$0xff]
        %v4816 = vld [vmem:[%s1064 + $0xfe0] sm:$0xff]
        %v4817 = vld [vmem:[%s1064 + $0xfe8] sm:$0xff]
        %v4818 = vld [vmem:[%s1064 + $0xff0] sm:$0xff]
        %v4819 = vld [vmem:[%s1064 + $0xff8] sm:$0xff]
        %4820 = vmatprep.subr.mxu0 %v4309
        %4821 = vmatpush1.msra.mxu0 %v4308
        %4822 = vmatprep.subr.mxu0 %v4313
        %4823 = vmatpush1.msra.mxu0 %v4312
        %4824 = vmatprep.subr.mxu0 %v4317
        %4825 = vmatpush1.msra.mxu0 %v4316
        %4826 = vmatprep.subr.mxu0 %v4321
        %4827 = vmatpush1.msra.mxu0 %v4320
        %4828 = vmatprep.subr.mxu0 %v4325
        %4829 = vmatpush1.msra.mxu0 %v4324
        %4830 = vmatprep.subr.mxu0 %v4329
        %4831 = vmatpush1.msra.mxu0 %v4328
        %4832 = vmatprep.subr.mxu0 %v4333
        %4833 = vmatpush1.msra.mxu0 %v4332
        %4834 = vmatprep.subr.mxu0 %v4337
        %4835 = vmatpush1.msra.mxu0 %v4336
        %4836 = vmatprep.subr.mxu0 %v4341
        %4837 = vmatpush1.msra.mxu0 %v4340
        %4838 = vmatprep.subr.mxu0 %v4345
        %4839 = vmatpush1.msra.mxu0 %v4344
        %4840 = vmatprep.subr.mxu0 %v4349
        %4841 = vmatpush1.msra.mxu0 %v4348
        %4842 = vmatprep.subr.mxu0 %v4353
        %4843 = vmatpush1.msra.mxu0 %v4352
        %4844 = vmatprep.subr.mxu0 %v4357
        %4845 = vmatpush1.msra.mxu0 %v4356
        %4846 = vmatprep.subr.mxu0 %v4361
        %4847 = vmatpush1.msra.mxu0 %v4360
        %4848 = vmatprep.subr.mxu0 %v4365
        %4849 = vmatpush1.msra.mxu0 %v4364
        %4850 = vmatprep.subr.mxu0 %v4369
        %4851 = vmatpush1.msra.mxu0 %v4368
        %4852 = vmatprep.subr.mxu0 %v4373
        %4853 = vmatpush1.msra.mxu0 %v4372
        %4854 = vmatprep.subr.mxu0 %v4377
        %4855 = vmatpush1.msra.mxu0 %v4376
        %4856 = vmatprep.subr.mxu0 %v4381
        %4857 = vmatpush1.msra.mxu0 %v4380
        %4858 = vmatprep.subr.mxu0 %v4385
        %4859 = vmatpush1.msra.mxu0 %v4384
        %4860 = vmatprep.subr.mxu0 %v4389
        %4861 = vmatpush1.msra.mxu0 %v4388
        %4862 = vmatprep.subr.mxu0 %v4393
        %4863 = vmatpush1.msra.mxu0 %v4392
        %4864 = vmatprep.subr.mxu0 %v4397
        %4865 = vmatpush1.msra.mxu0 %v4396
        %4866 = vmatprep.subr.mxu0 %v4401
        %4867 = vmatpush1.msra.mxu0 %v4400
        %4868 = vmatprep.subr.mxu0 %v4405
        %4869 = vmatpush1.msra.mxu0 %v4404
        %4870 = vmatprep.subr.mxu0 %v4409
        %4871 = vmatpush1.msra.mxu0 %v4408
        %4872 = vmatprep.subr.mxu0 %v4413
        %4873 = vmatpush1.msra.mxu0 %v4412
        %4874 = vmatprep.subr.mxu0 %v4417
        %4875 = vmatpush1.msra.mxu0 %v4416
        %4876 = vmatprep.subr.mxu0 %v4421
        %4877 = vmatpush1.msra.mxu0 %v4420
        %4878 = vmatprep.subr.mxu0 %v4425
        %4879 = vmatpush1.msra.mxu0 %v4424
        %4880 = vmatprep.subr.mxu0 %v4429
        %4881 = vmatpush1.msra.mxu0 %v4428
        %4882 = vmatprep.subr.mxu0 %v4433
        %4883 = vmatpush1.msra.mxu0 %v4432
        %4884 = vmatprep.mubr.f32.mxu0 %v4300
        %4885 = vmatmul.mubr.f32.gmra.mrb[0].mxu0 %v4299
        %v4886 = vpop.f32.mrb[0].mxu0
        %v4887 = vadd.f32 0.0, %v4886
        %v4888 = vpop.f32.mrb[0].mxu0
        %v4889 = vadd.f32 0.0, %v4888
        %4890 = vdwg.mxu0
        %4891 = vmatprep.subr.mxu0 %v4437
        %4892 = vmatpush1.msra.mxu0 %v4436
        %4893 = vmatprep.subr.mxu0 %v4441
        %4894 = vmatpush1.msra.mxu0 %v4440
        %4895 = vmatprep.subr.mxu0 %v4445
        %4896 = vmatpush1.msra.mxu0 %v4444
        %4897 = vmatprep.subr.mxu0 %v4449
        %4898 = vmatpush1.msra.mxu0 %v4448
        %4899 = vmatprep.subr.mxu0 %v4453
        %4900 = vmatpush1.msra.mxu0 %v4452
        %4901 = vmatprep.subr.mxu0 %v4457
        %4902 = vmatpush1.msra.mxu0 %v4456
        %4903 = vmatprep.subr.mxu0 %v4461
        %4904 = vmatpush1.msra.mxu0 %v4460
        %4905 = vmatprep.subr.mxu0 %v4465
        %4906 = vmatpush1.msra.mxu0 %v4464
        %4907 = vmatprep.subr.mxu0 %v4469
        %4908 = vmatpush1.msra.mxu0 %v4468
        %4909 = vmatprep.subr.mxu0 %v4473
        %4910 = vmatpush1.msra.mxu0 %v4472
        %4911 = vmatprep.subr.mxu0 %v4477
        %4912 = vmatpush1.msra.mxu0 %v4476
        %4913 = vmatprep.subr.mxu0 %v4481
        %4914 = vmatpush1.msra.mxu0 %v4480
        %4915 = vmatprep.subr.mxu0 %v4485
        %4916 = vmatpush1.msra.mxu0 %v4484
        %4917 = vmatprep.subr.mxu0 %v4489
        %4918 = vmatpush1.msra.mxu0 %v4488
        %4919 = vmatprep.subr.mxu0 %v4493
        %4920 = vmatpush1.msra.mxu0 %v4492
        %4921 = vmatprep.subr.mxu0 %v4497
        %4922 = vmatpush1.msra.mxu0 %v4496
        %4923 = vmatprep.subr.mxu0 %v4501
        %4924 = vmatpush1.msra.mxu0 %v4500
        %4925 = vmatprep.subr.mxu0 %v4505
        %4926 = vmatpush1.msra.mxu0 %v4504
        %4927 = vmatprep.subr.mxu0 %v4509
        %4928 = vmatpush1.msra.mxu0 %v4508
        %4929 = vmatprep.subr.mxu0 %v4513
        %4930 = vmatpush1.msra.mxu0 %v4512
        %4931 = vmatprep.subr.mxu0 %v4517
        %4932 = vmatpush1.msra.mxu0 %v4516
        %4933 = vmatprep.subr.mxu0 %v4521
        %4934 = vmatpush1.msra.mxu0 %v4520
        %4935 = vmatprep.subr.mxu0 %v4525
        %4936 = vmatpush1.msra.mxu0 %v4524
        %4937 = vmatprep.subr.mxu0 %v4529
        %4938 = vmatpush1.msra.mxu0 %v4528
        %4939 = vmatprep.subr.mxu0 %v4533
        %4940 = vmatpush1.msra.mxu0 %v4532
        %4941 = vmatprep.subr.mxu0 %v4537
        %4942 = vmatpush1.msra.mxu0 %v4536
        %4943 = vmatprep.subr.mxu0 %v4541
        %4944 = vmatpush1.msra.mxu0 %v4540
        %4945 = vmatprep.subr.mxu0 %v4545
        %4946 = vmatpush1.msra.mxu0 %v4544
        %4947 = vmatprep.subr.mxu0 %v4549
        %4948 = vmatpush1.msra.mxu0 %v4548
        %4949 = vmatprep.subr.mxu0 %v4553
        %4950 = vmatpush1.msra.mxu0 %v4552
        %4951 = vmatprep.subr.mxu0 %v4557
        %4952 = vmatpush1.msra.mxu0 %v4556
        %4953 = vmatprep.subr.mxu0 %v4561
        %4954 = vmatpush1.msra.mxu0 %v4560
        %4955 = vmatprep.mubr.f32.mxu0 %v4302
        %4956 = vmatmul.mubr.f32.gmra.mrb[0].mxu0 %v4301
        %v4957 = vpop.f32.mrb[0].mxu0
        %v4958 = vadd.f32 %v4887, %v4957
        %v4959 = vpop.f32.mrb[0].mxu0
        %v4960 = vadd.f32 %v4889, %v4959
        %4961 = vdwg.mxu0
        %4962 = vmatprep.subr.mxu0 %v4565
        %4963 = vmatpush1.msra.mxu0 %v4564
        %4964 = vmatprep.subr.mxu0 %v4569
        %4965 = vmatpush1.msra.mxu0 %v4568
        %4966 = vmatprep.subr.mxu0 %v4573
        %4967 = vmatpush1.msra.mxu0 %v4572
        %4968 = vmatprep.subr.mxu0 %v4577
        %4969 = vmatpush1.msra.mxu0 %v4576
        %4970 = vmatprep.subr.mxu0 %v4581
        %4971 = vmatpush1.msra.mxu0 %v4580
        %4972 = vmatprep.subr.mxu0 %v4585
        %4973 = vmatpush1.msra.mxu0 %v4584
        %4974 = vmatprep.subr.mxu0 %v4589
        %4975 = vmatpush1.msra.mxu0 %v4588
        %4976 = vmatprep.subr.mxu0 %v4593
        %4977 = vmatpush1.msra.mxu0 %v4592
        %4978 = vmatprep.subr.mxu0 %v4597
        %4979 = vmatpush1.msra.mxu0 %v4596
        %4980 = vmatprep.subr.mxu0 %v4601
        %4981 = vmatpush1.msra.mxu0 %v4600
        %4982 = vmatprep.subr.mxu0 %v4605
        %4983 = vmatpush1.msra.mxu0 %v4604
        %4984 = vmatprep.subr.mxu0 %v4609
        %4985 = vmatpush1.msra.mxu0 %v4608
        %4986 = vmatprep.subr.mxu0 %v4613
        %4987 = vmatpush1.msra.mxu0 %v4612
        %4988 = vmatprep.subr.mxu0 %v4617
        %4989 = vmatpush1.msra.mxu0 %v4616
        %4990 = vmatprep.subr.mxu0 %v4621
        %4991 = vmatpush1.msra.mxu0 %v4620
        %4992 = vmatprep.subr.mxu0 %v4625
        %4993 = vmatpush1.msra.mxu0 %v4624
        %4994 = vmatprep.subr.mxu0 %v4629
        %4995 = vmatpush1.msra.mxu0 %v4628
        %4996 = vmatprep.subr.mxu0 %v4633
        %4997 = vmatpush1.msra.mxu0 %v4632
        %4998 = vmatprep.subr.mxu0 %v4637
        %4999 = vmatpush1.msra.mxu0 %v4636
        %5000 = vmatprep.subr.mxu0 %v4641
        %5001 = vmatpush1.msra.mxu0 %v4640
        %5002 = vmatprep.subr.mxu0 %v4645
        %5003 = vmatpush1.msra.mxu0 %v4644
        %5004 = vmatprep.subr.mxu0 %v4649
        %5005 = vmatpush1.msra.mxu0 %v4648
        %5006 = vmatprep.subr.mxu0 %v4653
        %5007 = vmatpush1.msra.mxu0 %v4652
        %5008 = vmatprep.subr.mxu0 %v4657
        %5009 = vmatpush1.msra.mxu0 %v4656
        %5010 = vmatprep.subr.mxu0 %v4661
        %5011 = vmatpush1.msra.mxu0 %v4660
        %5012 = vmatprep.subr.mxu0 %v4665
        %5013 = vmatpush1.msra.mxu0 %v4664
        %5014 = vmatprep.subr.mxu0 %v4669
        %5015 = vmatpush1.msra.mxu0 %v4668
        %5016 = vmatprep.subr.mxu0 %v4673
        %5017 = vmatpush1.msra.mxu0 %v4672
        %5018 = vmatprep.subr.mxu0 %v4677
        %5019 = vmatpush1.msra.mxu0 %v4676
        %5020 = vmatprep.subr.mxu0 %v4681
        %5021 = vmatpush1.msra.mxu0 %v4680
        %5022 = vmatprep.subr.mxu0 %v4685
        %5023 = vmatpush1.msra.mxu0 %v4684
        %5024 = vmatprep.subr.mxu0 %v4689
        %5025 = vmatpush1.msra.mxu0 %v4688
        %5026 = vmatprep.mubr.f32.mxu0 %v4304
        %5027 = vmatmul.mubr.f32.gmra.mrb[0].mxu0 %v4303
        %v5028 = vpop.f32.mrb[0].mxu0
        %v5029 = vadd.f32 %v4958, %v5028
        %v5030 = vpop.f32.mrb[0].mxu0
        %v5031 = vadd.f32 %v4960, %v5030
        %5032 = vdwg.mxu0
        %5033 = vmatprep.subr.mxu0 %v4693
        %5034 = vmatpush1.msra.mxu0 %v4692
        %5035 = vmatprep.subr.mxu0 %v4697
        %5036 = vmatpush1.msra.mxu0 %v4696
        %5037 = vmatprep.subr.mxu0 %v4701
        %5038 = vmatpush1.msra.mxu0 %v4700
        %5039 = vmatprep.subr.mxu0 %v4705
        %5040 = vmatpush1.msra.mxu0 %v4704
        %5041 = vmatprep.subr.mxu0 %v4709
        %5042 = vmatpush1.msra.mxu0 %v4708
        %5043 = vmatprep.subr.mxu0 %v4713
        %5044 = vmatpush1.msra.mxu0 %v4712
        %5045 = vmatprep.subr.mxu0 %v4717
        %5046 = vmatpush1.msra.mxu0 %v4716
        %5047 = vmatprep.subr.mxu0 %v4721
        %5048 = vmatpush1.msra.mxu0 %v4720
        %5049 = vmatprep.subr.mxu0 %v4725
        %5050 = vmatpush1.msra.mxu0 %v4724
        %5051 = vmatprep.subr.mxu0 %v4729
        %5052 = vmatpush1.msra.mxu0 %v4728
        %5053 = vmatprep.subr.mxu0 %v4733
        %5054 = vmatpush1.msra.mxu0 %v4732
        %5055 = vmatprep.subr.mxu0 %v4737
        %5056 = vmatpush1.msra.mxu0 %v4736
        %5057 = vmatprep.subr.mxu0 %v4741
        %5058 = vmatpush1.msra.mxu0 %v4740
        %5059 = vmatprep.subr.mxu0 %v4745
        %5060 = vmatpush1.msra.mxu0 %v4744
        %5061 = vmatprep.subr.mxu0 %v4749
        %5062 = vmatpush1.msra.mxu0 %v4748
        %5063 = vmatprep.subr.mxu0 %v4753
        %5064 = vmatpush1.msra.mxu0 %v4752
        %5065 = vmatprep.subr.mxu0 %v4757
        %5066 = vmatpush1.msra.mxu0 %v4756
        %5067 = vmatprep.subr.mxu0 %v4761
        %5068 = vmatpush1.msra.mxu0 %v4760
        %5069 = vmatprep.subr.mxu0 %v4765
        %5070 = vmatpush1.msra.mxu0 %v4764
        %5071 = vmatprep.subr.mxu0 %v4769
        %5072 = vmatpush1.msra.mxu0 %v4768
        %5073 = vmatprep.subr.mxu0 %v4773
        %5074 = vmatpush1.msra.mxu0 %v4772
        %5075 = vmatprep.subr.mxu0 %v4777
        %5076 = vmatpush1.msra.mxu0 %v4776
        %5077 = vmatprep.subr.mxu0 %v4781
        %5078 = vmatpush1.msra.mxu0 %v4780
        %5079 = vmatprep.subr.mxu0 %v4785
        %5080 = vmatpush1.msra.mxu0 %v4784
        %5081 = vmatprep.subr.mxu0 %v4789
        %5082 = vmatpush1.msra.mxu0 %v4788
        %5083 = vmatprep.subr.mxu0 %v4793
        %5084 = vmatpush1.msra.mxu0 %v4792
        %5085 = vmatprep.subr.mxu0 %v4797
        %5086 = vmatpush1.msra.mxu0 %v4796
        %5087 = vmatprep.subr.mxu0 %v4801
        %5088 = vmatpush1.msra.mxu0 %v4800
        %5089 = vmatprep.subr.mxu0 %v4805
        %5090 = vmatpush1.msra.mxu0 %v4804
        %5091 = vmatprep.subr.mxu0 %v4809
        %5092 = vmatpush1.msra.mxu0 %v4808
        %5093 = vmatprep.subr.mxu0 %v4813
        %5094 = vmatpush1.msra.mxu0 %v4812
        %5095 = vmatprep.subr.mxu0 %v4817
        %5096 = vmatpush1.msra.mxu0 %v4816
        %5097 = vmatprep.mubr.f32.mxu0 %v4306
        %5098 = vmatmul.mubr.f32.gmra.mrb[0].mxu0 %v4305
        %v5099 = vpop.f32.mrb[0].mxu0
        %v5100 = vadd.f32 %v5029, %v5099
        %v5101 = vpop.f32.mrb[0].mxu0
        %v5102 = vadd.f32 %v5031, %v5101
        %5103 = vdwg.mxu0
        %5104 = vmatprep.subr.mxu0 %v4311
        %5105 = vmatpush1.msra.mxu0 %v4310
        %5106 = vmatprep.subr.mxu0 %v4315
        %5107 = vmatpush1.msra.mxu0 %v4314
        %5108 = vmatprep.subr.mxu0 %v4319
        %5109 = vmatpush1.msra.mxu0 %v4318
        %5110 = vmatprep.subr.mxu0 %v4323
        %5111 = vmatpush1.msra.mxu0 %v4322
        %5112 = vmatprep.subr.mxu0 %v4327
        %5113 = vmatpush1.msra.mxu0 %v4326
        %5114 = vmatprep.subr.mxu0 %v4331
        %5115 = vmatpush1.msra.mxu0 %v4330
        %5116 = vmatprep.subr.mxu0 %v4335
        %5117 = vmatpush1.msra.mxu0 %v4334
        %5118 = vmatprep.subr.mxu0 %v4339
        %5119 = vmatpush1.msra.mxu0 %v4338
        %5120 = vmatprep.subr.mxu0 %v4343
        %5121 = vmatpush1.msra.mxu0 %v4342
        %5122 = vmatprep.subr.mxu0 %v4347
        %5123 = vmatpush1.msra.mxu0 %v4346
        %5124 = vmatprep.subr.mxu0 %v4351
        %5125 = vmatpush1.msra.mxu0 %v4350
        %5126 = vmatprep.subr.mxu0 %v4355
        %5127 = vmatpush1.msra.mxu0 %v4354
        %5128 = vmatprep.subr.mxu0 %v4359
        %5129 = vmatpush1.msra.mxu0 %v4358
        %5130 = vmatprep.subr.mxu0 %v4363
        %5131 = vmatpush1.msra.mxu0 %v4362
        %5132 = vmatprep.subr.mxu0 %v4367
        %5133 = vmatpush1.msra.mxu0 %v4366
        %5134 = vmatprep.subr.mxu0 %v4371
        %5135 = vmatpush1.msra.mxu0 %v4370
        %5136 = vmatprep.subr.mxu0 %v4375
        %5137 = vmatpush1.msra.mxu0 %v4374
        %5138 = vmatprep.subr.mxu0 %v4379
        %5139 = vmatpush1.msra.mxu0 %v4378
        %5140 = vmatprep.subr.mxu0 %v4383
        %5141 = vmatpush1.msra.mxu0 %v4382
        %5142 = vmatprep.subr.mxu0 %v4387
        %5143 = vmatpush1.msra.mxu0 %v4386
        %5144 = vmatprep.subr.mxu0 %v4391
        %5145 = vmatpush1.msra.mxu0 %v4390
        %5146 = vmatprep.subr.mxu0 %v4395
        %5147 = vmatpush1.msra.mxu0 %v4394
        %5148 = vmatprep.subr.mxu0 %v4399
        %5149 = vmatpush1.msra.mxu0 %v4398
        %5150 = vmatprep.subr.mxu0 %v4403
        %5151 = vmatpush1.msra.mxu0 %v4402
        %5152 = vmatprep.subr.mxu0 %v4407
        %5153 = vmatpush1.msra.mxu0 %v4406
        %5154 = vmatprep.subr.mxu0 %v4411
        %5155 = vmatpush1.msra.mxu0 %v4410
        %5156 = vmatprep.subr.mxu0 %v4415
        %5157 = vmatpush1.msra.mxu0 %v4414
        %5158 = vmatprep.subr.mxu0 %v4419
        %5159 = vmatpush1.msra.mxu0 %v4418
        %5160 = vmatprep.subr.mxu0 %v4423
        %5161 = vmatpush1.msra.mxu0 %v4422
        %5162 = vmatprep.subr.mxu0 %v4427
        %5163 = vmatpush1.msra.mxu0 %v4426
        %5164 = vmatprep.subr.mxu0 %v4431
        %5165 = vmatpush1.msra.mxu0 %v4430
        %5166 = vmatprep.subr.mxu0 %v4435
        %5167 = vmatpush1.msra.mxu0 %v4434
        %5168 = vmatprep.mubr.f32.mxu0 %v4300
        %5169 = vmatmul.mubr.f32.gmra.mrb[0].mxu0 %v4299
        %v5170 = vpop.f32.mrb[0].mxu0
        %v5171 = vadd.f32 0.0, %v5170
        %v5172 = vpop.f32.mrb[0].mxu0
        %v5173 = vadd.f32 0.0, %v5172
        %5174 = vdwg.mxu0
        %5175 = vmatprep.subr.mxu0 %v4439
        %5176 = vmatpush1.msra.mxu0 %v4438
        %5177 = vmatprep.subr.mxu0 %v4443
        %5178 = vmatpush1.msra.mxu0 %v4442
        %5179 = vmatprep.subr.mxu0 %v4447
        %5180 = vmatpush1.msra.mxu0 %v4446
        %5181 = vmatprep.subr.mxu0 %v4451
        %5182 = vmatpush1.msra.mxu0 %v4450
        %5183 = vmatprep.subr.mxu0 %v4455
        %5184 = vmatpush1.msra.mxu0 %v4454
        %5185 = vmatprep.subr.mxu0 %v4459
        %5186 = vmatpush1.msra.mxu0 %v4458
        %5187 = vmatprep.subr.mxu0 %v4463
        %5188 = vmatpush1.msra.mxu0 %v4462
        %5189 = vmatprep.subr.mxu0 %v4467
        %5190 = vmatpush1.msra.mxu0 %v4466
        %5191 = vmatprep.subr.mxu0 %v4471
        %5192 = vmatpush1.msra.mxu0 %v4470
        %5193 = vmatprep.subr.mxu0 %v4475
        %5194 = vmatpush1.msra.mxu0 %v4474
        %5195 = vmatprep.subr.mxu0 %v4479
        %5196 = vmatpush1.msra.mxu0 %v4478
        %5197 = vmatprep.subr.mxu0 %v4483
        %5198 = vmatpush1.msra.mxu0 %v4482
        %5199 = vmatprep.subr.mxu0 %v4487
        %5200 = vmatpush1.msra.mxu0 %v4486
        %5201 = vmatprep.subr.mxu0 %v4491
        %5202 = vmatpush1.msra.mxu0 %v4490
        %5203 = vmatprep.subr.mxu0 %v4495
        %5204 = vmatpush1.msra.mxu0 %v4494
        %5205 = vmatprep.subr.mxu0 %v4499
        %5206 = vmatpush1.msra.mxu0 %v4498
        %5207 = vmatprep.subr.mxu0 %v4503
        %5208 = vmatpush1.msra.mxu0 %v4502
        %5209 = vmatprep.subr.mxu0 %v4507
        %5210 = vmatpush1.msra.mxu0 %v4506
        %5211 = vmatprep.subr.mxu0 %v4511
        %5212 = vmatpush1.msra.mxu0 %v4510
        %5213 = vmatprep.subr.mxu0 %v4515
        %5214 = vmatpush1.msra.mxu0 %v4514
        %5215 = vmatprep.subr.mxu0 %v4519
        %5216 = vmatpush1.msra.mxu0 %v4518
        %5217 = vmatprep.subr.mxu0 %v4523
        %5218 = vmatpush1.msra.mxu0 %v4522
        %5219 = vmatprep.subr.mxu0 %v4527
        %5220 = vmatpush1.msra.mxu0 %v4526
        %5221 = vmatprep.subr.mxu0 %v4531
        %5222 = vmatpush1.msra.mxu0 %v4530
        %5223 = vmatprep.subr.mxu0 %v4535
        %5224 = vmatpush1.msra.mxu0 %v4534
        %5225 = vmatprep.subr.mxu0 %v4539
        %5226 = vmatpush1.msra.mxu0 %v4538
        %5227 = vmatprep.subr.mxu0 %v4543
        %5228 = vmatpush1.msra.mxu0 %v4542
        %5229 = vmatprep.subr.mxu0 %v4547
        %5230 = vmatpush1.msra.mxu0 %v4546
        %5231 = vmatprep.subr.mxu0 %v4551
        %5232 = vmatpush1.msra.mxu0 %v4550
        %5233 = vmatprep.subr.mxu0 %v4555
        %5234 = vmatpush1.msra.mxu0 %v4554
        %5235 = vmatprep.subr.mxu0 %v4559
        %5236 = vmatpush1.msra.mxu0 %v4558
        %5237 = vmatprep.subr.mxu0 %v4563
        %5238 = vmatpush1.msra.mxu0 %v4562
        %5239 = vmatprep.mubr.f32.mxu0 %v4302
        %5240 = vmatmul.mubr.f32.gmra.mrb[0].mxu0 %v4301
        %v5241 = vpop.f32.mrb[0].mxu0
        %v5242 = vadd.f32 %v5171, %v5241
        %v5243 = vpop.f32.mrb[0].mxu0
        %v5244 = vadd.f32 %v5173, %v5243
        %5245 = vdwg.mxu0
        %5246 = vmatprep.subr.mxu0 %v4567
        %5247 = vmatpush1.msra.mxu0 %v4566
        %5248 = vmatprep.subr.mxu0 %v4571
        %5249 = vmatpush1.msra.mxu0 %v4570
        %5250 = vmatprep.subr.mxu0 %v4575
        %5251 = vmatpush1.msra.mxu0 %v4574
        %5252 = vmatprep.subr.mxu0 %v4579
        %5253 = vmatpush1.msra.mxu0 %v4578
        %5254 = vmatprep.subr.mxu0 %v4583
        %5255 = vmatpush1.msra.mxu0 %v4582
        %5256 = vmatprep.subr.mxu0 %v4587
        %5257 = vmatpush1.msra.mxu0 %v4586
        %5258 = vmatprep.subr.mxu0 %v4591
        %5259 = vmatpush1.msra.mxu0 %v4590
        %5260 = vmatprep.subr.mxu0 %v4595
        %5261 = vmatpush1.msra.mxu0 %v4594
        %5262 = vmatprep.subr.mxu0 %v4599
        %5263 = vmatpush1.msra.mxu0 %v4598
        %5264 = vmatprep.subr.mxu0 %v4603
        %5265 = vmatpush1.msra.mxu0 %v4602
        %5266 = vmatprep.subr.mxu0 %v4607
        %5267 = vmatpush1.msra.mxu0 %v4606
        %5268 = vmatprep.subr.mxu0 %v4611
        %5269 = vmatpush1.msra.mxu0 %v4610
        %5270 = vmatprep.subr.mxu0 %v4615
        %5271 = vmatpush1.msra.mxu0 %v4614
        %5272 = vmatprep.subr.mxu0 %v4619
        %5273 = vmatpush1.msra.mxu0 %v4618
        %5274 = vmatprep.subr.mxu0 %v4623
        %5275 = vmatpush1.msra.mxu0 %v4622
        %5276 = vmatprep.subr.mxu0 %v4627
        %5277 = vmatpush1.msra.mxu0 %v4626
        %5278 = vmatprep.subr.mxu0 %v4631
        %5279 = vmatpush1.msra.mxu0 %v4630
        %5280 = vmatprep.subr.mxu0 %v4635
        %5281 = vmatpush1.msra.mxu0 %v4634
        %5282 = vmatprep.subr.mxu0 %v4639
        %5283 = vmatpush1.msra.mxu0 %v4638
        %5284 = vmatprep.subr.mxu0 %v4643
        %5285 = vmatpush1.msra.mxu0 %v4642
        %5286 = vmatprep.subr.mxu0 %v4647
        %5287 = vmatpush1.msra.mxu0 %v4646
        %5288 = vmatprep.subr.mxu0 %v4651
        %5289 = vmatpush1.msra.mxu0 %v4650
        %5290 = vmatprep.subr.mxu0 %v4655
        %5291 = vmatpush1.msra.mxu0 %v4654
        %5292 = vmatprep.subr.mxu0 %v4659
        %5293 = vmatpush1.msra.mxu0 %v4658
        %5294 = vmatprep.subr.mxu0 %v4663
        %5295 = vmatpush1.msra.mxu0 %v4662
        %5296 = vmatprep.subr.mxu0 %v4667
        %5297 = vmatpush1.msra.mxu0 %v4666
        %5298 = vmatprep.subr.mxu0 %v4671
        %5299 = vmatpush1.msra.mxu0 %v4670
        %5300 = vmatprep.subr.mxu0 %v4675
        %5301 = vmatpush1.msra.mxu0 %v4674
        %5302 = vmatprep.subr.mxu0 %v4679
        %5303 = vmatpush1.msra.mxu0 %v4678
        %5304 = vmatprep.subr.mxu0 %v4683
        %5305 = vmatpush1.msra.mxu0 %v4682
        %5306 = vmatprep.subr.mxu0 %v4687
        %5307 = vmatpush1.msra.mxu0 %v4686
        %5308 = vmatprep.subr.mxu0 %v4691
        %5309 = vmatpush1.msra.mxu0 %v4690
        %5310 = vmatprep.mubr.f32.mxu0 %v4304
        %5311 = vmatmul.mubr.f32.gmra.mrb[0].mxu0 %v4303
        %v5312 = vpop.f32.mrb[0].mxu0
        %v5313 = vadd.f32 %v5242, %v5312
        %v5314 = vpop.f32.mrb[0].mxu0
        %v5315 = vadd.f32 %v5244, %v5314
        %5316 = vdwg.mxu0
        %5317 = vmatprep.subr.mxu0 %v4695
        %5318 = vmatpush1.msra.mxu0 %v4694
        %5319 = vmatprep.subr.mxu0 %v4699
        %5320 = vmatpush1.msra.mxu0 %v4698
        %5321 = vmatprep.subr.mxu0 %v4703
        %5322 = vmatpush1.msra.mxu0 %v4702
        %5323 = vmatprep.subr.mxu0 %v4707
        %5324 = vmatpush1.msra.mxu0 %v4706
        %5325 = vmatprep.subr.mxu0 %v4711
        %5326 = vmatpush1.msra.mxu0 %v4710
        %5327 = vmatprep.subr.mxu0 %v4715
        %5328 = vmatpush1.msra.mxu0 %v4714
        %5329 = vmatprep.subr.mxu0 %v4719
        %5330 = vmatpush1.msra.mxu0 %v4718
        %5331 = vmatprep.subr.mxu0 %v4723
        %5332 = vmatpush1.msra.mxu0 %v4722
        %5333 = vmatprep.subr.mxu0 %v4727
        %5334 = vmatpush1.msra.mxu0 %v4726
        %5335 = vmatprep.subr.mxu0 %v4731
        %5336 = vmatpush1.msra.mxu0 %v4730
        %5337 = vmatprep.subr.mxu0 %v4735
        %5338 = vmatpush1.msra.mxu0 %v4734
        %5339 = vmatprep.subr.mxu0 %v4739
        %5340 = vmatpush1.msra.mxu0 %v4738
        %5341 = vmatprep.subr.mxu0 %v4743
        %5342 = vmatpush1.msra.mxu0 %v4742
        %5343 = vmatprep.subr.mxu0 %v4747
        %5344 = vmatpush1.msra.mxu0 %v4746
        %5345 = vmatprep.subr.mxu0 %v4751
        %5346 = vmatpush1.msra.mxu0 %v4750
        %5347 = vmatprep.subr.mxu0 %v4755
        %5348 = vmatpush1.msra.mxu0 %v4754
        %5349 = vmatprep.subr.mxu0 %v4759
        %5350 = vmatpush1.msra.mxu0 %v4758
        %5351 = vmatprep.subr.mxu0 %v4763
        %5352 = vmatpush1.msra.mxu0 %v4762
        %5353 = vmatprep.subr.mxu0 %v4767
        %5354 = vmatpush1.msra.mxu0 %v4766
        %5355 = vmatprep.subr.mxu0 %v4771
        %5356 = vmatpush1.msra.mxu0 %v4770
        %5357 = vmatprep.subr.mxu0 %v4775
        %5358 = vmatpush1.msra.mxu0 %v4774
        %5359 = vmatprep.subr.mxu0 %v4779
        %5360 = vmatpush1.msra.mxu0 %v4778
        %5361 = vmatprep.subr.mxu0 %v4783
        %5362 = vmatpush1.msra.mxu0 %v4782
        %5363 = vmatprep.subr.mxu0 %v4787
        %5364 = vmatpush1.msra.mxu0 %v4786
        %5365 = vmatprep.subr.mxu0 %v4791
        %5366 = vmatpush1.msra.mxu0 %v4790
        %5367 = vmatprep.subr.mxu0 %v4795
        %5368 = vmatpush1.msra.mxu0 %v4794
        %5369 = vmatprep.subr.mxu0 %v4799
        %5370 = vmatpush1.msra.mxu0 %v4798
        %5371 = vmatprep.subr.mxu0 %v4803
        %5372 = vmatpush1.msra.mxu0 %v4802
        %5373 = vmatprep.subr.mxu0 %v4807
        %5374 = vmatpush1.msra.mxu0 %v4806
        %5375 = vmatprep.subr.mxu0 %v4811
        %5376 = vmatpush1.msra.mxu0 %v4810
        %5377 = vmatprep.subr.mxu0 %v4815
        %5378 = vmatpush1.msra.mxu0 %v4814
        %5379 = vmatprep.subr.mxu0 %v4819
        %5380 = vmatpush1.msra.mxu0 %v4818
        %5381 = vmatprep.mubr.f32.mxu0 %v4306
        %5382 = vmatmul.mubr.f32.gmra.mrb[0].mxu0 %v4305
        %v5383 = vpop.f32.mrb[0].mxu0
        %v5384 = vadd.f32 %v5313, %v5383
        %v5385 = vpop.f32.mrb[0].mxu0
        %v5386 = vadd.f32 %v5315, %v5385
        %5387 = vdwg.mxu0
        %v5392 = vcombine.low %v5100, %v5102
        %v5393 = vcombine.low %v5384, %v5386
        %v5395 = vunpack.c.l.s4 1983009808
        %v5396 = vunpack.c.0.s8 %v5395
        %v5397 = vlaneseq
        %v5398 = vshrl.u32 %v5397, 7
        %v5399 = vsub.s32 %v5396, %v5398
        %v5400 = vrot.slane %v5392, %v5399
        %v5402 = vunpack.c.l.s4 1983009808
        %v5403 = vunpack.c.0.s8 %v5402
        %v5404 = vlaneseq
        %v5405 = vshrl.u32 %v5404, 7
        %v5406 = vsub.s32 %v5403, %v5405
        %v5407 = vrot.slane %v5393, %v5406
        %v5408 = vcombine.low %v5400, %v5407
        %v5410 = vadd.f32 %v4307, %v5408
        %5411 = vst [vmem:[#allocation3] sm:$0xff] %v5410
        %p5412 = scmp.eq.s32.totalorder %s57, 3
        // Predicated region
        $region217: #{tpu_custom_call.1} parent=123 // pred_check
          %p5413 = pneg %p5412
        $region218: #{tpu_custom_call.1} parent=123 // pred_check_branch
          %5415 = sbr.rel (%p5413) target = $region220
        $region219: #{tpu_custom_call.1} parent=123 // pred_region
          %v5416 = vld [vmem:[#allocation3] sm:$0xff]
          %v5417 = vld [vmem:[#allocation36] sm:$0xf]
          %v5419 = vlaneseq
          %v5420 = vshrl.u32 %v5419, 7
          %v5421 = vsub.s32 0, %v5420
          %v5422 = vrot.slane %v5417, %v5421
          %v5423 = vlaneseq
          %v5424 = vshrl.u32 %v5423, 7
          %v5425 = vsub.s32 1, %v5424
          %v5426 = vrot.slane %v5417, %v5425
          %v5427 = vlaneseq
          %v5428 = vshrl.u32 %v5427, 7
          %v5429 = vsub.s32 2, %v5428
          %v5430 = vrot.slane %v5417, %v5429
          %v5431 = vlaneseq
          %v5432 = vshrl.u32 %v5431, 7
          %v5433 = vsub.s32 3, %v5432
          %v5434 = vrot.slane %v5417, %v5433
          %v5435 = vcombine.low %v5422, %v5426
          %v5436 = vcombine.low %v5430, %v5434
          %v5438 = vunpack.c.l.s4 1983009808
          %v5439 = vunpack.c.0.s8 %v5438
          %v5440 = vlaneseq
          %v5441 = vshrl.u32 %v5440, 7
          %v5442 = vsub.s32 %v5439, %v5441
          %v5443 = vrot.slane %v5435, %v5442
          %v5445 = vunpack.c.l.s4 1983009808
          %v5446 = vunpack.c.0.s8 %v5445
          %v5447 = vlaneseq
          %v5448 = vshrl.u32 %v5447, 7
          %v5449 = vsub.s32 %v5446, %v5448
          %v5450 = vrot.slane %v5436, %v5449
          %v5451 = vcombine.low %v5443, %v5450
          %v5453 = vadd.f32 %v5416, %v5451
          %v5454 = vmax.f32 %v5453, 0.0
          %5455 = vst [vmem:[#allocation40] sm:$0xff] %v5454
          %v5456 = vld [vmem:[%s24] sm:$0xff]
          %v5457 = vld [vmem:[%s24 + $0x8] sm:$0xff]
          %v5458 = vld [vmem:[%s24 + $0x10] sm:$0xff]
          %v5459 = vld [vmem:[%s24 + $0x18] sm:$0xff]
          %v5460 = vld [vmem:[%s24 + $0x20] sm:$0xff]
          %v5461 = vld [vmem:[%s24 + $0x28] sm:$0xff]
          %v5462 = vld [vmem:[%s24 + $0x30] sm:$0xff]
          %v5463 = vld [vmem:[%s24 + $0x38] sm:$0xff]
          %v5464 = vld [vmem:[%s24 + $0x40] sm:$0xff]
          %v5465 = vld [vmem:[%s24 + $0x48] sm:$0xff]
          %v5466 = vld [vmem:[%s24 + $0x50] sm:$0xff]
          %v5467 = vld [vmem:[%s24 + $0x58] sm:$0xff]
          %v5468 = vld [vmem:[%s24 + $0x60] sm:$0xff]
          %v5469 = vld [vmem:[%s24 + $0x68] sm:$0xff]
          %v5470 = vld [vmem:[%s24 + $0x70] sm:$0xff]
          %v5471 = vld [vmem:[%s24 + $0x78] sm:$0xff]
          %v5472 = vld [vmem:[%s24 + $0x80] sm:$0xff]
          %v5473 = vld [vmem:[%s24 + $0x88] sm:$0xff]
          %v5474 = vld [vmem:[%s24 + $0x90] sm:$0xff]
          %v5475 = vld [vmem:[%s24 + $0x98] sm:$0xff]
          %v5476 = vld [vmem:[%s24 + $0xa0] sm:$0xff]
          %v5477 = vld [vmem:[%s24 + $0xa8] sm:$0xff]
          %v5478 = vld [vmem:[%s24 + $0xb0] sm:$0xff]
          %v5479 = vld [vmem:[%s24 + $0xb8] sm:$0xff]
          %v5480 = vld [vmem:[%s24 + $0xc0] sm:$0xff]
          %v5481 = vld [vmem:[%s24 + $0xc8] sm:$0xff]
          %v5482 = vld [vmem:[%s24 + $0xd0] sm:$0xff]
          %v5483 = vld [vmem:[%s24 + $0xd8] sm:$0xff]
          %v5484 = vld [vmem:[%s24 + $0xe0] sm:$0xff]
          %v5485 = vld [vmem:[%s24 + $0xe8] sm:$0xff]
          %v5486 = vld [vmem:[%s24 + $0xf0] sm:$0xff]
          %v5487 = vld [vmem:[%s24 + $0xf8] sm:$0xff]
          %v5488 = vld [vmem:[%s24 + $0x100] sm:$0xff]
          %v5489 = vld [vmem:[%s24 + $0x108] sm:$0xff]
          %v5490 = vld [vmem:[%s24 + $0x110] sm:$0xff]
          %v5491 = vld [vmem:[%s24 + $0x118] sm:$0xff]
          %v5492 = vld [vmem:[%s24 + $0x120] sm:$0xff]
          %v5493 = vld [vmem:[%s24 + $0x128] sm:$0xff]
          %v5494 = vld [vmem:[%s24 + $0x130] sm:$0xff]
          %v5495 = vld [vmem:[%s24 + $0x138] sm:$0xff]
          %v5496 = vld [vmem:[%s24 + $0x140] sm:$0xff]
          %v5497 = vld [vmem:[%s24 + $0x148] sm:$0xff]
          %v5498 = vld [vmem:[%s24 + $0x150] sm:$0xff]
          %v5499 = vld [vmem:[%s24 + $0x158] sm:$0xff]
          %v5500 = vld [vmem:[%s24 + $0x160] sm:$0xff]
          %v5501 = vld [vmem:[%s24 + $0x168] sm:$0xff]
          %v5502 = vld [vmem:[%s24 + $0x170] sm:$0xff]
          %v5503 = vld [vmem:[%s24 + $0x178] sm:$0xff]
          %v5504 = vld [vmem:[%s24 + $0x180] sm:$0xff]
          %v5505 = vld [vmem:[%s24 + $0x188] sm:$0xff]
          %v5506 = vld [vmem:[%s24 + $0x190] sm:$0xff]
          %v5507 = vld [vmem:[%s24 + $0x198] sm:$0xff]
          %v5508 = vld [vmem:[%s24 + $0x1a0] sm:$0xff]
          %v5509 = vld [vmem:[%s24 + $0x1a8] sm:$0xff]
          %v5510 = vld [vmem:[%s24 + $0x1b0] sm:$0xff]
          %v5511 = vld [vmem:[%s24 + $0x1b8] sm:$0xff]
          %v5512 = vld [vmem:[%s24 + $0x1c0] sm:$0xff]
          %v5513 = vld [vmem:[%s24 + $0x1c8] sm:$0xff]
          %v5514 = vld [vmem:[%s24 + $0x1d0] sm:$0xff]
          %v5515 = vld [vmem:[%s24 + $0x1d8] sm:$0xff]
          %v5516 = vld [vmem:[%s24 + $0x1e0] sm:$0xff]
          %v5517 = vld [vmem:[%s24 + $0x1e8] sm:$0xff]
          %v5518 = vld [vmem:[%s24 + $0x1f0] sm:$0xff]
          %v5519 = vld [vmem:[%s24 + $0x1f8] sm:$0xff]
          %v5520 = vld [vmem:[#allocation37] sm:$0x1]
          %v5522 = vlaneseq
          %v5523 = vshrl.u32 %v5522, 7
          %v5524 = vsub.s32 0, %v5523
          %v5525 = vrot.slane %v5520, %v5524
          %v5528 = vcombine.high %v5454, %v5454
          %v5530 = vunpack.c.l.s4 1983009808
          %v5531 = vunpack.c.0.s8 %v5530
          %v5532 = vlaneseq
          %v5533 = vshrl.u32 %v5532, 7
          %v5534 = vsub.s32 %v5531, %v5533
          %v5535 = vrot.slane %v5454, %v5534
          %v5537 = vunpack.c.l.s4 1983009808
          %v5538 = vunpack.c.0.s8 %v5537
          %v5539 = vlaneseq
          %v5540 = vshrl.u32 %v5539, 7
          %v5541 = vsub.s32 %v5538, %v5540
          %v5542 = vrot.slane %v5528, %v5541
          %v5543 = vcombine.high %v5535, %v5535
          %v5544 = vcombine.high %v5542, %v5542
          %5549 = vmatprep.subr.mxu0 0.0
          %5550 = vmatpush1.msra.mxu0 %v5456
          %5551 = vmatprep.subr.mxu0 0.0
          %5552 = vmatpush1.msra.mxu0 %v5457
          %5553 = vmatprep.subr.mxu0 0.0
          %5554 = vmatpush1.msra.mxu0 %v5458
          %5555 = vmatprep.subr.mxu0 0.0
          %5556 = vmatpush1.msra.mxu0 %v5459
          %5557 = vmatprep.subr.mxu0 0.0
          %5558 = vmatpush1.msra.mxu0 %v5460
          %5559 = vmatprep.subr.mxu0 0.0
          %5560 = vmatpush1.msra.mxu0 %v5461
          %5561 = vmatprep.subr.mxu0 0.0
          %5562 = vmatpush1.msra.mxu0 %v5462
          %5563 = vmatprep.subr.mxu0 0.0
          %5564 = vmatpush1.msra.mxu0 %v5463
          %5565 = vmatprep.subr.mxu0 0.0
          %5566 = vmatpush1.msra.mxu0 %v5464
          %5567 = vmatprep.subr.mxu0 0.0
          %5568 = vmatpush1.msra.mxu0 %v5465
          %5569 = vmatprep.subr.mxu0 0.0
          %5570 = vmatpush1.msra.mxu0 %v5466
          %5571 = vmatprep.subr.mxu0 0.0
          %5572 = vmatpush1.msra.mxu0 %v5467
          %5573 = vmatprep.subr.mxu0 0.0
          %5574 = vmatpush1.msra.mxu0 %v5468
          %5575 = vmatprep.subr.mxu0 0.0
          %5576 = vmatpush1.msra.mxu0 %v5469
          %5577 = vmatprep.subr.mxu0 0.0
          %5578 = vmatpush1.msra.mxu0 %v5470
          %5579 = vmatprep.subr.mxu0 0.0
          %5580 = vmatpush1.msra.mxu0 %v5471
          %5581 = vmatprep.subr.mxu0 0.0
          %5582 = vmatpush1.msra.mxu0 %v5472
          %5583 = vmatprep.subr.mxu0 0.0
          %5584 = vmatpush1.msra.mxu0 %v5473
          %5585 = vmatprep.subr.mxu0 0.0
          %5586 = vmatpush1.msra.mxu0 %v5474
          %5587 = vmatprep.subr.mxu0 0.0
          %5588 = vmatpush1.msra.mxu0 %v5475
          %5589 = vmatprep.subr.mxu0 0.0
          %5590 = vmatpush1.msra.mxu0 %v5476
          %5591 = vmatprep.subr.mxu0 0.0
          %5592 = vmatpush1.msra.mxu0 %v5477
          %5593 = vmatprep.subr.mxu0 0.0
          %5594 = vmatpush1.msra.mxu0 %v5478
          %5595 = vmatprep.subr.mxu0 0.0
          %5596 = vmatpush1.msra.mxu0 %v5479
          %5597 = vmatprep.subr.mxu0 0.0
          %5598 = vmatpush1.msra.mxu0 %v5480
          %5599 = vmatprep.subr.mxu0 0.0
          %5600 = vmatpush1.msra.mxu0 %v5481
          %5601 = vmatprep.subr.mxu0 0.0
          %5602 = vmatpush1.msra.mxu0 %v5482
          %5603 = vmatprep.subr.mxu0 0.0
          %5604 = vmatpush1.msra.mxu0 %v5483
          %5605 = vmatprep.subr.mxu0 0.0
          %5606 = vmatpush1.msra.mxu0 %v5484
          %5607 = vmatprep.subr.mxu0 0.0
          %5608 = vmatpush1.msra.mxu0 %v5485
          %5609 = vmatprep.subr.mxu0 0.0
          %5610 = vmatpush1.msra.mxu0 %v5486
          %5611 = vmatprep.subr.mxu0 0.0
          %5612 = vmatpush1.msra.mxu0 %v5487
          %5613 = vmatprep.mubr.f32.mxu0 %v5543
          %5614 = vmatmul.mubr.f32.gmra.mrb[0].mxu0 %v5535
          %v5615 = vpop.f32.mrb[0].mxu0
          %v5616 = vadd.f32 %v5525, %v5615
          %v5617 = vpop.f32.mrb[0].mxu0
          %5618 = vdwg.mxu0
          %5619 = vmatprep.subr.mxu0 0.0
          %5620 = vmatpush1.msra.mxu0 %v5488
          %5621 = vmatprep.subr.mxu0 0.0
          %5622 = vmatpush1.msra.mxu0 %v5489
          %5623 = vmatprep.subr.mxu0 0.0
          %5624 = vmatpush1.msra.mxu0 %v5490
          %5625 = vmatprep.subr.mxu0 0.0
          %5626 = vmatpush1.msra.mxu0 %v5491
          %5627 = vmatprep.subr.mxu0 0.0
          %5628 = vmatpush1.msra.mxu0 %v5492
          %5629 = vmatprep.subr.mxu0 0.0
          %5630 = vmatpush1.msra.mxu0 %v5493
          %5631 = vmatprep.subr.mxu0 0.0
          %5632 = vmatpush1.msra.mxu0 %v5494
          %5633 = vmatprep.subr.mxu0 0.0
          %5634 = vmatpush1.msra.mxu0 %v5495
          %5635 = vmatprep.subr.mxu0 0.0
          %5636 = vmatpush1.msra.mxu0 %v5496
          %5637 = vmatprep.subr.mxu0 0.0
          %5638 = vmatpush1.msra.mxu0 %v5497
          %5639 = vmatprep.subr.mxu0 0.0
          %5640 = vmatpush1.msra.mxu0 %v5498
          %5641 = vmatprep.subr.mxu0 0.0
          %5642 = vmatpush1.msra.mxu0 %v5499
          %5643 = vmatprep.subr.mxu0 0.0
          %5644 = vmatpush1.msra.mxu0 %v5500
          %5645 = vmatprep.subr.mxu0 0.0
          %5646 = vmatpush1.msra.mxu0 %v5501
          %5647 = vmatprep.subr.mxu0 0.0
          %5648 = vmatpush1.msra.mxu0 %v5502
          %5649 = vmatprep.subr.mxu0 0.0
          %5650 = vmatpush1.msra.mxu0 %v5503
          %5651 = vmatprep.subr.mxu0 0.0
          %5652 = vmatpush1.msra.mxu0 %v5504
          %5653 = vmatprep.subr.mxu0 0.0
          %5654 = vmatpush1.msra.mxu0 %v5505
          %5655 = vmatprep.subr.mxu0 0.0
          %5656 = vmatpush1.msra.mxu0 %v5506
          %5657 = vmatprep.subr.mxu0 0.0
          %5658 = vmatpush1.msra.mxu0 %v5507
          %5659 = vmatprep.subr.mxu0 0.0
          %5660 = vmatpush1.msra.mxu0 %v5508
          %5661 = vmatprep.subr.mxu0 0.0
          %5662 = vmatpush1.msra.mxu0 %v5509
          %5663 = vmatprep.subr.mxu0 0.0
          %5664 = vmatpush1.msra.mxu0 %v5510
          %5665 = vmatprep.subr.mxu0 0.0
          %5666 = vmatpush1.msra.mxu0 %v5511
          %5667 = vmatprep.subr.mxu0 0.0
          %5668 = vmatpush1.msra.mxu0 %v5512
          %5669 = vmatprep.subr.mxu0 0.0
          %5670 = vmatpush1.msra.mxu0 %v5513
          %5671 = vmatprep.subr.mxu0 0.0
          %5672 = vmatpush1.msra.mxu0 %v5514
          %5673 = vmatprep.subr.mxu0 0.0
          %5674 = vmatpush1.msra.mxu0 %v5515
          %5675 = vmatprep.subr.mxu0 0.0
          %5676 = vmatpush1.msra.mxu0 %v5516
          %5677 = vmatprep.subr.mxu0 0.0
          %5678 = vmatpush1.msra.mxu0 %v5517
          %5679 = vmatprep.subr.mxu0 0.0
          %5680 = vmatpush1.msra.mxu0 %v5518
          %5681 = vmatprep.subr.mxu0 0.0
          %5682 = vmatpush1.msra.mxu0 %v5519
          %5683 = vmatprep.mubr.f32.mxu0 %v5544
          %5684 = vmatmul.mubr.f32.gmra.mrb[0].mxu0 %v5542
          %v5685 = vpop.f32.mrb[0].mxu0
          %v5686 = vadd.f32 %v5616, %v5685
          %v5687 = vpop.f32.mrb[0].mxu0
          %5688 = vdwg.mxu0
          %v5689 = vtanh.pop %v5686
          %vm5690 = vcmask 254976
          %5691 = vst.msk [vmem:[#allocation39] sm:$0x3] %vm5690, %v5689
        $region220: #{tpu_custom_call.1} parent=123 // pred_fallthru
          _
        // Predicated region
        $region221: #{tpu_custom_call.1} parent=123 // pred_check
          %p5692 = pneg %p631
        $region222: #{tpu_custom_call.1} parent=123 // pred_check_branch
          %5694 = sbr.rel (%p5692) target = $region224
        $region223: #{tpu_custom_call.1} parent=123 // pred_region
          %s5696 = ssub.s32 32, 32
          %5697 = vsyncadd [#allocation6], %s5696
          %s5699 = sshll.u32 [#allocation39], 4
          %s5700 = int_to_ptr.vmem [resolvable:$true] %s5699
          %5702 = dma.vmem_to_hbm [thread:$0]  %s5700, 32, %s26, [#allocation6]
        $region224: #{tpu_custom_call.1} parent=123 // pred_fallthru
          _
        // Predicated region
        $region225: #{tpu_custom_call.1} parent=123 // pred_check
          %p5703 = pneg %p652
        $region226: #{tpu_custom_call.1} parent=123 // pred_check_branch
          %5705 = sbr.rel (%p5703) target = $region228
        $region227: #{tpu_custom_call.1} parent=123 // pred_region
          %s5707 = ssub.s32 128, 128
          %5708 = vsyncadd [#allocation41], %s5707
          %s5710 = sshll.u32 [#allocation40], 4
          %s5711 = int_to_ptr.vmem [resolvable:$true] %s5710
          %5713 = dma.vmem_to_hbm [thread:$0]  %s5711, 128, %s27, [#allocation41]
        $region228: #{tpu_custom_call.1} parent=123 // pred_fallthru
          _
        // Predicated region
        $region229: #{tpu_custom_call.1} parent=123 // pred_check
          %p5714 = pneg %p631
        $region230: #{tpu_custom_call.1} parent=123 // pred_check_branch
          %5716 = sbr.rel (%p5714) target = $region232
        $region231: #{tpu_custom_call.1} parent=123 // pred_region
          %5717 = dma.done [#allocation6], 32
        $region232: #{tpu_custom_call.1} parent=123 // pred_fallthru
          _
        // Predicated region
        $region233: #{tpu_custom_call.1} parent=123 // pred_check
          %p5718 = pneg %p652
        $region234: #{tpu_custom_call.1} parent=123 // pred_check_branch
          %5720 = sbr.rel (%p5718) target = $region236
        $region235: #{tpu_custom_call.1} parent=123 // pred_region
          %5721 = dma.done [#allocation41], 128
        $region236: #{tpu_custom_call.1} parent=123 // pred_fallthru
          _
      $region124: #{tpu_custom_call.1} parent=5 // pred_fallthru
        _
      %p5722 = scmp.le.s32.totalorder 2, %s52
      // Predicated region
      $region237: #{tpu_custom_call.1} parent=5 // pred_check
        %p5723 = pneg %p5722
      $region238: #{tpu_custom_call.1} parent=5 // pred_check_branch
        %5725 = sbr.rel (%p5723) target = $region240
      $region239: #{tpu_custom_call.1} parent=5 // pred_region
        %s5726 = ssub.s32 %s52, 2
      $region240: #{tpu_custom_call.1} parent=5 // pred_fallthru
        _
    $region6: #{tpu_custom_call.1} parent=1 // loop_footer
      %s56 = sadd.s32 1, %s52
    $region7: #{tpu_custom_call.1} parent=1 // loop_footer_branch
      %51 = sbr.rel target = $region3
    $region8: #{tpu_custom_call.1} parent=1 // loop_exit
      _
    %5727 = vsyncpa [#allocation5], 1
    %s5728 = scalar_lea.sflag [#allocation5], 1
    %5729 = vsyncpa %s5728, 1
    %5730 = vsyncpa [#allocation8], 1
    %5731 = vsyncpa [#allocation11], 1
    %5732 = vsyncpa [#allocation14], 1
    %5733 = vsyncpa [#allocation17], 1
    %5734 = vsyncpa [#allocation20], 1
    %5735 = vsyncpa [#allocation23], 1
    %5736 = vsyncpa [#allocation26], 1
    %5737 = vsyncpa [#allocation29], 1
    %5738 = vsyncpa [#allocation32], 1
    %s5739 = scalar_lea.sflag [#allocation32], 1
    %5740 = vsyncpa %s5739, 1
    %5741 = vsyncpa [#allocation35], 1
    %s5742 = scalar_lea.sflag [#allocation35], 1
    %5743 = vsyncpa %s5742, 1
    %5744 = vsyncpa [#allocation38], 1
    %5745 = vsyncpa [#allocation6], 1
    %s5746 = scalar_lea.sflag [#allocation6], 1
    %5747 = vsyncpa %s5746, 1
    %5748 = vsyncpa [#allocation41], 1

</llo_original>
